<compile_context>
chip_gen: v7x
topology: tpu7x:2x2x1
jax: 0.10.0
libtpu: 0.0.40
codegen_flags: <defaults>
</compile_context>

<pallas_src>
import functools

import jax
import jax.numpy as jnp
from jax import lax
from jax.experimental import pallas as pl
from jax.experimental.pallas import tpu as pltpu


# ----------------------------------------------------------------------------
# In-kernel helpers (all pure jnp on values held in vregs/VMEM)
# ----------------------------------------------------------------------------
def _shift_matrix(L, d):
    """[L, L] 0/1 matrix M with (M @ v)[p] = v[p + d] (zero outside range)."""
    rows = lax.broadcasted_iota(jnp.int32, (L, L), 0)
    cols = lax.broadcasted_iota(jnp.int32, (L, L), 1)
    return (cols == rows + d).astype(jnp.float32)


def _stride2_tap_matrix(L, d):
    """[L//2, L] 0/1 matrix C with (C @ v)[o] = v[2*o + d] (zero outside range)."""
    Lo = L // 2
    rows = lax.broadcasted_iota(jnp.int32, (Lo, L), 0)
    cols = lax.broadcasted_iota(jnp.int32, (Lo, L), 1)
    return (cols == 2 * rows + d).astype(jnp.float32)


def _conv3_s1(v, w_ref, b_ref):
    """K=3, stride-1, pad-1 Conv1d in channels-last layout.

    v: [L, C_in], w_ref: [3, C_in, C_out], b_ref: [1, C_out] -> [L, C_out].
    """
    L = v.shape[0]
    acc = None
    for k in range(3):
        d = k - 1
        sv = v if d == 0 else jnp.dot(
            _shift_matrix(L, d), v, preferred_element_type=jnp.float32)
        term = jnp.dot(sv, w_ref[k], preferred_element_type=jnp.float32)
        acc = term if acc is None else acc + term
    return acc + b_ref[...]


def _conv3_s2(v, w_ref, b_ref):
    """K=3, stride-2, pad-1 Conv1d producing [L//2, C_out] directly."""
    L = v.shape[0]
    acc = None
    for k in range(3):
        d = k - 1
        sv = jnp.dot(_stride2_tap_matrix(L, d), v,
                     preferred_element_type=jnp.float32)
        term = jnp.dot(sv, w_ref[k], preferred_element_type=jnp.float32)
        acc = term if acc is None else acc + term
    return acc + b_ref[...]


def _downsample2(v):
    """Take even rows: [L, C] -> [L//2, C] (selection matmul, no strided slice)."""
    return jnp.dot(_stride2_tap_matrix(v.shape[0], 0), v,
                   preferred_element_type=jnp.float32)


def _make_fused_kernel(channels, batch, context_size):
    n_blocks = len(channels) - 1

    def kernel(*refs):
        it = iter(refs)
        x_ref = next(it)                                               # [B, T, C_in]
        block_refs = [tuple(next(it) for _ in range(4)) for _ in range(n_blocks)]
        wml_ref = next(it)                                             # [2T, 2*ctx]
        bml_ref = next(it)                                             # [1, 2*ctx]
        mu_ref = next(it)                                              # [B, ctx]
        sd_ref = next(it)                                              # [B, ctx]

        for b in range(batch):          # tiny static batch; fully unrolled
            h = x_ref[b].astype(jnp.float32)      # [T, C_in], channels-last
            for li, (w1c_ref, b1c_ref, w2_ref, b2_ref) in enumerate(block_refs):
                c_out = channels[li + 1]
                # merged (conv1 | shortcut) stride-1 matmul over the shared input
                y = _conv3_s1(h, w1c_ref, b1c_ref)       # [L, 2*c_out]
                cb = jnp.maximum(y[:, :c_out], 0.0)      # conv1 + ReLU (dropout=id)
                sc = _downsample2(y[:, c_out:])          # shortcut conv @ stride 2
                cb2 = _conv3_s2(cb, w2_ref, b2_ref)      # conv2 @ stride 2
                h = jnp.maximum(cb2 + sc, 0.0)           # residual add + ReLU
            # h: [1, 2*temporal_hidden]  (sequence reduced to length 1)
            z = jnp.dot(h, wml_ref[...],
                        preferred_element_type=jnp.float32) + bml_ref[...]
            mu = z[:, :context_size]
            lv = z[:, context_size:]
            # softplus (matches F.softplus threshold semantics) then clamp
            sp = jnp.where(lv > 20.0, lv,
                           jnp.log(1.0 + jnp.exp(jnp.minimum(lv, 20.0))))
            sd = jnp.clip(sp, 1e-5, 5.0)
            mu_ref[pl.ds(b, 1), :] = mu.astype(mu_ref.dtype)
            sd_ref[pl.ds(b, 1), :] = sd.astype(sd_ref.dtype)

    return kernel


# ----------------------------------------------------------------------------
# Wrapper: one pallas_call for the whole forward
# ----------------------------------------------------------------------------
def context_conv_forward(params, x):
    """x: [num_timesteps, batch, input_size] -> ((mu, sd), z), eval mode."""
    T, B, D = x.shape
    channels = params["channels"]
    ctx = params["context_size"]
    xb = jnp.transpose(x, (1, 0, 2)).astype(jnp.float32)   # [B, T, C_in] once, at entry

    inputs = [xb]
    for blk in params["blocks"]:
        inputs += [blk["w1c"], blk["b1c"], blk["w2"], blk["b2"]]
    inputs += [params["wml"], params["bml"]]

    kernel = _make_fused_kernel(tuple(channels), B, ctx)
    vmem_spec = lambda: pl.BlockSpec(memory_space=pltpu.MemorySpace.VMEM)
    mu, sd = pl.pallas_call(
        kernel,
        out_shape=(jax.ShapeDtypeStruct((B, ctx), jnp.float32),
                   jax.ShapeDtypeStruct((B, ctx), jnp.float32)),
        in_specs=[vmem_spec() for _ in inputs],
        out_specs=(vmem_spec(), vmem_spec()),
        compiler_params=pltpu.CompilerParams(vmem_limit_bytes=32 * 1024 * 1024),
    )(*inputs)
    z = mu  # eval mode: Normal(mu, sd).mean == mu
    return (mu, sd), z


# ----------------------------------------------------------------------------
# Parameters (kaiming-normal conv weights, zero conv bias), packed once for
# the kernel (channels-last [3, C_in, C_out], conv1+shortcut merged, mu+lv merged)
# ----------------------------------------------------------------------------
def _kaiming_normal(key, c_out, c_in, k):
    fan_in = c_in * k
    std = (2.0 / fan_in) ** 0.5
    return jax.random.normal(key, (c_out, c_in, k), jnp.float32) * std


def make_params(key, input_size, temporal_hidden_size, context_size):
    channels = [input_size] + [int(2 * temporal_hidden_size / 2 ** i)
                               for i in range(4, -1, -1)]
    two_t = 2 * temporal_hidden_size
    keys = jax.random.split(key, 4 * (len(channels) - 1) + 4)
    ki = 0
    raw_blocks, packed_blocks = [], []
    in_c = channels[0]
    for out_c in channels[1:]:
        cb_w1 = _kaiming_normal(keys[ki], out_c, in_c, 3); ki += 1
        cb_b1 = jnp.zeros((out_c,), jnp.float32)
        cb_w2 = _kaiming_normal(keys[ki], out_c, out_c, 3); ki += 1
        cb_b2 = jnp.zeros((out_c,), jnp.float32)
        rb_w2 = _kaiming_normal(keys[ki], out_c, in_c, 3); ki += 1
        rb_b2 = jnp.zeros((out_c,), jnp.float32)
        raw_blocks.append(dict(cb_w1=cb_w1, cb_b1=cb_b1, cb_w2=cb_w2, cb_b2=cb_b2,
                               rb_w2=rb_w2, rb_b2=rb_b2))
        # kernel layout: [3, C_in, C_out]; conv1 and shortcut merged along C_out
        w1c = jnp.transpose(jnp.concatenate([cb_w1, rb_w2], axis=0), (2, 1, 0))
        b1c = jnp.concatenate([cb_b1, rb_b2]).reshape(1, 2 * out_c)
        w2 = jnp.transpose(cb_w2, (2, 1, 0))
        b2 = cb_b2.reshape(1, out_c)
        packed_blocks.append(dict(w1c=w1c, b1c=b1c, w2=w2, b2=b2))
        in_c = out_c
    mu_w = jax.random.normal(keys[ki], (context_size, two_t), jnp.float32) / two_t ** 0.5; ki += 1
    mu_b = jax.random.normal(keys[ki], (context_size,), jnp.float32) * 0.01; ki += 1
    lv_w = jax.random.normal(keys[ki], (context_size, two_t), jnp.float32) / two_t ** 0.5; ki += 1
    lv_b = jax.random.normal(keys[ki], (context_size,), jnp.float32) * 0.01; ki += 1
    wml = jnp.concatenate([mu_w, lv_w], axis=0).T            # [2T, 2*context]
    bml = jnp.concatenate([mu_b, lv_b]).reshape(1, 2 * context_size)
    return dict(channels=channels, context_size=context_size,
                blocks=packed_blocks, wml=wml, bml=bml,
                raw=dict(blocks=raw_blocks, mu_w=mu_w, mu_b=mu_b,
                         lv_w=lv_w, lv_b=lv_b))


# ----------------------------------------------------------------------------
# Pure-JAX reference (independent impl via lax.conv) for a correctness check
# ----------------------------------------------------------------------------
def _conv1d_ref(x, w, b, stride, padding):
    y = lax.conv_general_dilated(
        x, w, window_strides=(stride,), padding=[(padding, padding)],
        dimension_numbers=("NCH", "OIH", "NCH"), precision=lax.Precision.HIGHEST)
    return y + b[None, :, None]


def context_conv_reference(params, x):
    raw = params["raw"]
    h = jnp.transpose(x, (1, 2, 0))                      # [B, C_in, T]  (NCW)
    for blk in raw["blocks"]:
        cb = jax.nn.relu(_conv1d_ref(h, blk["cb_w1"], blk["cb_b1"], 1, 1))
        cb = _conv1d_ref(cb, blk["cb_w2"], blk["cb_b2"], 2, 1)
        sc = _conv1d_ref(h, blk["rb_w2"], blk["rb_b2"], 2, 1)
        h = jax.nn.relu(cb + sc)
    h = h[:, :, 0]                                       # squeeze(-1)
    mu = jnp.dot(h, raw["mu_w"].T, precision=lax.Precision.HIGHEST) + raw["mu_b"]
    lv = jnp.dot(h, raw["lv_w"].T, precision=lax.Precision.HIGHEST) + raw["lv_b"]
    sd = jnp.clip(jax.nn.softplus(lv), 1e-5, 5.0)
    return mu, sd


if __name__ == "__main__":
    # Small shapes consistent with the module:
    input_size = 4
    spatial_hidden_size = 8      # unused in forward (as in the PyTorch module)
    temporal_hidden_size = 16    # -> channels [4, 2, 4, 8, 16, 32]
    context_size = 8
    num_layers = 1               # unused in forward
    dropout_val = 0.1            # identity in eval mode
    num_timesteps = 32           # 5 stride-2 halvings: 32 -> 1 (needed by squeeze(-1))
    batch_size = 2

    key = jax.random.PRNGKey(0)
    pkey, xkey = jax.random.split(key)
    params = make_params(pkey, input_size, temporal_hidden_size, context_size)
    x = jax.random.normal(xkey, (num_timesteps, batch_size, input_size), jnp.float32)

    fwd = jax.jit(functools.partial(context_conv_forward, params))
    (mu, sd), z = fwd(x)
    jax.block_until_ready((mu, sd, z))

    assert mu.shape == (batch_size, context_size)
    assert sd.shape == (batch_size, context_size)
    assert z.shape == (batch_size, context_size)
    assert bool(jnp.all(sd >= 1e-5 - 1e-7)) and bool(jnp.all(sd <= 5.0 + 1e-7))

    # Correctness check against an independent pure-JAX (lax.conv) reference.
    mu_ref, sd_ref = context_conv_reference(params, x)
    assert bool(jnp.allclose(mu, mu_ref, atol=1e-2, rtol=1e-2)), (mu, mu_ref)
    assert bool(jnp.allclose(sd, sd_ref, atol=1e-2, rtol=1e-2)), (sd, sd_ref)

    print("KERNEL_OK")
</pallas_src>

<mosaic_0001>
module attributes {stable_mosaic.version = 11 : i64} {
  func.func @kernel(%arg0: memref<2x32x4xf32, #tpu.memory_space<vmem>>, %arg1: memref<3x4x4xf32, #tpu.memory_space<vmem>>, %arg2: memref<1x4xf32, #tpu.memory_space<vmem>>, %arg3: memref<3x2x2xf32, #tpu.memory_space<vmem>>, %arg4: memref<1x2xf32, #tpu.memory_space<vmem>>, %arg5: memref<3x2x8xf32, #tpu.memory_space<vmem>>, %arg6: memref<1x8xf32, #tpu.memory_space<vmem>>, %arg7: memref<3x4x4xf32, #tpu.memory_space<vmem>>, %arg8: memref<1x4xf32, #tpu.memory_space<vmem>>, %arg9: memref<3x4x16xf32, #tpu.memory_space<vmem>>, %arg10: memref<1x16xf32, #tpu.memory_space<vmem>>, %arg11: memref<3x8x8xf32, #tpu.memory_space<vmem>>, %arg12: memref<1x8xf32, #tpu.memory_space<vmem>>, %arg13: memref<3x8x32xf32, #tpu.memory_space<vmem>>, %arg14: memref<1x32xf32, #tpu.memory_space<vmem>>, %arg15: memref<3x16x16xf32, #tpu.memory_space<vmem>>, %arg16: memref<1x16xf32, #tpu.memory_space<vmem>>, %arg17: memref<3x16x64xf32, #tpu.memory_space<vmem>>, %arg18: memref<1x64xf32, #tpu.memory_space<vmem>>, %arg19: memref<3x32x32xf32, #tpu.memory_space<vmem>>, %arg20: memref<1x32xf32, #tpu.memory_space<vmem>>, %arg21: memref<32x16xf32, #tpu.memory_space<vmem>>, %arg22: memref<1x16xf32, #tpu.memory_space<vmem>>, %arg23: memref<2x8xf32, #tpu.memory_space<vmem>>, %arg24: memref<2x8xf32, #tpu.memory_space<vmem>>) attributes {dimension_semantics = [], scalar_prefetch = 0 : i64, scratch_operands = 0 : i64, tpu.core_type = #tpu.core_type<tc>} {
    %c0 = arith.constant 0 : index
    %c0_0 = arith.constant 0 : index
    %c0_1 = arith.constant 0 : index
    %0 = vector.load %arg0[%c0, %c0_0, %c0_1] : memref<2x32x4xf32, #tpu.memory_space<vmem>>, vector<1x32x4xf32>
    %1 = vector.shape_cast %0 : vector<1x32x4xf32> to vector<32x4xf32>
    %2 = tpu.iota {dimensions = array<i32: 0>} : vector<32x32xi32>
    %3 = tpu.iota {dimensions = array<i32: 1>} : vector<32x32xi32>
    %c-1_i32 = arith.constant -1 : i32
    %4 = vector.broadcast %c-1_i32 : i32 to vector<32x32xi32>
    %5 = arith.addi %2, %4 : vector<32x32xi32>
    %6 = arith.cmpi eq, %3, %5 : vector<32x32xi32>
    %7 = arith.extui %6 : vector<32x32xi1> to vector<32x32xi32>
    %8 = arith.sitofp %7 : vector<32x32xi32> to vector<32x32xf32>
    %cst = arith.constant dense<0.000000e+00> : vector<32x4xf32>
    %9 = tpu.matmul %8, %1, %cst {dimension_numbers = #tpu.dot_dimension_numbers<[1], [0], [0], [1], [0, 0, 1, 1], [], []>} : vector<32x32xf32>, vector<32x4xf32>, vector<32x4xf32> -> vector<32x4xf32>
    %c0_2 = arith.constant 0 : index
    %c0_3 = arith.constant 0 : index
    %c0_4 = arith.constant 0 : index
    %10 = vector.load %arg1[%c0_2, %c0_3, %c0_4] : memref<3x4x4xf32, #tpu.memory_space<vmem>>, vector<1x4x4xf32>
    %11 = vector.shape_cast %10 : vector<1x4x4xf32> to vector<4x4xf32>
    %cst_5 = arith.constant dense<0.000000e+00> : vector<32x4xf32>
    %12 = tpu.matmul %9, %11, %cst_5 {dimension_numbers = #tpu.dot_dimension_numbers<[1], [0], [0], [1], [0, 0, 1, 1], [], []>} : vector<32x4xf32>, vector<4x4xf32>, vector<32x4xf32> -> vector<32x4xf32>
    %c1 = arith.constant 1 : index
    %c0_6 = arith.constant 0 : index
    %c0_7 = arith.constant 0 : index
    %13 = vector.load %arg1[%c1, %c0_6, %c0_7] : memref<3x4x4xf32, #tpu.memory_space<vmem>>, vector<1x4x4xf32>
    %14 = vector.shape_cast %13 : vector<1x4x4xf32> to vector<4x4xf32>
    %cst_8 = arith.constant dense<0.000000e+00> : vector<32x4xf32>
    %15 = tpu.matmul %1, %14, %cst_8 {dimension_numbers = #tpu.dot_dimension_numbers<[1], [0], [0], [1], [0, 0, 1, 1], [], []>} : vector<32x4xf32>, vector<4x4xf32>, vector<32x4xf32> -> vector<32x4xf32>
    %16 = arith.addf %12, %15 : vector<32x4xf32>
    %17 = tpu.iota {dimensions = array<i32: 0>} : vector<32x32xi32>
    %18 = tpu.iota {dimensions = array<i32: 1>} : vector<32x32xi32>
    %c1_i32 = arith.constant 1 : i32
    %19 = vector.broadcast %c1_i32 : i32 to vector<32x32xi32>
    %20 = arith.addi %17, %19 : vector<32x32xi32>
    %21 = arith.cmpi eq, %18, %20 : vector<32x32xi32>
    %22 = arith.extui %21 : vector<32x32xi1> to vector<32x32xi32>
    %23 = arith.sitofp %22 : vector<32x32xi32> to vector<32x32xf32>
    %cst_9 = arith.constant dense<0.000000e+00> : vector<32x4xf32>
    %24 = tpu.matmul %23, %1, %cst_9 {dimension_numbers = #tpu.dot_dimension_numbers<[1], [0], [0], [1], [0, 0, 1, 1], [], []>} : vector<32x32xf32>, vector<32x4xf32>, vector<32x4xf32> -> vector<32x4xf32>
    %c2 = arith.constant 2 : index
    %c0_10 = arith.constant 0 : index
    %c0_11 = arith.constant 0 : index
    %25 = vector.load %arg1[%c2, %c0_10, %c0_11] : memref<3x4x4xf32, #tpu.memory_space<vmem>>, vector<1x4x4xf32>
    %26 = vector.shape_cast %25 : vector<1x4x4xf32> to vector<4x4xf32>
    %cst_12 = arith.constant dense<0.000000e+00> : vector<32x4xf32>
    %27 = tpu.matmul %24, %26, %cst_12 {dimension_numbers = #tpu.dot_dimension_numbers<[1], [0], [0], [1], [0, 0, 1, 1], [], []>} : vector<32x4xf32>, vector<4x4xf32>, vector<32x4xf32> -> vector<32x4xf32>
    %28 = arith.addf %16, %27 : vector<32x4xf32>
    %c0_13 = arith.constant 0 : index
    %c0_14 = arith.constant 0 : index
    %29 = vector.load %arg2[%c0_13, %c0_14] : memref<1x4xf32, #tpu.memory_space<vmem>>, vector<1x4xf32>
    %30 = vector.broadcast %29 : vector<1x4xf32> to vector<32x4xf32>
    %31 = arith.addf %28, %30 : vector<32x4xf32>
    %32 = vector.extract_strided_slice %31 {offsets = [0, 0], sizes = [32, 2], strides = [1, 1]} : vector<32x4xf32> to vector<32x2xf32>
    %cst_15 = arith.constant 0.000000e+00 : f32
    %33 = vector.broadcast %cst_15 : f32 to vector<32x2xf32>
    %34 = arith.maximumf %32, %33 : vector<32x2xf32>
    %35 = vector.extract_strided_slice %31 {offsets = [0, 2], sizes = [32, 2], strides = [1, 1]} : vector<32x4xf32> to vector<32x2xf32>
    %36 = tpu.iota {dimensions = array<i32: 0>} : vector<16x32xi32>
    %37 = tpu.iota {dimensions = array<i32: 1>} : vector<16x32xi32>
    %c2_i32 = arith.constant 2 : i32
    %38 = vector.broadcast %c2_i32 : i32 to vector<16x32xi32>
    %39 = arith.muli %38, %36 : vector<16x32xi32>
    %c0_i32 = arith.constant 0 : i32
    %40 = vector.broadcast %c0_i32 : i32 to vector<16x32xi32>
    %41 = arith.addi %39, %40 : vector<16x32xi32>
    %42 = arith.cmpi eq, %37, %41 : vector<16x32xi32>
    %43 = arith.extui %42 : vector<16x32xi1> to vector<16x32xi32>
    %44 = arith.sitofp %43 : vector<16x32xi32> to vector<16x32xf32>
    %cst_16 = arith.constant dense<0.000000e+00> : vector<16x2xf32>
    %45 = tpu.matmul %44, %35, %cst_16 {dimension_numbers = #tpu.dot_dimension_numbers<[1], [0], [0], [1], [0, 0, 1, 1], [], []>} : vector<16x32xf32>, vector<32x2xf32>, vector<16x2xf32> -> vector<16x2xf32>
    %46 = tpu.iota {dimensions = array<i32: 0>} : vector<16x32xi32>
    %47 = tpu.iota {dimensions = array<i32: 1>} : vector<16x32xi32>
    %c2_i32_17 = arith.constant 2 : i32
    %48 = vector.broadcast %c2_i32_17 : i32 to vector<16x32xi32>
    %49 = arith.muli %48, %46 : vector<16x32xi32>
    %c-1_i32_18 = arith.constant -1 : i32
    %50 = vector.broadcast %c-1_i32_18 : i32 to vector<16x32xi32>
    %51 = arith.addi %49, %50 : vector<16x32xi32>
    %52 = arith.cmpi eq, %47, %51 : vector<16x32xi32>
    %53 = arith.extui %52 : vector<16x32xi1> to vector<16x32xi32>
    %54 = arith.sitofp %53 : vector<16x32xi32> to vector<16x32xf32>
    %cst_19 = arith.constant dense<0.000000e+00> : vector<16x2xf32>
    %55 = tpu.matmul %54, %34, %cst_19 {dimension_numbers = #tpu.dot_dimension_numbers<[1], [0], [0], [1], [0, 0, 1, 1], [], []>} : vector<16x32xf32>, vector<32x2xf32>, vector<16x2xf32> -> vector<16x2xf32>
    %c0_20 = arith.constant 0 : index
    %c0_21 = arith.constant 0 : index
    %c0_22 = arith.constant 0 : index
    %56 = vector.load %arg3[%c0_20, %c0_21, %c0_22] : memref<3x2x2xf32, #tpu.memory_space<vmem>>, vector<1x2x2xf32>
    %57 = vector.shape_cast %56 : vector<1x2x2xf32> to vector<2x2xf32>
    %cst_23 = arith.constant dense<0.000000e+00> : vector<16x2xf32>
    %58 = tpu.matmul %55, %57, %cst_23 {dimension_numbers = #tpu.dot_dimension_numbers<[1], [0], [0], [1], [0, 0, 1, 1], [], []>} : vector<16x2xf32>, vector<2x2xf32>, vector<16x2xf32> -> vector<16x2xf32>
    %59 = tpu.iota {dimensions = array<i32: 0>} : vector<16x32xi32>
    %60 = tpu.iota {dimensions = array<i32: 1>} : vector<16x32xi32>
    %c2_i32_24 = arith.constant 2 : i32
    %61 = vector.broadcast %c2_i32_24 : i32 to vector<16x32xi32>
    %62 = arith.muli %61, %59 : vector<16x32xi32>
    %c0_i32_25 = arith.constant 0 : i32
    %63 = vector.broadcast %c0_i32_25 : i32 to vector<16x32xi32>
    %64 = arith.addi %62, %63 : vector<16x32xi32>
    %65 = arith.cmpi eq, %60, %64 : vector<16x32xi32>
    %66 = arith.extui %65 : vector<16x32xi1> to vector<16x32xi32>
    %67 = arith.sitofp %66 : vector<16x32xi32> to vector<16x32xf32>
    %cst_26 = arith.constant dense<0.000000e+00> : vector<16x2xf32>
    %68 = tpu.matmul %67, %34, %cst_26 {dimension_numbers = #tpu.dot_dimension_numbers<[1], [0], [0], [1], [0, 0, 1, 1], [], []>} : vector<16x32xf32>, vector<32x2xf32>, vector<16x2xf32> -> vector<16x2xf32>
    %c1_27 = arith.constant 1 : index
    %c0_28 = arith.constant 0 : index
    %c0_29 = arith.constant 0 : index
    %69 = vector.load %arg3[%c1_27, %c0_28, %c0_29] : memref<3x2x2xf32, #tpu.memory_space<vmem>>, vector<1x2x2xf32>
    %70 = vector.shape_cast %69 : vector<1x2x2xf32> to vector<2x2xf32>
    %cst_30 = arith.constant dense<0.000000e+00> : vector<16x2xf32>
    %71 = tpu.matmul %68, %70, %cst_30 {dimension_numbers = #tpu.dot_dimension_numbers<[1], [0], [0], [1], [0, 0, 1, 1], [], []>} : vector<16x2xf32>, vector<2x2xf32>, vector<16x2xf32> -> vector<16x2xf32>
    %72 = arith.addf %58, %71 : vector<16x2xf32>
    %73 = tpu.iota {dimensions = array<i32: 0>} : vector<16x32xi32>
    %74 = tpu.iota {dimensions = array<i32: 1>} : vector<16x32xi32>
    %c2_i32_31 = arith.constant 2 : i32
    %75 = vector.broadcast %c2_i32_31 : i32 to vector<16x32xi32>
    %76 = arith.muli %75, %73 : vector<16x32xi32>
    %c1_i32_32 = arith.constant 1 : i32
    %77 = vector.broadcast %c1_i32_32 : i32 to vector<16x32xi32>
    %78 = arith.addi %76, %77 : vector<16x32xi32>
    %79 = arith.cmpi eq, %74, %78 : vector<16x32xi32>
    %80 = arith.extui %79 : vector<16x32xi1> to vector<16x32xi32>
    %81 = arith.sitofp %80 : vector<16x32xi32> to vector<16x32xf32>
    %cst_33 = arith.constant dense<0.000000e+00> : vector<16x2xf32>
    %82 = tpu.matmul %81, %34, %cst_33 {dimension_numbers = #tpu.dot_dimension_numbers<[1], [0], [0], [1], [0, 0, 1, 1], [], []>} : vector<16x32xf32>, vector<32x2xf32>, vector<16x2xf32> -> vector<16x2xf32>
    %c2_34 = arith.constant 2 : index
    %c0_35 = arith.constant 0 : index
    %c0_36 = arith.constant 0 : index
    %83 = vector.load %arg3[%c2_34, %c0_35, %c0_36] : memref<3x2x2xf32, #tpu.memory_space<vmem>>, vector<1x2x2xf32>
    %84 = vector.shape_cast %83 : vector<1x2x2xf32> to vector<2x2xf32>
    %cst_37 = arith.constant dense<0.000000e+00> : vector<16x2xf32>
    %85 = tpu.matmul %82, %84, %cst_37 {dimension_numbers = #tpu.dot_dimension_numbers<[1], [0], [0], [1], [0, 0, 1, 1], [], []>} : vector<16x2xf32>, vector<2x2xf32>, vector<16x2xf32> -> vector<16x2xf32>
    %86 = arith.addf %72, %85 : vector<16x2xf32>
    %c0_38 = arith.constant 0 : index
    %c0_39 = arith.constant 0 : index
    %87 = vector.load %arg4[%c0_38, %c0_39] : memref<1x2xf32, #tpu.memory_space<vmem>>, vector<1x2xf32>
    %88 = vector.broadcast %87 : vector<1x2xf32> to vector<16x2xf32>
    %89 = arith.addf %86, %88 : vector<16x2xf32>
    %90 = arith.addf %89, %45 : vector<16x2xf32>
    %cst_40 = arith.constant 0.000000e+00 : f32
    %91 = vector.broadcast %cst_40 : f32 to vector<16x2xf32>
    %92 = arith.maximumf %90, %91 : vector<16x2xf32>
    %93 = tpu.iota {dimensions = array<i32: 0>} : vector<16x16xi32>
    %94 = tpu.iota {dimensions = array<i32: 1>} : vector<16x16xi32>
    %c-1_i32_41 = arith.constant -1 : i32
    %95 = vector.broadcast %c-1_i32_41 : i32 to vector<16x16xi32>
    %96 = arith.addi %93, %95 : vector<16x16xi32>
    %97 = arith.cmpi eq, %94, %96 : vector<16x16xi32>
    %98 = arith.extui %97 : vector<16x16xi1> to vector<16x16xi32>
    %99 = arith.sitofp %98 : vector<16x16xi32> to vector<16x16xf32>
    %cst_42 = arith.constant dense<0.000000e+00> : vector<16x2xf32>
    %100 = tpu.matmul %99, %92, %cst_42 {dimension_numbers = #tpu.dot_dimension_numbers<[1], [0], [0], [1], [0, 0, 1, 1], [], []>} : vector<16x16xf32>, vector<16x2xf32>, vector<16x2xf32> -> vector<16x2xf32>
    %c0_43 = arith.constant 0 : index
    %c0_44 = arith.constant 0 : index
    %c0_45 = arith.constant 0 : index
    %101 = vector.load %arg5[%c0_43, %c0_44, %c0_45] : memref<3x2x8xf32, #tpu.memory_space<vmem>>, vector<1x2x8xf32>
    %102 = vector.shape_cast %101 : vector<1x2x8xf32> to vector<2x8xf32>
    %cst_46 = arith.constant dense<0.000000e+00> : vector<16x8xf32>
    %103 = tpu.matmul %100, %102, %cst_46 {dimension_numbers = #tpu.dot_dimension_numbers<[1], [0], [0], [1], [0, 0, 1, 1], [], []>} : vector<16x2xf32>, vector<2x8xf32>, vector<16x8xf32> -> vector<16x8xf32>
    %c1_47 = arith.constant 1 : index
    %c0_48 = arith.constant 0 : index
    %c0_49 = arith.constant 0 : index
    %104 = vector.load %arg5[%c1_47, %c0_48, %c0_49] : memref<3x2x8xf32, #tpu.memory_space<vmem>>, vector<1x2x8xf32>
    %105 = vector.shape_cast %104 : vector<1x2x8xf32> to vector<2x8xf32>
    %cst_50 = arith.constant dense<0.000000e+00> : vector<16x8xf32>
    %106 = tpu.matmul %92, %105, %cst_50 {dimension_numbers = #tpu.dot_dimension_numbers<[1], [0], [0], [1], [0, 0, 1, 1], [], []>} : vector<16x2xf32>, vector<2x8xf32>, vector<16x8xf32> -> vector<16x8xf32>
    %107 = arith.addf %103, %106 : vector<16x8xf32>
    %108 = tpu.iota {dimensions = array<i32: 0>} : vector<16x16xi32>
    %109 = tpu.iota {dimensions = array<i32: 1>} : vector<16x16xi32>
    %c1_i32_51 = arith.constant 1 : i32
    %110 = vector.broadcast %c1_i32_51 : i32 to vector<16x16xi32>
    %111 = arith.addi %108, %110 : vector<16x16xi32>
    %112 = arith.cmpi eq, %109, %111 : vector<16x16xi32>
    %113 = arith.extui %112 : vector<16x16xi1> to vector<16x16xi32>
    %114 = arith.sitofp %113 : vector<16x16xi32> to vector<16x16xf32>
    %cst_52 = arith.constant dense<0.000000e+00> : vector<16x2xf32>
    %115 = tpu.matmul %114, %92, %cst_52 {dimension_numbers = #tpu.dot_dimension_numbers<[1], [0], [0], [1], [0, 0, 1, 1], [], []>} : vector<16x16xf32>, vector<16x2xf32>, vector<16x2xf32> -> vector<16x2xf32>
    %c2_53 = arith.constant 2 : index
    %c0_54 = arith.constant 0 : index
    %c0_55 = arith.constant 0 : index
    %116 = vector.load %arg5[%c2_53, %c0_54, %c0_55] : memref<3x2x8xf32, #tpu.memory_space<vmem>>, vector<1x2x8xf32>
    %117 = vector.shape_cast %116 : vector<1x2x8xf32> to vector<2x8xf32>
    %cst_56 = arith.constant dense<0.000000e+00> : vector<16x8xf32>
    %118 = tpu.matmul %115, %117, %cst_56 {dimension_numbers = #tpu.dot_dimension_numbers<[1], [0], [0], [1], [0, 0, 1, 1], [], []>} : vector<16x2xf32>, vector<2x8xf32>, vector<16x8xf32> -> vector<16x8xf32>
    %119 = arith.addf %107, %118 : vector<16x8xf32>
    %c0_57 = arith.constant 0 : index
    %c0_58 = arith.constant 0 : index
    %120 = vector.load %arg6[%c0_57, %c0_58] : memref<1x8xf32, #tpu.memory_space<vmem>>, vector<1x8xf32>
    %121 = vector.broadcast %120 : vector<1x8xf32> to vector<16x8xf32>
    %122 = arith.addf %119, %121 : vector<16x8xf32>
    %123 = vector.extract_strided_slice %122 {offsets = [0, 0], sizes = [16, 4], strides = [1, 1]} : vector<16x8xf32> to vector<16x4xf32>
    %cst_59 = arith.constant 0.000000e+00 : f32
    %124 = vector.broadcast %cst_59 : f32 to vector<16x4xf32>
    %125 = arith.maximumf %123, %124 : vector<16x4xf32>
    %126 = vector.extract_strided_slice %122 {offsets = [0, 4], sizes = [16, 4], strides = [1, 1]} : vector<16x8xf32> to vector<16x4xf32>
    %127 = tpu.iota {dimensions = array<i32: 0>} : vector<8x16xi32>
    %128 = tpu.iota {dimensions = array<i32: 1>} : vector<8x16xi32>
    %c2_i32_60 = arith.constant 2 : i32
    %129 = vector.broadcast %c2_i32_60 : i32 to vector<8x16xi32>
    %130 = arith.muli %129, %127 : vector<8x16xi32>
    %c0_i32_61 = arith.constant 0 : i32
    %131 = vector.broadcast %c0_i32_61 : i32 to vector<8x16xi32>
    %132 = arith.addi %130, %131 : vector<8x16xi32>
    %133 = arith.cmpi eq, %128, %132 : vector<8x16xi32>
    %134 = arith.extui %133 : vector<8x16xi1> to vector<8x16xi32>
    %135 = arith.sitofp %134 : vector<8x16xi32> to vector<8x16xf32>
    %cst_62 = arith.constant dense<0.000000e+00> : vector<8x4xf32>
    %136 = tpu.matmul %135, %126, %cst_62 {dimension_numbers = #tpu.dot_dimension_numbers<[1], [0], [0], [1], [0, 0, 1, 1], [], []>} : vector<8x16xf32>, vector<16x4xf32>, vector<8x4xf32> -> vector<8x4xf32>
    %137 = tpu.iota {dimensions = array<i32: 0>} : vector<8x16xi32>
    %138 = tpu.iota {dimensions = array<i32: 1>} : vector<8x16xi32>
    %c2_i32_63 = arith.constant 2 : i32
    %139 = vector.broadcast %c2_i32_63 : i32 to vector<8x16xi32>
    %140 = arith.muli %139, %137 : vector<8x16xi32>
    %c-1_i32_64 = arith.constant -1 : i32
    %141 = vector.broadcast %c-1_i32_64 : i32 to vector<8x16xi32>
    %142 = arith.addi %140, %141 : vector<8x16xi32>
    %143 = arith.cmpi eq, %138, %142 : vector<8x16xi32>
    %144 = arith.extui %143 : vector<8x16xi1> to vector<8x16xi32>
    %145 = arith.sitofp %144 : vector<8x16xi32> to vector<8x16xf32>
    %cst_65 = arith.constant dense<0.000000e+00> : vector<8x4xf32>
    %146 = tpu.matmul %145, %125, %cst_65 {dimension_numbers = #tpu.dot_dimension_numbers<[1], [0], [0], [1], [0, 0, 1, 1], [], []>} : vector<8x16xf32>, vector<16x4xf32>, vector<8x4xf32> -> vector<8x4xf32>
    %c0_66 = arith.constant 0 : index
    %c0_67 = arith.constant 0 : index
    %c0_68 = arith.constant 0 : index
    %147 = vector.load %arg7[%c0_66, %c0_67, %c0_68] : memref<3x4x4xf32, #tpu.memory_space<vmem>>, vector<1x4x4xf32>
    %148 = vector.shape_cast %147 : vector<1x4x4xf32> to vector<4x4xf32>
    %cst_69 = arith.constant dense<0.000000e+00> : vector<8x4xf32>
    %149 = tpu.matmul %146, %148, %cst_69 {dimension_numbers = #tpu.dot_dimension_numbers<[1], [0], [0], [1], [0, 0, 1, 1], [], []>} : vector<8x4xf32>, vector<4x4xf32>, vector<8x4xf32> -> vector<8x4xf32>
    %150 = tpu.iota {dimensions = array<i32: 0>} : vector<8x16xi32>
    %151 = tpu.iota {dimensions = array<i32: 1>} : vector<8x16xi32>
    %c2_i32_70 = arith.constant 2 : i32
    %152 = vector.broadcast %c2_i32_70 : i32 to vector<8x16xi32>
    %153 = arith.muli %152, %150 : vector<8x16xi32>
    %c0_i32_71 = arith.constant 0 : i32
    %154 = vector.broadcast %c0_i32_71 : i32 to vector<8x16xi32>
    %155 = arith.addi %153, %154 : vector<8x16xi32>
    %156 = arith.cmpi eq, %151, %155 : vector<8x16xi32>
    %157 = arith.extui %156 : vector<8x16xi1> to vector<8x16xi32>
    %158 = arith.sitofp %157 : vector<8x16xi32> to vector<8x16xf32>
    %cst_72 = arith.constant dense<0.000000e+00> : vector<8x4xf32>
    %159 = tpu.matmul %158, %125, %cst_72 {dimension_numbers = #tpu.dot_dimension_numbers<[1], [0], [0], [1], [0, 0, 1, 1], [], []>} : vector<8x16xf32>, vector<16x4xf32>, vector<8x4xf32> -> vector<8x4xf32>
    %c1_73 = arith.constant 1 : index
    %c0_74 = arith.constant 0 : index
    %c0_75 = arith.constant 0 : index
    %160 = vector.load %arg7[%c1_73, %c0_74, %c0_75] : memref<3x4x4xf32, #tpu.memory_space<vmem>>, vector<1x4x4xf32>
    %161 = vector.shape_cast %160 : vector<1x4x4xf32> to vector<4x4xf32>
    %cst_76 = arith.constant dense<0.000000e+00> : vector<8x4xf32>
    %162 = tpu.matmul %159, %161, %cst_76 {dimension_numbers = #tpu.dot_dimension_numbers<[1], [0], [0], [1], [0, 0, 1, 1], [], []>} : vector<8x4xf32>, vector<4x4xf32>, vector<8x4xf32> -> vector<8x4xf32>
    %163 = arith.addf %149, %162 : vector<8x4xf32>
    %164 = tpu.iota {dimensions = array<i32: 0>} : vector<8x16xi32>
    %165 = tpu.iota {dimensions = array<i32: 1>} : vector<8x16xi32>
    %c2_i32_77 = arith.constant 2 : i32
    %166 = vector.broadcast %c2_i32_77 : i32 to vector<8x16xi32>
    %167 = arith.muli %166, %164 : vector<8x16xi32>
    %c1_i32_78 = arith.constant 1 : i32
    %168 = vector.broadcast %c1_i32_78 : i32 to vector<8x16xi32>
    %169 = arith.addi %167, %168 : vector<8x16xi32>
    %170 = arith.cmpi eq, %165, %169 : vector<8x16xi32>
    %171 = arith.extui %170 : vector<8x16xi1> to vector<8x16xi32>
    %172 = arith.sitofp %171 : vector<8x16xi32> to vector<8x16xf32>
    %cst_79 = arith.constant dense<0.000000e+00> : vector<8x4xf32>
    %173 = tpu.matmul %172, %125, %cst_79 {dimension_numbers = #tpu.dot_dimension_numbers<[1], [0], [0], [1], [0, 0, 1, 1], [], []>} : vector<8x16xf32>, vector<16x4xf32>, vector<8x4xf32> -> vector<8x4xf32>
    %c2_80 = arith.constant 2 : index
    %c0_81 = arith.constant 0 : index
    %c0_82 = arith.constant 0 : index
    %174 = vector.load %arg7[%c2_80, %c0_81, %c0_82] : memref<3x4x4xf32, #tpu.memory_space<vmem>>, vector<1x4x4xf32>
    %175 = vector.shape_cast %174 : vector<1x4x4xf32> to vector<4x4xf32>
    %cst_83 = arith.constant dense<0.000000e+00> : vector<8x4xf32>
    %176 = tpu.matmul %173, %175, %cst_83 {dimension_numbers = #tpu.dot_dimension_numbers<[1], [0], [0], [1], [0, 0, 1, 1], [], []>} : vector<8x4xf32>, vector<4x4xf32>, vector<8x4xf32> -> vector<8x4xf32>
    %177 = arith.addf %163, %176 : vector<8x4xf32>
    %c0_84 = arith.constant 0 : index
    %c0_85 = arith.constant 0 : index
    %178 = vector.load %arg8[%c0_84, %c0_85] : memref<1x4xf32, #tpu.memory_space<vmem>>, vector<1x4xf32>
    %179 = vector.broadcast %178 : vector<1x4xf32> to vector<8x4xf32>
    %180 = arith.addf %177, %179 : vector<8x4xf32>
    %181 = arith.addf %180, %136 : vector<8x4xf32>
    %cst_86 = arith.constant 0.000000e+00 : f32
    %182 = vector.broadcast %cst_86 : f32 to vector<8x4xf32>
    %183 = arith.maximumf %181, %182 : vector<8x4xf32>
    %184 = tpu.iota {dimensions = array<i32: 0>} : vector<8x8xi32>
    %185 = tpu.iota {dimensions = array<i32: 1>} : vector<8x8xi32>
    %c-1_i32_87 = arith.constant -1 : i32
    %186 = vector.broadcast %c-1_i32_87 : i32 to vector<8x8xi32>
    %187 = arith.addi %184, %186 : vector<8x8xi32>
    %188 = arith.cmpi eq, %185, %187 : vector<8x8xi32>
    %189 = arith.extui %188 : vector<8x8xi1> to vector<8x8xi32>
    %190 = arith.sitofp %189 : vector<8x8xi32> to vector<8x8xf32>
    %cst_88 = arith.constant dense<0.000000e+00> : vector<8x4xf32>
    %191 = tpu.matmul %190, %183, %cst_88 {dimension_numbers = #tpu.dot_dimension_numbers<[1], [0], [0], [1], [0, 0, 1, 1], [], []>} : vector<8x8xf32>, vector<8x4xf32>, vector<8x4xf32> -> vector<8x4xf32>
    %c0_89 = arith.constant 0 : index
    %c0_90 = arith.constant 0 : index
    %c0_91 = arith.constant 0 : index
    %192 = vector.load %arg9[%c0_89, %c0_90, %c0_91] : memref<3x4x16xf32, #tpu.memory_space<vmem>>, vector<1x4x16xf32>
    %193 = vector.shape_cast %192 : vector<1x4x16xf32> to vector<4x16xf32>
    %cst_92 = arith.constant dense<0.000000e+00> : vector<8x16xf32>
    %194 = tpu.matmul %191, %193, %cst_92 {dimension_numbers = #tpu.dot_dimension_numbers<[1], [0], [0], [1], [0, 0, 1, 1], [], []>} : vector<8x4xf32>, vector<4x16xf32>, vector<8x16xf32> -> vector<8x16xf32>
    %c1_93 = arith.constant 1 : index
    %c0_94 = arith.constant 0 : index
    %c0_95 = arith.constant 0 : index
    %195 = vector.load %arg9[%c1_93, %c0_94, %c0_95] : memref<3x4x16xf32, #tpu.memory_space<vmem>>, vector<1x4x16xf32>
    %196 = vector.shape_cast %195 : vector<1x4x16xf32> to vector<4x16xf32>
    %cst_96 = arith.constant dense<0.000000e+00> : vector<8x16xf32>
    %197 = tpu.matmul %183, %196, %cst_96 {dimension_numbers = #tpu.dot_dimension_numbers<[1], [0], [0], [1], [0, 0, 1, 1], [], []>} : vector<8x4xf32>, vector<4x16xf32>, vector<8x16xf32> -> vector<8x16xf32>
    %198 = arith.addf %194, %197 : vector<8x16xf32>
    %199 = tpu.iota {dimensions = array<i32: 0>} : vector<8x8xi32>
    %200 = tpu.iota {dimensions = array<i32: 1>} : vector<8x8xi32>
    %c1_i32_97 = arith.constant 1 : i32
    %201 = vector.broadcast %c1_i32_97 : i32 to vector<8x8xi32>
    %202 = arith.addi %199, %201 : vector<8x8xi32>
    %203 = arith.cmpi eq, %200, %202 : vector<8x8xi32>
    %204 = arith.extui %203 : vector<8x8xi1> to vector<8x8xi32>
    %205 = arith.sitofp %204 : vector<8x8xi32> to vector<8x8xf32>
    %cst_98 = arith.constant dense<0.000000e+00> : vector<8x4xf32>
    %206 = tpu.matmul %205, %183, %cst_98 {dimension_numbers = #tpu.dot_dimension_numbers<[1], [0], [0], [1], [0, 0, 1, 1], [], []>} : vector<8x8xf32>, vector<8x4xf32>, vector<8x4xf32> -> vector<8x4xf32>
    %c2_99 = arith.constant 2 : index
    %c0_100 = arith.constant 0 : index
    %c0_101 = arith.constant 0 : index
    %207 = vector.load %arg9[%c2_99, %c0_100, %c0_101] : memref<3x4x16xf32, #tpu.memory_space<vmem>>, vector<1x4x16xf32>
    %208 = vector.shape_cast %207 : vector<1x4x16xf32> to vector<4x16xf32>
    %cst_102 = arith.constant dense<0.000000e+00> : vector<8x16xf32>
    %209 = tpu.matmul %206, %208, %cst_102 {dimension_numbers = #tpu.dot_dimension_numbers<[1], [0], [0], [1], [0, 0, 1, 1], [], []>} : vector<8x4xf32>, vector<4x16xf32>, vector<8x16xf32> -> vector<8x16xf32>
    %210 = arith.addf %198, %209 : vector<8x16xf32>
    %c0_103 = arith.constant 0 : index
    %c0_104 = arith.constant 0 : index
    %211 = vector.load %arg10[%c0_103, %c0_104] : memref<1x16xf32, #tpu.memory_space<vmem>>, vector<1x16xf32>
    %212 = vector.broadcast %211 : vector<1x16xf32> to vector<8x16xf32>
    %213 = arith.addf %210, %212 : vector<8x16xf32>
    %214 = vector.extract_strided_slice %213 {offsets = [0, 0], sizes = [8, 8], strides = [1, 1]} : vector<8x16xf32> to vector<8x8xf32>
    %cst_105 = arith.constant 0.000000e+00 : f32
    %215 = vector.broadcast %cst_105 : f32 to vector<8x8xf32>
    %216 = arith.maximumf %214, %215 : vector<8x8xf32>
    %217 = vector.extract_strided_slice %213 {offsets = [0, 8], sizes = [8, 8], strides = [1, 1]} : vector<8x16xf32> to vector<8x8xf32>
    %218 = tpu.iota {dimensions = array<i32: 0>} : vector<4x8xi32>
    %219 = tpu.iota {dimensions = array<i32: 1>} : vector<4x8xi32>
    %c2_i32_106 = arith.constant 2 : i32
    %220 = vector.broadcast %c2_i32_106 : i32 to vector<4x8xi32>
    %221 = arith.muli %220, %218 : vector<4x8xi32>
    %c0_i32_107 = arith.constant 0 : i32
    %222 = vector.broadcast %c0_i32_107 : i32 to vector<4x8xi32>
    %223 = arith.addi %221, %222 : vector<4x8xi32>
    %224 = arith.cmpi eq, %219, %223 : vector<4x8xi32>
    %225 = arith.extui %224 : vector<4x8xi1> to vector<4x8xi32>
    %226 = arith.sitofp %225 : vector<4x8xi32> to vector<4x8xf32>
    %cst_108 = arith.constant dense<0.000000e+00> : vector<4x8xf32>
    %227 = tpu.matmul %226, %217, %cst_108 {dimension_numbers = #tpu.dot_dimension_numbers<[1], [0], [0], [1], [0, 0, 1, 1], [], []>} : vector<4x8xf32>, vector<8x8xf32>, vector<4x8xf32> -> vector<4x8xf32>
    %228 = tpu.iota {dimensions = array<i32: 0>} : vector<4x8xi32>
    %229 = tpu.iota {dimensions = array<i32: 1>} : vector<4x8xi32>
    %c2_i32_109 = arith.constant 2 : i32
    %230 = vector.broadcast %c2_i32_109 : i32 to vector<4x8xi32>
    %231 = arith.muli %230, %228 : vector<4x8xi32>
    %c-1_i32_110 = arith.constant -1 : i32
    %232 = vector.broadcast %c-1_i32_110 : i32 to vector<4x8xi32>
    %233 = arith.addi %231, %232 : vector<4x8xi32>
    %234 = arith.cmpi eq, %229, %233 : vector<4x8xi32>
    %235 = arith.extui %234 : vector<4x8xi1> to vector<4x8xi32>
    %236 = arith.sitofp %235 : vector<4x8xi32> to vector<4x8xf32>
    %cst_111 = arith.constant dense<0.000000e+00> : vector<4x8xf32>
    %237 = tpu.matmul %236, %216, %cst_111 {dimension_numbers = #tpu.dot_dimension_numbers<[1], [0], [0], [1], [0, 0, 1, 1], [], []>} : vector<4x8xf32>, vector<8x8xf32>, vector<4x8xf32> -> vector<4x8xf32>
    %c0_112 = arith.constant 0 : index
    %c0_113 = arith.constant 0 : index
    %c0_114 = arith.constant 0 : index
    %238 = vector.load %arg11[%c0_112, %c0_113, %c0_114] : memref<3x8x8xf32, #tpu.memory_space<vmem>>, vector<1x8x8xf32>
    %239 = vector.shape_cast %238 : vector<1x8x8xf32> to vector<8x8xf32>
    %cst_115 = arith.constant dense<0.000000e+00> : vector<4x8xf32>
    %240 = tpu.matmul %237, %239, %cst_115 {dimension_numbers = #tpu.dot_dimension_numbers<[1], [0], [0], [1], [0, 0, 1, 1], [], []>} : vector<4x8xf32>, vector<8x8xf32>, vector<4x8xf32> -> vector<4x8xf32>
    %241 = tpu.iota {dimensions = array<i32: 0>} : vector<4x8xi32>
    %242 = tpu.iota {dimensions = array<i32: 1>} : vector<4x8xi32>
    %c2_i32_116 = arith.constant 2 : i32
    %243 = vector.broadcast %c2_i32_116 : i32 to vector<4x8xi32>
    %244 = arith.muli %243, %241 : vector<4x8xi32>
    %c0_i32_117 = arith.constant 0 : i32
    %245 = vector.broadcast %c0_i32_117 : i32 to vector<4x8xi32>
    %246 = arith.addi %244, %245 : vector<4x8xi32>
    %247 = arith.cmpi eq, %242, %246 : vector<4x8xi32>
    %248 = arith.extui %247 : vector<4x8xi1> to vector<4x8xi32>
    %249 = arith.sitofp %248 : vector<4x8xi32> to vector<4x8xf32>
    %cst_118 = arith.constant dense<0.000000e+00> : vector<4x8xf32>
    %250 = tpu.matmul %249, %216, %cst_118 {dimension_numbers = #tpu.dot_dimension_numbers<[1], [0], [0], [1], [0, 0, 1, 1], [], []>} : vector<4x8xf32>, vector<8x8xf32>, vector<4x8xf32> -> vector<4x8xf32>
    %c1_119 = arith.constant 1 : index
    %c0_120 = arith.constant 0 : index
    %c0_121 = arith.constant 0 : index
    %251 = vector.load %arg11[%c1_119, %c0_120, %c0_121] : memref<3x8x8xf32, #tpu.memory_space<vmem>>, vector<1x8x8xf32>
    %252 = vector.shape_cast %251 : vector<1x8x8xf32> to vector<8x8xf32>
    %cst_122 = arith.constant dense<0.000000e+00> : vector<4x8xf32>
    %253 = tpu.matmul %250, %252, %cst_122 {dimension_numbers = #tpu.dot_dimension_numbers<[1], [0], [0], [1], [0, 0, 1, 1], [], []>} : vector<4x8xf32>, vector<8x8xf32>, vector<4x8xf32> -> vector<4x8xf32>
    %254 = arith.addf %240, %253 : vector<4x8xf32>
    %255 = tpu.iota {dimensions = array<i32: 0>} : vector<4x8xi32>
    %256 = tpu.iota {dimensions = array<i32: 1>} : vector<4x8xi32>
    %c2_i32_123 = arith.constant 2 : i32
    %257 = vector.broadcast %c2_i32_123 : i32 to vector<4x8xi32>
    %258 = arith.muli %257, %255 : vector<4x8xi32>
    %c1_i32_124 = arith.constant 1 : i32
    %259 = vector.broadcast %c1_i32_124 : i32 to vector<4x8xi32>
    %260 = arith.addi %258, %259 : vector<4x8xi32>
    %261 = arith.cmpi eq, %256, %260 : vector<4x8xi32>
    %262 = arith.extui %261 : vector<4x8xi1> to vector<4x8xi32>
    %263 = arith.sitofp %262 : vector<4x8xi32> to vector<4x8xf32>
    %cst_125 = arith.constant dense<0.000000e+00> : vector<4x8xf32>
    %264 = tpu.matmul %263, %216, %cst_125 {dimension_numbers = #tpu.dot_dimension_numbers<[1], [0], [0], [1], [0, 0, 1, 1], [], []>} : vector<4x8xf32>, vector<8x8xf32>, vector<4x8xf32> -> vector<4x8xf32>
    %c2_126 = arith.constant 2 : index
    %c0_127 = arith.constant 0 : index
    %c0_128 = arith.constant 0 : index
    %265 = vector.load %arg11[%c2_126, %c0_127, %c0_128] : memref<3x8x8xf32, #tpu.memory_space<vmem>>, vector<1x8x8xf32>
    %266 = vector.shape_cast %265 : vector<1x8x8xf32> to vector<8x8xf32>
    %cst_129 = arith.constant dense<0.000000e+00> : vector<4x8xf32>
    %267 = tpu.matmul %264, %266, %cst_129 {dimension_numbers = #tpu.dot_dimension_numbers<[1], [0], [0], [1], [0, 0, 1, 1], [], []>} : vector<4x8xf32>, vector<8x8xf32>, vector<4x8xf32> -> vector<4x8xf32>
    %268 = arith.addf %254, %267 : vector<4x8xf32>
    %c0_130 = arith.constant 0 : index
    %c0_131 = arith.constant 0 : index
    %269 = vector.load %arg12[%c0_130, %c0_131] : memref<1x8xf32, #tpu.memory_space<vmem>>, vector<1x8xf32>
    %270 = vector.broadcast %269 : vector<1x8xf32> to vector<4x8xf32>
    %271 = arith.addf %268, %270 : vector<4x8xf32>
    %272 = arith.addf %271, %227 : vector<4x8xf32>
    %cst_132 = arith.constant 0.000000e+00 : f32
    %273 = vector.broadcast %cst_132 : f32 to vector<4x8xf32>
    %274 = arith.maximumf %272, %273 : vector<4x8xf32>
    %275 = tpu.iota {dimensions = array<i32: 0>} : vector<4x4xi32>
    %276 = tpu.iota {dimensions = array<i32: 1>} : vector<4x4xi32>
    %c-1_i32_133 = arith.constant -1 : i32
    %277 = vector.broadcast %c-1_i32_133 : i32 to vector<4x4xi32>
    %278 = arith.addi %275, %277 : vector<4x4xi32>
    %279 = arith.cmpi eq, %276, %278 : vector<4x4xi32>
    %280 = arith.extui %279 : vector<4x4xi1> to vector<4x4xi32>
    %281 = arith.sitofp %280 : vector<4x4xi32> to vector<4x4xf32>
    %cst_134 = arith.constant dense<0.000000e+00> : vector<4x8xf32>
    %282 = tpu.matmul %281, %274, %cst_134 {dimension_numbers = #tpu.dot_dimension_numbers<[1], [0], [0], [1], [0, 0, 1, 1], [], []>} : vector<4x4xf32>, vector<4x8xf32>, vector<4x8xf32> -> vector<4x8xf32>
    %c0_135 = arith.constant 0 : index
    %c0_136 = arith.constant 0 : index
    %c0_137 = arith.constant 0 : index
    %283 = vector.load %arg13[%c0_135, %c0_136, %c0_137] : memref<3x8x32xf32, #tpu.memory_space<vmem>>, vector<1x8x32xf32>
    %284 = vector.shape_cast %283 : vector<1x8x32xf32> to vector<8x32xf32>
    %cst_138 = arith.constant dense<0.000000e+00> : vector<4x32xf32>
    %285 = tpu.matmul %282, %284, %cst_138 {dimension_numbers = #tpu.dot_dimension_numbers<[1], [0], [0], [1], [0, 0, 1, 1], [], []>} : vector<4x8xf32>, vector<8x32xf32>, vector<4x32xf32> -> vector<4x32xf32>
    %c1_139 = arith.constant 1 : index
    %c0_140 = arith.constant 0 : index
    %c0_141 = arith.constant 0 : index
    %286 = vector.load %arg13[%c1_139, %c0_140, %c0_141] : memref<3x8x32xf32, #tpu.memory_space<vmem>>, vector<1x8x32xf32>
    %287 = vector.shape_cast %286 : vector<1x8x32xf32> to vector<8x32xf32>
    %cst_142 = arith.constant dense<0.000000e+00> : vector<4x32xf32>
    %288 = tpu.matmul %274, %287, %cst_142 {dimension_numbers = #tpu.dot_dimension_numbers<[1], [0], [0], [1], [0, 0, 1, 1], [], []>} : vector<4x8xf32>, vector<8x32xf32>, vector<4x32xf32> -> vector<4x32xf32>
    %289 = arith.addf %285, %288 : vector<4x32xf32>
    %290 = tpu.iota {dimensions = array<i32: 0>} : vector<4x4xi32>
    %291 = tpu.iota {dimensions = array<i32: 1>} : vector<4x4xi32>
    %c1_i32_143 = arith.constant 1 : i32
    %292 = vector.broadcast %c1_i32_143 : i32 to vector<4x4xi32>
    %293 = arith.addi %290, %292 : vector<4x4xi32>
    %294 = arith.cmpi eq, %291, %293 : vector<4x4xi32>
    %295 = arith.extui %294 : vector<4x4xi1> to vector<4x4xi32>
    %296 = arith.sitofp %295 : vector<4x4xi32> to vector<4x4xf32>
    %cst_144 = arith.constant dense<0.000000e+00> : vector<4x8xf32>
    %297 = tpu.matmul %296, %274, %cst_144 {dimension_numbers = #tpu.dot_dimension_numbers<[1], [0], [0], [1], [0, 0, 1, 1], [], []>} : vector<4x4xf32>, vector<4x8xf32>, vector<4x8xf32> -> vector<4x8xf32>
    %c2_145 = arith.constant 2 : index
    %c0_146 = arith.constant 0 : index
    %c0_147 = arith.constant 0 : index
    %298 = vector.load %arg13[%c2_145, %c0_146, %c0_147] : memref<3x8x32xf32, #tpu.memory_space<vmem>>, vector<1x8x32xf32>
    %299 = vector.shape_cast %298 : vector<1x8x32xf32> to vector<8x32xf32>
    %cst_148 = arith.constant dense<0.000000e+00> : vector<4x32xf32>
    %300 = tpu.matmul %297, %299, %cst_148 {dimension_numbers = #tpu.dot_dimension_numbers<[1], [0], [0], [1], [0, 0, 1, 1], [], []>} : vector<4x8xf32>, vector<8x32xf32>, vector<4x32xf32> -> vector<4x32xf32>
    %301 = arith.addf %289, %300 : vector<4x32xf32>
    %c0_149 = arith.constant 0 : index
    %c0_150 = arith.constant 0 : index
    %302 = vector.load %arg14[%c0_149, %c0_150] : memref<1x32xf32, #tpu.memory_space<vmem>>, vector<1x32xf32>
    %303 = vector.broadcast %302 : vector<1x32xf32> to vector<4x32xf32>
    %304 = arith.addf %301, %303 : vector<4x32xf32>
    %305 = vector.extract_strided_slice %304 {offsets = [0, 0], sizes = [4, 16], strides = [1, 1]} : vector<4x32xf32> to vector<4x16xf32>
    %cst_151 = arith.constant 0.000000e+00 : f32
    %306 = vector.broadcast %cst_151 : f32 to vector<4x16xf32>
    %307 = arith.maximumf %305, %306 : vector<4x16xf32>
    %308 = vector.extract_strided_slice %304 {offsets = [0, 16], sizes = [4, 16], strides = [1, 1]} : vector<4x32xf32> to vector<4x16xf32>
    %309 = tpu.iota {dimensions = array<i32: 0>} : vector<2x4xi32>
    %310 = tpu.iota {dimensions = array<i32: 1>} : vector<2x4xi32>
    %c2_i32_152 = arith.constant 2 : i32
    %311 = vector.broadcast %c2_i32_152 : i32 to vector<2x4xi32>
    %312 = arith.muli %311, %309 : vector<2x4xi32>
    %c0_i32_153 = arith.constant 0 : i32
    %313 = vector.broadcast %c0_i32_153 : i32 to vector<2x4xi32>
    %314 = arith.addi %312, %313 : vector<2x4xi32>
    %315 = arith.cmpi eq, %310, %314 : vector<2x4xi32>
    %316 = arith.extui %315 : vector<2x4xi1> to vector<2x4xi32>
    %317 = arith.sitofp %316 : vector<2x4xi32> to vector<2x4xf32>
    %cst_154 = arith.constant dense<0.000000e+00> : vector<2x16xf32>
    %318 = tpu.matmul %317, %308, %cst_154 {dimension_numbers = #tpu.dot_dimension_numbers<[1], [0], [0], [1], [0, 0, 1, 1], [], []>} : vector<2x4xf32>, vector<4x16xf32>, vector<2x16xf32> -> vector<2x16xf32>
    %319 = tpu.iota {dimensions = array<i32: 0>} : vector<2x4xi32>
    %320 = tpu.iota {dimensions = array<i32: 1>} : vector<2x4xi32>
    %c2_i32_155 = arith.constant 2 : i32
    %321 = vector.broadcast %c2_i32_155 : i32 to vector<2x4xi32>
    %322 = arith.muli %321, %319 : vector<2x4xi32>
    %c-1_i32_156 = arith.constant -1 : i32
    %323 = vector.broadcast %c-1_i32_156 : i32 to vector<2x4xi32>
    %324 = arith.addi %322, %323 : vector<2x4xi32>
    %325 = arith.cmpi eq, %320, %324 : vector<2x4xi32>
    %326 = arith.extui %325 : vector<2x4xi1> to vector<2x4xi32>
    %327 = arith.sitofp %326 : vector<2x4xi32> to vector<2x4xf32>
    %cst_157 = arith.constant dense<0.000000e+00> : vector<2x16xf32>
    %328 = tpu.matmul %327, %307, %cst_157 {dimension_numbers = #tpu.dot_dimension_numbers<[1], [0], [0], [1], [0, 0, 1, 1], [], []>} : vector<2x4xf32>, vector<4x16xf32>, vector<2x16xf32> -> vector<2x16xf32>
    %c0_158 = arith.constant 0 : index
    %c0_159 = arith.constant 0 : index
    %c0_160 = arith.constant 0 : index
    %329 = vector.load %arg15[%c0_158, %c0_159, %c0_160] : memref<3x16x16xf32, #tpu.memory_space<vmem>>, vector<1x16x16xf32>
    %330 = vector.shape_cast %329 : vector<1x16x16xf32> to vector<16x16xf32>
    %cst_161 = arith.constant dense<0.000000e+00> : vector<2x16xf32>
    %331 = tpu.matmul %328, %330, %cst_161 {dimension_numbers = #tpu.dot_dimension_numbers<[1], [0], [0], [1], [0, 0, 1, 1], [], []>} : vector<2x16xf32>, vector<16x16xf32>, vector<2x16xf32> -> vector<2x16xf32>
    %332 = tpu.iota {dimensions = array<i32: 0>} : vector<2x4xi32>
    %333 = tpu.iota {dimensions = array<i32: 1>} : vector<2x4xi32>
    %c2_i32_162 = arith.constant 2 : i32
    %334 = vector.broadcast %c2_i32_162 : i32 to vector<2x4xi32>
    %335 = arith.muli %334, %332 : vector<2x4xi32>
    %c0_i32_163 = arith.constant 0 : i32
    %336 = vector.broadcast %c0_i32_163 : i32 to vector<2x4xi32>
    %337 = arith.addi %335, %336 : vector<2x4xi32>
    %338 = arith.cmpi eq, %333, %337 : vector<2x4xi32>
    %339 = arith.extui %338 : vector<2x4xi1> to vector<2x4xi32>
    %340 = arith.sitofp %339 : vector<2x4xi32> to vector<2x4xf32>
    %cst_164 = arith.constant dense<0.000000e+00> : vector<2x16xf32>
    %341 = tpu.matmul %340, %307, %cst_164 {dimension_numbers = #tpu.dot_dimension_numbers<[1], [0], [0], [1], [0, 0, 1, 1], [], []>} : vector<2x4xf32>, vector<4x16xf32>, vector<2x16xf32> -> vector<2x16xf32>
    %c1_165 = arith.constant 1 : index
    %c0_166 = arith.constant 0 : index
    %c0_167 = arith.constant 0 : index
    %342 = vector.load %arg15[%c1_165, %c0_166, %c0_167] : memref<3x16x16xf32, #tpu.memory_space<vmem>>, vector<1x16x16xf32>
    %343 = vector.shape_cast %342 : vector<1x16x16xf32> to vector<16x16xf32>
    %cst_168 = arith.constant dense<0.000000e+00> : vector<2x16xf32>
    %344 = tpu.matmul %341, %343, %cst_168 {dimension_numbers = #tpu.dot_dimension_numbers<[1], [0], [0], [1], [0, 0, 1, 1], [], []>} : vector<2x16xf32>, vector<16x16xf32>, vector<2x16xf32> -> vector<2x16xf32>
    %345 = arith.addf %331, %344 : vector<2x16xf32>
    %346 = tpu.iota {dimensions = array<i32: 0>} : vector<2x4xi32>
    %347 = tpu.iota {dimensions = array<i32: 1>} : vector<2x4xi32>
    %c2_i32_169 = arith.constant 2 : i32
    %348 = vector.broadcast %c2_i32_169 : i32 to vector<2x4xi32>
    %349 = arith.muli %348, %346 : vector<2x4xi32>
    %c1_i32_170 = arith.constant 1 : i32
    %350 = vector.broadcast %c1_i32_170 : i32 to vector<2x4xi32>
    %351 = arith.addi %349, %350 : vector<2x4xi32>
    %352 = arith.cmpi eq, %347, %351 : vector<2x4xi32>
    %353 = arith.extui %352 : vector<2x4xi1> to vector<2x4xi32>
    %354 = arith.sitofp %353 : vector<2x4xi32> to vector<2x4xf32>
    %cst_171 = arith.constant dense<0.000000e+00> : vector<2x16xf32>
    %355 = tpu.matmul %354, %307, %cst_171 {dimension_numbers = #tpu.dot_dimension_numbers<[1], [0], [0], [1], [0, 0, 1, 1], [], []>} : vector<2x4xf32>, vector<4x16xf32>, vector<2x16xf32> -> vector<2x16xf32>
    %c2_172 = arith.constant 2 : index
    %c0_173 = arith.constant 0 : index
    %c0_174 = arith.constant 0 : index
    %356 = vector.load %arg15[%c2_172, %c0_173, %c0_174] : memref<3x16x16xf32, #tpu.memory_space<vmem>>, vector<1x16x16xf32>
    %357 = vector.shape_cast %356 : vector<1x16x16xf32> to vector<16x16xf32>
    %cst_175 = arith.constant dense<0.000000e+00> : vector<2x16xf32>
    %358 = tpu.matmul %355, %357, %cst_175 {dimension_numbers = #tpu.dot_dimension_numbers<[1], [0], [0], [1], [0, 0, 1, 1], [], []>} : vector<2x16xf32>, vector<16x16xf32>, vector<2x16xf32> -> vector<2x16xf32>
    %359 = arith.addf %345, %358 : vector<2x16xf32>
    %c0_176 = arith.constant 0 : index
    %c0_177 = arith.constant 0 : index
    %360 = vector.load %arg16[%c0_176, %c0_177] : memref<1x16xf32, #tpu.memory_space<vmem>>, vector<1x16xf32>
    %361 = vector.broadcast %360 : vector<1x16xf32> to vector<2x16xf32>
    %362 = arith.addf %359, %361 : vector<2x16xf32>
    %363 = arith.addf %362, %318 : vector<2x16xf32>
    %cst_178 = arith.constant 0.000000e+00 : f32
    %364 = vector.broadcast %cst_178 : f32 to vector<2x16xf32>
    %365 = arith.maximumf %363, %364 : vector<2x16xf32>
    %366 = tpu.iota {dimensions = array<i32: 0>} : vector<2x2xi32>
    %367 = tpu.iota {dimensions = array<i32: 1>} : vector<2x2xi32>
    %c-1_i32_179 = arith.constant -1 : i32
    %368 = vector.broadcast %c-1_i32_179 : i32 to vector<2x2xi32>
    %369 = arith.addi %366, %368 : vector<2x2xi32>
    %370 = arith.cmpi eq, %367, %369 : vector<2x2xi32>
    %371 = arith.extui %370 : vector<2x2xi1> to vector<2x2xi32>
    %372 = arith.sitofp %371 : vector<2x2xi32> to vector<2x2xf32>
    %cst_180 = arith.constant dense<0.000000e+00> : vector<2x16xf32>
    %373 = tpu.matmul %372, %365, %cst_180 {dimension_numbers = #tpu.dot_dimension_numbers<[1], [0], [0], [1], [0, 0, 1, 1], [], []>} : vector<2x2xf32>, vector<2x16xf32>, vector<2x16xf32> -> vector<2x16xf32>
    %c0_181 = arith.constant 0 : index
    %c0_182 = arith.constant 0 : index
    %c0_183 = arith.constant 0 : index
    %374 = vector.load %arg17[%c0_181, %c0_182, %c0_183] : memref<3x16x64xf32, #tpu.memory_space<vmem>>, vector<1x16x64xf32>
    %375 = vector.shape_cast %374 : vector<1x16x64xf32> to vector<16x64xf32>
    %cst_184 = arith.constant dense<0.000000e+00> : vector<2x64xf32>
    %376 = tpu.matmul %373, %375, %cst_184 {dimension_numbers = #tpu.dot_dimension_numbers<[1], [0], [0], [1], [0, 0, 1, 1], [], []>} : vector<2x16xf32>, vector<16x64xf32>, vector<2x64xf32> -> vector<2x64xf32>
    %c1_185 = arith.constant 1 : index
    %c0_186 = arith.constant 0 : index
    %c0_187 = arith.constant 0 : index
    %377 = vector.load %arg17[%c1_185, %c0_186, %c0_187] : memref<3x16x64xf32, #tpu.memory_space<vmem>>, vector<1x16x64xf32>
    %378 = vector.shape_cast %377 : vector<1x16x64xf32> to vector<16x64xf32>
    %cst_188 = arith.constant dense<0.000000e+00> : vector<2x64xf32>
    %379 = tpu.matmul %365, %378, %cst_188 {dimension_numbers = #tpu.dot_dimension_numbers<[1], [0], [0], [1], [0, 0, 1, 1], [], []>} : vector<2x16xf32>, vector<16x64xf32>, vector<2x64xf32> -> vector<2x64xf32>
    %380 = arith.addf %376, %379 : vector<2x64xf32>
    %381 = tpu.iota {dimensions = array<i32: 0>} : vector<2x2xi32>
    %382 = tpu.iota {dimensions = array<i32: 1>} : vector<2x2xi32>
    %c1_i32_189 = arith.constant 1 : i32
    %383 = vector.broadcast %c1_i32_189 : i32 to vector<2x2xi32>
    %384 = arith.addi %381, %383 : vector<2x2xi32>
    %385 = arith.cmpi eq, %382, %384 : vector<2x2xi32>
    %386 = arith.extui %385 : vector<2x2xi1> to vector<2x2xi32>
    %387 = arith.sitofp %386 : vector<2x2xi32> to vector<2x2xf32>
    %cst_190 = arith.constant dense<0.000000e+00> : vector<2x16xf32>
    %388 = tpu.matmul %387, %365, %cst_190 {dimension_numbers = #tpu.dot_dimension_numbers<[1], [0], [0], [1], [0, 0, 1, 1], [], []>} : vector<2x2xf32>, vector<2x16xf32>, vector<2x16xf32> -> vector<2x16xf32>
    %c2_191 = arith.constant 2 : index
    %c0_192 = arith.constant 0 : index
    %c0_193 = arith.constant 0 : index
    %389 = vector.load %arg17[%c2_191, %c0_192, %c0_193] : memref<3x16x64xf32, #tpu.memory_space<vmem>>, vector<1x16x64xf32>
    %390 = vector.shape_cast %389 : vector<1x16x64xf32> to vector<16x64xf32>
    %cst_194 = arith.constant dense<0.000000e+00> : vector<2x64xf32>
    %391 = tpu.matmul %388, %390, %cst_194 {dimension_numbers = #tpu.dot_dimension_numbers<[1], [0], [0], [1], [0, 0, 1, 1], [], []>} : vector<2x16xf32>, vector<16x64xf32>, vector<2x64xf32> -> vector<2x64xf32>
    %392 = arith.addf %380, %391 : vector<2x64xf32>
    %c0_195 = arith.constant 0 : index
    %c0_196 = arith.constant 0 : index
    %393 = vector.load %arg18[%c0_195, %c0_196] : memref<1x64xf32, #tpu.memory_space<vmem>>, vector<1x64xf32>
    %394 = vector.broadcast %393 : vector<1x64xf32> to vector<2x64xf32>
    %395 = arith.addf %392, %394 : vector<2x64xf32>
    %396 = vector.extract_strided_slice %395 {offsets = [0, 0], sizes = [2, 32], strides = [1, 1]} : vector<2x64xf32> to vector<2x32xf32>
    %cst_197 = arith.constant 0.000000e+00 : f32
    %397 = vector.broadcast %cst_197 : f32 to vector<2x32xf32>
    %398 = arith.maximumf %396, %397 : vector<2x32xf32>
    %399 = vector.extract_strided_slice %395 {offsets = [0, 32], sizes = [2, 32], strides = [1, 1]} : vector<2x64xf32> to vector<2x32xf32>
    %400 = tpu.iota {dimensions = array<i32: 0>} : vector<1x2xi32>
    %401 = tpu.iota {dimensions = array<i32: 1>} : vector<1x2xi32>
    %c2_i32_198 = arith.constant 2 : i32
    %402 = vector.broadcast %c2_i32_198 : i32 to vector<1x2xi32>
    %403 = arith.muli %402, %400 : vector<1x2xi32>
    %c0_i32_199 = arith.constant 0 : i32
    %404 = vector.broadcast %c0_i32_199 : i32 to vector<1x2xi32>
    %405 = arith.addi %403, %404 : vector<1x2xi32>
    %406 = arith.cmpi eq, %401, %405 : vector<1x2xi32>
    %407 = arith.extui %406 : vector<1x2xi1> to vector<1x2xi32>
    %408 = arith.sitofp %407 : vector<1x2xi32> to vector<1x2xf32>
    %cst_200 = arith.constant dense<0.000000e+00> : vector<1x32xf32>
    %409 = tpu.matmul %408, %399, %cst_200 {dimension_numbers = #tpu.dot_dimension_numbers<[1], [0], [0], [1], [0, 0, 1, 1], [], []>} : vector<1x2xf32>, vector<2x32xf32>, vector<1x32xf32> -> vector<1x32xf32>
    %410 = tpu.iota {dimensions = array<i32: 0>} : vector<1x2xi32>
    %411 = tpu.iota {dimensions = array<i32: 1>} : vector<1x2xi32>
    %c2_i32_201 = arith.constant 2 : i32
    %412 = vector.broadcast %c2_i32_201 : i32 to vector<1x2xi32>
    %413 = arith.muli %412, %410 : vector<1x2xi32>
    %c-1_i32_202 = arith.constant -1 : i32
    %414 = vector.broadcast %c-1_i32_202 : i32 to vector<1x2xi32>
    %415 = arith.addi %413, %414 : vector<1x2xi32>
    %416 = arith.cmpi eq, %411, %415 : vector<1x2xi32>
    %417 = arith.extui %416 : vector<1x2xi1> to vector<1x2xi32>
    %418 = arith.sitofp %417 : vector<1x2xi32> to vector<1x2xf32>
    %cst_203 = arith.constant dense<0.000000e+00> : vector<1x32xf32>
    %419 = tpu.matmul %418, %398, %cst_203 {dimension_numbers = #tpu.dot_dimension_numbers<[1], [0], [0], [1], [0, 0, 1, 1], [], []>} : vector<1x2xf32>, vector<2x32xf32>, vector<1x32xf32> -> vector<1x32xf32>
    %c0_204 = arith.constant 0 : index
    %c0_205 = arith.constant 0 : index
    %c0_206 = arith.constant 0 : index
    %420 = vector.load %arg19[%c0_204, %c0_205, %c0_206] : memref<3x32x32xf32, #tpu.memory_space<vmem>>, vector<1x32x32xf32>
    %421 = vector.shape_cast %420 : vector<1x32x32xf32> to vector<32x32xf32>
    %cst_207 = arith.constant dense<0.000000e+00> : vector<1x32xf32>
    %422 = tpu.matmul %419, %421, %cst_207 {dimension_numbers = #tpu.dot_dimension_numbers<[1], [0], [0], [1], [0, 0, 1, 1], [], []>} : vector<1x32xf32>, vector<32x32xf32>, vector<1x32xf32> -> vector<1x32xf32>
    %423 = tpu.iota {dimensions = array<i32: 0>} : vector<1x2xi32>
    %424 = tpu.iota {dimensions = array<i32: 1>} : vector<1x2xi32>
    %c2_i32_208 = arith.constant 2 : i32
    %425 = vector.broadcast %c2_i32_208 : i32 to vector<1x2xi32>
    %426 = arith.muli %425, %423 : vector<1x2xi32>
    %c0_i32_209 = arith.constant 0 : i32
    %427 = vector.broadcast %c0_i32_209 : i32 to vector<1x2xi32>
    %428 = arith.addi %426, %427 : vector<1x2xi32>
    %429 = arith.cmpi eq, %424, %428 : vector<1x2xi32>
    %430 = arith.extui %429 : vector<1x2xi1> to vector<1x2xi32>
    %431 = arith.sitofp %430 : vector<1x2xi32> to vector<1x2xf32>
    %cst_210 = arith.constant dense<0.000000e+00> : vector<1x32xf32>
    %432 = tpu.matmul %431, %398, %cst_210 {dimension_numbers = #tpu.dot_dimension_numbers<[1], [0], [0], [1], [0, 0, 1, 1], [], []>} : vector<1x2xf32>, vector<2x32xf32>, vector<1x32xf32> -> vector<1x32xf32>
    %c1_211 = arith.constant 1 : index
    %c0_212 = arith.constant 0 : index
    %c0_213 = arith.constant 0 : index
    %433 = vector.load %arg19[%c1_211, %c0_212, %c0_213] : memref<3x32x32xf32, #tpu.memory_space<vmem>>, vector<1x32x32xf32>
    %434 = vector.shape_cast %433 : vector<1x32x32xf32> to vector<32x32xf32>
    %cst_214 = arith.constant dense<0.000000e+00> : vector<1x32xf32>
    %435 = tpu.matmul %432, %434, %cst_214 {dimension_numbers = #tpu.dot_dimension_numbers<[1], [0], [0], [1], [0, 0, 1, 1], [], []>} : vector<1x32xf32>, vector<32x32xf32>, vector<1x32xf32> -> vector<1x32xf32>
    %436 = arith.addf %422, %435 : vector<1x32xf32>
    %437 = tpu.iota {dimensions = array<i32: 0>} : vector<1x2xi32>
    %438 = tpu.iota {dimensions = array<i32: 1>} : vector<1x2xi32>
    %c2_i32_215 = arith.constant 2 : i32
    %439 = vector.broadcast %c2_i32_215 : i32 to vector<1x2xi32>
    %440 = arith.muli %439, %437 : vector<1x2xi32>
    %c1_i32_216 = arith.constant 1 : i32
    %441 = vector.broadcast %c1_i32_216 : i32 to vector<1x2xi32>
    %442 = arith.addi %440, %441 : vector<1x2xi32>
    %443 = arith.cmpi eq, %438, %442 : vector<1x2xi32>
    %444 = arith.extui %443 : vector<1x2xi1> to vector<1x2xi32>
    %445 = arith.sitofp %444 : vector<1x2xi32> to vector<1x2xf32>
    %cst_217 = arith.constant dense<0.000000e+00> : vector<1x32xf32>
    %446 = tpu.matmul %445, %398, %cst_217 {dimension_numbers = #tpu.dot_dimension_numbers<[1], [0], [0], [1], [0, 0, 1, 1], [], []>} : vector<1x2xf32>, vector<2x32xf32>, vector<1x32xf32> -> vector<1x32xf32>
    %c2_218 = arith.constant 2 : index
    %c0_219 = arith.constant 0 : index
    %c0_220 = arith.constant 0 : index
    %447 = vector.load %arg19[%c2_218, %c0_219, %c0_220] : memref<3x32x32xf32, #tpu.memory_space<vmem>>, vector<1x32x32xf32>
    %448 = vector.shape_cast %447 : vector<1x32x32xf32> to vector<32x32xf32>
    %cst_221 = arith.constant dense<0.000000e+00> : vector<1x32xf32>
    %449 = tpu.matmul %446, %448, %cst_221 {dimension_numbers = #tpu.dot_dimension_numbers<[1], [0], [0], [1], [0, 0, 1, 1], [], []>} : vector<1x32xf32>, vector<32x32xf32>, vector<1x32xf32> -> vector<1x32xf32>
    %450 = arith.addf %436, %449 : vector<1x32xf32>
    %c0_222 = arith.constant 0 : index
    %c0_223 = arith.constant 0 : index
    %451 = vector.load %arg20[%c0_222, %c0_223] : memref<1x32xf32, #tpu.memory_space<vmem>>, vector<1x32xf32>
    %452 = arith.addf %450, %451 : vector<1x32xf32>
    %453 = arith.addf %452, %409 : vector<1x32xf32>
    %cst_224 = arith.constant 0.000000e+00 : f32
    %454 = vector.broadcast %cst_224 : f32 to vector<1x32xf32>
    %455 = arith.maximumf %453, %454 : vector<1x32xf32>
    %c0_225 = arith.constant 0 : index
    %c0_226 = arith.constant 0 : index
    %456 = vector.load %arg21[%c0_225, %c0_226] : memref<32x16xf32, #tpu.memory_space<vmem>>, vector<32x16xf32>
    %cst_227 = arith.constant dense<0.000000e+00> : vector<1x16xf32>
    %457 = tpu.matmul %455, %456, %cst_227 {dimension_numbers = #tpu.dot_dimension_numbers<[1], [0], [0], [1], [0, 0, 1, 1], [], []>} : vector<1x32xf32>, vector<32x16xf32>, vector<1x16xf32> -> vector<1x16xf32>
    %c0_228 = arith.constant 0 : index
    %c0_229 = arith.constant 0 : index
    %458 = vector.load %arg22[%c0_228, %c0_229] : memref<1x16xf32, #tpu.memory_space<vmem>>, vector<1x16xf32>
    %459 = arith.addf %457, %458 : vector<1x16xf32>
    %460 = vector.extract_strided_slice %459 {offsets = [0, 0], sizes = [1, 8], strides = [1, 1]} : vector<1x16xf32> to vector<1x8xf32>
    %461 = vector.extract_strided_slice %459 {offsets = [0, 8], sizes = [1, 8], strides = [1, 1]} : vector<1x16xf32> to vector<1x8xf32>
    %cst_230 = arith.constant 2.000000e+01 : f32
    %462 = vector.broadcast %cst_230 : f32 to vector<1x8xf32>
    %463 = arith.cmpf ogt, %461, %462 : vector<1x8xf32>
    %cst_231 = arith.constant 2.000000e+01 : f32
    %464 = vector.broadcast %cst_231 : f32 to vector<1x8xf32>
    %465 = arith.minimumf %461, %464 : vector<1x8xf32>
    %466 = math.exp %465 : vector<1x8xf32>
    %cst_232 = arith.constant 1.000000e+00 : f32
    %467 = vector.broadcast %cst_232 : f32 to vector<1x8xf32>
    %468 = arith.addf %467, %466 : vector<1x8xf32>
    %469 = math.log %468 : vector<1x8xf32>
    %470 = arith.select %463, %461, %469 : vector<1x8xi1>, vector<1x8xf32>
    %cst_233 = arith.constant 9.99999974E-6 : f32
    %cst_234 = arith.constant 5.000000e+00 : f32
    %471 = vector.broadcast %cst_233 : f32 to vector<1x8xf32>
    %472 = arith.maximumf %471, %470 : vector<1x8xf32>
    %473 = vector.broadcast %cst_234 : f32 to vector<1x8xf32>
    %474 = arith.minimumf %473, %472 : vector<1x8xf32>
    %c0_235 = arith.constant 0 : index
    %c0_236 = arith.constant 0 : index
    %475 = vector.load %arg23[%c0_235, %c0_236] : memref<2x8xf32, #tpu.memory_space<vmem>>, vector<1x8xf32>
    tpu.vector_store %arg23[%c0_235, %c0_236], %460 {strides = array<i32>} : memref<2x8xf32, #tpu.memory_space<vmem>>, vector<1x8xf32>,
    %c0_237 = arith.constant 0 : index
    %c0_238 = arith.constant 0 : index
    %476 = vector.load %arg24[%c0_237, %c0_238] : memref<2x8xf32, #tpu.memory_space<vmem>>, vector<1x8xf32>
    tpu.vector_store %arg24[%c0_237, %c0_238], %474 {strides = array<i32>} : memref<2x8xf32, #tpu.memory_space<vmem>>, vector<1x8xf32>,
    %c1_239 = arith.constant 1 : index
    %c0_240 = arith.constant 0 : index
    %c0_241 = arith.constant 0 : index
    %477 = vector.load %arg0[%c1_239, %c0_240, %c0_241] : memref<2x32x4xf32, #tpu.memory_space<vmem>>, vector<1x32x4xf32>
    %478 = vector.shape_cast %477 : vector<1x32x4xf32> to vector<32x4xf32>
    %479 = tpu.iota {dimensions = array<i32: 0>} : vector<32x32xi32>
    %480 = tpu.iota {dimensions = array<i32: 1>} : vector<32x32xi32>
    %c-1_i32_242 = arith.constant -1 : i32
    %481 = vector.broadcast %c-1_i32_242 : i32 to vector<32x32xi32>
    %482 = arith.addi %479, %481 : vector<32x32xi32>
    %483 = arith.cmpi eq, %480, %482 : vector<32x32xi32>
    %484 = arith.extui %483 : vector<32x32xi1> to vector<32x32xi32>
    %485 = arith.sitofp %484 : vector<32x32xi32> to vector<32x32xf32>
    %cst_243 = arith.constant dense<0.000000e+00> : vector<32x4xf32>
    %486 = tpu.matmul %485, %478, %cst_243 {dimension_numbers = #tpu.dot_dimension_numbers<[1], [0], [0], [1], [0, 0, 1, 1], [], []>} : vector<32x32xf32>, vector<32x4xf32>, vector<32x4xf32> -> vector<32x4xf32>
    %c0_244 = arith.constant 0 : index
    %c0_245 = arith.constant 0 : index
    %c0_246 = arith.constant 0 : index
    %487 = vector.load %arg1[%c0_244, %c0_245, %c0_246] : memref<3x4x4xf32, #tpu.memory_space<vmem>>, vector<1x4x4xf32>
    %488 = vector.shape_cast %487 : vector<1x4x4xf32> to vector<4x4xf32>
    %cst_247 = arith.constant dense<0.000000e+00> : vector<32x4xf32>
    %489 = tpu.matmul %486, %488, %cst_247 {dimension_numbers = #tpu.dot_dimension_numbers<[1], [0], [0], [1], [0, 0, 1, 1], [], []>} : vector<32x4xf32>, vector<4x4xf32>, vector<32x4xf32> -> vector<32x4xf32>
    %c1_248 = arith.constant 1 : index
    %c0_249 = arith.constant 0 : index
    %c0_250 = arith.constant 0 : index
    %490 = vector.load %arg1[%c1_248, %c0_249, %c0_250] : memref<3x4x4xf32, #tpu.memory_space<vmem>>, vector<1x4x4xf32>
    %491 = vector.shape_cast %490 : vector<1x4x4xf32> to vector<4x4xf32>
    %cst_251 = arith.constant dense<0.000000e+00> : vector<32x4xf32>
    %492 = tpu.matmul %478, %491, %cst_251 {dimension_numbers = #tpu.dot_dimension_numbers<[1], [0], [0], [1], [0, 0, 1, 1], [], []>} : vector<32x4xf32>, vector<4x4xf32>, vector<32x4xf32> -> vector<32x4xf32>
    %493 = arith.addf %489, %492 : vector<32x4xf32>
    %494 = tpu.iota {dimensions = array<i32: 0>} : vector<32x32xi32>
    %495 = tpu.iota {dimensions = array<i32: 1>} : vector<32x32xi32>
    %c1_i32_252 = arith.constant 1 : i32
    %496 = vector.broadcast %c1_i32_252 : i32 to vector<32x32xi32>
    %497 = arith.addi %494, %496 : vector<32x32xi32>
    %498 = arith.cmpi eq, %495, %497 : vector<32x32xi32>
    %499 = arith.extui %498 : vector<32x32xi1> to vector<32x32xi32>
    %500 = arith.sitofp %499 : vector<32x32xi32> to vector<32x32xf32>
    %cst_253 = arith.constant dense<0.000000e+00> : vector<32x4xf32>
    %501 = tpu.matmul %500, %478, %cst_253 {dimension_numbers = #tpu.dot_dimension_numbers<[1], [0], [0], [1], [0, 0, 1, 1], [], []>} : vector<32x32xf32>, vector<32x4xf32>, vector<32x4xf32> -> vector<32x4xf32>
    %c2_254 = arith.constant 2 : index
    %c0_255 = arith.constant 0 : index
    %c0_256 = arith.constant 0 : index
    %502 = vector.load %arg1[%c2_254, %c0_255, %c0_256] : memref<3x4x4xf32, #tpu.memory_space<vmem>>, vector<1x4x4xf32>
    %503 = vector.shape_cast %502 : vector<1x4x4xf32> to vector<4x4xf32>
    %cst_257 = arith.constant dense<0.000000e+00> : vector<32x4xf32>
    %504 = tpu.matmul %501, %503, %cst_257 {dimension_numbers = #tpu.dot_dimension_numbers<[1], [0], [0], [1], [0, 0, 1, 1], [], []>} : vector<32x4xf32>, vector<4x4xf32>, vector<32x4xf32> -> vector<32x4xf32>
    %505 = arith.addf %493, %504 : vector<32x4xf32>
    %c0_258 = arith.constant 0 : index
    %c0_259 = arith.constant 0 : index
    %506 = vector.load %arg2[%c0_258, %c0_259] : memref<1x4xf32, #tpu.memory_space<vmem>>, vector<1x4xf32>
    %507 = vector.broadcast %506 : vector<1x4xf32> to vector<32x4xf32>
    %508 = arith.addf %505, %507 : vector<32x4xf32>
    %509 = vector.extract_strided_slice %508 {offsets = [0, 0], sizes = [32, 2], strides = [1, 1]} : vector<32x4xf32> to vector<32x2xf32>
    %cst_260 = arith.constant 0.000000e+00 : f32
    %510 = vector.broadcast %cst_260 : f32 to vector<32x2xf32>
    %511 = arith.maximumf %509, %510 : vector<32x2xf32>
    %512 = vector.extract_strided_slice %508 {offsets = [0, 2], sizes = [32, 2], strides = [1, 1]} : vector<32x4xf32> to vector<32x2xf32>
    %513 = tpu.iota {dimensions = array<i32: 0>} : vector<16x32xi32>
    %514 = tpu.iota {dimensions = array<i32: 1>} : vector<16x32xi32>
    %c2_i32_261 = arith.constant 2 : i32
    %515 = vector.broadcast %c2_i32_261 : i32 to vector<16x32xi32>
    %516 = arith.muli %515, %513 : vector<16x32xi32>
    %c0_i32_262 = arith.constant 0 : i32
    %517 = vector.broadcast %c0_i32_262 : i32 to vector<16x32xi32>
    %518 = arith.addi %516, %517 : vector<16x32xi32>
    %519 = arith.cmpi eq, %514, %518 : vector<16x32xi32>
    %520 = arith.extui %519 : vector<16x32xi1> to vector<16x32xi32>
    %521 = arith.sitofp %520 : vector<16x32xi32> to vector<16x32xf32>
    %cst_263 = arith.constant dense<0.000000e+00> : vector<16x2xf32>
    %522 = tpu.matmul %521, %512, %cst_263 {dimension_numbers = #tpu.dot_dimension_numbers<[1], [0], [0], [1], [0, 0, 1, 1], [], []>} : vector<16x32xf32>, vector<32x2xf32>, vector<16x2xf32> -> vector<16x2xf32>
    %523 = tpu.iota {dimensions = array<i32: 0>} : vector<16x32xi32>
    %524 = tpu.iota {dimensions = array<i32: 1>} : vector<16x32xi32>
    %c2_i32_264 = arith.constant 2 : i32
    %525 = vector.broadcast %c2_i32_264 : i32 to vector<16x32xi32>
    %526 = arith.muli %525, %523 : vector<16x32xi32>
    %c-1_i32_265 = arith.constant -1 : i32
    %527 = vector.broadcast %c-1_i32_265 : i32 to vector<16x32xi32>
    %528 = arith.addi %526, %527 : vector<16x32xi32>
    %529 = arith.cmpi eq, %524, %528 : vector<16x32xi32>
    %530 = arith.extui %529 : vector<16x32xi1> to vector<16x32xi32>
    %531 = arith.sitofp %530 : vector<16x32xi32> to vector<16x32xf32>
    %cst_266 = arith.constant dense<0.000000e+00> : vector<16x2xf32>
    %532 = tpu.matmul %531, %511, %cst_266 {dimension_numbers = #tpu.dot_dimension_numbers<[1], [0], [0], [1], [0, 0, 1, 1], [], []>} : vector<16x32xf32>, vector<32x2xf32>, vector<16x2xf32> -> vector<16x2xf32>
    %c0_267 = arith.constant 0 : index
    %c0_268 = arith.constant 0 : index
    %c0_269 = arith.constant 0 : index
    %533 = vector.load %arg3[%c0_267, %c0_268, %c0_269] : memref<3x2x2xf32, #tpu.memory_space<vmem>>, vector<1x2x2xf32>
    %534 = vector.shape_cast %533 : vector<1x2x2xf32> to vector<2x2xf32>
    %cst_270 = arith.constant dense<0.000000e+00> : vector<16x2xf32>
    %535 = tpu.matmul %532, %534, %cst_270 {dimension_numbers = #tpu.dot_dimension_numbers<[1], [0], [0], [1], [0, 0, 1, 1], [], []>} : vector<16x2xf32>, vector<2x2xf32>, vector<16x2xf32> -> vector<16x2xf32>
    %536 = tpu.iota {dimensions = array<i32: 0>} : vector<16x32xi32>
    %537 = tpu.iota {dimensions = array<i32: 1>} : vector<16x32xi32>
    %c2_i32_271 = arith.constant 2 : i32
    %538 = vector.broadcast %c2_i32_271 : i32 to vector<16x32xi32>
    %539 = arith.muli %538, %536 : vector<16x32xi32>
    %c0_i32_272 = arith.constant 0 : i32
    %540 = vector.broadcast %c0_i32_272 : i32 to vector<16x32xi32>
    %541 = arith.addi %539, %540 : vector<16x32xi32>
    %542 = arith.cmpi eq, %537, %541 : vector<16x32xi32>
    %543 = arith.extui %542 : vector<16x32xi1> to vector<16x32xi32>
    %544 = arith.sitofp %543 : vector<16x32xi32> to vector<16x32xf32>
    %cst_273 = arith.constant dense<0.000000e+00> : vector<16x2xf32>
    %545 = tpu.matmul %544, %511, %cst_273 {dimension_numbers = #tpu.dot_dimension_numbers<[1], [0], [0], [1], [0, 0, 1, 1], [], []>} : vector<16x32xf32>, vector<32x2xf32>, vector<16x2xf32> -> vector<16x2xf32>
    %c1_274 = arith.constant 1 : index
    %c0_275 = arith.constant 0 : index
    %c0_276 = arith.constant 0 : index
    %546 = vector.load %arg3[%c1_274, %c0_275, %c0_276] : memref<3x2x2xf32, #tpu.memory_space<vmem>>, vector<1x2x2xf32>
    %547 = vector.shape_cast %546 : vector<1x2x2xf32> to vector<2x2xf32>
    %cst_277 = arith.constant dense<0.000000e+00> : vector<16x2xf32>
    %548 = tpu.matmul %545, %547, %cst_277 {dimension_numbers = #tpu.dot_dimension_numbers<[1], [0], [0], [1], [0, 0, 1, 1], [], []>} : vector<16x2xf32>, vector<2x2xf32>, vector<16x2xf32> -> vector<16x2xf32>
    %549 = arith.addf %535, %548 : vector<16x2xf32>
    %550 = tpu.iota {dimensions = array<i32: 0>} : vector<16x32xi32>
    %551 = tpu.iota {dimensions = array<i32: 1>} : vector<16x32xi32>
    %c2_i32_278 = arith.constant 2 : i32
    %552 = vector.broadcast %c2_i32_278 : i32 to vector<16x32xi32>
    %553 = arith.muli %552, %550 : vector<16x32xi32>
    %c1_i32_279 = arith.constant 1 : i32
    %554 = vector.broadcast %c1_i32_279 : i32 to vector<16x32xi32>
    %555 = arith.addi %553, %554 : vector<16x32xi32>
    %556 = arith.cmpi eq, %551, %555 : vector<16x32xi32>
    %557 = arith.extui %556 : vector<16x32xi1> to vector<16x32xi32>
    %558 = arith.sitofp %557 : vector<16x32xi32> to vector<16x32xf32>
    %cst_280 = arith.constant dense<0.000000e+00> : vector<16x2xf32>
    %559 = tpu.matmul %558, %511, %cst_280 {dimension_numbers = #tpu.dot_dimension_numbers<[1], [0], [0], [1], [0, 0, 1, 1], [], []>} : vector<16x32xf32>, vector<32x2xf32>, vector<16x2xf32> -> vector<16x2xf32>
    %c2_281 = arith.constant 2 : index
    %c0_282 = arith.constant 0 : index
    %c0_283 = arith.constant 0 : index
    %560 = vector.load %arg3[%c2_281, %c0_282, %c0_283] : memref<3x2x2xf32, #tpu.memory_space<vmem>>, vector<1x2x2xf32>
    %561 = vector.shape_cast %560 : vector<1x2x2xf32> to vector<2x2xf32>
    %cst_284 = arith.constant dense<0.000000e+00> : vector<16x2xf32>
    %562 = tpu.matmul %559, %561, %cst_284 {dimension_numbers = #tpu.dot_dimension_numbers<[1], [0], [0], [1], [0, 0, 1, 1], [], []>} : vector<16x2xf32>, vector<2x2xf32>, vector<16x2xf32> -> vector<16x2xf32>
    %563 = arith.addf %549, %562 : vector<16x2xf32>
    %c0_285 = arith.constant 0 : index
    %c0_286 = arith.constant 0 : index
    %564 = vector.load %arg4[%c0_285, %c0_286] : memref<1x2xf32, #tpu.memory_space<vmem>>, vector<1x2xf32>
    %565 = vector.broadcast %564 : vector<1x2xf32> to vector<16x2xf32>
    %566 = arith.addf %563, %565 : vector<16x2xf32>
    %567 = arith.addf %566, %522 : vector<16x2xf32>
    %cst_287 = arith.constant 0.000000e+00 : f32
    %568 = vector.broadcast %cst_287 : f32 to vector<16x2xf32>
    %569 = arith.maximumf %567, %568 : vector<16x2xf32>
    %570 = tpu.iota {dimensions = array<i32: 0>} : vector<16x16xi32>
    %571 = tpu.iota {dimensions = array<i32: 1>} : vector<16x16xi32>
    %c-1_i32_288 = arith.constant -1 : i32
    %572 = vector.broadcast %c-1_i32_288 : i32 to vector<16x16xi32>
    %573 = arith.addi %570, %572 : vector<16x16xi32>
    %574 = arith.cmpi eq, %571, %573 : vector<16x16xi32>
    %575 = arith.extui %574 : vector<16x16xi1> to vector<16x16xi32>
    %576 = arith.sitofp %575 : vector<16x16xi32> to vector<16x16xf32>
    %cst_289 = arith.constant dense<0.000000e+00> : vector<16x2xf32>
    %577 = tpu.matmul %576, %569, %cst_289 {dimension_numbers = #tpu.dot_dimension_numbers<[1], [0], [0], [1], [0, 0, 1, 1], [], []>} : vector<16x16xf32>, vector<16x2xf32>, vector<16x2xf32> -> vector<16x2xf32>
    %c0_290 = arith.constant 0 : index
    %c0_291 = arith.constant 0 : index
    %c0_292 = arith.constant 0 : index
    %578 = vector.load %arg5[%c0_290, %c0_291, %c0_292] : memref<3x2x8xf32, #tpu.memory_space<vmem>>, vector<1x2x8xf32>
    %579 = vector.shape_cast %578 : vector<1x2x8xf32> to vector<2x8xf32>
    %cst_293 = arith.constant dense<0.000000e+00> : vector<16x8xf32>
    %580 = tpu.matmul %577, %579, %cst_293 {dimension_numbers = #tpu.dot_dimension_numbers<[1], [0], [0], [1], [0, 0, 1, 1], [], []>} : vector<16x2xf32>, vector<2x8xf32>, vector<16x8xf32> -> vector<16x8xf32>
    %c1_294 = arith.constant 1 : index
    %c0_295 = arith.constant 0 : index
    %c0_296 = arith.constant 0 : index
    %581 = vector.load %arg5[%c1_294, %c0_295, %c0_296] : memref<3x2x8xf32, #tpu.memory_space<vmem>>, vector<1x2x8xf32>
    %582 = vector.shape_cast %581 : vector<1x2x8xf32> to vector<2x8xf32>
    %cst_297 = arith.constant dense<0.000000e+00> : vector<16x8xf32>
    %583 = tpu.matmul %569, %582, %cst_297 {dimension_numbers = #tpu.dot_dimension_numbers<[1], [0], [0], [1], [0, 0, 1, 1], [], []>} : vector<16x2xf32>, vector<2x8xf32>, vector<16x8xf32> -> vector<16x8xf32>
    %584 = arith.addf %580, %583 : vector<16x8xf32>
    %585 = tpu.iota {dimensions = array<i32: 0>} : vector<16x16xi32>
    %586 = tpu.iota {dimensions = array<i32: 1>} : vector<16x16xi32>
    %c1_i32_298 = arith.constant 1 : i32
    %587 = vector.broadcast %c1_i32_298 : i32 to vector<16x16xi32>
    %588 = arith.addi %585, %587 : vector<16x16xi32>
    %589 = arith.cmpi eq, %586, %588 : vector<16x16xi32>
    %590 = arith.extui %589 : vector<16x16xi1> to vector<16x16xi32>
    %591 = arith.sitofp %590 : vector<16x16xi32> to vector<16x16xf32>
    %cst_299 = arith.constant dense<0.000000e+00> : vector<16x2xf32>
    %592 = tpu.matmul %591, %569, %cst_299 {dimension_numbers = #tpu.dot_dimension_numbers<[1], [0], [0], [1], [0, 0, 1, 1], [], []>} : vector<16x16xf32>, vector<16x2xf32>, vector<16x2xf32> -> vector<16x2xf32>
    %c2_300 = arith.constant 2 : index
    %c0_301 = arith.constant 0 : index
    %c0_302 = arith.constant 0 : index
    %593 = vector.load %arg5[%c2_300, %c0_301, %c0_302] : memref<3x2x8xf32, #tpu.memory_space<vmem>>, vector<1x2x8xf32>
    %594 = vector.shape_cast %593 : vector<1x2x8xf32> to vector<2x8xf32>
    %cst_303 = arith.constant dense<0.000000e+00> : vector<16x8xf32>
    %595 = tpu.matmul %592, %594, %cst_303 {dimension_numbers = #tpu.dot_dimension_numbers<[1], [0], [0], [1], [0, 0, 1, 1], [], []>} : vector<16x2xf32>, vector<2x8xf32>, vector<16x8xf32> -> vector<16x8xf32>
    %596 = arith.addf %584, %595 : vector<16x8xf32>
    %c0_304 = arith.constant 0 : index
    %c0_305 = arith.constant 0 : index
    %597 = vector.load %arg6[%c0_304, %c0_305] : memref<1x8xf32, #tpu.memory_space<vmem>>, vector<1x8xf32>
    %598 = vector.broadcast %597 : vector<1x8xf32> to vector<16x8xf32>
    %599 = arith.addf %596, %598 : vector<16x8xf32>
    %600 = vector.extract_strided_slice %599 {offsets = [0, 0], sizes = [16, 4], strides = [1, 1]} : vector<16x8xf32> to vector<16x4xf32>
    %cst_306 = arith.constant 0.000000e+00 : f32
    %601 = vector.broadcast %cst_306 : f32 to vector<16x4xf32>
    %602 = arith.maximumf %600, %601 : vector<16x4xf32>
    %603 = vector.extract_strided_slice %599 {offsets = [0, 4], sizes = [16, 4], strides = [1, 1]} : vector<16x8xf32> to vector<16x4xf32>
    %604 = tpu.iota {dimensions = array<i32: 0>} : vector<8x16xi32>
    %605 = tpu.iota {dimensions = array<i32: 1>} : vector<8x16xi32>
    %c2_i32_307 = arith.constant 2 : i32
    %606 = vector.broadcast %c2_i32_307 : i32 to vector<8x16xi32>
    %607 = arith.muli %606, %604 : vector<8x16xi32>
    %c0_i32_308 = arith.constant 0 : i32
    %608 = vector.broadcast %c0_i32_308 : i32 to vector<8x16xi32>
    %609 = arith.addi %607, %608 : vector<8x16xi32>
    %610 = arith.cmpi eq, %605, %609 : vector<8x16xi32>
    %611 = arith.extui %610 : vector<8x16xi1> to vector<8x16xi32>
    %612 = arith.sitofp %611 : vector<8x16xi32> to vector<8x16xf32>
    %cst_309 = arith.constant dense<0.000000e+00> : vector<8x4xf32>
    %613 = tpu.matmul %612, %603, %cst_309 {dimension_numbers = #tpu.dot_dimension_numbers<[1], [0], [0], [1], [0, 0, 1, 1], [], []>} : vector<8x16xf32>, vector<16x4xf32>, vector<8x4xf32> -> vector<8x4xf32>
    %614 = tpu.iota {dimensions = array<i32: 0>} : vector<8x16xi32>
    %615 = tpu.iota {dimensions = array<i32: 1>} : vector<8x16xi32>
    %c2_i32_310 = arith.constant 2 : i32
    %616 = vector.broadcast %c2_i32_310 : i32 to vector<8x16xi32>
    %617 = arith.muli %616, %614 : vector<8x16xi32>
    %c-1_i32_311 = arith.constant -1 : i32
    %618 = vector.broadcast %c-1_i32_311 : i32 to vector<8x16xi32>
    %619 = arith.addi %617, %618 : vector<8x16xi32>
    %620 = arith.cmpi eq, %615, %619 : vector<8x16xi32>
    %621 = arith.extui %620 : vector<8x16xi1> to vector<8x16xi32>
    %622 = arith.sitofp %621 : vector<8x16xi32> to vector<8x16xf32>
    %cst_312 = arith.constant dense<0.000000e+00> : vector<8x4xf32>
    %623 = tpu.matmul %622, %602, %cst_312 {dimension_numbers = #tpu.dot_dimension_numbers<[1], [0], [0], [1], [0, 0, 1, 1], [], []>} : vector<8x16xf32>, vector<16x4xf32>, vector<8x4xf32> -> vector<8x4xf32>
    %c0_313 = arith.constant 0 : index
    %c0_314 = arith.constant 0 : index
    %c0_315 = arith.constant 0 : index
    %624 = vector.load %arg7[%c0_313, %c0_314, %c0_315] : memref<3x4x4xf32, #tpu.memory_space<vmem>>, vector<1x4x4xf32>
    %625 = vector.shape_cast %624 : vector<1x4x4xf32> to vector<4x4xf32>
    %cst_316 = arith.constant dense<0.000000e+00> : vector<8x4xf32>
    %626 = tpu.matmul %623, %625, %cst_316 {dimension_numbers = #tpu.dot_dimension_numbers<[1], [0], [0], [1], [0, 0, 1, 1], [], []>} : vector<8x4xf32>, vector<4x4xf32>, vector<8x4xf32> -> vector<8x4xf32>
    %627 = tpu.iota {dimensions = array<i32: 0>} : vector<8x16xi32>
    %628 = tpu.iota {dimensions = array<i32: 1>} : vector<8x16xi32>
    %c2_i32_317 = arith.constant 2 : i32
    %629 = vector.broadcast %c2_i32_317 : i32 to vector<8x16xi32>
    %630 = arith.muli %629, %627 : vector<8x16xi32>
    %c0_i32_318 = arith.constant 0 : i32
    %631 = vector.broadcast %c0_i32_318 : i32 to vector<8x16xi32>
    %632 = arith.addi %630, %631 : vector<8x16xi32>
    %633 = arith.cmpi eq, %628, %632 : vector<8x16xi32>
    %634 = arith.extui %633 : vector<8x16xi1> to vector<8x16xi32>
    %635 = arith.sitofp %634 : vector<8x16xi32> to vector<8x16xf32>
    %cst_319 = arith.constant dense<0.000000e+00> : vector<8x4xf32>
    %636 = tpu.matmul %635, %602, %cst_319 {dimension_numbers = #tpu.dot_dimension_numbers<[1], [0], [0], [1], [0, 0, 1, 1], [], []>} : vector<8x16xf32>, vector<16x4xf32>, vector<8x4xf32> -> vector<8x4xf32>
    %c1_320 = arith.constant 1 : index
    %c0_321 = arith.constant 0 : index
    %c0_322 = arith.constant 0 : index
    %637 = vector.load %arg7[%c1_320, %c0_321, %c0_322] : memref<3x4x4xf32, #tpu.memory_space<vmem>>, vector<1x4x4xf32>
    %638 = vector.shape_cast %637 : vector<1x4x4xf32> to vector<4x4xf32>
    %cst_323 = arith.constant dense<0.000000e+00> : vector<8x4xf32>
    %639 = tpu.matmul %636, %638, %cst_323 {dimension_numbers = #tpu.dot_dimension_numbers<[1], [0], [0], [1], [0, 0, 1, 1], [], []>} : vector<8x4xf32>, vector<4x4xf32>, vector<8x4xf32> -> vector<8x4xf32>
    %640 = arith.addf %626, %639 : vector<8x4xf32>
    %641 = tpu.iota {dimensions = array<i32: 0>} : vector<8x16xi32>
    %642 = tpu.iota {dimensions = array<i32: 1>} : vector<8x16xi32>
    %c2_i32_324 = arith.constant 2 : i32
    %643 = vector.broadcast %c2_i32_324 : i32 to vector<8x16xi32>
    %644 = arith.muli %643, %641 : vector<8x16xi32>
    %c1_i32_325 = arith.constant 1 : i32
    %645 = vector.broadcast %c1_i32_325 : i32 to vector<8x16xi32>
    %646 = arith.addi %644, %645 : vector<8x16xi32>
    %647 = arith.cmpi eq, %642, %646 : vector<8x16xi32>
    %648 = arith.extui %647 : vector<8x16xi1> to vector<8x16xi32>
    %649 = arith.sitofp %648 : vector<8x16xi32> to vector<8x16xf32>
    %cst_326 = arith.constant dense<0.000000e+00> : vector<8x4xf32>
    %650 = tpu.matmul %649, %602, %cst_326 {dimension_numbers = #tpu.dot_dimension_numbers<[1], [0], [0], [1], [0, 0, 1, 1], [], []>} : vector<8x16xf32>, vector<16x4xf32>, vector<8x4xf32> -> vector<8x4xf32>
    %c2_327 = arith.constant 2 : index
    %c0_328 = arith.constant 0 : index
    %c0_329 = arith.constant 0 : index
    %651 = vector.load %arg7[%c2_327, %c0_328, %c0_329] : memref<3x4x4xf32, #tpu.memory_space<vmem>>, vector<1x4x4xf32>
    %652 = vector.shape_cast %651 : vector<1x4x4xf32> to vector<4x4xf32>
    %cst_330 = arith.constant dense<0.000000e+00> : vector<8x4xf32>
    %653 = tpu.matmul %650, %652, %cst_330 {dimension_numbers = #tpu.dot_dimension_numbers<[1], [0], [0], [1], [0, 0, 1, 1], [], []>} : vector<8x4xf32>, vector<4x4xf32>, vector<8x4xf32> -> vector<8x4xf32>
    %654 = arith.addf %640, %653 : vector<8x4xf32>
    %c0_331 = arith.constant 0 : index
    %c0_332 = arith.constant 0 : index
    %655 = vector.load %arg8[%c0_331, %c0_332] : memref<1x4xf32, #tpu.memory_space<vmem>>, vector<1x4xf32>
    %656 = vector.broadcast %655 : vector<1x4xf32> to vector<8x4xf32>
    %657 = arith.addf %654, %656 : vector<8x4xf32>
    %658 = arith.addf %657, %613 : vector<8x4xf32>
    %cst_333 = arith.constant 0.000000e+00 : f32
    %659 = vector.broadcast %cst_333 : f32 to vector<8x4xf32>
    %660 = arith.maximumf %658, %659 : vector<8x4xf32>
    %661 = tpu.iota {dimensions = array<i32: 0>} : vector<8x8xi32>
    %662 = tpu.iota {dimensions = array<i32: 1>} : vector<8x8xi32>
    %c-1_i32_334 = arith.constant -1 : i32
    %663 = vector.broadcast %c-1_i32_334 : i32 to vector<8x8xi32>
    %664 = arith.addi %661, %663 : vector<8x8xi32>
    %665 = arith.cmpi eq, %662, %664 : vector<8x8xi32>
    %666 = arith.extui %665 : vector<8x8xi1> to vector<8x8xi32>
    %667 = arith.sitofp %666 : vector<8x8xi32> to vector<8x8xf32>
    %cst_335 = arith.constant dense<0.000000e+00> : vector<8x4xf32>
    %668 = tpu.matmul %667, %660, %cst_335 {dimension_numbers = #tpu.dot_dimension_numbers<[1], [0], [0], [1], [0, 0, 1, 1], [], []>} : vector<8x8xf32>, vector<8x4xf32>, vector<8x4xf32> -> vector<8x4xf32>
    %c0_336 = arith.constant 0 : index
    %c0_337 = arith.constant 0 : index
    %c0_338 = arith.constant 0 : index
    %669 = vector.load %arg9[%c0_336, %c0_337, %c0_338] : memref<3x4x16xf32, #tpu.memory_space<vmem>>, vector<1x4x16xf32>
    %670 = vector.shape_cast %669 : vector<1x4x16xf32> to vector<4x16xf32>
    %cst_339 = arith.constant dense<0.000000e+00> : vector<8x16xf32>
    %671 = tpu.matmul %668, %670, %cst_339 {dimension_numbers = #tpu.dot_dimension_numbers<[1], [0], [0], [1], [0, 0, 1, 1], [], []>} : vector<8x4xf32>, vector<4x16xf32>, vector<8x16xf32> -> vector<8x16xf32>
    %c1_340 = arith.constant 1 : index
    %c0_341 = arith.constant 0 : index
    %c0_342 = arith.constant 0 : index
    %672 = vector.load %arg9[%c1_340, %c0_341, %c0_342] : memref<3x4x16xf32, #tpu.memory_space<vmem>>, vector<1x4x16xf32>
    %673 = vector.shape_cast %672 : vector<1x4x16xf32> to vector<4x16xf32>
    %cst_343 = arith.constant dense<0.000000e+00> : vector<8x16xf32>
    %674 = tpu.matmul %660, %673, %cst_343 {dimension_numbers = #tpu.dot_dimension_numbers<[1], [0], [0], [1], [0, 0, 1, 1], [], []>} : vector<8x4xf32>, vector<4x16xf32>, vector<8x16xf32> -> vector<8x16xf32>
    %675 = arith.addf %671, %674 : vector<8x16xf32>
    %676 = tpu.iota {dimensions = array<i32: 0>} : vector<8x8xi32>
    %677 = tpu.iota {dimensions = array<i32: 1>} : vector<8x8xi32>
    %c1_i32_344 = arith.constant 1 : i32
    %678 = vector.broadcast %c1_i32_344 : i32 to vector<8x8xi32>
    %679 = arith.addi %676, %678 : vector<8x8xi32>
    %680 = arith.cmpi eq, %677, %679 : vector<8x8xi32>
    %681 = arith.extui %680 : vector<8x8xi1> to vector<8x8xi32>
    %682 = arith.sitofp %681 : vector<8x8xi32> to vector<8x8xf32>
    %cst_345 = arith.constant dense<0.000000e+00> : vector<8x4xf32>
    %683 = tpu.matmul %682, %660, %cst_345 {dimension_numbers = #tpu.dot_dimension_numbers<[1], [0], [0], [1], [0, 0, 1, 1], [], []>} : vector<8x8xf32>, vector<8x4xf32>, vector<8x4xf32> -> vector<8x4xf32>
    %c2_346 = arith.constant 2 : index
    %c0_347 = arith.constant 0 : index
    %c0_348 = arith.constant 0 : index
    %684 = vector.load %arg9[%c2_346, %c0_347, %c0_348] : memref<3x4x16xf32, #tpu.memory_space<vmem>>, vector<1x4x16xf32>
    %685 = vector.shape_cast %684 : vector<1x4x16xf32> to vector<4x16xf32>
    %cst_349 = arith.constant dense<0.000000e+00> : vector<8x16xf32>
    %686 = tpu.matmul %683, %685, %cst_349 {dimension_numbers = #tpu.dot_dimension_numbers<[1], [0], [0], [1], [0, 0, 1, 1], [], []>} : vector<8x4xf32>, vector<4x16xf32>, vector<8x16xf32> -> vector<8x16xf32>
    %687 = arith.addf %675, %686 : vector<8x16xf32>
    %c0_350 = arith.constant 0 : index
    %c0_351 = arith.constant 0 : index
    %688 = vector.load %arg10[%c0_350, %c0_351] : memref<1x16xf32, #tpu.memory_space<vmem>>, vector<1x16xf32>
    %689 = vector.broadcast %688 : vector<1x16xf32> to vector<8x16xf32>
    %690 = arith.addf %687, %689 : vector<8x16xf32>
    %691 = vector.extract_strided_slice %690 {offsets = [0, 0], sizes = [8, 8], strides = [1, 1]} : vector<8x16xf32> to vector<8x8xf32>
    %cst_352 = arith.constant 0.000000e+00 : f32
    %692 = vector.broadcast %cst_352 : f32 to vector<8x8xf32>
    %693 = arith.maximumf %691, %692 : vector<8x8xf32>
    %694 = vector.extract_strided_slice %690 {offsets = [0, 8], sizes = [8, 8], strides = [1, 1]} : vector<8x16xf32> to vector<8x8xf32>
    %695 = tpu.iota {dimensions = array<i32: 0>} : vector<4x8xi32>
    %696 = tpu.iota {dimensions = array<i32: 1>} : vector<4x8xi32>
    %c2_i32_353 = arith.constant 2 : i32
    %697 = vector.broadcast %c2_i32_353 : i32 to vector<4x8xi32>
    %698 = arith.muli %697, %695 : vector<4x8xi32>
    %c0_i32_354 = arith.constant 0 : i32
    %699 = vector.broadcast %c0_i32_354 : i32 to vector<4x8xi32>
    %700 = arith.addi %698, %699 : vector<4x8xi32>
    %701 = arith.cmpi eq, %696, %700 : vector<4x8xi32>
    %702 = arith.extui %701 : vector<4x8xi1> to vector<4x8xi32>
    %703 = arith.sitofp %702 : vector<4x8xi32> to vector<4x8xf32>
    %cst_355 = arith.constant dense<0.000000e+00> : vector<4x8xf32>
    %704 = tpu.matmul %703, %694, %cst_355 {dimension_numbers = #tpu.dot_dimension_numbers<[1], [0], [0], [1], [0, 0, 1, 1], [], []>} : vector<4x8xf32>, vector<8x8xf32>, vector<4x8xf32> -> vector<4x8xf32>
    %705 = tpu.iota {dimensions = array<i32: 0>} : vector<4x8xi32>
    %706 = tpu.iota {dimensions = array<i32: 1>} : vector<4x8xi32>
    %c2_i32_356 = arith.constant 2 : i32
    %707 = vector.broadcast %c2_i32_356 : i32 to vector<4x8xi32>
    %708 = arith.muli %707, %705 : vector<4x8xi32>
    %c-1_i32_357 = arith.constant -1 : i32
    %709 = vector.broadcast %c-1_i32_357 : i32 to vector<4x8xi32>
    %710 = arith.addi %708, %709 : vector<4x8xi32>
    %711 = arith.cmpi eq, %706, %710 : vector<4x8xi32>
    %712 = arith.extui %711 : vector<4x8xi1> to vector<4x8xi32>
    %713 = arith.sitofp %712 : vector<4x8xi32> to vector<4x8xf32>
    %cst_358 = arith.constant dense<0.000000e+00> : vector<4x8xf32>
    %714 = tpu.matmul %713, %693, %cst_358 {dimension_numbers = #tpu.dot_dimension_numbers<[1], [0], [0], [1], [0, 0, 1, 1], [], []>} : vector<4x8xf32>, vector<8x8xf32>, vector<4x8xf32> -> vector<4x8xf32>
    %c0_359 = arith.constant 0 : index
    %c0_360 = arith.constant 0 : index
    %c0_361 = arith.constant 0 : index
    %715 = vector.load %arg11[%c0_359, %c0_360, %c0_361] : memref<3x8x8xf32, #tpu.memory_space<vmem>>, vector<1x8x8xf32>
    %716 = vector.shape_cast %715 : vector<1x8x8xf32> to vector<8x8xf32>
    %cst_362 = arith.constant dense<0.000000e+00> : vector<4x8xf32>
    %717 = tpu.matmul %714, %716, %cst_362 {dimension_numbers = #tpu.dot_dimension_numbers<[1], [0], [0], [1], [0, 0, 1, 1], [], []>} : vector<4x8xf32>, vector<8x8xf32>, vector<4x8xf32> -> vector<4x8xf32>
    %718 = tpu.iota {dimensions = array<i32: 0>} : vector<4x8xi32>
    %719 = tpu.iota {dimensions = array<i32: 1>} : vector<4x8xi32>
    %c2_i32_363 = arith.constant 2 : i32
    %720 = vector.broadcast %c2_i32_363 : i32 to vector<4x8xi32>
    %721 = arith.muli %720, %718 : vector<4x8xi32>
    %c0_i32_364 = arith.constant 0 : i32
    %722 = vector.broadcast %c0_i32_364 : i32 to vector<4x8xi32>
    %723 = arith.addi %721, %722 : vector<4x8xi32>
    %724 = arith.cmpi eq, %719, %723 : vector<4x8xi32>
    %725 = arith.extui %724 : vector<4x8xi1> to vector<4x8xi32>
    %726 = arith.sitofp %725 : vector<4x8xi32> to vector<4x8xf32>
    %cst_365 = arith.constant dense<0.000000e+00> : vector<4x8xf32>
    %727 = tpu.matmul %726, %693, %cst_365 {dimension_numbers = #tpu.dot_dimension_numbers<[1], [0], [0], [1], [0, 0, 1, 1], [], []>} : vector<4x8xf32>, vector<8x8xf32>, vector<4x8xf32> -> vector<4x8xf32>
    %c1_366 = arith.constant 1 : index
    %c0_367 = arith.constant 0 : index
    %c0_368 = arith.constant 0 : index
    %728 = vector.load %arg11[%c1_366, %c0_367, %c0_368] : memref<3x8x8xf32, #tpu.memory_space<vmem>>, vector<1x8x8xf32>
    %729 = vector.shape_cast %728 : vector<1x8x8xf32> to vector<8x8xf32>
    %cst_369 = arith.constant dense<0.000000e+00> : vector<4x8xf32>
    %730 = tpu.matmul %727, %729, %cst_369 {dimension_numbers = #tpu.dot_dimension_numbers<[1], [0], [0], [1], [0, 0, 1, 1], [], []>} : vector<4x8xf32>, vector<8x8xf32>, vector<4x8xf32> -> vector<4x8xf32>
    %731 = arith.addf %717, %730 : vector<4x8xf32>
    %732 = tpu.iota {dimensions = array<i32: 0>} : vector<4x8xi32>
    %733 = tpu.iota {dimensions = array<i32: 1>} : vector<4x8xi32>
    %c2_i32_370 = arith.constant 2 : i32
    %734 = vector.broadcast %c2_i32_370 : i32 to vector<4x8xi32>
    %735 = arith.muli %734, %732 : vector<4x8xi32>
    %c1_i32_371 = arith.constant 1 : i32
    %736 = vector.broadcast %c1_i32_371 : i32 to vector<4x8xi32>
    %737 = arith.addi %735, %736 : vector<4x8xi32>
    %738 = arith.cmpi eq, %733, %737 : vector<4x8xi32>
    %739 = arith.extui %738 : vector<4x8xi1> to vector<4x8xi32>
    %740 = arith.sitofp %739 : vector<4x8xi32> to vector<4x8xf32>
    %cst_372 = arith.constant dense<0.000000e+00> : vector<4x8xf32>
    %741 = tpu.matmul %740, %693, %cst_372 {dimension_numbers = #tpu.dot_dimension_numbers<[1], [0], [0], [1], [0, 0, 1, 1], [], []>} : vector<4x8xf32>, vector<8x8xf32>, vector<4x8xf32> -> vector<4x8xf32>
    %c2_373 = arith.constant 2 : index
    %c0_374 = arith.constant 0 : index
    %c0_375 = arith.constant 0 : index
    %742 = vector.load %arg11[%c2_373, %c0_374, %c0_375] : memref<3x8x8xf32, #tpu.memory_space<vmem>>, vector<1x8x8xf32>
    %743 = vector.shape_cast %742 : vector<1x8x8xf32> to vector<8x8xf32>
    %cst_376 = arith.constant dense<0.000000e+00> : vector<4x8xf32>
    %744 = tpu.matmul %741, %743, %cst_376 {dimension_numbers = #tpu.dot_dimension_numbers<[1], [0], [0], [1], [0, 0, 1, 1], [], []>} : vector<4x8xf32>, vector<8x8xf32>, vector<4x8xf32> -> vector<4x8xf32>
    %745 = arith.addf %731, %744 : vector<4x8xf32>
    %c0_377 = arith.constant 0 : index
    %c0_378 = arith.constant 0 : index
    %746 = vector.load %arg12[%c0_377, %c0_378] : memref<1x8xf32, #tpu.memory_space<vmem>>, vector<1x8xf32>
    %747 = vector.broadcast %746 : vector<1x8xf32> to vector<4x8xf32>
    %748 = arith.addf %745, %747 : vector<4x8xf32>
    %749 = arith.addf %748, %704 : vector<4x8xf32>
    %cst_379 = arith.constant 0.000000e+00 : f32
    %750 = vector.broadcast %cst_379 : f32 to vector<4x8xf32>
    %751 = arith.maximumf %749, %750 : vector<4x8xf32>
    %752 = tpu.iota {dimensions = array<i32: 0>} : vector<4x4xi32>
    %753 = tpu.iota {dimensions = array<i32: 1>} : vector<4x4xi32>
    %c-1_i32_380 = arith.constant -1 : i32
    %754 = vector.broadcast %c-1_i32_380 : i32 to vector<4x4xi32>
    %755 = arith.addi %752, %754 : vector<4x4xi32>
    %756 = arith.cmpi eq, %753, %755 : vector<4x4xi32>
    %757 = arith.extui %756 : vector<4x4xi1> to vector<4x4xi32>
    %758 = arith.sitofp %757 : vector<4x4xi32> to vector<4x4xf32>
    %cst_381 = arith.constant dense<0.000000e+00> : vector<4x8xf32>
    %759 = tpu.matmul %758, %751, %cst_381 {dimension_numbers = #tpu.dot_dimension_numbers<[1], [0], [0], [1], [0, 0, 1, 1], [], []>} : vector<4x4xf32>, vector<4x8xf32>, vector<4x8xf32> -> vector<4x8xf32>
    %c0_382 = arith.constant 0 : index
    %c0_383 = arith.constant 0 : index
    %c0_384 = arith.constant 0 : index
    %760 = vector.load %arg13[%c0_382, %c0_383, %c0_384] : memref<3x8x32xf32, #tpu.memory_space<vmem>>, vector<1x8x32xf32>
    %761 = vector.shape_cast %760 : vector<1x8x32xf32> to vector<8x32xf32>
    %cst_385 = arith.constant dense<0.000000e+00> : vector<4x32xf32>
    %762 = tpu.matmul %759, %761, %cst_385 {dimension_numbers = #tpu.dot_dimension_numbers<[1], [0], [0], [1], [0, 0, 1, 1], [], []>} : vector<4x8xf32>, vector<8x32xf32>, vector<4x32xf32> -> vector<4x32xf32>
    %c1_386 = arith.constant 1 : index
    %c0_387 = arith.constant 0 : index
    %c0_388 = arith.constant 0 : index
    %763 = vector.load %arg13[%c1_386, %c0_387, %c0_388] : memref<3x8x32xf32, #tpu.memory_space<vmem>>, vector<1x8x32xf32>
    %764 = vector.shape_cast %763 : vector<1x8x32xf32> to vector<8x32xf32>
    %cst_389 = arith.constant dense<0.000000e+00> : vector<4x32xf32>
    %765 = tpu.matmul %751, %764, %cst_389 {dimension_numbers = #tpu.dot_dimension_numbers<[1], [0], [0], [1], [0, 0, 1, 1], [], []>} : vector<4x8xf32>, vector<8x32xf32>, vector<4x32xf32> -> vector<4x32xf32>
    %766 = arith.addf %762, %765 : vector<4x32xf32>
    %767 = tpu.iota {dimensions = array<i32: 0>} : vector<4x4xi32>
    %768 = tpu.iota {dimensions = array<i32: 1>} : vector<4x4xi32>
    %c1_i32_390 = arith.constant 1 : i32
    %769 = vector.broadcast %c1_i32_390 : i32 to vector<4x4xi32>
    %770 = arith.addi %767, %769 : vector<4x4xi32>
    %771 = arith.cmpi eq, %768, %770 : vector<4x4xi32>
    %772 = arith.extui %771 : vector<4x4xi1> to vector<4x4xi32>
    %773 = arith.sitofp %772 : vector<4x4xi32> to vector<4x4xf32>
    %cst_391 = arith.constant dense<0.000000e+00> : vector<4x8xf32>
    %774 = tpu.matmul %773, %751, %cst_391 {dimension_numbers = #tpu.dot_dimension_numbers<[1], [0], [0], [1], [0, 0, 1, 1], [], []>} : vector<4x4xf32>, vector<4x8xf32>, vector<4x8xf32> -> vector<4x8xf32>
    %c2_392 = arith.constant 2 : index
    %c0_393 = arith.constant 0 : index
    %c0_394 = arith.constant 0 : index
    %775 = vector.load %arg13[%c2_392, %c0_393, %c0_394] : memref<3x8x32xf32, #tpu.memory_space<vmem>>, vector<1x8x32xf32>
    %776 = vector.shape_cast %775 : vector<1x8x32xf32> to vector<8x32xf32>
    %cst_395 = arith.constant dense<0.000000e+00> : vector<4x32xf32>
    %777 = tpu.matmul %774, %776, %cst_395 {dimension_numbers = #tpu.dot_dimension_numbers<[1], [0], [0], [1], [0, 0, 1, 1], [], []>} : vector<4x8xf32>, vector<8x32xf32>, vector<4x32xf32> -> vector<4x32xf32>
    %778 = arith.addf %766, %777 : vector<4x32xf32>
    %c0_396 = arith.constant 0 : index
    %c0_397 = arith.constant 0 : index
    %779 = vector.load %arg14[%c0_396, %c0_397] : memref<1x32xf32, #tpu.memory_space<vmem>>, vector<1x32xf32>
    %780 = vector.broadcast %779 : vector<1x32xf32> to vector<4x32xf32>
    %781 = arith.addf %778, %780 : vector<4x32xf32>
    %782 = vector.extract_strided_slice %781 {offsets = [0, 0], sizes = [4, 16], strides = [1, 1]} : vector<4x32xf32> to vector<4x16xf32>
    %cst_398 = arith.constant 0.000000e+00 : f32
    %783 = vector.broadcast %cst_398 : f32 to vector<4x16xf32>
    %784 = arith.maximumf %782, %783 : vector<4x16xf32>
    %785 = vector.extract_strided_slice %781 {offsets = [0, 16], sizes = [4, 16], strides = [1, 1]} : vector<4x32xf32> to vector<4x16xf32>
    %786 = tpu.iota {dimensions = array<i32: 0>} : vector<2x4xi32>
    %787 = tpu.iota {dimensions = array<i32: 1>} : vector<2x4xi32>
    %c2_i32_399 = arith.constant 2 : i32
    %788 = vector.broadcast %c2_i32_399 : i32 to vector<2x4xi32>
    %789 = arith.muli %788, %786 : vector<2x4xi32>
    %c0_i32_400 = arith.constant 0 : i32
    %790 = vector.broadcast %c0_i32_400 : i32 to vector<2x4xi32>
    %791 = arith.addi %789, %790 : vector<2x4xi32>
    %792 = arith.cmpi eq, %787, %791 : vector<2x4xi32>
    %793 = arith.extui %792 : vector<2x4xi1> to vector<2x4xi32>
    %794 = arith.sitofp %793 : vector<2x4xi32> to vector<2x4xf32>
    %cst_401 = arith.constant dense<0.000000e+00> : vector<2x16xf32>
    %795 = tpu.matmul %794, %785, %cst_401 {dimension_numbers = #tpu.dot_dimension_numbers<[1], [0], [0], [1], [0, 0, 1, 1], [], []>} : vector<2x4xf32>, vector<4x16xf32>, vector<2x16xf32> -> vector<2x16xf32>
    %796 = tpu.iota {dimensions = array<i32: 0>} : vector<2x4xi32>
    %797 = tpu.iota {dimensions = array<i32: 1>} : vector<2x4xi32>
    %c2_i32_402 = arith.constant 2 : i32
    %798 = vector.broadcast %c2_i32_402 : i32 to vector<2x4xi32>
    %799 = arith.muli %798, %796 : vector<2x4xi32>
    %c-1_i32_403 = arith.constant -1 : i32
    %800 = vector.broadcast %c-1_i32_403 : i32 to vector<2x4xi32>
    %801 = arith.addi %799, %800 : vector<2x4xi32>
    %802 = arith.cmpi eq, %797, %801 : vector<2x4xi32>
    %803 = arith.extui %802 : vector<2x4xi1> to vector<2x4xi32>
    %804 = arith.sitofp %803 : vector<2x4xi32> to vector<2x4xf32>
    %cst_404 = arith.constant dense<0.000000e+00> : vector<2x16xf32>
    %805 = tpu.matmul %804, %784, %cst_404 {dimension_numbers = #tpu.dot_dimension_numbers<[1], [0], [0], [1], [0, 0, 1, 1], [], []>} : vector<2x4xf32>, vector<4x16xf32>, vector<2x16xf32> -> vector<2x16xf32>
    %c0_405 = arith.constant 0 : index
    %c0_406 = arith.constant 0 : index
    %c0_407 = arith.constant 0 : index
    %806 = vector.load %arg15[%c0_405, %c0_406, %c0_407] : memref<3x16x16xf32, #tpu.memory_space<vmem>>, vector<1x16x16xf32>
    %807 = vector.shape_cast %806 : vector<1x16x16xf32> to vector<16x16xf32>
    %cst_408 = arith.constant dense<0.000000e+00> : vector<2x16xf32>
    %808 = tpu.matmul %805, %807, %cst_408 {dimension_numbers = #tpu.dot_dimension_numbers<[1], [0], [0], [1], [0, 0, 1, 1], [], []>} : vector<2x16xf32>, vector<16x16xf32>, vector<2x16xf32> -> vector<2x16xf32>
    %809 = tpu.iota {dimensions = array<i32: 0>} : vector<2x4xi32>
    %810 = tpu.iota {dimensions = array<i32: 1>} : vector<2x4xi32>
    %c2_i32_409 = arith.constant 2 : i32
    %811 = vector.broadcast %c2_i32_409 : i32 to vector<2x4xi32>
    %812 = arith.muli %811, %809 : vector<2x4xi32>
    %c0_i32_410 = arith.constant 0 : i32
    %813 = vector.broadcast %c0_i32_410 : i32 to vector<2x4xi32>
    %814 = arith.addi %812, %813 : vector<2x4xi32>
    %815 = arith.cmpi eq, %810, %814 : vector<2x4xi32>
    %816 = arith.extui %815 : vector<2x4xi1> to vector<2x4xi32>
    %817 = arith.sitofp %816 : vector<2x4xi32> to vector<2x4xf32>
    %cst_411 = arith.constant dense<0.000000e+00> : vector<2x16xf32>
    %818 = tpu.matmul %817, %784, %cst_411 {dimension_numbers = #tpu.dot_dimension_numbers<[1], [0], [0], [1], [0, 0, 1, 1], [], []>} : vector<2x4xf32>, vector<4x16xf32>, vector<2x16xf32> -> vector<2x16xf32>
    %c1_412 = arith.constant 1 : index
    %c0_413 = arith.constant 0 : index
    %c0_414 = arith.constant 0 : index
    %819 = vector.load %arg15[%c1_412, %c0_413, %c0_414] : memref<3x16x16xf32, #tpu.memory_space<vmem>>, vector<1x16x16xf32>
    %820 = vector.shape_cast %819 : vector<1x16x16xf32> to vector<16x16xf32>
    %cst_415 = arith.constant dense<0.000000e+00> : vector<2x16xf32>
    %821 = tpu.matmul %818, %820, %cst_415 {dimension_numbers = #tpu.dot_dimension_numbers<[1], [0], [0], [1], [0, 0, 1, 1], [], []>} : vector<2x16xf32>, vector<16x16xf32>, vector<2x16xf32> -> vector<2x16xf32>
    %822 = arith.addf %808, %821 : vector<2x16xf32>
    %823 = tpu.iota {dimensions = array<i32: 0>} : vector<2x4xi32>
    %824 = tpu.iota {dimensions = array<i32: 1>} : vector<2x4xi32>
    %c2_i32_416 = arith.constant 2 : i32
    %825 = vector.broadcast %c2_i32_416 : i32 to vector<2x4xi32>
    %826 = arith.muli %825, %823 : vector<2x4xi32>
    %c1_i32_417 = arith.constant 1 : i32
    %827 = vector.broadcast %c1_i32_417 : i32 to vector<2x4xi32>
    %828 = arith.addi %826, %827 : vector<2x4xi32>
    %829 = arith.cmpi eq, %824, %828 : vector<2x4xi32>
    %830 = arith.extui %829 : vector<2x4xi1> to vector<2x4xi32>
    %831 = arith.sitofp %830 : vector<2x4xi32> to vector<2x4xf32>
    %cst_418 = arith.constant dense<0.000000e+00> : vector<2x16xf32>
    %832 = tpu.matmul %831, %784, %cst_418 {dimension_numbers = #tpu.dot_dimension_numbers<[1], [0], [0], [1], [0, 0, 1, 1], [], []>} : vector<2x4xf32>, vector<4x16xf32>, vector<2x16xf32> -> vector<2x16xf32>
    %c2_419 = arith.constant 2 : index
    %c0_420 = arith.constant 0 : index
    %c0_421 = arith.constant 0 : index
    %833 = vector.load %arg15[%c2_419, %c0_420, %c0_421] : memref<3x16x16xf32, #tpu.memory_space<vmem>>, vector<1x16x16xf32>
    %834 = vector.shape_cast %833 : vector<1x16x16xf32> to vector<16x16xf32>
    %cst_422 = arith.constant dense<0.000000e+00> : vector<2x16xf32>
    %835 = tpu.matmul %832, %834, %cst_422 {dimension_numbers = #tpu.dot_dimension_numbers<[1], [0], [0], [1], [0, 0, 1, 1], [], []>} : vector<2x16xf32>, vector<16x16xf32>, vector<2x16xf32> -> vector<2x16xf32>
    %836 = arith.addf %822, %835 : vector<2x16xf32>
    %c0_423 = arith.constant 0 : index
    %c0_424 = arith.constant 0 : index
    %837 = vector.load %arg16[%c0_423, %c0_424] : memref<1x16xf32, #tpu.memory_space<vmem>>, vector<1x16xf32>
    %838 = vector.broadcast %837 : vector<1x16xf32> to vector<2x16xf32>
    %839 = arith.addf %836, %838 : vector<2x16xf32>
    %840 = arith.addf %839, %795 : vector<2x16xf32>
    %cst_425 = arith.constant 0.000000e+00 : f32
    %841 = vector.broadcast %cst_425 : f32 to vector<2x16xf32>
    %842 = arith.maximumf %840, %841 : vector<2x16xf32>
    %843 = tpu.iota {dimensions = array<i32: 0>} : vector<2x2xi32>
    %844 = tpu.iota {dimensions = array<i32: 1>} : vector<2x2xi32>
    %c-1_i32_426 = arith.constant -1 : i32
    %845 = vector.broadcast %c-1_i32_426 : i32 to vector<2x2xi32>
    %846 = arith.addi %843, %845 : vector<2x2xi32>
    %847 = arith.cmpi eq, %844, %846 : vector<2x2xi32>
    %848 = arith.extui %847 : vector<2x2xi1> to vector<2x2xi32>
    %849 = arith.sitofp %848 : vector<2x2xi32> to vector<2x2xf32>
    %cst_427 = arith.constant dense<0.000000e+00> : vector<2x16xf32>
    %850 = tpu.matmul %849, %842, %cst_427 {dimension_numbers = #tpu.dot_dimension_numbers<[1], [0], [0], [1], [0, 0, 1, 1], [], []>} : vector<2x2xf32>, vector<2x16xf32>, vector<2x16xf32> -> vector<2x16xf32>
    %c0_428 = arith.constant 0 : index
    %c0_429 = arith.constant 0 : index
    %c0_430 = arith.constant 0 : index
    %851 = vector.load %arg17[%c0_428, %c0_429, %c0_430] : memref<3x16x64xf32, #tpu.memory_space<vmem>>, vector<1x16x64xf32>
    %852 = vector.shape_cast %851 : vector<1x16x64xf32> to vector<16x64xf32>
    %cst_431 = arith.constant dense<0.000000e+00> : vector<2x64xf32>
    %853 = tpu.matmul %850, %852, %cst_431 {dimension_numbers = #tpu.dot_dimension_numbers<[1], [0], [0], [1], [0, 0, 1, 1], [], []>} : vector<2x16xf32>, vector<16x64xf32>, vector<2x64xf32> -> vector<2x64xf32>
    %c1_432 = arith.constant 1 : index
    %c0_433 = arith.constant 0 : index
    %c0_434 = arith.constant 0 : index
    %854 = vector.load %arg17[%c1_432, %c0_433, %c0_434] : memref<3x16x64xf32, #tpu.memory_space<vmem>>, vector<1x16x64xf32>
    %855 = vector.shape_cast %854 : vector<1x16x64xf32> to vector<16x64xf32>
    %cst_435 = arith.constant dense<0.000000e+00> : vector<2x64xf32>
    %856 = tpu.matmul %842, %855, %cst_435 {dimension_numbers = #tpu.dot_dimension_numbers<[1], [0], [0], [1], [0, 0, 1, 1], [], []>} : vector<2x16xf32>, vector<16x64xf32>, vector<2x64xf32> -> vector<2x64xf32>
    %857 = arith.addf %853, %856 : vector<2x64xf32>
    %858 = tpu.iota {dimensions = array<i32: 0>} : vector<2x2xi32>
    %859 = tpu.iota {dimensions = array<i32: 1>} : vector<2x2xi32>
    %c1_i32_436 = arith.constant 1 : i32
    %860 = vector.broadcast %c1_i32_436 : i32 to vector<2x2xi32>
    %861 = arith.addi %858, %860 : vector<2x2xi32>
    %862 = arith.cmpi eq, %859, %861 : vector<2x2xi32>
    %863 = arith.extui %862 : vector<2x2xi1> to vector<2x2xi32>
    %864 = arith.sitofp %863 : vector<2x2xi32> to vector<2x2xf32>
    %cst_437 = arith.constant dense<0.000000e+00> : vector<2x16xf32>
    %865 = tpu.matmul %864, %842, %cst_437 {dimension_numbers = #tpu.dot_dimension_numbers<[1], [0], [0], [1], [0, 0, 1, 1], [], []>} : vector<2x2xf32>, vector<2x16xf32>, vector<2x16xf32> -> vector<2x16xf32>
    %c2_438 = arith.constant 2 : index
    %c0_439 = arith.constant 0 : index
    %c0_440 = arith.constant 0 : index
    %866 = vector.load %arg17[%c2_438, %c0_439, %c0_440] : memref<3x16x64xf32, #tpu.memory_space<vmem>>, vector<1x16x64xf32>
    %867 = vector.shape_cast %866 : vector<1x16x64xf32> to vector<16x64xf32>
    %cst_441 = arith.constant dense<0.000000e+00> : vector<2x64xf32>
    %868 = tpu.matmul %865, %867, %cst_441 {dimension_numbers = #tpu.dot_dimension_numbers<[1], [0], [0], [1], [0, 0, 1, 1], [], []>} : vector<2x16xf32>, vector<16x64xf32>, vector<2x64xf32> -> vector<2x64xf32>
    %869 = arith.addf %857, %868 : vector<2x64xf32>
    %c0_442 = arith.constant 0 : index
    %c0_443 = arith.constant 0 : index
    %870 = vector.load %arg18[%c0_442, %c0_443] : memref<1x64xf32, #tpu.memory_space<vmem>>, vector<1x64xf32>
    %871 = vector.broadcast %870 : vector<1x64xf32> to vector<2x64xf32>
    %872 = arith.addf %869, %871 : vector<2x64xf32>
    %873 = vector.extract_strided_slice %872 {offsets = [0, 0], sizes = [2, 32], strides = [1, 1]} : vector<2x64xf32> to vector<2x32xf32>
    %cst_444 = arith.constant 0.000000e+00 : f32
    %874 = vector.broadcast %cst_444 : f32 to vector<2x32xf32>
    %875 = arith.maximumf %873, %874 : vector<2x32xf32>
    %876 = vector.extract_strided_slice %872 {offsets = [0, 32], sizes = [2, 32], strides = [1, 1]} : vector<2x64xf32> to vector<2x32xf32>
    %877 = tpu.iota {dimensions = array<i32: 0>} : vector<1x2xi32>
    %878 = tpu.iota {dimensions = array<i32: 1>} : vector<1x2xi32>
    %c2_i32_445 = arith.constant 2 : i32
    %879 = vector.broadcast %c2_i32_445 : i32 to vector<1x2xi32>
    %880 = arith.muli %879, %877 : vector<1x2xi32>
    %c0_i32_446 = arith.constant 0 : i32
    %881 = vector.broadcast %c0_i32_446 : i32 to vector<1x2xi32>
    %882 = arith.addi %880, %881 : vector<1x2xi32>
    %883 = arith.cmpi eq, %878, %882 : vector<1x2xi32>
    %884 = arith.extui %883 : vector<1x2xi1> to vector<1x2xi32>
    %885 = arith.sitofp %884 : vector<1x2xi32> to vector<1x2xf32>
    %cst_447 = arith.constant dense<0.000000e+00> : vector<1x32xf32>
    %886 = tpu.matmul %885, %876, %cst_447 {dimension_numbers = #tpu.dot_dimension_numbers<[1], [0], [0], [1], [0, 0, 1, 1], [], []>} : vector<1x2xf32>, vector<2x32xf32>, vector<1x32xf32> -> vector<1x32xf32>
    %887 = tpu.iota {dimensions = array<i32: 0>} : vector<1x2xi32>
    %888 = tpu.iota {dimensions = array<i32: 1>} : vector<1x2xi32>
    %c2_i32_448 = arith.constant 2 : i32
    %889 = vector.broadcast %c2_i32_448 : i32 to vector<1x2xi32>
    %890 = arith.muli %889, %887 : vector<1x2xi32>
    %c-1_i32_449 = arith.constant -1 : i32
    %891 = vector.broadcast %c-1_i32_449 : i32 to vector<1x2xi32>
    %892 = arith.addi %890, %891 : vector<1x2xi32>
    %893 = arith.cmpi eq, %888, %892 : vector<1x2xi32>
    %894 = arith.extui %893 : vector<1x2xi1> to vector<1x2xi32>
    %895 = arith.sitofp %894 : vector<1x2xi32> to vector<1x2xf32>
    %cst_450 = arith.constant dense<0.000000e+00> : vector<1x32xf32>
    %896 = tpu.matmul %895, %875, %cst_450 {dimension_numbers = #tpu.dot_dimension_numbers<[1], [0], [0], [1], [0, 0, 1, 1], [], []>} : vector<1x2xf32>, vector<2x32xf32>, vector<1x32xf32> -> vector<1x32xf32>
    %c0_451 = arith.constant 0 : index
    %c0_452 = arith.constant 0 : index
    %c0_453 = arith.constant 0 : index
    %897 = vector.load %arg19[%c0_451, %c0_452, %c0_453] : memref<3x32x32xf32, #tpu.memory_space<vmem>>, vector<1x32x32xf32>
    %898 = vector.shape_cast %897 : vector<1x32x32xf32> to vector<32x32xf32>
    %cst_454 = arith.constant dense<0.000000e+00> : vector<1x32xf32>
    %899 = tpu.matmul %896, %898, %cst_454 {dimension_numbers = #tpu.dot_dimension_numbers<[1], [0], [0], [1], [0, 0, 1, 1], [], []>} : vector<1x32xf32>, vector<32x32xf32>, vector<1x32xf32> -> vector<1x32xf32>
    %900 = tpu.iota {dimensions = array<i32: 0>} : vector<1x2xi32>
    %901 = tpu.iota {dimensions = array<i32: 1>} : vector<1x2xi32>
    %c2_i32_455 = arith.constant 2 : i32
    %902 = vector.broadcast %c2_i32_455 : i32 to vector<1x2xi32>
    %903 = arith.muli %902, %900 : vector<1x2xi32>
    %c0_i32_456 = arith.constant 0 : i32
    %904 = vector.broadcast %c0_i32_456 : i32 to vector<1x2xi32>
    %905 = arith.addi %903, %904 : vector<1x2xi32>
    %906 = arith.cmpi eq, %901, %905 : vector<1x2xi32>
    %907 = arith.extui %906 : vector<1x2xi1> to vector<1x2xi32>
    %908 = arith.sitofp %907 : vector<1x2xi32> to vector<1x2xf32>
    %cst_457 = arith.constant dense<0.000000e+00> : vector<1x32xf32>
    %909 = tpu.matmul %908, %875, %cst_457 {dimension_numbers = #tpu.dot_dimension_numbers<[1], [0], [0], [1], [0, 0, 1, 1], [], []>} : vector<1x2xf32>, vector<2x32xf32>, vector<1x32xf32> -> vector<1x32xf32>
    %c1_458 = arith.constant 1 : index
    %c0_459 = arith.constant 0 : index
    %c0_460 = arith.constant 0 : index
    %910 = vector.load %arg19[%c1_458, %c0_459, %c0_460] : memref<3x32x32xf32, #tpu.memory_space<vmem>>, vector<1x32x32xf32>
    %911 = vector.shape_cast %910 : vector<1x32x32xf32> to vector<32x32xf32>
    %cst_461 = arith.constant dense<0.000000e+00> : vector<1x32xf32>
    %912 = tpu.matmul %909, %911, %cst_461 {dimension_numbers = #tpu.dot_dimension_numbers<[1], [0], [0], [1], [0, 0, 1, 1], [], []>} : vector<1x32xf32>, vector<32x32xf32>, vector<1x32xf32> -> vector<1x32xf32>
    %913 = arith.addf %899, %912 : vector<1x32xf32>
    %914 = tpu.iota {dimensions = array<i32: 0>} : vector<1x2xi32>
    %915 = tpu.iota {dimensions = array<i32: 1>} : vector<1x2xi32>
    %c2_i32_462 = arith.constant 2 : i32
    %916 = vector.broadcast %c2_i32_462 : i32 to vector<1x2xi32>
    %917 = arith.muli %916, %914 : vector<1x2xi32>
    %c1_i32_463 = arith.constant 1 : i32
    %918 = vector.broadcast %c1_i32_463 : i32 to vector<1x2xi32>
    %919 = arith.addi %917, %918 : vector<1x2xi32>
    %920 = arith.cmpi eq, %915, %919 : vector<1x2xi32>
    %921 = arith.extui %920 : vector<1x2xi1> to vector<1x2xi32>
    %922 = arith.sitofp %921 : vector<1x2xi32> to vector<1x2xf32>
    %cst_464 = arith.constant dense<0.000000e+00> : vector<1x32xf32>
    %923 = tpu.matmul %922, %875, %cst_464 {dimension_numbers = #tpu.dot_dimension_numbers<[1], [0], [0], [1], [0, 0, 1, 1], [], []>} : vector<1x2xf32>, vector<2x32xf32>, vector<1x32xf32> -> vector<1x32xf32>
    %c2_465 = arith.constant 2 : index
    %c0_466 = arith.constant 0 : index
    %c0_467 = arith.constant 0 : index
    %924 = vector.load %arg19[%c2_465, %c0_466, %c0_467] : memref<3x32x32xf32, #tpu.memory_space<vmem>>, vector<1x32x32xf32>
    %925 = vector.shape_cast %924 : vector<1x32x32xf32> to vector<32x32xf32>
    %cst_468 = arith.constant dense<0.000000e+00> : vector<1x32xf32>
    %926 = tpu.matmul %923, %925, %cst_468 {dimension_numbers = #tpu.dot_dimension_numbers<[1], [0], [0], [1], [0, 0, 1, 1], [], []>} : vector<1x32xf32>, vector<32x32xf32>, vector<1x32xf32> -> vector<1x32xf32>
    %927 = arith.addf %913, %926 : vector<1x32xf32>
    %c0_469 = arith.constant 0 : index
    %c0_470 = arith.constant 0 : index
    %928 = vector.load %arg20[%c0_469, %c0_470] : memref<1x32xf32, #tpu.memory_space<vmem>>, vector<1x32xf32>
    %929 = arith.addf %927, %928 : vector<1x32xf32>
    %930 = arith.addf %929, %886 : vector<1x32xf32>
    %cst_471 = arith.constant 0.000000e+00 : f32
    %931 = vector.broadcast %cst_471 : f32 to vector<1x32xf32>
    %932 = arith.maximumf %930, %931 : vector<1x32xf32>
    %c0_472 = arith.constant 0 : index
    %c0_473 = arith.constant 0 : index
    %933 = vector.load %arg21[%c0_472, %c0_473] : memref<32x16xf32, #tpu.memory_space<vmem>>, vector<32x16xf32>
    %cst_474 = arith.constant dense<0.000000e+00> : vector<1x16xf32>
    %934 = tpu.matmul %932, %933, %cst_474 {dimension_numbers = #tpu.dot_dimension_numbers<[1], [0], [0], [1], [0, 0, 1, 1], [], []>} : vector<1x32xf32>, vector<32x16xf32>, vector<1x16xf32> -> vector<1x16xf32>
    %c0_475 = arith.constant 0 : index
    %c0_476 = arith.constant 0 : index
    %935 = vector.load %arg22[%c0_475, %c0_476] : memref<1x16xf32, #tpu.memory_space<vmem>>, vector<1x16xf32>
    %936 = arith.addf %934, %935 : vector<1x16xf32>
    %937 = vector.extract_strided_slice %936 {offsets = [0, 0], sizes = [1, 8], strides = [1, 1]} : vector<1x16xf32> to vector<1x8xf32>
    %938 = vector.extract_strided_slice %936 {offsets = [0, 8], sizes = [1, 8], strides = [1, 1]} : vector<1x16xf32> to vector<1x8xf32>
    %cst_477 = arith.constant 2.000000e+01 : f32
    %939 = vector.broadcast %cst_477 : f32 to vector<1x8xf32>
    %940 = arith.cmpf ogt, %938, %939 : vector<1x8xf32>
    %cst_478 = arith.constant 2.000000e+01 : f32
    %941 = vector.broadcast %cst_478 : f32 to vector<1x8xf32>
    %942 = arith.minimumf %938, %941 : vector<1x8xf32>
    %943 = math.exp %942 : vector<1x8xf32>
    %cst_479 = arith.constant 1.000000e+00 : f32
    %944 = vector.broadcast %cst_479 : f32 to vector<1x8xf32>
    %945 = arith.addf %944, %943 : vector<1x8xf32>
    %946 = math.log %945 : vector<1x8xf32>
    %947 = arith.select %940, %938, %946 : vector<1x8xi1>, vector<1x8xf32>
    %cst_480 = arith.constant 9.99999974E-6 : f32
    %cst_481 = arith.constant 5.000000e+00 : f32
    %948 = vector.broadcast %cst_480 : f32 to vector<1x8xf32>
    %949 = arith.maximumf %948, %947 : vector<1x8xf32>
    %950 = vector.broadcast %cst_481 : f32 to vector<1x8xf32>
    %951 = arith.minimumf %950, %949 : vector<1x8xf32>
    %c1_482 = arith.constant 1 : index
    %c0_483 = arith.constant 0 : index
    %952 = vector.load %arg23[%c1_482, %c0_483] : memref<2x8xf32, #tpu.memory_space<vmem>>, vector<1x8xf32>
    tpu.vector_store %arg23[%c1_482, %c0_483], %937 {strides = array<i32>} : memref<2x8xf32, #tpu.memory_space<vmem>>, vector<1x8xf32>,
    %c1_484 = arith.constant 1 : index
    %c0_485 = arith.constant 0 : index
    %953 = vector.load %arg24[%c1_484, %c0_485] : memref<2x8xf32, #tpu.memory_space<vmem>>, vector<1x8xf32>
    tpu.vector_store %arg24[%c1_484, %c0_485], %951 {strides = array<i32>} : memref<2x8xf32, #tpu.memory_space<vmem>>, vector<1x8xf32>,
    return
  }
}

</mosaic_0001>

<llo_original>
// kernel: context_conv_forward.1
$region0: #{context_conv_forward.1}
  #allocation0 [shape = 'u32[]', space=smem, size = 0x4, offset = 0x4, fixed_abs, tag = 'smem constant byte address 0x4 - core index']
  #allocation1 [shape = 'u32[144,128]{1,0:T(1,128)}', space=vmem, size = 0x12000, scoped, tag = 'internal scratch']
  %s0 = inlined_call_operand.vmem [shape: f32[2,32,4], index: 0, kind: input, shape index: {}]
  %s1 = inlined_call_operand.hbm [shape: f32[3,4,4], index: 1, kind: input, shape index: {}]
  %s2 = inlined_call_operand.vmem [shape: f32[1,4], index: 2, kind: input, shape index: {}, may-alias: {2,8}]
  %s3 = inlined_call_operand.hbm [shape: f32[3,2,2], index: 3, kind: input, shape index: {}]
  %s4 = inlined_call_operand.vmem [shape: f32[1,2], index: 4, kind: input, shape index: {}]
  %s5 = inlined_call_operand.hbm [shape: f32[3,2,8], index: 5, kind: input, shape index: {}]
  %s6 = inlined_call_operand.vmem [shape: f32[1,8], index: 6, kind: input, shape index: {}, may-alias: {6,12}]
  %s7 = inlined_call_operand.hbm [shape: f32[3,4,4], index: 7, kind: input, shape index: {}]
  %s8 = inlined_call_operand.vmem [shape: f32[1,4], index: 8, kind: input, shape index: {}, may-alias: {2,8}]
  %s9 = inlined_call_operand.vmem [shape: f32[3,4,16], index: 9, kind: input, shape index: {}]
  %s10 = inlined_call_operand.vmem [shape: f32[1,16], index: 10, kind: input, shape index: {}, may-alias: {10,16}]
  %s11 = inlined_call_operand.hbm [shape: f32[3,8,8], index: 11, kind: input, shape index: {}]
  %s12 = inlined_call_operand.vmem [shape: f32[1,8], index: 12, kind: input, shape index: {}, may-alias: {6,12}]
  %s13 = inlined_call_operand.hbm [shape: f32[3,8,32], index: 13, kind: input, shape index: {}]
  %s14 = inlined_call_operand.vmem [shape: f32[1,32], index: 14, kind: input, shape index: {}, may-alias: {14,20}]
  %s15 = inlined_call_operand.hbm [shape: f32[3,16,16], index: 15, kind: input, shape index: {}]
  %s16 = inlined_call_operand.vmem [shape: f32[1,16], index: 16, kind: input, shape index: {}, may-alias: {10,16}]
  %s17 = inlined_call_operand.hbm [shape: f32[3,16,64], index: 17, kind: input, shape index: {}]
  %s18 = inlined_call_operand.vmem [shape: f32[1,64], index: 18, kind: input, shape index: {}]
  %s19 = inlined_call_operand.vmem [shape: f32[3,32,32], index: 19, kind: input, shape index: {}]
  %s20 = inlined_call_operand.vmem [shape: f32[1,32], index: 20, kind: input, shape index: {}, may-alias: {14,20}]
  %s21 = inlined_call_operand.vmem [shape: f32[32,16], index: 21, kind: input, shape index: {}]
  %s22 = inlined_call_operand.vmem [shape: f32[1,16], index: 22, kind: input, shape index: {}]
  %s23 = inlined_call_operand.vmem [shape: f32[2,8], index: 23, kind: output, shape index: {0}]
  %s24 = inlined_call_operand.hbm [shape: f32[2,8], index: 24, kind: output, shape index: {1}]
  %25 = xla_tuple %s23, %s24
  %s26 = sld [smem:[#allocation0]]
  $region142: #{context_conv_forward.1} parent=0
    _
  %s28 = ssub.s32 1, %s26
  %s29 = scalar_select 0, %s28, %s26
  $region1: #{context_conv_forward.1} parent=0
    #allocation2 [shape = 'u8[6144]{0}', space=vmem, size = 0x1800, scoped, tag = 'input window, operand 1, single buffered']
    #allocation3 [shape = 's32[1]{0}', space=sflag, size = 0x4, scoped, tag = 'scoped memory for context_conv_forward.1']
    #allocation4 [shape = 's32[1]{0}', space=sflag, size = 0x4, scoped, tag = 'scoped memory for context_conv_forward.1']
    #allocation5 [shape = 'u8[3072]{0}', space=vmem, size = 0xc00, scoped, tag = 'input window, operand 3, single buffered']
    #allocation6 [shape = 's32[1]{0}', space=sflag, size = 0x4, scoped, tag = 'scoped memory for context_conv_forward.1']
    #allocation7 [shape = 'u8[3072]{0}', space=vmem, size = 0xc00, scoped, tag = 'input window, operand 5, single buffered']
    #allocation8 [shape = 'u8[6144]{0}', space=vmem, size = 0x1800, scoped, tag = 'input window, operand 7, single buffered']
    #allocation9 [shape = 's32[1]{0}', space=sflag, size = 0x4, scoped, tag = 'scoped memory for context_conv_forward.1']
    #allocation10 [shape = 'u8[12288]{0}', space=vmem, size = 0x3000, scoped, tag = 'input window, operand 11, single buffered']
    #allocation11 [shape = 'u8[12288]{0}', space=vmem, size = 0x3000, scoped, tag = 'input window, operand 13, single buffered']
    #allocation12 [shape = 's32[1]{0}', space=sflag, size = 0x4, scoped, tag = 'scoped memory for context_conv_forward.1']
    #allocation13 [shape = 'u8[24576]{0}', space=vmem, size = 0x6000, scoped, tag = 'input window, operand 15, single buffered']
    #allocation14 [shape = 'u8[24576]{0}', space=vmem, size = 0x6000, scoped, tag = 'input window, operand 17, single buffered']
    #allocation15 [shape = 's32[1]{0}', space=sflag, size = 0x4, scoped, tag = 'scoped memory for context_conv_forward.1']
    #allocation16 [shape = 'u8[1024]{0}', space=vmem, size = 0x400, scoped, tag = 'output window, operand 1, single buffered']
    %30 = vsyncpa [#allocation3], 0
    %31 = vsyncpa [#allocation6], 0
    %32 = vsyncpa [#allocation9], 0
    %33 = vsyncpa [#allocation12], 0
    %34 = vsyncpa [#allocation15], 0
    %35 = vsyncpa [#allocation4], 0
    // Predicated region
    $region2: #{context_conv_forward.1} parent=1 // pred_check
      _
    $region3: #{context_conv_forward.1} parent=1 // pred_check_branch
      %37 = sbr.rel (0) target = $region5
    $region4: #{context_conv_forward.1} parent=1 // pred_region
      _
    $region5: #{context_conv_forward.1} parent=1 // pred_fallthru
      _
    // Predicated region
    $region6: #{context_conv_forward.1} parent=1 // pred_check
      _
    $region7: #{context_conv_forward.1} parent=1 // pred_check_branch
      %39 = sbr.rel (0) target = $region9
    $region8: #{context_conv_forward.1} parent=1 // pred_region
      %s41 = ssub.s32 192, 192
      %42 = vsyncadd [#allocation3], %s41
      %s43 = sshll.u32 [#allocation2], 4
      %s44 = int_to_ptr.vmem [resolvable:$true] %s43
      %49 = dma.hbm_to_vmem [thread:$0]  %s1, 192, %s44, [#allocation3], 64, 64, 4
    $region9: #{context_conv_forward.1} parent=1 // pred_fallthru
      _
    // Predicated region
    $region10: #{context_conv_forward.1} parent=1 // pred_check
      _
    $region11: #{context_conv_forward.1} parent=1 // pred_check_branch
      %51 = sbr.rel (0) target = $region13
    $region12: #{context_conv_forward.1} parent=1 // pred_region
      _
    $region13: #{context_conv_forward.1} parent=1 // pred_fallthru
      _
    // Predicated region
    $region14: #{context_conv_forward.1} parent=1 // pred_check
      _
    $region15: #{context_conv_forward.1} parent=1 // pred_check_branch
      %53 = sbr.rel (0) target = $region17
    $region16: #{context_conv_forward.1} parent=1 // pred_region
      %s55 = ssub.s32 96, 96
      %56 = vsyncadd [#allocation6], %s55
      %s57 = sshll.u32 [#allocation5], 4
      %s58 = int_to_ptr.vmem [resolvable:$true] %s57
      %63 = dma.hbm_to_vmem [thread:$0]  %s3, 96, %s58, [#allocation6], 32, 32, 2
    $region17: #{context_conv_forward.1} parent=1 // pred_fallthru
      _
    // Predicated region
    $region18: #{context_conv_forward.1} parent=1 // pred_check
      _
    $region19: #{context_conv_forward.1} parent=1 // pred_check_branch
      %65 = sbr.rel (0) target = $region21
    $region20: #{context_conv_forward.1} parent=1 // pred_region
      _
    $region21: #{context_conv_forward.1} parent=1 // pred_fallthru
      _
    // Predicated region
    $region22: #{context_conv_forward.1} parent=1 // pred_check
      _
    $region23: #{context_conv_forward.1} parent=1 // pred_check_branch
      %67 = sbr.rel (0) target = $region25
    $region24: #{context_conv_forward.1} parent=1 // pred_region
      %s69 = ssub.s32 96, 96
      %70 = vsyncadd [#allocation6], %s69
      %s71 = sshll.u32 [#allocation7], 4
      %s72 = int_to_ptr.vmem [resolvable:$true] %s71
      %77 = dma.hbm_to_vmem [thread:$0]  %s5, 96, %s72, [#allocation6], 32, 32, 2
    $region25: #{context_conv_forward.1} parent=1 // pred_fallthru
      _
    // Predicated region
    $region26: #{context_conv_forward.1} parent=1 // pred_check
      _
    $region27: #{context_conv_forward.1} parent=1 // pred_check_branch
      %79 = sbr.rel (0) target = $region29
    $region28: #{context_conv_forward.1} parent=1 // pred_region
      _
    $region29: #{context_conv_forward.1} parent=1 // pred_fallthru
      _
    // Predicated region
    $region30: #{context_conv_forward.1} parent=1 // pred_check
      _
    $region31: #{context_conv_forward.1} parent=1 // pred_check_branch
      %81 = sbr.rel (0) target = $region33
    $region32: #{context_conv_forward.1} parent=1 // pred_region
      %s83 = ssub.s32 192, 192
      %84 = vsyncadd [#allocation9], %s83
      %s85 = sshll.u32 [#allocation8], 4
      %s86 = int_to_ptr.vmem [resolvable:$true] %s85
      %91 = dma.hbm_to_vmem [thread:$0]  %s7, 192, %s86, [#allocation9], 64, 64, 4
    $region33: #{context_conv_forward.1} parent=1 // pred_fallthru
      _
    // Predicated region
    $region34: #{context_conv_forward.1} parent=1 // pred_check
      _
    $region35: #{context_conv_forward.1} parent=1 // pred_check_branch
      %93 = sbr.rel (0) target = $region37
    $region36: #{context_conv_forward.1} parent=1 // pred_region
      _
    $region37: #{context_conv_forward.1} parent=1 // pred_fallthru
      _
    // Predicated region
    $region38: #{context_conv_forward.1} parent=1 // pred_check
      _
    $region39: #{context_conv_forward.1} parent=1 // pred_check_branch
      %95 = sbr.rel (0) target = $region41
    $region40: #{context_conv_forward.1} parent=1 // pred_region
      _
    $region41: #{context_conv_forward.1} parent=1 // pred_fallthru
      _
    // Predicated region
    $region42: #{context_conv_forward.1} parent=1 // pred_check
      _
    $region43: #{context_conv_forward.1} parent=1 // pred_check_branch
      %97 = sbr.rel (0) target = $region45
    $region44: #{context_conv_forward.1} parent=1 // pred_region
      _
    $region45: #{context_conv_forward.1} parent=1 // pred_fallthru
      _
    // Predicated region
    $region46: #{context_conv_forward.1} parent=1 // pred_check
      _
    $region47: #{context_conv_forward.1} parent=1 // pred_check_branch
      %99 = sbr.rel (0) target = $region49
    $region48: #{context_conv_forward.1} parent=1 // pred_region
      %s101 = ssub.s32 384, 384
      %102 = vsyncadd [#allocation9], %s101
      %s103 = sshll.u32 [#allocation10], 4
      %s104 = int_to_ptr.vmem [resolvable:$true] %s103
      %109 = dma.hbm_to_vmem [thread:$0]  %s11, 384, %s104, [#allocation9], 128, 128, 8
    $region49: #{context_conv_forward.1} parent=1 // pred_fallthru
      _
    // Predicated region
    $region50: #{context_conv_forward.1} parent=1 // pred_check
      _
    $region51: #{context_conv_forward.1} parent=1 // pred_check_branch
      %111 = sbr.rel (0) target = $region53
    $region52: #{context_conv_forward.1} parent=1 // pred_region
      _
    $region53: #{context_conv_forward.1} parent=1 // pred_fallthru
      _
    // Predicated region
    $region54: #{context_conv_forward.1} parent=1 // pred_check
      _
    $region55: #{context_conv_forward.1} parent=1 // pred_check_branch
      %113 = sbr.rel (0) target = $region57
    $region56: #{context_conv_forward.1} parent=1 // pred_region
      %s115 = ssub.s32 384, 384
      %116 = vsyncadd [#allocation12], %s115
      %s117 = sshll.u32 [#allocation11], 4
      %s118 = int_to_ptr.vmem [resolvable:$true] %s117
      %123 = dma.hbm_to_vmem [thread:$0]  %s13, 384, %s118, [#allocation12], 128, 128, 8
    $region57: #{context_conv_forward.1} parent=1 // pred_fallthru
      _
    // Predicated region
    $region58: #{context_conv_forward.1} parent=1 // pred_check
      _
    $region59: #{context_conv_forward.1} parent=1 // pred_check_branch
      %125 = sbr.rel (0) target = $region61
    $region60: #{context_conv_forward.1} parent=1 // pred_region
      _
    $region61: #{context_conv_forward.1} parent=1 // pred_fallthru
      _
    // Predicated region
    $region62: #{context_conv_forward.1} parent=1 // pred_check
      _
    $region63: #{context_conv_forward.1} parent=1 // pred_check_branch
      %127 = sbr.rel (0) target = $region65
    $region64: #{context_conv_forward.1} parent=1 // pred_region
      %s129 = ssub.s32 768, 768
      %130 = vsyncadd [#allocation12], %s129
      %s131 = sshll.u32 [#allocation13], 4
      %s132 = int_to_ptr.vmem [resolvable:$true] %s131
      %137 = dma.hbm_to_vmem [thread:$0]  %s15, 768, %s132, [#allocation12], 128, 128, 8
    $region65: #{context_conv_forward.1} parent=1 // pred_fallthru
      _
    // Predicated region
    $region66: #{context_conv_forward.1} parent=1 // pred_check
      _
    $region67: #{context_conv_forward.1} parent=1 // pred_check_branch
      %139 = sbr.rel (0) target = $region69
    $region68: #{context_conv_forward.1} parent=1 // pred_region
      _
    $region69: #{context_conv_forward.1} parent=1 // pred_fallthru
      _
    // Predicated region
    $region70: #{context_conv_forward.1} parent=1 // pred_check
      _
    $region71: #{context_conv_forward.1} parent=1 // pred_check_branch
      %141 = sbr.rel (0) target = $region73
    $region72: #{context_conv_forward.1} parent=1 // pred_region
      %s143 = ssub.s32 768, 768
      %144 = vsyncadd [#allocation15], %s143
      %s145 = sshll.u32 [#allocation14], 4
      %s146 = int_to_ptr.vmem [resolvable:$true] %s145
      %151 = dma.hbm_to_vmem [thread:$0]  %s17, 768, %s146, [#allocation15], 128, 128, 8
    $region73: #{context_conv_forward.1} parent=1 // pred_fallthru
      _
    // Predicated region
    $region74: #{context_conv_forward.1} parent=1 // pred_check
      _
    $region75: #{context_conv_forward.1} parent=1 // pred_check_branch
      %153 = sbr.rel (0) target = $region77
    $region76: #{context_conv_forward.1} parent=1 // pred_region
      _
    $region77: #{context_conv_forward.1} parent=1 // pred_fallthru
      _
    // Predicated region
    $region78: #{context_conv_forward.1} parent=1 // pred_check
      _
    $region79: #{context_conv_forward.1} parent=1 // pred_check_branch
      %155 = sbr.rel (0) target = $region81
    $region80: #{context_conv_forward.1} parent=1 // pred_region
      _
    $region81: #{context_conv_forward.1} parent=1 // pred_fallthru
      _
    // Predicated region
    $region82: #{context_conv_forward.1} parent=1 // pred_check
      _
    $region83: #{context_conv_forward.1} parent=1 // pred_check_branch
      %157 = sbr.rel (0) target = $region85
    $region84: #{context_conv_forward.1} parent=1 // pred_region
      _
    $region85: #{context_conv_forward.1} parent=1 // pred_fallthru
      _
    // Predicated region
    $region86: #{context_conv_forward.1} parent=1 // pred_check
      _
    $region87: #{context_conv_forward.1} parent=1 // pred_check_branch
      %159 = sbr.rel (0) target = $region89
    $region88: #{context_conv_forward.1} parent=1 // pred_region
      _
    $region89: #{context_conv_forward.1} parent=1 // pred_fallthru
      _
    // Predicated region
    $region90: #{context_conv_forward.1} parent=1 // pred_check
      _
    $region91: #{context_conv_forward.1} parent=1 // pred_check_branch
      %161 = sbr.rel (0) target = $region93
    $region92: #{context_conv_forward.1} parent=1 // pred_region
      _
    $region93: #{context_conv_forward.1} parent=1 // pred_fallthru
      _
    // Predicated region
    $region94: #{context_conv_forward.1} parent=1 // pred_check
      _
    $region95: #{context_conv_forward.1} parent=1 // pred_check_branch
      %163 = sbr.rel (0) target = $region97
    $region96: #{context_conv_forward.1} parent=1 // pred_region
      %164 = dma.done [#allocation3], 192
    $region97: #{context_conv_forward.1} parent=1 // pred_fallthru
      _
    // Predicated region
    $region98: #{context_conv_forward.1} parent=1 // pred_check
      _
    $region99: #{context_conv_forward.1} parent=1 // pred_check_branch
      %166 = sbr.rel (0) target = $region101
    $region100: #{context_conv_forward.1} parent=1 // pred_region
      %167 = dma.done [#allocation6], 96
    $region101: #{context_conv_forward.1} parent=1 // pred_fallthru
      _
    // Predicated region
    $region102: #{context_conv_forward.1} parent=1 // pred_check
      _
    $region103: #{context_conv_forward.1} parent=1 // pred_check_branch
      %169 = sbr.rel (0) target = $region105
    $region104: #{context_conv_forward.1} parent=1 // pred_region
      %170 = dma.done [#allocation6], 96
    $region105: #{context_conv_forward.1} parent=1 // pred_fallthru
      _
    // Predicated region
    $region106: #{context_conv_forward.1} parent=1 // pred_check
      _
    $region107: #{context_conv_forward.1} parent=1 // pred_check_branch
      %172 = sbr.rel (0) target = $region109
    $region108: #{context_conv_forward.1} parent=1 // pred_region
      %173 = dma.done [#allocation9], 192
    $region109: #{context_conv_forward.1} parent=1 // pred_fallthru
      _
    // Predicated region
    $region110: #{context_conv_forward.1} parent=1 // pred_check
      _
    $region111: #{context_conv_forward.1} parent=1 // pred_check_branch
      %175 = sbr.rel (0) target = $region113
    $region112: #{context_conv_forward.1} parent=1 // pred_region
      %176 = dma.done [#allocation9], 384
    $region113: #{context_conv_forward.1} parent=1 // pred_fallthru
      _
    // Predicated region
    $region114: #{context_conv_forward.1} parent=1 // pred_check
      _
    $region115: #{context_conv_forward.1} parent=1 // pred_check_branch
      %178 = sbr.rel (0) target = $region117
    $region116: #{context_conv_forward.1} parent=1 // pred_region
      %179 = dma.done [#allocation12], 384
    $region117: #{context_conv_forward.1} parent=1 // pred_fallthru
      _
    // Predicated region
    $region118: #{context_conv_forward.1} parent=1 // pred_check
      _
    $region119: #{context_conv_forward.1} parent=1 // pred_check_branch
      %181 = sbr.rel (0) target = $region121
    $region120: #{context_conv_forward.1} parent=1 // pred_region
      %182 = dma.done [#allocation12], 768
    $region121: #{context_conv_forward.1} parent=1 // pred_fallthru
      _
    // Predicated region
    $region122: #{context_conv_forward.1} parent=1 // pred_check
      _
    $region123: #{context_conv_forward.1} parent=1 // pred_check_branch
      %184 = sbr.rel (0) target = $region125
    $region124: #{context_conv_forward.1} parent=1 // pred_region
      %185 = dma.done [#allocation15], 768
    $region125: #{context_conv_forward.1} parent=1 // pred_fallthru
      _
    %v186 = vld [vmem:[%s0] sm:$0xff]
    %v187 = vld [vmem:[%s0 + $0x8] sm:$0xff]
    %v188 = vld [vmem:[%s0 + $0x10] sm:$0xff]
    %v189 = vld [vmem:[%s0 + $0x18] sm:$0xff]
    %v190 = vlaneseq
    %v191 = vshrl.u32 %v190, 7
    %v192 = vadd.s32 %v191, 8
    %v193 = vadd.s32 %v191, 16
    %v194 = vadd.s32 %v191, 24
    %v195 = vlaneseq
    %v196 = vand.u32 %v195, 127
    %v197 = vadd.s32 %v191, 4294967295
    %v198 = vadd.s32 %v192, 4294967295
    %v199 = vadd.s32 %v193, 4294967295
    %v200 = vadd.s32 %v194, 4294967295
    %vm201 = vcmp.eq.s32.totalorder %v196, %v197
    %vm202 = vcmp.eq.s32.totalorder %v196, %v198
    %vm203 = vcmp.eq.s32.totalorder %v196, %v199
    %vm204 = vcmp.eq.s32.totalorder %v196, %v200
    %v205 = vsel %vm201, 1, 0
    %v206 = vsel %vm202, 1, 0
    %v207 = vsel %vm203, 1, 0
    %v208 = vsel %vm204, 1, 0
    %v209 = vcvt.s32.f32 %v205
    %v210 = vcvt.s32.f32 %v206
    %v211 = vcvt.s32.f32 %v207
    %v212 = vcvt.s32.f32 %v208
    %vm213 = vcmask 261120
    %v215 = vsel %vm213, %v209, 0
    %v218 = vsel %vm213, %v210, 0
    %v221 = vsel %vm213, %v211, 0
    %v224 = vsel %vm213, %v212, 0
    %226 = vmatprep.subr.mxu0 0.0
    %227 = vmatpush1.msra.mxu0 %v186
    %228 = vmatprep.subr.mxu0 0.0
    %229 = vmatpush1.msra.mxu0 %v187
    %230 = vmatprep.subr.mxu0 0.0
    %231 = vmatpush1.msra.mxu0 %v188
    %232 = vmatprep.subr.mxu0 0.0
    %233 = vmatpush1.msra.mxu0 %v189
    %234 = vmatprep.subr.mxu0 0.0
    %235 = vmatpush1.msra.mxu0 0.0
    %236 = vmatprep.subr.mxu0 0.0
    %237 = vmatpush1.msra.mxu0 0.0
    %238 = vmatprep.subr.mxu0 0.0
    %239 = vmatpush1.msra.mxu0 0.0
    %240 = vmatprep.subr.mxu0 0.0
    %241 = vmatpush1.msra.mxu0 0.0
    %242 = vmatprep.subr.mxu0 0.0
    %243 = vmatpush1.msra.mxu0 0.0
    %244 = vmatprep.subr.mxu0 0.0
    %245 = vmatpush1.msra.mxu0 0.0
    %246 = vmatprep.subr.mxu0 0.0
    %247 = vmatpush1.msra.mxu0 0.0
    %248 = vmatprep.subr.mxu0 0.0
    %249 = vmatpush1.msra.mxu0 0.0
    %250 = vmatprep.subr.mxu0 0.0
    %251 = vmatpush1.msra.mxu0 0.0
    %252 = vmatprep.subr.mxu0 0.0
    %253 = vmatpush1.msra.mxu0 0.0
    %254 = vmatprep.subr.mxu0 0.0
    %255 = vmatpush1.msra.mxu0 0.0
    %256 = vmatprep.subr.mxu0 0.0
    %257 = vmatpush1.msra.mxu0 0.0
    %258 = vmatprep.subr.mxu0 0.0
    %259 = vmatpush1.msra.mxu0 0.0
    %260 = vmatprep.subr.mxu0 0.0
    %261 = vmatpush1.msra.mxu0 0.0
    %262 = vmatprep.subr.mxu0 0.0
    %263 = vmatpush1.msra.mxu0 0.0
    %264 = vmatprep.subr.mxu0 0.0
    %265 = vmatpush1.msra.mxu0 0.0
    %266 = vmatprep.subr.mxu0 0.0
    %267 = vmatpush1.msra.mxu0 0.0
    %268 = vmatprep.subr.mxu0 0.0
    %269 = vmatpush1.msra.mxu0 0.0
    %270 = vmatprep.subr.mxu0 0.0
    %271 = vmatpush1.msra.mxu0 0.0
    %272 = vmatprep.subr.mxu0 0.0
    %273 = vmatpush1.msra.mxu0 0.0
    %274 = vmatprep.subr.mxu0 0.0
    %275 = vmatpush1.msra.mxu0 0.0
    %276 = vmatprep.subr.mxu0 0.0
    %277 = vmatpush1.msra.mxu0 0.0
    %278 = vmatprep.subr.mxu0 0.0
    %279 = vmatpush1.msra.mxu0 0.0
    %280 = vmatprep.subr.mxu0 0.0
    %281 = vmatpush1.msra.mxu0 0.0
    %282 = vmatprep.subr.mxu0 0.0
    %283 = vmatpush1.msra.mxu0 0.0
    %284 = vmatprep.subr.mxu0 0.0
    %285 = vmatpush1.msra.mxu0 0.0
    %286 = vmatprep.subr.mxu0 0.0
    %287 = vmatpush1.msra.mxu0 0.0
    %288 = vmatprep.subr.mxu0 0.0
    %289 = vmatpush1.msra.mxu0 0.0
    %290 = vmatprep.mubr.f32.mxu0 0.0
    %291 = vmatmul.mubr.f32.gmra.mrb[0].mxu0 %v215
    %v292 = vpop.f32.mrb[0].mxu0
    %v293 = vadd.f32 0.0, %v292
    %v294 = vpop.f32.mrb[0].mxu0
    %295 = vmatprep.mubr.f32.mxu0 0.0
    %296 = vmatmul.mubr.f32.gmra.mrb[0].mxu0 %v218
    %v297 = vpop.f32.mrb[0].mxu0
    %v298 = vadd.f32 0.0, %v297
    %v299 = vpop.f32.mrb[0].mxu0
    %300 = vmatprep.mubr.f32.mxu0 0.0
    %301 = vmatmul.mubr.f32.gmra.mrb[0].mxu0 %v221
    %v302 = vpop.f32.mrb[0].mxu0
    %v303 = vadd.f32 0.0, %v302
    %v304 = vpop.f32.mrb[0].mxu0
    %305 = vmatprep.mubr.f32.mxu0 0.0
    %306 = vmatmul.mubr.f32.gmra.mrb[0].mxu0 %v224
    %v307 = vpop.f32.mrb[0].mxu0
    %v308 = vadd.f32 0.0, %v307
    %v309 = vpop.f32.mrb[0].mxu0
    %310 = vdwg.mxu0
    %v311 = vld [vmem:[#allocation2] sm:$0xf]
    %s312 = scalar_lea.vmem [#allocation2], 4
    %v313 = vld [vmem:[%s312] sm:$0xf]
    %vm314 = vcmask 31744
    %v316 = vsel %vm314, %v186, 0
    %v319 = vsel %vm314, %v187, 0
    %v322 = vsel %vm314, %v188, 0
    %v325 = vsel %vm314, %v189, 0
    %vm327 = vcmask 1043456
    %v329 = vsel %vm327, %v313, 0
    %331 = vmatprep.subr.mxu0 0.0
    %332 = vmatpush1.msra.mxu0 %v329
    %333 = vmatprep.subr.mxu0 0.0
    %334 = vmatpush1.msra.mxu0 0.0
    %335 = vmatprep.subr.mxu0 0.0
    %336 = vmatpush1.msra.mxu0 0.0
    %337 = vmatprep.subr.mxu0 0.0
    %338 = vmatpush1.msra.mxu0 0.0
    %339 = vmatprep.subr.mxu0 0.0
    %340 = vmatpush1.msra.mxu0 0.0
    %341 = vmatprep.subr.mxu0 0.0
    %342 = vmatpush1.msra.mxu0 0.0
    %343 = vmatprep.subr.mxu0 0.0
    %344 = vmatpush1.msra.mxu0 0.0
    %345 = vmatprep.subr.mxu0 0.0
    %346 = vmatpush1.msra.mxu0 0.0
    %347 = vmatprep.subr.mxu0 0.0
    %348 = vmatpush1.msra.mxu0 0.0
    %349 = vmatprep.subr.mxu0 0.0
    %350 = vmatpush1.msra.mxu0 0.0
    %351 = vmatprep.subr.mxu0 0.0
    %352 = vmatpush1.msra.mxu0 0.0
    %353 = vmatprep.subr.mxu0 0.0
    %354 = vmatpush1.msra.mxu0 0.0
    %355 = vmatprep.subr.mxu0 0.0
    %356 = vmatpush1.msra.mxu0 0.0
    %357 = vmatprep.subr.mxu0 0.0
    %358 = vmatpush1.msra.mxu0 0.0
    %359 = vmatprep.subr.mxu0 0.0
    %360 = vmatpush1.msra.mxu0 0.0
    %361 = vmatprep.subr.mxu0 0.0
    %362 = vmatpush1.msra.mxu0 0.0
    %363 = vmatprep.subr.mxu0 0.0
    %364 = vmatpush1.msra.mxu0 0.0
    %365 = vmatprep.subr.mxu0 0.0
    %366 = vmatpush1.msra.mxu0 0.0
    %367 = vmatprep.subr.mxu0 0.0
    %368 = vmatpush1.msra.mxu0 0.0
    %369 = vmatprep.subr.mxu0 0.0
    %370 = vmatpush1.msra.mxu0 0.0
    %371 = vmatprep.subr.mxu0 0.0
    %372 = vmatpush1.msra.mxu0 0.0
    %373 = vmatprep.subr.mxu0 0.0
    %374 = vmatpush1.msra.mxu0 0.0
    %375 = vmatprep.subr.mxu0 0.0
    %376 = vmatpush1.msra.mxu0 0.0
    %377 = vmatprep.subr.mxu0 0.0
    %378 = vmatpush1.msra.mxu0 0.0
    %379 = vmatprep.subr.mxu0 0.0
    %380 = vmatpush1.msra.mxu0 0.0
    %381 = vmatprep.subr.mxu0 0.0
    %382 = vmatpush1.msra.mxu0 0.0
    %383 = vmatprep.subr.mxu0 0.0
    %384 = vmatpush1.msra.mxu0 0.0
    %385 = vmatprep.subr.mxu0 0.0
    %386 = vmatpush1.msra.mxu0 0.0
    %387 = vmatprep.subr.mxu0 0.0
    %388 = vmatpush1.msra.mxu0 0.0
    %389 = vmatprep.subr.mxu0 0.0
    %390 = vmatpush1.msra.mxu0 0.0
    %391 = vmatprep.subr.mxu0 0.0
    %392 = vmatpush1.msra.mxu0 0.0
    %393 = vmatprep.subr.mxu0 0.0
    %394 = vmatpush1.msra.mxu0 0.0
    %395 = vmatprep.mubr.f32.mxu0 0.0
    %396 = vmatmul.mubr.f32.gmra.mrb[0].mxu0 %v316
    %v397 = vpop.f32.mrb[0].mxu0
    %v398 = vadd.f32 0.0, %v397
    %v399 = vpop.f32.mrb[0].mxu0
    %400 = vmatprep.mubr.f32.mxu0 0.0
    %401 = vmatmul.mubr.f32.gmra.mrb[0].mxu0 %v319
    %v402 = vpop.f32.mrb[0].mxu0
    %v403 = vadd.f32 0.0, %v402
    %v404 = vpop.f32.mrb[0].mxu0
    %405 = vmatprep.mubr.f32.mxu0 0.0
    %406 = vmatmul.mubr.f32.gmra.mrb[0].mxu0 %v322
    %v407 = vpop.f32.mrb[0].mxu0
    %v408 = vadd.f32 0.0, %v407
    %v409 = vpop.f32.mrb[0].mxu0
    %410 = vmatprep.mubr.f32.mxu0 0.0
    %411 = vmatmul.mubr.f32.gmra.mrb[0].mxu0 %v325
    %v412 = vpop.f32.mrb[0].mxu0
    %v413 = vadd.f32 0.0, %v412
    %v414 = vpop.f32.mrb[0].mxu0
    %415 = vdwg.mxu0
    %v417 = vsel %vm314, %v293, 0
    %v420 = vsel %vm314, %v298, 0
    %v423 = vsel %vm314, %v303, 0
    %v426 = vsel %vm314, %v308, 0
    %v429 = vsel %vm327, %v311, 0
    %431 = vmatprep.subr.mxu0 0.0
    %432 = vmatpush1.msra.mxu0 %v429
    %433 = vmatprep.subr.mxu0 0.0
    %434 = vmatpush1.msra.mxu0 0.0
    %435 = vmatprep.subr.mxu0 0.0
    %436 = vmatpush1.msra.mxu0 0.0
    %437 = vmatprep.subr.mxu0 0.0
    %438 = vmatpush1.msra.mxu0 0.0
    %439 = vmatprep.subr.mxu0 0.0
    %440 = vmatpush1.msra.mxu0 0.0
    %441 = vmatprep.subr.mxu0 0.0
    %442 = vmatpush1.msra.mxu0 0.0
    %443 = vmatprep.subr.mxu0 0.0
    %444 = vmatpush1.msra.mxu0 0.0
    %445 = vmatprep.subr.mxu0 0.0
    %446 = vmatpush1.msra.mxu0 0.0
    %447 = vmatprep.subr.mxu0 0.0
    %448 = vmatpush1.msra.mxu0 0.0
    %449 = vmatprep.subr.mxu0 0.0
    %450 = vmatpush1.msra.mxu0 0.0
    %451 = vmatprep.subr.mxu0 0.0
    %452 = vmatpush1.msra.mxu0 0.0
    %453 = vmatprep.subr.mxu0 0.0
    %454 = vmatpush1.msra.mxu0 0.0
    %455 = vmatprep.subr.mxu0 0.0
    %456 = vmatpush1.msra.mxu0 0.0
    %457 = vmatprep.subr.mxu0 0.0
    %458 = vmatpush1.msra.mxu0 0.0
    %459 = vmatprep.subr.mxu0 0.0
    %460 = vmatpush1.msra.mxu0 0.0
    %461 = vmatprep.subr.mxu0 0.0
    %462 = vmatpush1.msra.mxu0 0.0
    %463 = vmatprep.subr.mxu0 0.0
    %464 = vmatpush1.msra.mxu0 0.0
    %465 = vmatprep.subr.mxu0 0.0
    %466 = vmatpush1.msra.mxu0 0.0
    %467 = vmatprep.subr.mxu0 0.0
    %468 = vmatpush1.msra.mxu0 0.0
    %469 = vmatprep.subr.mxu0 0.0
    %470 = vmatpush1.msra.mxu0 0.0
    %471 = vmatprep.subr.mxu0 0.0
    %472 = vmatpush1.msra.mxu0 0.0
    %473 = vmatprep.subr.mxu0 0.0
    %474 = vmatpush1.msra.mxu0 0.0
    %475 = vmatprep.subr.mxu0 0.0
    %476 = vmatpush1.msra.mxu0 0.0
    %477 = vmatprep.subr.mxu0 0.0
    %478 = vmatpush1.msra.mxu0 0.0
    %479 = vmatprep.subr.mxu0 0.0
    %480 = vmatpush1.msra.mxu0 0.0
    %481 = vmatprep.subr.mxu0 0.0
    %482 = vmatpush1.msra.mxu0 0.0
    %483 = vmatprep.subr.mxu0 0.0
    %484 = vmatpush1.msra.mxu0 0.0
    %485 = vmatprep.subr.mxu0 0.0
    %486 = vmatpush1.msra.mxu0 0.0
    %487 = vmatprep.subr.mxu0 0.0
    %488 = vmatpush1.msra.mxu0 0.0
    %489 = vmatprep.subr.mxu0 0.0
    %490 = vmatpush1.msra.mxu0 0.0
    %491 = vmatprep.subr.mxu0 0.0
    %492 = vmatpush1.msra.mxu0 0.0
    %493 = vmatprep.subr.mxu0 0.0
    %494 = vmatpush1.msra.mxu0 0.0
    %495 = vmatprep.mubr.f32.mxu0 0.0
    %496 = vmatmul.mubr.f32.gmra.mrb[0].mxu0 %v417
    %v497 = vpop.f32.mrb[0].mxu0
    %v498 = vadd.f32 %v398, %v497
    %v499 = vpop.f32.mrb[0].mxu0
    %500 = vmatprep.mubr.f32.mxu0 0.0
    %501 = vmatmul.mubr.f32.gmra.mrb[0].mxu0 %v420
    %v502 = vpop.f32.mrb[0].mxu0
    %v503 = vadd.f32 %v403, %v502
    %v504 = vpop.f32.mrb[0].mxu0
    %505 = vmatprep.mubr.f32.mxu0 0.0
    %506 = vmatmul.mubr.f32.gmra.mrb[0].mxu0 %v423
    %v507 = vpop.f32.mrb[0].mxu0
    %v508 = vadd.f32 %v408, %v507
    %v509 = vpop.f32.mrb[0].mxu0
    %510 = vmatprep.mubr.f32.mxu0 0.0
    %511 = vmatmul.mubr.f32.gmra.mrb[0].mxu0 %v426
    %v512 = vpop.f32.mrb[0].mxu0
    %v513 = vadd.f32 %v413, %v512
    %v514 = vpop.f32.mrb[0].mxu0
    %515 = vdwg.mxu0
    %v516 = vadd.s32 %v191, 1
    %v517 = vadd.s32 %v192, 1
    %v518 = vadd.s32 %v193, 1
    %v519 = vadd.s32 %v194, 1
    %vm520 = vcmp.eq.s32.totalorder %v196, %v516
    %vm521 = vcmp.eq.s32.totalorder %v196, %v517
    %vm522 = vcmp.eq.s32.totalorder %v196, %v518
    %vm523 = vcmp.eq.s32.totalorder %v196, %v519
    %v524 = vsel %vm520, 1, 0
    %v525 = vsel %vm521, 1, 0
    %v526 = vsel %vm522, 1, 0
    %v527 = vsel %vm523, 1, 0
    %v528 = vcvt.s32.f32 %v524
    %v529 = vcvt.s32.f32 %v525
    %v530 = vcvt.s32.f32 %v526
    %v531 = vcvt.s32.f32 %v527
    %v533 = vsel %vm213, %v528, 0
    %v536 = vsel %vm213, %v529, 0
    %v539 = vsel %vm213, %v530, 0
    %v542 = vsel %vm213, %v531, 0
    %544 = vmatprep.subr.mxu0 0.0
    %545 = vmatpush1.msra.mxu0 %v186
    %546 = vmatprep.subr.mxu0 0.0
    %547 = vmatpush1.msra.mxu0 %v187
    %548 = vmatprep.subr.mxu0 0.0
    %549 = vmatpush1.msra.mxu0 %v188
    %550 = vmatprep.subr.mxu0 0.0
    %551 = vmatpush1.msra.mxu0 %v189
    %552 = vmatprep.subr.mxu0 0.0
    %553 = vmatpush1.msra.mxu0 0.0
    %554 = vmatprep.subr.mxu0 0.0
    %555 = vmatpush1.msra.mxu0 0.0
    %556 = vmatprep.subr.mxu0 0.0
    %557 = vmatpush1.msra.mxu0 0.0
    %558 = vmatprep.subr.mxu0 0.0
    %559 = vmatpush1.msra.mxu0 0.0
    %560 = vmatprep.subr.mxu0 0.0
    %561 = vmatpush1.msra.mxu0 0.0
    %562 = vmatprep.subr.mxu0 0.0
    %563 = vmatpush1.msra.mxu0 0.0
    %564 = vmatprep.subr.mxu0 0.0
    %565 = vmatpush1.msra.mxu0 0.0
    %566 = vmatprep.subr.mxu0 0.0
    %567 = vmatpush1.msra.mxu0 0.0
    %568 = vmatprep.subr.mxu0 0.0
    %569 = vmatpush1.msra.mxu0 0.0
    %570 = vmatprep.subr.mxu0 0.0
    %571 = vmatpush1.msra.mxu0 0.0
    %572 = vmatprep.subr.mxu0 0.0
    %573 = vmatpush1.msra.mxu0 0.0
    %574 = vmatprep.subr.mxu0 0.0
    %575 = vmatpush1.msra.mxu0 0.0
    %576 = vmatprep.subr.mxu0 0.0
    %577 = vmatpush1.msra.mxu0 0.0
    %578 = vmatprep.subr.mxu0 0.0
    %579 = vmatpush1.msra.mxu0 0.0
    %580 = vmatprep.subr.mxu0 0.0
    %581 = vmatpush1.msra.mxu0 0.0
    %582 = vmatprep.subr.mxu0 0.0
    %583 = vmatpush1.msra.mxu0 0.0
    %584 = vmatprep.subr.mxu0 0.0
    %585 = vmatpush1.msra.mxu0 0.0
    %586 = vmatprep.subr.mxu0 0.0
    %587 = vmatpush1.msra.mxu0 0.0
    %588 = vmatprep.subr.mxu0 0.0
    %589 = vmatpush1.msra.mxu0 0.0
    %590 = vmatprep.subr.mxu0 0.0
    %591 = vmatpush1.msra.mxu0 0.0
    %592 = vmatprep.subr.mxu0 0.0
    %593 = vmatpush1.msra.mxu0 0.0
    %594 = vmatprep.subr.mxu0 0.0
    %595 = vmatpush1.msra.mxu0 0.0
    %596 = vmatprep.subr.mxu0 0.0
    %597 = vmatpush1.msra.mxu0 0.0
    %598 = vmatprep.subr.mxu0 0.0
    %599 = vmatpush1.msra.mxu0 0.0
    %600 = vmatprep.subr.mxu0 0.0
    %601 = vmatpush1.msra.mxu0 0.0
    %602 = vmatprep.subr.mxu0 0.0
    %603 = vmatpush1.msra.mxu0 0.0
    %604 = vmatprep.subr.mxu0 0.0
    %605 = vmatpush1.msra.mxu0 0.0
    %606 = vmatprep.subr.mxu0 0.0
    %607 = vmatpush1.msra.mxu0 0.0
    %608 = vmatprep.mubr.f32.mxu0 0.0
    %609 = vmatmul.mubr.f32.gmra.mrb[0].mxu0 %v533
    %v610 = vpop.f32.mrb[0].mxu0
    %v611 = vadd.f32 0.0, %v610
    %v612 = vpop.f32.mrb[0].mxu0
    %613 = vmatprep.mubr.f32.mxu0 0.0
    %614 = vmatmul.mubr.f32.gmra.mrb[0].mxu0 %v536
    %v615 = vpop.f32.mrb[0].mxu0
    %v616 = vadd.f32 0.0, %v615
    %v617 = vpop.f32.mrb[0].mxu0
    %618 = vmatprep.mubr.f32.mxu0 0.0
    %619 = vmatmul.mubr.f32.gmra.mrb[0].mxu0 %v539
    %v620 = vpop.f32.mrb[0].mxu0
    %v621 = vadd.f32 0.0, %v620
    %v622 = vpop.f32.mrb[0].mxu0
    %623 = vmatprep.mubr.f32.mxu0 0.0
    %624 = vmatmul.mubr.f32.gmra.mrb[0].mxu0 %v542
    %v625 = vpop.f32.mrb[0].mxu0
    %v626 = vadd.f32 0.0, %v625
    %v627 = vpop.f32.mrb[0].mxu0
    %628 = vdwg.mxu0
    %s629 = scalar_lea.vmem [#allocation2], 8
    %v630 = vld [vmem:[%s629] sm:$0xf]
    %v632 = vsel %vm314, %v611, 0
    %v635 = vsel %vm314, %v616, 0
    %v638 = vsel %vm314, %v621, 0
    %v641 = vsel %vm314, %v626, 0
    %v644 = vsel %vm327, %v630, 0
    %646 = vmatprep.subr.mxu0 0.0
    %647 = vmatpush1.msra.mxu0 %v644
    %648 = vmatprep.subr.mxu0 0.0
    %649 = vmatpush1.msra.mxu0 0.0
    %650 = vmatprep.subr.mxu0 0.0
    %651 = vmatpush1.msra.mxu0 0.0
    %652 = vmatprep.subr.mxu0 0.0
    %653 = vmatpush1.msra.mxu0 0.0
    %654 = vmatprep.subr.mxu0 0.0
    %655 = vmatpush1.msra.mxu0 0.0
    %656 = vmatprep.subr.mxu0 0.0
    %657 = vmatpush1.msra.mxu0 0.0
    %658 = vmatprep.subr.mxu0 0.0
    %659 = vmatpush1.msra.mxu0 0.0
    %660 = vmatprep.subr.mxu0 0.0
    %661 = vmatpush1.msra.mxu0 0.0
    %662 = vmatprep.subr.mxu0 0.0
    %663 = vmatpush1.msra.mxu0 0.0
    %664 = vmatprep.subr.mxu0 0.0
    %665 = vmatpush1.msra.mxu0 0.0
    %666 = vmatprep.subr.mxu0 0.0
    %667 = vmatpush1.msra.mxu0 0.0
    %668 = vmatprep.subr.mxu0 0.0
    %669 = vmatpush1.msra.mxu0 0.0
    %670 = vmatprep.subr.mxu0 0.0
    %671 = vmatpush1.msra.mxu0 0.0
    %672 = vmatprep.subr.mxu0 0.0
    %673 = vmatpush1.msra.mxu0 0.0
    %674 = vmatprep.subr.mxu0 0.0
    %675 = vmatpush1.msra.mxu0 0.0
    %676 = vmatprep.subr.mxu0 0.0
    %677 = vmatpush1.msra.mxu0 0.0
    %678 = vmatprep.subr.mxu0 0.0
    %679 = vmatpush1.msra.mxu0 0.0
    %680 = vmatprep.subr.mxu0 0.0
    %681 = vmatpush1.msra.mxu0 0.0
    %682 = vmatprep.subr.mxu0 0.0
    %683 = vmatpush1.msra.mxu0 0.0
    %684 = vmatprep.subr.mxu0 0.0
    %685 = vmatpush1.msra.mxu0 0.0
    %686 = vmatprep.subr.mxu0 0.0
    %687 = vmatpush1.msra.mxu0 0.0
    %688 = vmatprep.subr.mxu0 0.0
    %689 = vmatpush1.msra.mxu0 0.0
    %690 = vmatprep.subr.mxu0 0.0
    %691 = vmatpush1.msra.mxu0 0.0
    %692 = vmatprep.subr.mxu0 0.0
    %693 = vmatpush1.msra.mxu0 0.0
    %694 = vmatprep.subr.mxu0 0.0
    %695 = vmatpush1.msra.mxu0 0.0
    %696 = vmatprep.subr.mxu0 0.0
    %697 = vmatpush1.msra.mxu0 0.0
    %698 = vmatprep.subr.mxu0 0.0
    %699 = vmatpush1.msra.mxu0 0.0
    %700 = vmatprep.subr.mxu0 0.0
    %701 = vmatpush1.msra.mxu0 0.0
    %702 = vmatprep.subr.mxu0 0.0
    %703 = vmatpush1.msra.mxu0 0.0
    %704 = vmatprep.subr.mxu0 0.0
    %705 = vmatpush1.msra.mxu0 0.0
    %706 = vmatprep.subr.mxu0 0.0
    %707 = vmatpush1.msra.mxu0 0.0
    %708 = vmatprep.subr.mxu0 0.0
    %709 = vmatpush1.msra.mxu0 0.0
    %710 = vmatprep.mubr.f32.mxu0 0.0
    %711 = vmatmul.mubr.f32.gmra.mrb[0].mxu0 %v632
    %v712 = vpop.f32.mrb[0].mxu0
    %v713 = vadd.f32 0.0, %v712
    %v714 = vpop.f32.mrb[0].mxu0
    %715 = vmatprep.mubr.f32.mxu0 0.0
    %716 = vmatmul.mubr.f32.gmra.mrb[0].mxu0 %v635
    %v717 = vpop.f32.mrb[0].mxu0
    %v718 = vadd.f32 0.0, %v717
    %v719 = vpop.f32.mrb[0].mxu0
    %720 = vmatprep.mubr.f32.mxu0 0.0
    %721 = vmatmul.mubr.f32.gmra.mrb[0].mxu0 %v638
    %v722 = vpop.f32.mrb[0].mxu0
    %v723 = vadd.f32 0.0, %v722
    %v724 = vpop.f32.mrb[0].mxu0
    %725 = vmatprep.mubr.f32.mxu0 0.0
    %726 = vmatmul.mubr.f32.gmra.mrb[0].mxu0 %v641
    %v727 = vpop.f32.mrb[0].mxu0
    %v728 = vadd.f32 0.0, %v727
    %v729 = vpop.f32.mrb[0].mxu0
    %730 = vdwg.mxu0
    %v731 = vadd.f32 %v498, %v713
    %v732 = vadd.f32 %v503, %v718
    %v733 = vadd.f32 %v508, %v723
    %v734 = vadd.f32 %v513, %v728
    %v735 = vld [vmem:[%s2] sm:$0x1]
    %v737 = vlaneseq
    %v738 = vshrl.u32 %v737, 7
    %v739 = vsub.s32 0, %v738
    %v740 = vrot.slane %v735, %v739
    %v742 = vadd.f32 %v731, %v740
    %v743 = vadd.f32 %v732, %v740
    %v744 = vadd.f32 %v733, %v740
    %v745 = vadd.f32 %v734, %v740
    %v746 = vmax.f32 %v742, 0.0
    %v747 = vmax.f32 %v743, 0.0
    %v748 = vmax.f32 %v744, 0.0
    %v749 = vmax.f32 %v745, 0.0
    %v750 = vmul.u32 %v191, 2
    %v751 = vmul.u32 %v192, 2
    %vm752 = vcmp.eq.s32.totalorder %v196, %v750
    %vm753 = vcmp.eq.s32.totalorder %v196, %v751
    %v754 = vsel %vm752, 1, 0
    %v755 = vsel %vm753, 1, 0
    %v756 = vcvt.s32.f32 %v754
    %v757 = vcvt.s32.f32 %v755
    %762 = vrot.lane.b32.xlu0 %v742, 126
    %v763 = vpop.permute.xlu0 %762
    %764 = vrot.lane.b32.xlu0 %v743, 126
    %v765 = vpop.permute.xlu0 %764
    %766 = vrot.lane.b32.xlu0 %v744, 126
    %v767 = vpop.permute.xlu0 %766
    %768 = vrot.lane.b32.xlu0 %v745, 126
    %v769 = vpop.permute.xlu0 %768
    %v775 = vsel %vm213, %v756, 0
    %v778 = vsel %vm213, %v757, 0
    %780 = vmatprep.subr.mxu0 0.0
    %781 = vmatpush1.msra.mxu0 %v763
    %782 = vmatprep.subr.mxu0 0.0
    %783 = vmatpush1.msra.mxu0 %v765
    %784 = vmatprep.subr.mxu0 0.0
    %785 = vmatpush1.msra.mxu0 %v767
    %786 = vmatprep.subr.mxu0 0.0
    %787 = vmatpush1.msra.mxu0 %v769
    %788 = vmatprep.subr.mxu0 0.0
    %789 = vmatpush1.msra.mxu0 0.0
    %790 = vmatprep.subr.mxu0 0.0
    %791 = vmatpush1.msra.mxu0 0.0
    %792 = vmatprep.subr.mxu0 0.0
    %793 = vmatpush1.msra.mxu0 0.0
    %794 = vmatprep.subr.mxu0 0.0
    %795 = vmatpush1.msra.mxu0 0.0
    %796 = vmatprep.subr.mxu0 0.0
    %797 = vmatpush1.msra.mxu0 0.0
    %798 = vmatprep.subr.mxu0 0.0
    %799 = vmatpush1.msra.mxu0 0.0
    %800 = vmatprep.subr.mxu0 0.0
    %801 = vmatpush1.msra.mxu0 0.0
    %802 = vmatprep.subr.mxu0 0.0
    %803 = vmatpush1.msra.mxu0 0.0
    %804 = vmatprep.subr.mxu0 0.0
    %805 = vmatpush1.msra.mxu0 0.0
    %806 = vmatprep.subr.mxu0 0.0
    %807 = vmatpush1.msra.mxu0 0.0
    %808 = vmatprep.subr.mxu0 0.0
    %809 = vmatpush1.msra.mxu0 0.0
    %810 = vmatprep.subr.mxu0 0.0
    %811 = vmatpush1.msra.mxu0 0.0
    %812 = vmatprep.subr.mxu0 0.0
    %813 = vmatpush1.msra.mxu0 0.0
    %814 = vmatprep.subr.mxu0 0.0
    %815 = vmatpush1.msra.mxu0 0.0
    %816 = vmatprep.subr.mxu0 0.0
    %817 = vmatpush1.msra.mxu0 0.0
    %818 = vmatprep.subr.mxu0 0.0
    %819 = vmatpush1.msra.mxu0 0.0
    %820 = vmatprep.subr.mxu0 0.0
    %821 = vmatpush1.msra.mxu0 0.0
    %822 = vmatprep.subr.mxu0 0.0
    %823 = vmatpush1.msra.mxu0 0.0
    %824 = vmatprep.subr.mxu0 0.0
    %825 = vmatpush1.msra.mxu0 0.0
    %826 = vmatprep.subr.mxu0 0.0
    %827 = vmatpush1.msra.mxu0 0.0
    %828 = vmatprep.subr.mxu0 0.0
    %829 = vmatpush1.msra.mxu0 0.0
    %830 = vmatprep.subr.mxu0 0.0
    %831 = vmatpush1.msra.mxu0 0.0
    %832 = vmatprep.subr.mxu0 0.0
    %833 = vmatpush1.msra.mxu0 0.0
    %834 = vmatprep.subr.mxu0 0.0
    %835 = vmatpush1.msra.mxu0 0.0
    %836 = vmatprep.subr.mxu0 0.0
    %837 = vmatpush1.msra.mxu0 0.0
    %838 = vmatprep.subr.mxu0 0.0
    %839 = vmatpush1.msra.mxu0 0.0
    %840 = vmatprep.subr.mxu0 0.0
    %841 = vmatpush1.msra.mxu0 0.0
    %842 = vmatprep.subr.mxu0 0.0
    %843 = vmatpush1.msra.mxu0 0.0
    %844 = vmatprep.mubr.f32.mxu0 0.0
    %845 = vmatmul.mubr.f32.gmra.mrb[0].mxu0 %v775
    %v846 = vpop.f32.mrb[0].mxu0
    %v847 = vadd.f32 0.0, %v846
    %v848 = vpop.f32.mrb[0].mxu0
    %849 = vmatprep.mubr.f32.mxu0 0.0
    %850 = vmatmul.mubr.f32.gmra.mrb[0].mxu0 %v778
    %v851 = vpop.f32.mrb[0].mxu0
    %v852 = vadd.f32 0.0, %v851
    %v853 = vpop.f32.mrb[0].mxu0
    %854 = vdwg.mxu0
    %v855 = vadd.s32 %v750, 4294967295
    %v856 = vadd.s32 %v751, 4294967295
    %vm857 = vcmp.eq.s32.totalorder %v196, %v855
    %vm858 = vcmp.eq.s32.totalorder %v196, %v856
    %v859 = vsel %vm857, 1, 0
    %v860 = vsel %vm858, 1, 0
    %v861 = vcvt.s32.f32 %v859
    %v862 = vcvt.s32.f32 %v860
    %v864 = vsel %vm213, %v861, 0
    %v867 = vsel %vm213, %v862, 0
    %869 = vmatprep.subr.mxu0 0.0
    %870 = vmatpush1.msra.mxu0 %v746
    %871 = vmatprep.subr.mxu0 0.0
    %872 = vmatpush1.msra.mxu0 %v747
    %873 = vmatprep.subr.mxu0 0.0
    %874 = vmatpush1.msra.mxu0 %v748
    %875 = vmatprep.subr.mxu0 0.0
    %876 = vmatpush1.msra.mxu0 %v749
    %877 = vmatprep.subr.mxu0 0.0
    %878 = vmatpush1.msra.mxu0 0.0
    %879 = vmatprep.subr.mxu0 0.0
    %880 = vmatpush1.msra.mxu0 0.0
    %881 = vmatprep.subr.mxu0 0.0
    %882 = vmatpush1.msra.mxu0 0.0
    %883 = vmatprep.subr.mxu0 0.0
    %884 = vmatpush1.msra.mxu0 0.0
    %885 = vmatprep.subr.mxu0 0.0
    %886 = vmatpush1.msra.mxu0 0.0
    %887 = vmatprep.subr.mxu0 0.0
    %888 = vmatpush1.msra.mxu0 0.0
    %889 = vmatprep.subr.mxu0 0.0
    %890 = vmatpush1.msra.mxu0 0.0
    %891 = vmatprep.subr.mxu0 0.0
    %892 = vmatpush1.msra.mxu0 0.0
    %893 = vmatprep.subr.mxu0 0.0
    %894 = vmatpush1.msra.mxu0 0.0
    %895 = vmatprep.subr.mxu0 0.0
    %896 = vmatpush1.msra.mxu0 0.0
    %897 = vmatprep.subr.mxu0 0.0
    %898 = vmatpush1.msra.mxu0 0.0
    %899 = vmatprep.subr.mxu0 0.0
    %900 = vmatpush1.msra.mxu0 0.0
    %901 = vmatprep.subr.mxu0 0.0
    %902 = vmatpush1.msra.mxu0 0.0
    %903 = vmatprep.subr.mxu0 0.0
    %904 = vmatpush1.msra.mxu0 0.0
    %905 = vmatprep.subr.mxu0 0.0
    %906 = vmatpush1.msra.mxu0 0.0
    %907 = vmatprep.subr.mxu0 0.0
    %908 = vmatpush1.msra.mxu0 0.0
    %909 = vmatprep.subr.mxu0 0.0
    %910 = vmatpush1.msra.mxu0 0.0
    %911 = vmatprep.subr.mxu0 0.0
    %912 = vmatpush1.msra.mxu0 0.0
    %913 = vmatprep.subr.mxu0 0.0
    %914 = vmatpush1.msra.mxu0 0.0
    %915 = vmatprep.subr.mxu0 0.0
    %916 = vmatpush1.msra.mxu0 0.0
    %917 = vmatprep.subr.mxu0 0.0
    %918 = vmatpush1.msra.mxu0 0.0
    %919 = vmatprep.subr.mxu0 0.0
    %920 = vmatpush1.msra.mxu0 0.0
    %921 = vmatprep.subr.mxu0 0.0
    %922 = vmatpush1.msra.mxu0 0.0
    %923 = vmatprep.subr.mxu0 0.0
    %924 = vmatpush1.msra.mxu0 0.0
    %925 = vmatprep.subr.mxu0 0.0
    %926 = vmatpush1.msra.mxu0 0.0
    %927 = vmatprep.subr.mxu0 0.0
    %928 = vmatpush1.msra.mxu0 0.0
    %929 = vmatprep.subr.mxu0 0.0
    %930 = vmatpush1.msra.mxu0 0.0
    %931 = vmatprep.subr.mxu0 0.0
    %932 = vmatpush1.msra.mxu0 0.0
    %933 = vmatprep.mubr.f32.mxu0 0.0
    %934 = vmatmul.mubr.f32.gmra.mrb[0].mxu0 %v864
    %v935 = vpop.f32.mrb[0].mxu0
    %v936 = vadd.f32 0.0, %v935
    %v937 = vpop.f32.mrb[0].mxu0
    %938 = vmatprep.mubr.f32.mxu0 0.0
    %939 = vmatmul.mubr.f32.gmra.mrb[0].mxu0 %v867
    %v940 = vpop.f32.mrb[0].mxu0
    %v941 = vadd.f32 0.0, %v940
    %v942 = vpop.f32.mrb[0].mxu0
    %943 = vdwg.mxu0
    %v944 = vld [vmem:[#allocation5] sm:$0x3]
    %945 = vmatprep.subr.mxu0 0.0
    %946 = vmatpush1.msra.mxu0 %v746
    %947 = vmatprep.subr.mxu0 0.0
    %948 = vmatpush1.msra.mxu0 %v747
    %949 = vmatprep.subr.mxu0 0.0
    %950 = vmatpush1.msra.mxu0 %v748
    %951 = vmatprep.subr.mxu0 0.0
    %952 = vmatpush1.msra.mxu0 %v749
    %953 = vmatprep.subr.mxu0 0.0
    %954 = vmatpush1.msra.mxu0 0.0
    %955 = vmatprep.subr.mxu0 0.0
    %956 = vmatpush1.msra.mxu0 0.0
    %957 = vmatprep.subr.mxu0 0.0
    %958 = vmatpush1.msra.mxu0 0.0
    %959 = vmatprep.subr.mxu0 0.0
    %960 = vmatpush1.msra.mxu0 0.0
    %961 = vmatprep.subr.mxu0 0.0
    %962 = vmatpush1.msra.mxu0 0.0
    %963 = vmatprep.subr.mxu0 0.0
    %964 = vmatpush1.msra.mxu0 0.0
    %965 = vmatprep.subr.mxu0 0.0
    %966 = vmatpush1.msra.mxu0 0.0
    %967 = vmatprep.subr.mxu0 0.0
    %968 = vmatpush1.msra.mxu0 0.0
    %969 = vmatprep.subr.mxu0 0.0
    %970 = vmatpush1.msra.mxu0 0.0
    %971 = vmatprep.subr.mxu0 0.0
    %972 = vmatpush1.msra.mxu0 0.0
    %973 = vmatprep.subr.mxu0 0.0
    %974 = vmatpush1.msra.mxu0 0.0
    %975 = vmatprep.subr.mxu0 0.0
    %976 = vmatpush1.msra.mxu0 0.0
    %977 = vmatprep.subr.mxu0 0.0
    %978 = vmatpush1.msra.mxu0 0.0
    %979 = vmatprep.subr.mxu0 0.0
    %980 = vmatpush1.msra.mxu0 0.0
    %981 = vmatprep.subr.mxu0 0.0
    %982 = vmatpush1.msra.mxu0 0.0
    %983 = vmatprep.subr.mxu0 0.0
    %984 = vmatpush1.msra.mxu0 0.0
    %985 = vmatprep.subr.mxu0 0.0
    %986 = vmatpush1.msra.mxu0 0.0
    %987 = vmatprep.subr.mxu0 0.0
    %988 = vmatpush1.msra.mxu0 0.0
    %989 = vmatprep.subr.mxu0 0.0
    %990 = vmatpush1.msra.mxu0 0.0
    %991 = vmatprep.subr.mxu0 0.0
    %992 = vmatpush1.msra.mxu0 0.0
    %993 = vmatprep.subr.mxu0 0.0
    %994 = vmatpush1.msra.mxu0 0.0
    %995 = vmatprep.subr.mxu0 0.0
    %996 = vmatpush1.msra.mxu0 0.0
    %997 = vmatprep.subr.mxu0 0.0
    %998 = vmatpush1.msra.mxu0 0.0
    %999 = vmatprep.subr.mxu0 0.0
    %1000 = vmatpush1.msra.mxu0 0.0
    %1001 = vmatprep.subr.mxu0 0.0
    %1002 = vmatpush1.msra.mxu0 0.0
    %1003 = vmatprep.subr.mxu0 0.0
    %1004 = vmatpush1.msra.mxu0 0.0
    %1005 = vmatprep.subr.mxu0 0.0
    %1006 = vmatpush1.msra.mxu0 0.0
    %1007 = vmatprep.subr.mxu0 0.0
    %1008 = vmatpush1.msra.mxu0 0.0
    %1009 = vmatprep.mubr.f32.mxu0 0.0
    %1010 = vmatmul.mubr.f32.gmra.mrb[0].mxu0 %v775
    %v1011 = vpop.f32.mrb[0].mxu0
    %v1012 = vadd.f32 0.0, %v1011
    %v1013 = vpop.f32.mrb[0].mxu0
    %1014 = vmatprep.mubr.f32.mxu0 0.0
    %1015 = vmatmul.mubr.f32.gmra.mrb[0].mxu0 %v778
    %v1016 = vpop.f32.mrb[0].mxu0
    %v1017 = vadd.f32 0.0, %v1016
    %v1018 = vpop.f32.mrb[0].mxu0
    %1019 = vdwg.mxu0
    %s1020 = scalar_lea.vmem [#allocation5], 2
    %v1021 = vld [vmem:[%s1020] sm:$0x3]
    %vm1022 = vcmask 15360
    %v1024 = vsel %vm1022, %v1012, 0
    %v1027 = vsel %vm1022, %v1017, 0
    %vm1029 = vcmask 1041408
    %v1031 = vsel %vm1029, %v1021, 0
    %1033 = vmatprep.subr.mxu0 0.0
    %1034 = vmatpush1.msra.mxu0 %v1031
    %1035 = vmatprep.subr.mxu0 0.0
    %1036 = vmatpush1.msra.mxu0 0.0
    %1037 = vmatprep.subr.mxu0 0.0
    %1038 = vmatpush1.msra.mxu0 0.0
    %1039 = vmatprep.subr.mxu0 0.0
    %1040 = vmatpush1.msra.mxu0 0.0
    %1041 = vmatprep.subr.mxu0 0.0
    %1042 = vmatpush1.msra.mxu0 0.0
    %1043 = vmatprep.subr.mxu0 0.0
    %1044 = vmatpush1.msra.mxu0 0.0
    %1045 = vmatprep.subr.mxu0 0.0
    %1046 = vmatpush1.msra.mxu0 0.0
    %1047 = vmatprep.subr.mxu0 0.0
    %1048 = vmatpush1.msra.mxu0 0.0
    %1049 = vmatprep.subr.mxu0 0.0
    %1050 = vmatpush1.msra.mxu0 0.0
    %1051 = vmatprep.subr.mxu0 0.0
    %1052 = vmatpush1.msra.mxu0 0.0
    %1053 = vmatprep.subr.mxu0 0.0
    %1054 = vmatpush1.msra.mxu0 0.0
    %1055 = vmatprep.subr.mxu0 0.0
    %1056 = vmatpush1.msra.mxu0 0.0
    %1057 = vmatprep.subr.mxu0 0.0
    %1058 = vmatpush1.msra.mxu0 0.0
    %1059 = vmatprep.subr.mxu0 0.0
    %1060 = vmatpush1.msra.mxu0 0.0
    %1061 = vmatprep.subr.mxu0 0.0
    %1062 = vmatpush1.msra.mxu0 0.0
    %1063 = vmatprep.subr.mxu0 0.0
    %1064 = vmatpush1.msra.mxu0 0.0
    %1065 = vmatprep.subr.mxu0 0.0
    %1066 = vmatpush1.msra.mxu0 0.0
    %1067 = vmatprep.subr.mxu0 0.0
    %1068 = vmatpush1.msra.mxu0 0.0
    %1069 = vmatprep.subr.mxu0 0.0
    %1070 = vmatpush1.msra.mxu0 0.0
    %1071 = vmatprep.subr.mxu0 0.0
    %1072 = vmatpush1.msra.mxu0 0.0
    %1073 = vmatprep.subr.mxu0 0.0
    %1074 = vmatpush1.msra.mxu0 0.0
    %1075 = vmatprep.subr.mxu0 0.0
    %1076 = vmatpush1.msra.mxu0 0.0
    %1077 = vmatprep.subr.mxu0 0.0
    %1078 = vmatpush1.msra.mxu0 0.0
    %1079 = vmatprep.subr.mxu0 0.0
    %1080 = vmatpush1.msra.mxu0 0.0
    %1081 = vmatprep.subr.mxu0 0.0
    %1082 = vmatpush1.msra.mxu0 0.0
    %1083 = vmatprep.subr.mxu0 0.0
    %1084 = vmatpush1.msra.mxu0 0.0
    %1085 = vmatprep.subr.mxu0 0.0
    %1086 = vmatpush1.msra.mxu0 0.0
    %1087 = vmatprep.subr.mxu0 0.0
    %1088 = vmatpush1.msra.mxu0 0.0
    %1089 = vmatprep.subr.mxu0 0.0
    %1090 = vmatpush1.msra.mxu0 0.0
    %1091 = vmatprep.subr.mxu0 0.0
    %1092 = vmatpush1.msra.mxu0 0.0
    %1093 = vmatprep.subr.mxu0 0.0
    %1094 = vmatpush1.msra.mxu0 0.0
    %1095 = vmatprep.subr.mxu0 0.0
    %1096 = vmatpush1.msra.mxu0 0.0
    %1097 = vmatprep.mubr.f32.mxu0 0.0
    %1098 = vmatmul.mubr.f32.gmra.mrb[0].mxu0 %v1024
    %v1099 = vpop.f32.mrb[0].mxu0
    %v1100 = vadd.f32 0.0, %v1099
    %v1101 = vpop.f32.mrb[0].mxu0
    %1102 = vmatprep.mubr.f32.mxu0 0.0
    %1103 = vmatmul.mubr.f32.gmra.mrb[0].mxu0 %v1027
    %v1104 = vpop.f32.mrb[0].mxu0
    %v1105 = vadd.f32 0.0, %v1104
    %v1106 = vpop.f32.mrb[0].mxu0
    %1107 = vdwg.mxu0
    %v1109 = vsel %vm1022, %v936, 0
    %v1112 = vsel %vm1022, %v941, 0
    %v1115 = vsel %vm1029, %v944, 0
    %1117 = vmatprep.subr.mxu0 0.0
    %1118 = vmatpush1.msra.mxu0 %v1115
    %1119 = vmatprep.subr.mxu0 0.0
    %1120 = vmatpush1.msra.mxu0 0.0
    %1121 = vmatprep.subr.mxu0 0.0
    %1122 = vmatpush1.msra.mxu0 0.0
    %1123 = vmatprep.subr.mxu0 0.0
    %1124 = vmatpush1.msra.mxu0 0.0
    %1125 = vmatprep.subr.mxu0 0.0
    %1126 = vmatpush1.msra.mxu0 0.0
    %1127 = vmatprep.subr.mxu0 0.0
    %1128 = vmatpush1.msra.mxu0 0.0
    %1129 = vmatprep.subr.mxu0 0.0
    %1130 = vmatpush1.msra.mxu0 0.0
    %1131 = vmatprep.subr.mxu0 0.0
    %1132 = vmatpush1.msra.mxu0 0.0
    %1133 = vmatprep.subr.mxu0 0.0
    %1134 = vmatpush1.msra.mxu0 0.0
    %1135 = vmatprep.subr.mxu0 0.0
    %1136 = vmatpush1.msra.mxu0 0.0
    %1137 = vmatprep.subr.mxu0 0.0
    %1138 = vmatpush1.msra.mxu0 0.0
    %1139 = vmatprep.subr.mxu0 0.0
    %1140 = vmatpush1.msra.mxu0 0.0
    %1141 = vmatprep.subr.mxu0 0.0
    %1142 = vmatpush1.msra.mxu0 0.0
    %1143 = vmatprep.subr.mxu0 0.0
    %1144 = vmatpush1.msra.mxu0 0.0
    %1145 = vmatprep.subr.mxu0 0.0
    %1146 = vmatpush1.msra.mxu0 0.0
    %1147 = vmatprep.subr.mxu0 0.0
    %1148 = vmatpush1.msra.mxu0 0.0
    %1149 = vmatprep.subr.mxu0 0.0
    %1150 = vmatpush1.msra.mxu0 0.0
    %1151 = vmatprep.subr.mxu0 0.0
    %1152 = vmatpush1.msra.mxu0 0.0
    %1153 = vmatprep.subr.mxu0 0.0
    %1154 = vmatpush1.msra.mxu0 0.0
    %1155 = vmatprep.subr.mxu0 0.0
    %1156 = vmatpush1.msra.mxu0 0.0
    %1157 = vmatprep.subr.mxu0 0.0
    %1158 = vmatpush1.msra.mxu0 0.0
    %1159 = vmatprep.subr.mxu0 0.0
    %1160 = vmatpush1.msra.mxu0 0.0
    %1161 = vmatprep.subr.mxu0 0.0
    %1162 = vmatpush1.msra.mxu0 0.0
    %1163 = vmatprep.subr.mxu0 0.0
    %1164 = vmatpush1.msra.mxu0 0.0
    %1165 = vmatprep.subr.mxu0 0.0
    %1166 = vmatpush1.msra.mxu0 0.0
    %1167 = vmatprep.subr.mxu0 0.0
    %1168 = vmatpush1.msra.mxu0 0.0
    %1169 = vmatprep.subr.mxu0 0.0
    %1170 = vmatpush1.msra.mxu0 0.0
    %1171 = vmatprep.subr.mxu0 0.0
    %1172 = vmatpush1.msra.mxu0 0.0
    %1173 = vmatprep.subr.mxu0 0.0
    %1174 = vmatpush1.msra.mxu0 0.0
    %1175 = vmatprep.subr.mxu0 0.0
    %1176 = vmatpush1.msra.mxu0 0.0
    %1177 = vmatprep.subr.mxu0 0.0
    %1178 = vmatpush1.msra.mxu0 0.0
    %1179 = vmatprep.subr.mxu0 0.0
    %1180 = vmatpush1.msra.mxu0 0.0
    %1181 = vmatprep.mubr.f32.mxu0 0.0
    %1182 = vmatmul.mubr.f32.gmra.mrb[0].mxu0 %v1109
    %v1183 = vpop.f32.mrb[0].mxu0
    %v1184 = vadd.f32 %v1100, %v1183
    %v1185 = vpop.f32.mrb[0].mxu0
    %1186 = vmatprep.mubr.f32.mxu0 0.0
    %1187 = vmatmul.mubr.f32.gmra.mrb[0].mxu0 %v1112
    %v1188 = vpop.f32.mrb[0].mxu0
    %v1189 = vadd.f32 %v1105, %v1188
    %v1190 = vpop.f32.mrb[0].mxu0
    %1191 = vdwg.mxu0
    %v1192 = vadd.s32 %v750, 1
    %v1193 = vadd.s32 %v751, 1
    %vm1194 = vcmp.eq.s32.totalorder %v196, %v1192
    %vm1195 = vcmp.eq.s32.totalorder %v196, %v1193
    %v1196 = vsel %vm1194, 1, 0
    %v1197 = vsel %vm1195, 1, 0
    %v1198 = vcvt.s32.f32 %v1196
    %v1199 = vcvt.s32.f32 %v1197
    %v1201 = vsel %vm213, %v1198, 0
    %v1204 = vsel %vm213, %v1199, 0
    %1206 = vmatprep.subr.mxu0 0.0
    %1207 = vmatpush1.msra.mxu0 %v746
    %1208 = vmatprep.subr.mxu0 0.0
    %1209 = vmatpush1.msra.mxu0 %v747
    %1210 = vmatprep.subr.mxu0 0.0
    %1211 = vmatpush1.msra.mxu0 %v748
    %1212 = vmatprep.subr.mxu0 0.0
    %1213 = vmatpush1.msra.mxu0 %v749
    %1214 = vmatprep.subr.mxu0 0.0
    %1215 = vmatpush1.msra.mxu0 0.0
    %1216 = vmatprep.subr.mxu0 0.0
    %1217 = vmatpush1.msra.mxu0 0.0
    %1218 = vmatprep.subr.mxu0 0.0
    %1219 = vmatpush1.msra.mxu0 0.0
    %1220 = vmatprep.subr.mxu0 0.0
    %1221 = vmatpush1.msra.mxu0 0.0
    %1222 = vmatprep.subr.mxu0 0.0
    %1223 = vmatpush1.msra.mxu0 0.0
    %1224 = vmatprep.subr.mxu0 0.0
    %1225 = vmatpush1.msra.mxu0 0.0
    %1226 = vmatprep.subr.mxu0 0.0
    %1227 = vmatpush1.msra.mxu0 0.0
    %1228 = vmatprep.subr.mxu0 0.0
    %1229 = vmatpush1.msra.mxu0 0.0
    %1230 = vmatprep.subr.mxu0 0.0
    %1231 = vmatpush1.msra.mxu0 0.0
    %1232 = vmatprep.subr.mxu0 0.0
    %1233 = vmatpush1.msra.mxu0 0.0
    %1234 = vmatprep.subr.mxu0 0.0
    %1235 = vmatpush1.msra.mxu0 0.0
    %1236 = vmatprep.subr.mxu0 0.0
    %1237 = vmatpush1.msra.mxu0 0.0
    %1238 = vmatprep.subr.mxu0 0.0
    %1239 = vmatpush1.msra.mxu0 0.0
    %1240 = vmatprep.subr.mxu0 0.0
    %1241 = vmatpush1.msra.mxu0 0.0
    %1242 = vmatprep.subr.mxu0 0.0
    %1243 = vmatpush1.msra.mxu0 0.0
    %1244 = vmatprep.subr.mxu0 0.0
    %1245 = vmatpush1.msra.mxu0 0.0
    %1246 = vmatprep.subr.mxu0 0.0
    %1247 = vmatpush1.msra.mxu0 0.0
    %1248 = vmatprep.subr.mxu0 0.0
    %1249 = vmatpush1.msra.mxu0 0.0
    %1250 = vmatprep.subr.mxu0 0.0
    %1251 = vmatpush1.msra.mxu0 0.0
    %1252 = vmatprep.subr.mxu0 0.0
    %1253 = vmatpush1.msra.mxu0 0.0
    %1254 = vmatprep.subr.mxu0 0.0
    %1255 = vmatpush1.msra.mxu0 0.0
    %1256 = vmatprep.subr.mxu0 0.0
    %1257 = vmatpush1.msra.mxu0 0.0
    %1258 = vmatprep.subr.mxu0 0.0
    %1259 = vmatpush1.msra.mxu0 0.0
    %1260 = vmatprep.subr.mxu0 0.0
    %1261 = vmatpush1.msra.mxu0 0.0
    %1262 = vmatprep.subr.mxu0 0.0
    %1263 = vmatpush1.msra.mxu0 0.0
    %1264 = vmatprep.subr.mxu0 0.0
    %1265 = vmatpush1.msra.mxu0 0.0
    %1266 = vmatprep.subr.mxu0 0.0
    %1267 = vmatpush1.msra.mxu0 0.0
    %1268 = vmatprep.subr.mxu0 0.0
    %1269 = vmatpush1.msra.mxu0 0.0
    %1270 = vmatprep.mubr.f32.mxu0 0.0
    %1271 = vmatmul.mubr.f32.gmra.mrb[0].mxu0 %v1201
    %v1272 = vpop.f32.mrb[0].mxu0
    %v1273 = vadd.f32 0.0, %v1272
    %v1274 = vpop.f32.mrb[0].mxu0
    %1275 = vmatprep.mubr.f32.mxu0 0.0
    %1276 = vmatmul.mubr.f32.gmra.mrb[0].mxu0 %v1204
    %v1277 = vpop.f32.mrb[0].mxu0
    %v1278 = vadd.f32 0.0, %v1277
    %v1279 = vpop.f32.mrb[0].mxu0
    %1280 = vdwg.mxu0
    %s1281 = scalar_lea.vmem [#allocation5], 4
    %v1282 = vld [vmem:[%s1281] sm:$0x3]
    %v1284 = vsel %vm1022, %v1273, 0
    %v1287 = vsel %vm1022, %v1278, 0
    %v1290 = vsel %vm1029, %v1282, 0
    %1292 = vmatprep.subr.mxu0 0.0
    %1293 = vmatpush1.msra.mxu0 %v1290
    %1294 = vmatprep.subr.mxu0 0.0
    %1295 = vmatpush1.msra.mxu0 0.0
    %1296 = vmatprep.subr.mxu0 0.0
    %1297 = vmatpush1.msra.mxu0 0.0
    %1298 = vmatprep.subr.mxu0 0.0
    %1299 = vmatpush1.msra.mxu0 0.0
    %1300 = vmatprep.subr.mxu0 0.0
    %1301 = vmatpush1.msra.mxu0 0.0
    %1302 = vmatprep.subr.mxu0 0.0
    %1303 = vmatpush1.msra.mxu0 0.0
    %1304 = vmatprep.subr.mxu0 0.0
    %1305 = vmatpush1.msra.mxu0 0.0
    %1306 = vmatprep.subr.mxu0 0.0
    %1307 = vmatpush1.msra.mxu0 0.0
    %1308 = vmatprep.subr.mxu0 0.0
    %1309 = vmatpush1.msra.mxu0 0.0
    %1310 = vmatprep.subr.mxu0 0.0
    %1311 = vmatpush1.msra.mxu0 0.0
    %1312 = vmatprep.subr.mxu0 0.0
    %1313 = vmatpush1.msra.mxu0 0.0
    %1314 = vmatprep.subr.mxu0 0.0
    %1315 = vmatpush1.msra.mxu0 0.0
    %1316 = vmatprep.subr.mxu0 0.0
    %1317 = vmatpush1.msra.mxu0 0.0
    %1318 = vmatprep.subr.mxu0 0.0
    %1319 = vmatpush1.msra.mxu0 0.0
    %1320 = vmatprep.subr.mxu0 0.0
    %1321 = vmatpush1.msra.mxu0 0.0
    %1322 = vmatprep.subr.mxu0 0.0
    %1323 = vmatpush1.msra.mxu0 0.0
    %1324 = vmatprep.subr.mxu0 0.0
    %1325 = vmatpush1.msra.mxu0 0.0
    %1326 = vmatprep.subr.mxu0 0.0
    %1327 = vmatpush1.msra.mxu0 0.0
    %1328 = vmatprep.subr.mxu0 0.0
    %1329 = vmatpush1.msra.mxu0 0.0
    %1330 = vmatprep.subr.mxu0 0.0
    %1331 = vmatpush1.msra.mxu0 0.0
    %1332 = vmatprep.subr.mxu0 0.0
    %1333 = vmatpush1.msra.mxu0 0.0
    %1334 = vmatprep.subr.mxu0 0.0
    %1335 = vmatpush1.msra.mxu0 0.0
    %1336 = vmatprep.subr.mxu0 0.0
    %1337 = vmatpush1.msra.mxu0 0.0
    %1338 = vmatprep.subr.mxu0 0.0
    %1339 = vmatpush1.msra.mxu0 0.0
    %1340 = vmatprep.subr.mxu0 0.0
    %1341 = vmatpush1.msra.mxu0 0.0
    %1342 = vmatprep.subr.mxu0 0.0
    %1343 = vmatpush1.msra.mxu0 0.0
    %1344 = vmatprep.subr.mxu0 0.0
    %1345 = vmatpush1.msra.mxu0 0.0
    %1346 = vmatprep.subr.mxu0 0.0
    %1347 = vmatpush1.msra.mxu0 0.0
    %1348 = vmatprep.subr.mxu0 0.0
    %1349 = vmatpush1.msra.mxu0 0.0
    %1350 = vmatprep.subr.mxu0 0.0
    %1351 = vmatpush1.msra.mxu0 0.0
    %1352 = vmatprep.subr.mxu0 0.0
    %1353 = vmatpush1.msra.mxu0 0.0
    %1354 = vmatprep.subr.mxu0 0.0
    %1355 = vmatpush1.msra.mxu0 0.0
    %1356 = vmatprep.mubr.f32.mxu0 0.0
    %1357 = vmatmul.mubr.f32.gmra.mrb[0].mxu0 %v1284
    %v1358 = vpop.f32.mrb[0].mxu0
    %v1359 = vadd.f32 0.0, %v1358
    %v1360 = vpop.f32.mrb[0].mxu0
    %1361 = vmatprep.mubr.f32.mxu0 0.0
    %1362 = vmatmul.mubr.f32.gmra.mrb[0].mxu0 %v1287
    %v1363 = vpop.f32.mrb[0].mxu0
    %v1364 = vadd.f32 0.0, %v1363
    %v1365 = vpop.f32.mrb[0].mxu0
    %1366 = vdwg.mxu0
    %v1367 = vadd.f32 %v1184, %v1359
    %v1368 = vadd.f32 %v1189, %v1364
    %v1369 = vld [vmem:[%s4] sm:$0x1]
    %v1371 = vlaneseq
    %v1372 = vshrl.u32 %v1371, 7
    %v1373 = vsub.s32 0, %v1372
    %v1374 = vrot.slane %v1369, %v1373
    %v1376 = vadd.f32 %v1367, %v1374
    %v1377 = vadd.f32 %v1368, %v1374
    %v1378 = vadd.f32 %v1376, %v847
    %v1379 = vadd.f32 %v1377, %v852
    %v1380 = vmax.f32 %v1378, 0.0
    %v1381 = vmax.f32 %v1379, 0.0
    %vm1382 = vcmask 130048
    %v1383 = vsel %vm1382, %v209, 0
    %v1385 = vsel %vm1382, %v210, 0
    %1387 = vmatprep.subr.mxu0 0.0
    %1388 = vmatpush1.msra.mxu0 %v1380
    %1389 = vmatprep.subr.mxu0 0.0
    %1390 = vmatpush1.msra.mxu0 %v1381
    %1391 = vmatprep.subr.mxu0 0.0
    %1392 = vmatpush1.msra.mxu0 0.0
    %1393 = vmatprep.subr.mxu0 0.0
    %1394 = vmatpush1.msra.mxu0 0.0
    %1395 = vmatprep.subr.mxu0 0.0
    %1396 = vmatpush1.msra.mxu0 0.0
    %1397 = vmatprep.subr.mxu0 0.0
    %1398 = vmatpush1.msra.mxu0 0.0
    %1399 = vmatprep.subr.mxu0 0.0
    %1400 = vmatpush1.msra.mxu0 0.0
    %1401 = vmatprep.subr.mxu0 0.0
    %1402 = vmatpush1.msra.mxu0 0.0
    %1403 = vmatprep.subr.mxu0 0.0
    %1404 = vmatpush1.msra.mxu0 0.0
    %1405 = vmatprep.subr.mxu0 0.0
    %1406 = vmatpush1.msra.mxu0 0.0
    %1407 = vmatprep.subr.mxu0 0.0
    %1408 = vmatpush1.msra.mxu0 0.0
    %1409 = vmatprep.subr.mxu0 0.0
    %1410 = vmatpush1.msra.mxu0 0.0
    %1411 = vmatprep.subr.mxu0 0.0
    %1412 = vmatpush1.msra.mxu0 0.0
    %1413 = vmatprep.subr.mxu0 0.0
    %1414 = vmatpush1.msra.mxu0 0.0
    %1415 = vmatprep.subr.mxu0 0.0
    %1416 = vmatpush1.msra.mxu0 0.0
    %1417 = vmatprep.subr.mxu0 0.0
    %1418 = vmatpush1.msra.mxu0 0.0
    %1419 = vmatprep.subr.mxu0 0.0
    %1420 = vmatpush1.msra.mxu0 0.0
    %1421 = vmatprep.subr.mxu0 0.0
    %1422 = vmatpush1.msra.mxu0 0.0
    %1423 = vmatprep.subr.mxu0 0.0
    %1424 = vmatpush1.msra.mxu0 0.0
    %1425 = vmatprep.subr.mxu0 0.0
    %1426 = vmatpush1.msra.mxu0 0.0
    %1427 = vmatprep.subr.mxu0 0.0
    %1428 = vmatpush1.msra.mxu0 0.0
    %1429 = vmatprep.subr.mxu0 0.0
    %1430 = vmatpush1.msra.mxu0 0.0
    %1431 = vmatprep.subr.mxu0 0.0
    %1432 = vmatpush1.msra.mxu0 0.0
    %1433 = vmatprep.subr.mxu0 0.0
    %1434 = vmatpush1.msra.mxu0 0.0
    %1435 = vmatprep.subr.mxu0 0.0
    %1436 = vmatpush1.msra.mxu0 0.0
    %1437 = vmatprep.subr.mxu0 0.0
    %1438 = vmatpush1.msra.mxu0 0.0
    %1439 = vmatprep.subr.mxu0 0.0
    %1440 = vmatpush1.msra.mxu0 0.0
    %1441 = vmatprep.subr.mxu0 0.0
    %1442 = vmatpush1.msra.mxu0 0.0
    %1443 = vmatprep.subr.mxu0 0.0
    %1444 = vmatpush1.msra.mxu0 0.0
    %1445 = vmatprep.subr.mxu0 0.0
    %1446 = vmatpush1.msra.mxu0 0.0
    %1447 = vmatprep.subr.mxu0 0.0
    %1448 = vmatpush1.msra.mxu0 0.0
    %1449 = vmatprep.subr.mxu0 0.0
    %1450 = vmatpush1.msra.mxu0 0.0
    %1451 = vmatprep.mubr.f32.mxu0 0.0
    %1452 = vmatmul.mubr.f32.gmra.mrb[0].mxu0 %v1383
    %v1453 = vpop.f32.mrb[0].mxu0
    %v1454 = vadd.f32 0.0, %v1453
    %v1455 = vpop.f32.mrb[0].mxu0
    %1456 = vmatprep.mubr.f32.mxu0 0.0
    %1457 = vmatmul.mubr.f32.gmra.mrb[0].mxu0 %v1385
    %v1458 = vpop.f32.mrb[0].mxu0
    %v1459 = vadd.f32 0.0, %v1458
    %v1460 = vpop.f32.mrb[0].mxu0
    %1461 = vdwg.mxu0
    %v1462 = vld [vmem:[#allocation7] sm:$0x3]
    %s1463 = scalar_lea.vmem [#allocation7], 2
    %v1464 = vld [vmem:[%s1463] sm:$0x3]
    %v1466 = vsel %vm1022, %v1380, 0
    %v1469 = vsel %vm1022, %v1381, 0
    %v1472 = vsel %vm1029, %v1464, 0
    %1474 = vmatprep.subr.mxu0 0.0
    %1475 = vmatpush1.msra.mxu0 %v1472
    %1476 = vmatprep.subr.mxu0 0.0
    %1477 = vmatpush1.msra.mxu0 0.0
    %1478 = vmatprep.subr.mxu0 0.0
    %1479 = vmatpush1.msra.mxu0 0.0
    %1480 = vmatprep.subr.mxu0 0.0
    %1481 = vmatpush1.msra.mxu0 0.0
    %1482 = vmatprep.subr.mxu0 0.0
    %1483 = vmatpush1.msra.mxu0 0.0
    %1484 = vmatprep.subr.mxu0 0.0
    %1485 = vmatpush1.msra.mxu0 0.0
    %1486 = vmatprep.subr.mxu0 0.0
    %1487 = vmatpush1.msra.mxu0 0.0
    %1488 = vmatprep.subr.mxu0 0.0
    %1489 = vmatpush1.msra.mxu0 0.0
    %1490 = vmatprep.subr.mxu0 0.0
    %1491 = vmatpush1.msra.mxu0 0.0
    %1492 = vmatprep.subr.mxu0 0.0
    %1493 = vmatpush1.msra.mxu0 0.0
    %1494 = vmatprep.subr.mxu0 0.0
    %1495 = vmatpush1.msra.mxu0 0.0
    %1496 = vmatprep.subr.mxu0 0.0
    %1497 = vmatpush1.msra.mxu0 0.0
    %1498 = vmatprep.subr.mxu0 0.0
    %1499 = vmatpush1.msra.mxu0 0.0
    %1500 = vmatprep.subr.mxu0 0.0
    %1501 = vmatpush1.msra.mxu0 0.0
    %1502 = vmatprep.subr.mxu0 0.0
    %1503 = vmatpush1.msra.mxu0 0.0
    %1504 = vmatprep.subr.mxu0 0.0
    %1505 = vmatpush1.msra.mxu0 0.0
    %1506 = vmatprep.subr.mxu0 0.0
    %1507 = vmatpush1.msra.mxu0 0.0
    %1508 = vmatprep.subr.mxu0 0.0
    %1509 = vmatpush1.msra.mxu0 0.0
    %1510 = vmatprep.subr.mxu0 0.0
    %1511 = vmatpush1.msra.mxu0 0.0
    %1512 = vmatprep.subr.mxu0 0.0
    %1513 = vmatpush1.msra.mxu0 0.0
    %1514 = vmatprep.subr.mxu0 0.0
    %1515 = vmatpush1.msra.mxu0 0.0
    %1516 = vmatprep.subr.mxu0 0.0
    %1517 = vmatpush1.msra.mxu0 0.0
    %1518 = vmatprep.subr.mxu0 0.0
    %1519 = vmatpush1.msra.mxu0 0.0
    %1520 = vmatprep.subr.mxu0 0.0
    %1521 = vmatpush1.msra.mxu0 0.0
    %1522 = vmatprep.subr.mxu0 0.0
    %1523 = vmatpush1.msra.mxu0 0.0
    %1524 = vmatprep.subr.mxu0 0.0
    %1525 = vmatpush1.msra.mxu0 0.0
    %1526 = vmatprep.subr.mxu0 0.0
    %1527 = vmatpush1.msra.mxu0 0.0
    %1528 = vmatprep.subr.mxu0 0.0
    %1529 = vmatpush1.msra.mxu0 0.0
    %1530 = vmatprep.subr.mxu0 0.0
    %1531 = vmatpush1.msra.mxu0 0.0
    %1532 = vmatprep.subr.mxu0 0.0
    %1533 = vmatpush1.msra.mxu0 0.0
    %1534 = vmatprep.subr.mxu0 0.0
    %1535 = vmatpush1.msra.mxu0 0.0
    %1536 = vmatprep.subr.mxu0 0.0
    %1537 = vmatpush1.msra.mxu0 0.0
    %1538 = vmatprep.mubr.f32.mxu0 0.0
    %1539 = vmatmul.mubr.f32.gmra.mrb[0].mxu0 %v1466
    %v1540 = vpop.f32.mrb[0].mxu0
    %v1541 = vadd.f32 0.0, %v1540
    %v1542 = vpop.f32.mrb[0].mxu0
    %1543 = vmatprep.mubr.f32.mxu0 0.0
    %1544 = vmatmul.mubr.f32.gmra.mrb[0].mxu0 %v1469
    %v1545 = vpop.f32.mrb[0].mxu0
    %v1546 = vadd.f32 0.0, %v1545
    %v1547 = vpop.f32.mrb[0].mxu0
    %1548 = vdwg.mxu0
    %v1550 = vsel %vm1022, %v1454, 0
    %v1553 = vsel %vm1022, %v1459, 0
    %v1556 = vsel %vm1029, %v1462, 0
    %1558 = vmatprep.subr.mxu0 0.0
    %1559 = vmatpush1.msra.mxu0 %v1556
    %1560 = vmatprep.subr.mxu0 0.0
    %1561 = vmatpush1.msra.mxu0 0.0
    %1562 = vmatprep.subr.mxu0 0.0
    %1563 = vmatpush1.msra.mxu0 0.0
    %1564 = vmatprep.subr.mxu0 0.0
    %1565 = vmatpush1.msra.mxu0 0.0
    %1566 = vmatprep.subr.mxu0 0.0
    %1567 = vmatpush1.msra.mxu0 0.0
    %1568 = vmatprep.subr.mxu0 0.0
    %1569 = vmatpush1.msra.mxu0 0.0
    %1570 = vmatprep.subr.mxu0 0.0
    %1571 = vmatpush1.msra.mxu0 0.0
    %1572 = vmatprep.subr.mxu0 0.0
    %1573 = vmatpush1.msra.mxu0 0.0
    %1574 = vmatprep.subr.mxu0 0.0
    %1575 = vmatpush1.msra.mxu0 0.0
    %1576 = vmatprep.subr.mxu0 0.0
    %1577 = vmatpush1.msra.mxu0 0.0
    %1578 = vmatprep.subr.mxu0 0.0
    %1579 = vmatpush1.msra.mxu0 0.0
    %1580 = vmatprep.subr.mxu0 0.0
    %1581 = vmatpush1.msra.mxu0 0.0
    %1582 = vmatprep.subr.mxu0 0.0
    %1583 = vmatpush1.msra.mxu0 0.0
    %1584 = vmatprep.subr.mxu0 0.0
    %1585 = vmatpush1.msra.mxu0 0.0
    %1586 = vmatprep.subr.mxu0 0.0
    %1587 = vmatpush1.msra.mxu0 0.0
    %1588 = vmatprep.subr.mxu0 0.0
    %1589 = vmatpush1.msra.mxu0 0.0
    %1590 = vmatprep.subr.mxu0 0.0
    %1591 = vmatpush1.msra.mxu0 0.0
    %1592 = vmatprep.subr.mxu0 0.0
    %1593 = vmatpush1.msra.mxu0 0.0
    %1594 = vmatprep.subr.mxu0 0.0
    %1595 = vmatpush1.msra.mxu0 0.0
    %1596 = vmatprep.subr.mxu0 0.0
    %1597 = vmatpush1.msra.mxu0 0.0
    %1598 = vmatprep.subr.mxu0 0.0
    %1599 = vmatpush1.msra.mxu0 0.0
    %1600 = vmatprep.subr.mxu0 0.0
    %1601 = vmatpush1.msra.mxu0 0.0
    %1602 = vmatprep.subr.mxu0 0.0
    %1603 = vmatpush1.msra.mxu0 0.0
    %1604 = vmatprep.subr.mxu0 0.0
    %1605 = vmatpush1.msra.mxu0 0.0
    %1606 = vmatprep.subr.mxu0 0.0
    %1607 = vmatpush1.msra.mxu0 0.0
    %1608 = vmatprep.subr.mxu0 0.0
    %1609 = vmatpush1.msra.mxu0 0.0
    %1610 = vmatprep.subr.mxu0 0.0
    %1611 = vmatpush1.msra.mxu0 0.0
    %1612 = vmatprep.subr.mxu0 0.0
    %1613 = vmatpush1.msra.mxu0 0.0
    %1614 = vmatprep.subr.mxu0 0.0
    %1615 = vmatpush1.msra.mxu0 0.0
    %1616 = vmatprep.subr.mxu0 0.0
    %1617 = vmatpush1.msra.mxu0 0.0
    %1618 = vmatprep.subr.mxu0 0.0
    %1619 = vmatpush1.msra.mxu0 0.0
    %1620 = vmatprep.subr.mxu0 0.0
    %1621 = vmatpush1.msra.mxu0 0.0
    %1622 = vmatprep.mubr.f32.mxu0 0.0
    %1623 = vmatmul.mubr.f32.gmra.mrb[0].mxu0 %v1550
    %v1624 = vpop.f32.mrb[0].mxu0
    %v1625 = vadd.f32 %v1541, %v1624
    %v1626 = vpop.f32.mrb[0].mxu0
    %1627 = vmatprep.mubr.f32.mxu0 0.0
    %1628 = vmatmul.mubr.f32.gmra.mrb[0].mxu0 %v1553
    %v1629 = vpop.f32.mrb[0].mxu0
    %v1630 = vadd.f32 %v1546, %v1629
    %v1631 = vpop.f32.mrb[0].mxu0
    %1632 = vdwg.mxu0
    %v1633 = vsel %vm1382, %v528, 0
    %v1635 = vsel %vm1382, %v529, 0
    %1637 = vmatprep.subr.mxu0 0.0
    %1638 = vmatpush1.msra.mxu0 %v1380
    %1639 = vmatprep.subr.mxu0 0.0
    %1640 = vmatpush1.msra.mxu0 %v1381
    %1641 = vmatprep.subr.mxu0 0.0
    %1642 = vmatpush1.msra.mxu0 0.0
    %1643 = vmatprep.subr.mxu0 0.0
    %1644 = vmatpush1.msra.mxu0 0.0
    %1645 = vmatprep.subr.mxu0 0.0
    %1646 = vmatpush1.msra.mxu0 0.0
    %1647 = vmatprep.subr.mxu0 0.0
    %1648 = vmatpush1.msra.mxu0 0.0
    %1649 = vmatprep.subr.mxu0 0.0
    %1650 = vmatpush1.msra.mxu0 0.0
    %1651 = vmatprep.subr.mxu0 0.0
    %1652 = vmatpush1.msra.mxu0 0.0
    %1653 = vmatprep.subr.mxu0 0.0
    %1654 = vmatpush1.msra.mxu0 0.0
    %1655 = vmatprep.subr.mxu0 0.0
    %1656 = vmatpush1.msra.mxu0 0.0
    %1657 = vmatprep.subr.mxu0 0.0
    %1658 = vmatpush1.msra.mxu0 0.0
    %1659 = vmatprep.subr.mxu0 0.0
    %1660 = vmatpush1.msra.mxu0 0.0
    %1661 = vmatprep.subr.mxu0 0.0
    %1662 = vmatpush1.msra.mxu0 0.0
    %1663 = vmatprep.subr.mxu0 0.0
    %1664 = vmatpush1.msra.mxu0 0.0
    %1665 = vmatprep.subr.mxu0 0.0
    %1666 = vmatpush1.msra.mxu0 0.0
    %1667 = vmatprep.subr.mxu0 0.0
    %1668 = vmatpush1.msra.mxu0 0.0
    %1669 = vmatprep.subr.mxu0 0.0
    %1670 = vmatpush1.msra.mxu0 0.0
    %1671 = vmatprep.subr.mxu0 0.0
    %1672 = vmatpush1.msra.mxu0 0.0
    %1673 = vmatprep.subr.mxu0 0.0
    %1674 = vmatpush1.msra.mxu0 0.0
    %1675 = vmatprep.subr.mxu0 0.0
    %1676 = vmatpush1.msra.mxu0 0.0
    %1677 = vmatprep.subr.mxu0 0.0
    %1678 = vmatpush1.msra.mxu0 0.0
    %1679 = vmatprep.subr.mxu0 0.0
    %1680 = vmatpush1.msra.mxu0 0.0
    %1681 = vmatprep.subr.mxu0 0.0
    %1682 = vmatpush1.msra.mxu0 0.0
    %1683 = vmatprep.subr.mxu0 0.0
    %1684 = vmatpush1.msra.mxu0 0.0
    %1685 = vmatprep.subr.mxu0 0.0
    %1686 = vmatpush1.msra.mxu0 0.0
    %1687 = vmatprep.subr.mxu0 0.0
    %1688 = vmatpush1.msra.mxu0 0.0
    %1689 = vmatprep.subr.mxu0 0.0
    %1690 = vmatpush1.msra.mxu0 0.0
    %1691 = vmatprep.subr.mxu0 0.0
    %1692 = vmatpush1.msra.mxu0 0.0
    %1693 = vmatprep.subr.mxu0 0.0
    %1694 = vmatpush1.msra.mxu0 0.0
    %1695 = vmatprep.subr.mxu0 0.0
    %1696 = vmatpush1.msra.mxu0 0.0
    %1697 = vmatprep.subr.mxu0 0.0
    %1698 = vmatpush1.msra.mxu0 0.0
    %1699 = vmatprep.subr.mxu0 0.0
    %1700 = vmatpush1.msra.mxu0 0.0
    %1701 = vmatprep.mubr.f32.mxu0 0.0
    %1702 = vmatmul.mubr.f32.gmra.mrb[0].mxu0 %v1633
    %v1703 = vpop.f32.mrb[0].mxu0
    %v1704 = vadd.f32 0.0, %v1703
    %v1705 = vpop.f32.mrb[0].mxu0
    %1706 = vmatprep.mubr.f32.mxu0 0.0
    %1707 = vmatmul.mubr.f32.gmra.mrb[0].mxu0 %v1635
    %v1708 = vpop.f32.mrb[0].mxu0
    %v1709 = vadd.f32 0.0, %v1708
    %v1710 = vpop.f32.mrb[0].mxu0
    %1711 = vdwg.mxu0
    %s1712 = scalar_lea.vmem [#allocation7], 4
    %v1713 = vld [vmem:[%s1712] sm:$0x3]
    %v1715 = vsel %vm1022, %v1704, 0
    %v1718 = vsel %vm1022, %v1709, 0
    %v1721 = vsel %vm1029, %v1713, 0
    %1723 = vmatprep.subr.mxu0 0.0
    %1724 = vmatpush1.msra.mxu0 %v1721
    %1725 = vmatprep.subr.mxu0 0.0
    %1726 = vmatpush1.msra.mxu0 0.0
    %1727 = vmatprep.subr.mxu0 0.0
    %1728 = vmatpush1.msra.mxu0 0.0
    %1729 = vmatprep.subr.mxu0 0.0
    %1730 = vmatpush1.msra.mxu0 0.0
    %1731 = vmatprep.subr.mxu0 0.0
    %1732 = vmatpush1.msra.mxu0 0.0
    %1733 = vmatprep.subr.mxu0 0.0
    %1734 = vmatpush1.msra.mxu0 0.0
    %1735 = vmatprep.subr.mxu0 0.0
    %1736 = vmatpush1.msra.mxu0 0.0
    %1737 = vmatprep.subr.mxu0 0.0
    %1738 = vmatpush1.msra.mxu0 0.0
    %1739 = vmatprep.subr.mxu0 0.0
    %1740 = vmatpush1.msra.mxu0 0.0
    %1741 = vmatprep.subr.mxu0 0.0
    %1742 = vmatpush1.msra.mxu0 0.0
    %1743 = vmatprep.subr.mxu0 0.0
    %1744 = vmatpush1.msra.mxu0 0.0
    %1745 = vmatprep.subr.mxu0 0.0
    %1746 = vmatpush1.msra.mxu0 0.0
    %1747 = vmatprep.subr.mxu0 0.0
    %1748 = vmatpush1.msra.mxu0 0.0
    %1749 = vmatprep.subr.mxu0 0.0
    %1750 = vmatpush1.msra.mxu0 0.0
    %1751 = vmatprep.subr.mxu0 0.0
    %1752 = vmatpush1.msra.mxu0 0.0
    %1753 = vmatprep.subr.mxu0 0.0
    %1754 = vmatpush1.msra.mxu0 0.0
    %1755 = vmatprep.subr.mxu0 0.0
    %1756 = vmatpush1.msra.mxu0 0.0
    %1757 = vmatprep.subr.mxu0 0.0
    %1758 = vmatpush1.msra.mxu0 0.0
    %1759 = vmatprep.subr.mxu0 0.0
    %1760 = vmatpush1.msra.mxu0 0.0
    %1761 = vmatprep.subr.mxu0 0.0
    %1762 = vmatpush1.msra.mxu0 0.0
    %1763 = vmatprep.subr.mxu0 0.0
    %1764 = vmatpush1.msra.mxu0 0.0
    %1765 = vmatprep.subr.mxu0 0.0
    %1766 = vmatpush1.msra.mxu0 0.0
    %1767 = vmatprep.subr.mxu0 0.0
    %1768 = vmatpush1.msra.mxu0 0.0
    %1769 = vmatprep.subr.mxu0 0.0
    %1770 = vmatpush1.msra.mxu0 0.0
    %1771 = vmatprep.subr.mxu0 0.0
    %1772 = vmatpush1.msra.mxu0 0.0
    %1773 = vmatprep.subr.mxu0 0.0
    %1774 = vmatpush1.msra.mxu0 0.0
    %1775 = vmatprep.subr.mxu0 0.0
    %1776 = vmatpush1.msra.mxu0 0.0
    %1777 = vmatprep.subr.mxu0 0.0
    %1778 = vmatpush1.msra.mxu0 0.0
    %1779 = vmatprep.subr.mxu0 0.0
    %1780 = vmatpush1.msra.mxu0 0.0
    %1781 = vmatprep.subr.mxu0 0.0
    %1782 = vmatpush1.msra.mxu0 0.0
    %1783 = vmatprep.subr.mxu0 0.0
    %1784 = vmatpush1.msra.mxu0 0.0
    %1785 = vmatprep.subr.mxu0 0.0
    %1786 = vmatpush1.msra.mxu0 0.0
    %1787 = vmatprep.mubr.f32.mxu0 0.0
    %1788 = vmatmul.mubr.f32.gmra.mrb[0].mxu0 %v1715
    %v1789 = vpop.f32.mrb[0].mxu0
    %v1790 = vadd.f32 0.0, %v1789
    %v1791 = vpop.f32.mrb[0].mxu0
    %1792 = vmatprep.mubr.f32.mxu0 0.0
    %1793 = vmatmul.mubr.f32.gmra.mrb[0].mxu0 %v1718
    %v1794 = vpop.f32.mrb[0].mxu0
    %v1795 = vadd.f32 0.0, %v1794
    %v1796 = vpop.f32.mrb[0].mxu0
    %1797 = vdwg.mxu0
    %v1798 = vadd.f32 %v1625, %v1790
    %v1799 = vadd.f32 %v1630, %v1795
    %v1800 = vld [vmem:[%s6] sm:$0x1]
    %v1802 = vlaneseq
    %v1803 = vshrl.u32 %v1802, 7
    %v1804 = vsub.s32 0, %v1803
    %v1805 = vrot.slane %v1800, %v1804
    %v1807 = vadd.f32 %v1798, %v1805
    %v1808 = vadd.f32 %v1799, %v1805
    %v1809 = vmax.f32 %v1807, 0.0
    %v1810 = vmax.f32 %v1808, 0.0
    %1813 = vrot.lane.b32.xlu0 %v1807, 124
    %v1814 = vpop.permute.xlu0 %1813
    %1815 = vrot.lane.b32.xlu0 %v1808, 124
    %v1816 = vpop.permute.xlu0 %1815
    %v1819 = vsel %vm1382, %v756, 0
    %1821 = vmatprep.subr.mxu0 0.0
    %1822 = vmatpush1.msra.mxu0 %v1814
    %1823 = vmatprep.subr.mxu0 0.0
    %1824 = vmatpush1.msra.mxu0 %v1816
    %1825 = vmatprep.subr.mxu0 0.0
    %1826 = vmatpush1.msra.mxu0 0.0
    %1827 = vmatprep.subr.mxu0 0.0
    %1828 = vmatpush1.msra.mxu0 0.0
    %1829 = vmatprep.subr.mxu0 0.0
    %1830 = vmatpush1.msra.mxu0 0.0
    %1831 = vmatprep.subr.mxu0 0.0
    %1832 = vmatpush1.msra.mxu0 0.0
    %1833 = vmatprep.subr.mxu0 0.0
    %1834 = vmatpush1.msra.mxu0 0.0
    %1835 = vmatprep.subr.mxu0 0.0
    %1836 = vmatpush1.msra.mxu0 0.0
    %1837 = vmatprep.subr.mxu0 0.0
    %1838 = vmatpush1.msra.mxu0 0.0
    %1839 = vmatprep.subr.mxu0 0.0
    %1840 = vmatpush1.msra.mxu0 0.0
    %1841 = vmatprep.subr.mxu0 0.0
    %1842 = vmatpush1.msra.mxu0 0.0
    %1843 = vmatprep.subr.mxu0 0.0
    %1844 = vmatpush1.msra.mxu0 0.0
    %1845 = vmatprep.subr.mxu0 0.0
    %1846 = vmatpush1.msra.mxu0 0.0
    %1847 = vmatprep.subr.mxu0 0.0
    %1848 = vmatpush1.msra.mxu0 0.0
    %1849 = vmatprep.subr.mxu0 0.0
    %1850 = vmatpush1.msra.mxu0 0.0
    %1851 = vmatprep.subr.mxu0 0.0
    %1852 = vmatpush1.msra.mxu0 0.0
    %1853 = vmatprep.subr.mxu0 0.0
    %1854 = vmatpush1.msra.mxu0 0.0
    %1855 = vmatprep.subr.mxu0 0.0
    %1856 = vmatpush1.msra.mxu0 0.0
    %1857 = vmatprep.subr.mxu0 0.0
    %1858 = vmatpush1.msra.mxu0 0.0
    %1859 = vmatprep.subr.mxu0 0.0
    %1860 = vmatpush1.msra.mxu0 0.0
    %1861 = vmatprep.subr.mxu0 0.0
    %1862 = vmatpush1.msra.mxu0 0.0
    %1863 = vmatprep.subr.mxu0 0.0
    %1864 = vmatpush1.msra.mxu0 0.0
    %1865 = vmatprep.subr.mxu0 0.0
    %1866 = vmatpush1.msra.mxu0 0.0
    %1867 = vmatprep.subr.mxu0 0.0
    %1868 = vmatpush1.msra.mxu0 0.0
    %1869 = vmatprep.subr.mxu0 0.0
    %1870 = vmatpush1.msra.mxu0 0.0
    %1871 = vmatprep.subr.mxu0 0.0
    %1872 = vmatpush1.msra.mxu0 0.0
    %1873 = vmatprep.subr.mxu0 0.0
    %1874 = vmatpush1.msra.mxu0 0.0
    %1875 = vmatprep.subr.mxu0 0.0
    %1876 = vmatpush1.msra.mxu0 0.0
    %1877 = vmatprep.subr.mxu0 0.0
    %1878 = vmatpush1.msra.mxu0 0.0
    %1879 = vmatprep.subr.mxu0 0.0
    %1880 = vmatpush1.msra.mxu0 0.0
    %1881 = vmatprep.subr.mxu0 0.0
    %1882 = vmatpush1.msra.mxu0 0.0
    %1883 = vmatprep.subr.mxu0 0.0
    %1884 = vmatpush1.msra.mxu0 0.0
    %1885 = vmatprep.mubr.f32.mxu0 0.0
    %1886 = vmatmul.mubr.f32.gmra.mrb[0].mxu0 %v1819
    %v1887 = vpop.f32.mrb[0].mxu0
    %v1888 = vadd.f32 0.0, %v1887
    %v1889 = vpop.f32.mrb[0].mxu0
    %1890 = vdwg.mxu0
    %v1891 = vsel %vm1382, %v861, 0
    %1893 = vmatprep.subr.mxu0 0.0
    %1894 = vmatpush1.msra.mxu0 %v1809
    %1895 = vmatprep.subr.mxu0 0.0
    %1896 = vmatpush1.msra.mxu0 %v1810
    %1897 = vmatprep.subr.mxu0 0.0
    %1898 = vmatpush1.msra.mxu0 0.0
    %1899 = vmatprep.subr.mxu0 0.0
    %1900 = vmatpush1.msra.mxu0 0.0
    %1901 = vmatprep.subr.mxu0 0.0
    %1902 = vmatpush1.msra.mxu0 0.0
    %1903 = vmatprep.subr.mxu0 0.0
    %1904 = vmatpush1.msra.mxu0 0.0
    %1905 = vmatprep.subr.mxu0 0.0
    %1906 = vmatpush1.msra.mxu0 0.0
    %1907 = vmatprep.subr.mxu0 0.0
    %1908 = vmatpush1.msra.mxu0 0.0
    %1909 = vmatprep.subr.mxu0 0.0
    %1910 = vmatpush1.msra.mxu0 0.0
    %1911 = vmatprep.subr.mxu0 0.0
    %1912 = vmatpush1.msra.mxu0 0.0
    %1913 = vmatprep.subr.mxu0 0.0
    %1914 = vmatpush1.msra.mxu0 0.0
    %1915 = vmatprep.subr.mxu0 0.0
    %1916 = vmatpush1.msra.mxu0 0.0
    %1917 = vmatprep.subr.mxu0 0.0
    %1918 = vmatpush1.msra.mxu0 0.0
    %1919 = vmatprep.subr.mxu0 0.0
    %1920 = vmatpush1.msra.mxu0 0.0
    %1921 = vmatprep.subr.mxu0 0.0
    %1922 = vmatpush1.msra.mxu0 0.0
    %1923 = vmatprep.subr.mxu0 0.0
    %1924 = vmatpush1.msra.mxu0 0.0
    %1925 = vmatprep.subr.mxu0 0.0
    %1926 = vmatpush1.msra.mxu0 0.0
    %1927 = vmatprep.subr.mxu0 0.0
    %1928 = vmatpush1.msra.mxu0 0.0
    %1929 = vmatprep.subr.mxu0 0.0
    %1930 = vmatpush1.msra.mxu0 0.0
    %1931 = vmatprep.subr.mxu0 0.0
    %1932 = vmatpush1.msra.mxu0 0.0
    %1933 = vmatprep.subr.mxu0 0.0
    %1934 = vmatpush1.msra.mxu0 0.0
    %1935 = vmatprep.subr.mxu0 0.0
    %1936 = vmatpush1.msra.mxu0 0.0
    %1937 = vmatprep.subr.mxu0 0.0
    %1938 = vmatpush1.msra.mxu0 0.0
    %1939 = vmatprep.subr.mxu0 0.0
    %1940 = vmatpush1.msra.mxu0 0.0
    %1941 = vmatprep.subr.mxu0 0.0
    %1942 = vmatpush1.msra.mxu0 0.0
    %1943 = vmatprep.subr.mxu0 0.0
    %1944 = vmatpush1.msra.mxu0 0.0
    %1945 = vmatprep.subr.mxu0 0.0
    %1946 = vmatpush1.msra.mxu0 0.0
    %1947 = vmatprep.subr.mxu0 0.0
    %1948 = vmatpush1.msra.mxu0 0.0
    %1949 = vmatprep.subr.mxu0 0.0
    %1950 = vmatpush1.msra.mxu0 0.0
    %1951 = vmatprep.subr.mxu0 0.0
    %1952 = vmatpush1.msra.mxu0 0.0
    %1953 = vmatprep.subr.mxu0 0.0
    %1954 = vmatpush1.msra.mxu0 0.0
    %1955 = vmatprep.subr.mxu0 0.0
    %1956 = vmatpush1.msra.mxu0 0.0
    %1957 = vmatprep.mubr.f32.mxu0 0.0
    %1958 = vmatmul.mubr.f32.gmra.mrb[0].mxu0 %v1891
    %v1959 = vpop.f32.mrb[0].mxu0
    %v1960 = vadd.f32 0.0, %v1959
    %v1961 = vpop.f32.mrb[0].mxu0
    %1962 = vdwg.mxu0
    %v1963 = vld [vmem:[#allocation8] sm:$0xf]
    %1964 = vmatprep.subr.mxu0 0.0
    %1965 = vmatpush1.msra.mxu0 %v1809
    %1966 = vmatprep.subr.mxu0 0.0
    %1967 = vmatpush1.msra.mxu0 %v1810
    %1968 = vmatprep.subr.mxu0 0.0
    %1969 = vmatpush1.msra.mxu0 0.0
    %1970 = vmatprep.subr.mxu0 0.0
    %1971 = vmatpush1.msra.mxu0 0.0
    %1972 = vmatprep.subr.mxu0 0.0
    %1973 = vmatpush1.msra.mxu0 0.0
    %1974 = vmatprep.subr.mxu0 0.0
    %1975 = vmatpush1.msra.mxu0 0.0
    %1976 = vmatprep.subr.mxu0 0.0
    %1977 = vmatpush1.msra.mxu0 0.0
    %1978 = vmatprep.subr.mxu0 0.0
    %1979 = vmatpush1.msra.mxu0 0.0
    %1980 = vmatprep.subr.mxu0 0.0
    %1981 = vmatpush1.msra.mxu0 0.0
    %1982 = vmatprep.subr.mxu0 0.0
    %1983 = vmatpush1.msra.mxu0 0.0
    %1984 = vmatprep.subr.mxu0 0.0
    %1985 = vmatpush1.msra.mxu0 0.0
    %1986 = vmatprep.subr.mxu0 0.0
    %1987 = vmatpush1.msra.mxu0 0.0
    %1988 = vmatprep.subr.mxu0 0.0
    %1989 = vmatpush1.msra.mxu0 0.0
    %1990 = vmatprep.subr.mxu0 0.0
    %1991 = vmatpush1.msra.mxu0 0.0
    %1992 = vmatprep.subr.mxu0 0.0
    %1993 = vmatpush1.msra.mxu0 0.0
    %1994 = vmatprep.subr.mxu0 0.0
    %1995 = vmatpush1.msra.mxu0 0.0
    %1996 = vmatprep.subr.mxu0 0.0
    %1997 = vmatpush1.msra.mxu0 0.0
    %1998 = vmatprep.subr.mxu0 0.0
    %1999 = vmatpush1.msra.mxu0 0.0
    %2000 = vmatprep.subr.mxu0 0.0
    %2001 = vmatpush1.msra.mxu0 0.0
    %2002 = vmatprep.subr.mxu0 0.0
    %2003 = vmatpush1.msra.mxu0 0.0
    %2004 = vmatprep.subr.mxu0 0.0
    %2005 = vmatpush1.msra.mxu0 0.0
    %2006 = vmatprep.subr.mxu0 0.0
    %2007 = vmatpush1.msra.mxu0 0.0
    %2008 = vmatprep.subr.mxu0 0.0
    %2009 = vmatpush1.msra.mxu0 0.0
    %2010 = vmatprep.subr.mxu0 0.0
    %2011 = vmatpush1.msra.mxu0 0.0
    %2012 = vmatprep.subr.mxu0 0.0
    %2013 = vmatpush1.msra.mxu0 0.0
    %2014 = vmatprep.subr.mxu0 0.0
    %2015 = vmatpush1.msra.mxu0 0.0
    %2016 = vmatprep.subr.mxu0 0.0
    %2017 = vmatpush1.msra.mxu0 0.0
    %2018 = vmatprep.subr.mxu0 0.0
    %2019 = vmatpush1.msra.mxu0 0.0
    %2020 = vmatprep.subr.mxu0 0.0
    %2021 = vmatpush1.msra.mxu0 0.0
    %2022 = vmatprep.subr.mxu0 0.0
    %2023 = vmatpush1.msra.mxu0 0.0
    %2024 = vmatprep.subr.mxu0 0.0
    %2025 = vmatpush1.msra.mxu0 0.0
    %2026 = vmatprep.subr.mxu0 0.0
    %2027 = vmatpush1.msra.mxu0 0.0
    %2028 = vmatprep.mubr.f32.mxu0 0.0
    %2029 = vmatmul.mubr.f32.gmra.mrb[0].mxu0 %v1819
    %v2030 = vpop.f32.mrb[0].mxu0
    %v2031 = vadd.f32 0.0, %v2030
    %v2032 = vpop.f32.mrb[0].mxu0
    %2033 = vdwg.mxu0
    %s2034 = scalar_lea.vmem [#allocation8], 4
    %v2035 = vld [vmem:[%s2034] sm:$0xf]
    %v2037 = vsel %vm314, %v2031, 0
    %v2040 = vsel %vm327, %v2035, 0
    %2042 = vmatprep.subr.mxu0 0.0
    %2043 = vmatpush1.msra.mxu0 %v2040
    %2044 = vmatprep.subr.mxu0 0.0
    %2045 = vmatpush1.msra.mxu0 0.0
    %2046 = vmatprep.subr.mxu0 0.0
    %2047 = vmatpush1.msra.mxu0 0.0
    %2048 = vmatprep.subr.mxu0 0.0
    %2049 = vmatpush1.msra.mxu0 0.0
    %2050 = vmatprep.subr.mxu0 0.0
    %2051 = vmatpush1.msra.mxu0 0.0
    %2052 = vmatprep.subr.mxu0 0.0
    %2053 = vmatpush1.msra.mxu0 0.0
    %2054 = vmatprep.subr.mxu0 0.0
    %2055 = vmatpush1.msra.mxu0 0.0
    %2056 = vmatprep.subr.mxu0 0.0
    %2057 = vmatpush1.msra.mxu0 0.0
    %2058 = vmatprep.subr.mxu0 0.0
    %2059 = vmatpush1.msra.mxu0 0.0
    %2060 = vmatprep.subr.mxu0 0.0
    %2061 = vmatpush1.msra.mxu0 0.0
    %2062 = vmatprep.subr.mxu0 0.0
    %2063 = vmatpush1.msra.mxu0 0.0
    %2064 = vmatprep.subr.mxu0 0.0
    %2065 = vmatpush1.msra.mxu0 0.0
    %2066 = vmatprep.subr.mxu0 0.0
    %2067 = vmatpush1.msra.mxu0 0.0
    %2068 = vmatprep.subr.mxu0 0.0
    %2069 = vmatpush1.msra.mxu0 0.0
    %2070 = vmatprep.subr.mxu0 0.0
    %2071 = vmatpush1.msra.mxu0 0.0
    %2072 = vmatprep.subr.mxu0 0.0
    %2073 = vmatpush1.msra.mxu0 0.0
    %2074 = vmatprep.subr.mxu0 0.0
    %2075 = vmatpush1.msra.mxu0 0.0
    %2076 = vmatprep.subr.mxu0 0.0
    %2077 = vmatpush1.msra.mxu0 0.0
    %2078 = vmatprep.subr.mxu0 0.0
    %2079 = vmatpush1.msra.mxu0 0.0
    %2080 = vmatprep.subr.mxu0 0.0
    %2081 = vmatpush1.msra.mxu0 0.0
    %2082 = vmatprep.subr.mxu0 0.0
    %2083 = vmatpush1.msra.mxu0 0.0
    %2084 = vmatprep.subr.mxu0 0.0
    %2085 = vmatpush1.msra.mxu0 0.0
    %2086 = vmatprep.subr.mxu0 0.0
    %2087 = vmatpush1.msra.mxu0 0.0
    %2088 = vmatprep.subr.mxu0 0.0
    %2089 = vmatpush1.msra.mxu0 0.0
    %2090 = vmatprep.subr.mxu0 0.0
    %2091 = vmatpush1.msra.mxu0 0.0
    %2092 = vmatprep.subr.mxu0 0.0
    %2093 = vmatpush1.msra.mxu0 0.0
    %2094 = vmatprep.subr.mxu0 0.0
    %2095 = vmatpush1.msra.mxu0 0.0
    %2096 = vmatprep.subr.mxu0 0.0
    %2097 = vmatpush1.msra.mxu0 0.0
    %2098 = vmatprep.subr.mxu0 0.0
    %2099 = vmatpush1.msra.mxu0 0.0
    %2100 = vmatprep.subr.mxu0 0.0
    %2101 = vmatpush1.msra.mxu0 0.0
    %2102 = vmatprep.subr.mxu0 0.0
    %2103 = vmatpush1.msra.mxu0 0.0
    %2104 = vmatprep.subr.mxu0 0.0
    %2105 = vmatpush1.msra.mxu0 0.0
    %2106 = vmatprep.mubr.f32.mxu0 0.0
    %2107 = vmatmul.mubr.f32.gmra.mrb[0].mxu0 %v2037
    %v2108 = vpop.f32.mrb[0].mxu0
    %v2109 = vadd.f32 0.0, %v2108
    %v2110 = vpop.f32.mrb[0].mxu0
    %2111 = vdwg.mxu0
    %v2113 = vsel %vm314, %v1960, 0
    %v2116 = vsel %vm327, %v1963, 0
    %2118 = vmatprep.subr.mxu0 0.0
    %2119 = vmatpush1.msra.mxu0 %v2116
    %2120 = vmatprep.subr.mxu0 0.0
    %2121 = vmatpush1.msra.mxu0 0.0
    %2122 = vmatprep.subr.mxu0 0.0
    %2123 = vmatpush1.msra.mxu0 0.0
    %2124 = vmatprep.subr.mxu0 0.0
    %2125 = vmatpush1.msra.mxu0 0.0
    %2126 = vmatprep.subr.mxu0 0.0
    %2127 = vmatpush1.msra.mxu0 0.0
    %2128 = vmatprep.subr.mxu0 0.0
    %2129 = vmatpush1.msra.mxu0 0.0
    %2130 = vmatprep.subr.mxu0 0.0
    %2131 = vmatpush1.msra.mxu0 0.0
    %2132 = vmatprep.subr.mxu0 0.0
    %2133 = vmatpush1.msra.mxu0 0.0
    %2134 = vmatprep.subr.mxu0 0.0
    %2135 = vmatpush1.msra.mxu0 0.0
    %2136 = vmatprep.subr.mxu0 0.0
    %2137 = vmatpush1.msra.mxu0 0.0
    %2138 = vmatprep.subr.mxu0 0.0
    %2139 = vmatpush1.msra.mxu0 0.0
    %2140 = vmatprep.subr.mxu0 0.0
    %2141 = vmatpush1.msra.mxu0 0.0
    %2142 = vmatprep.subr.mxu0 0.0
    %2143 = vmatpush1.msra.mxu0 0.0
    %2144 = vmatprep.subr.mxu0 0.0
    %2145 = vmatpush1.msra.mxu0 0.0
    %2146 = vmatprep.subr.mxu0 0.0
    %2147 = vmatpush1.msra.mxu0 0.0
    %2148 = vmatprep.subr.mxu0 0.0
    %2149 = vmatpush1.msra.mxu0 0.0
    %2150 = vmatprep.subr.mxu0 0.0
    %2151 = vmatpush1.msra.mxu0 0.0
    %2152 = vmatprep.subr.mxu0 0.0
    %2153 = vmatpush1.msra.mxu0 0.0
    %2154 = vmatprep.subr.mxu0 0.0
    %2155 = vmatpush1.msra.mxu0 0.0
    %2156 = vmatprep.subr.mxu0 0.0
    %2157 = vmatpush1.msra.mxu0 0.0
    %2158 = vmatprep.subr.mxu0 0.0
    %2159 = vmatpush1.msra.mxu0 0.0
    %2160 = vmatprep.subr.mxu0 0.0
    %2161 = vmatpush1.msra.mxu0 0.0
    %2162 = vmatprep.subr.mxu0 0.0
    %2163 = vmatpush1.msra.mxu0 0.0
    %2164 = vmatprep.subr.mxu0 0.0
    %2165 = vmatpush1.msra.mxu0 0.0
    %2166 = vmatprep.subr.mxu0 0.0
    %2167 = vmatpush1.msra.mxu0 0.0
    %2168 = vmatprep.subr.mxu0 0.0
    %2169 = vmatpush1.msra.mxu0 0.0
    %2170 = vmatprep.subr.mxu0 0.0
    %2171 = vmatpush1.msra.mxu0 0.0
    %2172 = vmatprep.subr.mxu0 0.0
    %2173 = vmatpush1.msra.mxu0 0.0
    %2174 = vmatprep.subr.mxu0 0.0
    %2175 = vmatpush1.msra.mxu0 0.0
    %2176 = vmatprep.subr.mxu0 0.0
    %2177 = vmatpush1.msra.mxu0 0.0
    %2178 = vmatprep.subr.mxu0 0.0
    %2179 = vmatpush1.msra.mxu0 0.0
    %2180 = vmatprep.subr.mxu0 0.0
    %2181 = vmatpush1.msra.mxu0 0.0
    %2182 = vmatprep.mubr.f32.mxu0 0.0
    %2183 = vmatmul.mubr.f32.gmra.mrb[0].mxu0 %v2113
    %v2184 = vpop.f32.mrb[0].mxu0
    %v2185 = vadd.f32 %v2109, %v2184
    %v2186 = vpop.f32.mrb[0].mxu0
    %2187 = vdwg.mxu0
    %v2188 = vsel %vm1382, %v1198, 0
    %2190 = vmatprep.subr.mxu0 0.0
    %2191 = vmatpush1.msra.mxu0 %v1809
    %2192 = vmatprep.subr.mxu0 0.0
    %2193 = vmatpush1.msra.mxu0 %v1810
    %2194 = vmatprep.subr.mxu0 0.0
    %2195 = vmatpush1.msra.mxu0 0.0
    %2196 = vmatprep.subr.mxu0 0.0
    %2197 = vmatpush1.msra.mxu0 0.0
    %2198 = vmatprep.subr.mxu0 0.0
    %2199 = vmatpush1.msra.mxu0 0.0
    %2200 = vmatprep.subr.mxu0 0.0
    %2201 = vmatpush1.msra.mxu0 0.0
    %2202 = vmatprep.subr.mxu0 0.0
    %2203 = vmatpush1.msra.mxu0 0.0
    %2204 = vmatprep.subr.mxu0 0.0
    %2205 = vmatpush1.msra.mxu0 0.0
    %2206 = vmatprep.subr.mxu0 0.0
    %2207 = vmatpush1.msra.mxu0 0.0
    %2208 = vmatprep.subr.mxu0 0.0
    %2209 = vmatpush1.msra.mxu0 0.0
    %2210 = vmatprep.subr.mxu0 0.0
    %2211 = vmatpush1.msra.mxu0 0.0
    %2212 = vmatprep.subr.mxu0 0.0
    %2213 = vmatpush1.msra.mxu0 0.0
    %2214 = vmatprep.subr.mxu0 0.0
    %2215 = vmatpush1.msra.mxu0 0.0
    %2216 = vmatprep.subr.mxu0 0.0
    %2217 = vmatpush1.msra.mxu0 0.0
    %2218 = vmatprep.subr.mxu0 0.0
    %2219 = vmatpush1.msra.mxu0 0.0
    %2220 = vmatprep.subr.mxu0 0.0
    %2221 = vmatpush1.msra.mxu0 0.0
    %2222 = vmatprep.subr.mxu0 0.0
    %2223 = vmatpush1.msra.mxu0 0.0
    %2224 = vmatprep.subr.mxu0 0.0
    %2225 = vmatpush1.msra.mxu0 0.0
    %2226 = vmatprep.subr.mxu0 0.0
    %2227 = vmatpush1.msra.mxu0 0.0
    %2228 = vmatprep.subr.mxu0 0.0
    %2229 = vmatpush1.msra.mxu0 0.0
    %2230 = vmatprep.subr.mxu0 0.0
    %2231 = vmatpush1.msra.mxu0 0.0
    %2232 = vmatprep.subr.mxu0 0.0
    %2233 = vmatpush1.msra.mxu0 0.0
    %2234 = vmatprep.subr.mxu0 0.0
    %2235 = vmatpush1.msra.mxu0 0.0
    %2236 = vmatprep.subr.mxu0 0.0
    %2237 = vmatpush1.msra.mxu0 0.0
    %2238 = vmatprep.subr.mxu0 0.0
    %2239 = vmatpush1.msra.mxu0 0.0
    %2240 = vmatprep.subr.mxu0 0.0
    %2241 = vmatpush1.msra.mxu0 0.0
    %2242 = vmatprep.subr.mxu0 0.0
    %2243 = vmatpush1.msra.mxu0 0.0
    %2244 = vmatprep.subr.mxu0 0.0
    %2245 = vmatpush1.msra.mxu0 0.0
    %2246 = vmatprep.subr.mxu0 0.0
    %2247 = vmatpush1.msra.mxu0 0.0
    %2248 = vmatprep.subr.mxu0 0.0
    %2249 = vmatpush1.msra.mxu0 0.0
    %2250 = vmatprep.subr.mxu0 0.0
    %2251 = vmatpush1.msra.mxu0 0.0
    %2252 = vmatprep.subr.mxu0 0.0
    %2253 = vmatpush1.msra.mxu0 0.0
    %2254 = vmatprep.mubr.f32.mxu0 0.0
    %2255 = vmatmul.mubr.f32.gmra.mrb[0].mxu0 %v2188
    %v2256 = vpop.f32.mrb[0].mxu0
    %v2257 = vadd.f32 0.0, %v2256
    %v2258 = vpop.f32.mrb[0].mxu0
    %2259 = vdwg.mxu0
    %s2260 = scalar_lea.vmem [#allocation8], 8
    %v2261 = vld [vmem:[%s2260] sm:$0xf]
    %v2263 = vsel %vm314, %v2257, 0
    %v2266 = vsel %vm327, %v2261, 0
    %2268 = vmatprep.subr.mxu0 0.0
    %2269 = vmatpush1.msra.mxu0 %v2266
    %2270 = vmatprep.subr.mxu0 0.0
    %2271 = vmatpush1.msra.mxu0 0.0
    %2272 = vmatprep.subr.mxu0 0.0
    %2273 = vmatpush1.msra.mxu0 0.0
    %2274 = vmatprep.subr.mxu0 0.0
    %2275 = vmatpush1.msra.mxu0 0.0
    %2276 = vmatprep.subr.mxu0 0.0
    %2277 = vmatpush1.msra.mxu0 0.0
    %2278 = vmatprep.subr.mxu0 0.0
    %2279 = vmatpush1.msra.mxu0 0.0
    %2280 = vmatprep.subr.mxu0 0.0
    %2281 = vmatpush1.msra.mxu0 0.0
    %2282 = vmatprep.subr.mxu0 0.0
    %2283 = vmatpush1.msra.mxu0 0.0
    %2284 = vmatprep.subr.mxu0 0.0
    %2285 = vmatpush1.msra.mxu0 0.0
    %2286 = vmatprep.subr.mxu0 0.0
    %2287 = vmatpush1.msra.mxu0 0.0
    %2288 = vmatprep.subr.mxu0 0.0
    %2289 = vmatpush1.msra.mxu0 0.0
    %2290 = vmatprep.subr.mxu0 0.0
    %2291 = vmatpush1.msra.mxu0 0.0
    %2292 = vmatprep.subr.mxu0 0.0
    %2293 = vmatpush1.msra.mxu0 0.0
    %2294 = vmatprep.subr.mxu0 0.0
    %2295 = vmatpush1.msra.mxu0 0.0
    %2296 = vmatprep.subr.mxu0 0.0
    %2297 = vmatpush1.msra.mxu0 0.0
    %2298 = vmatprep.subr.mxu0 0.0
    %2299 = vmatpush1.msra.mxu0 0.0
    %2300 = vmatprep.subr.mxu0 0.0
    %2301 = vmatpush1.msra.mxu0 0.0
    %2302 = vmatprep.subr.mxu0 0.0
    %2303 = vmatpush1.msra.mxu0 0.0
    %2304 = vmatprep.subr.mxu0 0.0
    %2305 = vmatpush1.msra.mxu0 0.0
    %2306 = vmatprep.subr.mxu0 0.0
    %2307 = vmatpush1.msra.mxu0 0.0
    %2308 = vmatprep.subr.mxu0 0.0
    %2309 = vmatpush1.msra.mxu0 0.0
    %2310 = vmatprep.subr.mxu0 0.0
    %2311 = vmatpush1.msra.mxu0 0.0
    %2312 = vmatprep.subr.mxu0 0.0
    %2313 = vmatpush1.msra.mxu0 0.0
    %2314 = vmatprep.subr.mxu0 0.0
    %2315 = vmatpush1.msra.mxu0 0.0
    %2316 = vmatprep.subr.mxu0 0.0
    %2317 = vmatpush1.msra.mxu0 0.0
    %2318 = vmatprep.subr.mxu0 0.0
    %2319 = vmatpush1.msra.mxu0 0.0
    %2320 = vmatprep.subr.mxu0 0.0
    %2321 = vmatpush1.msra.mxu0 0.0
    %2322 = vmatprep.subr.mxu0 0.0
    %2323 = vmatpush1.msra.mxu0 0.0
    %2324 = vmatprep.subr.mxu0 0.0
    %2325 = vmatpush1.msra.mxu0 0.0
    %2326 = vmatprep.subr.mxu0 0.0
    %2327 = vmatpush1.msra.mxu0 0.0
    %2328 = vmatprep.subr.mxu0 0.0
    %2329 = vmatpush1.msra.mxu0 0.0
    %2330 = vmatprep.subr.mxu0 0.0
    %2331 = vmatpush1.msra.mxu0 0.0
    %2332 = vmatprep.mubr.f32.mxu0 0.0
    %2333 = vmatmul.mubr.f32.gmra.mrb[0].mxu0 %v2263
    %v2334 = vpop.f32.mrb[0].mxu0
    %v2335 = vadd.f32 0.0, %v2334
    %v2336 = vpop.f32.mrb[0].mxu0
    %2337 = vdwg.mxu0
    %v2338 = vadd.f32 %v2185, %v2335
    %v2339 = vld [vmem:[%s8] sm:$0x1]
    %v2341 = vlaneseq
    %v2342 = vshrl.u32 %v2341, 7
    %v2343 = vsub.s32 0, %v2342
    %v2344 = vrot.slane %v2339, %v2343
    %v2346 = vadd.f32 %v2338, %v2344
    %v2347 = vadd.f32 %v2346, %v1888
    %v2348 = vmax.f32 %v2347, 0.0
    %vm2349 = vcmask 64512
    %v2350 = vsel %vm2349, %v209, 0
    %2352 = vmatprep.subr.mxu0 0.0
    %2353 = vmatpush1.msra.mxu0 %v2348
    %2354 = vmatprep.subr.mxu0 0.0
    %2355 = vmatpush1.msra.mxu0 0.0
    %2356 = vmatprep.subr.mxu0 0.0
    %2357 = vmatpush1.msra.mxu0 0.0
    %2358 = vmatprep.subr.mxu0 0.0
    %2359 = vmatpush1.msra.mxu0 0.0
    %2360 = vmatprep.subr.mxu0 0.0
    %2361 = vmatpush1.msra.mxu0 0.0
    %2362 = vmatprep.subr.mxu0 0.0
    %2363 = vmatpush1.msra.mxu0 0.0
    %2364 = vmatprep.subr.mxu0 0.0
    %2365 = vmatpush1.msra.mxu0 0.0
    %2366 = vmatprep.subr.mxu0 0.0
    %2367 = vmatpush1.msra.mxu0 0.0
    %2368 = vmatprep.subr.mxu0 0.0
    %2369 = vmatpush1.msra.mxu0 0.0
    %2370 = vmatprep.subr.mxu0 0.0
    %2371 = vmatpush1.msra.mxu0 0.0
    %2372 = vmatprep.subr.mxu0 0.0
    %2373 = vmatpush1.msra.mxu0 0.0
    %2374 = vmatprep.subr.mxu0 0.0
    %2375 = vmatpush1.msra.mxu0 0.0
    %2376 = vmatprep.subr.mxu0 0.0
    %2377 = vmatpush1.msra.mxu0 0.0
    %2378 = vmatprep.subr.mxu0 0.0
    %2379 = vmatpush1.msra.mxu0 0.0
    %2380 = vmatprep.subr.mxu0 0.0
    %2381 = vmatpush1.msra.mxu0 0.0
    %2382 = vmatprep.subr.mxu0 0.0
    %2383 = vmatpush1.msra.mxu0 0.0
    %2384 = vmatprep.subr.mxu0 0.0
    %2385 = vmatpush1.msra.mxu0 0.0
    %2386 = vmatprep.subr.mxu0 0.0
    %2387 = vmatpush1.msra.mxu0 0.0
    %2388 = vmatprep.subr.mxu0 0.0
    %2389 = vmatpush1.msra.mxu0 0.0
    %2390 = vmatprep.subr.mxu0 0.0
    %2391 = vmatpush1.msra.mxu0 0.0
    %2392 = vmatprep.subr.mxu0 0.0
    %2393 = vmatpush1.msra.mxu0 0.0
    %2394 = vmatprep.subr.mxu0 0.0
    %2395 = vmatpush1.msra.mxu0 0.0
    %2396 = vmatprep.subr.mxu0 0.0
    %2397 = vmatpush1.msra.mxu0 0.0
    %2398 = vmatprep.subr.mxu0 0.0
    %2399 = vmatpush1.msra.mxu0 0.0
    %2400 = vmatprep.subr.mxu0 0.0
    %2401 = vmatpush1.msra.mxu0 0.0
    %2402 = vmatprep.subr.mxu0 0.0
    %2403 = vmatpush1.msra.mxu0 0.0
    %2404 = vmatprep.subr.mxu0 0.0
    %2405 = vmatpush1.msra.mxu0 0.0
    %2406 = vmatprep.subr.mxu0 0.0
    %2407 = vmatpush1.msra.mxu0 0.0
    %2408 = vmatprep.subr.mxu0 0.0
    %2409 = vmatpush1.msra.mxu0 0.0
    %2410 = vmatprep.subr.mxu0 0.0
    %2411 = vmatpush1.msra.mxu0 0.0
    %2412 = vmatprep.subr.mxu0 0.0
    %2413 = vmatpush1.msra.mxu0 0.0
    %2414 = vmatprep.subr.mxu0 0.0
    %2415 = vmatpush1.msra.mxu0 0.0
    %2416 = vmatprep.mubr.f32.mxu0 0.0
    %2417 = vmatmul.mubr.f32.gmra.mrb[0].mxu0 %v2350
    %v2418 = vpop.f32.mrb[0].mxu0
    %v2419 = vadd.f32 0.0, %v2418
    %v2420 = vpop.f32.mrb[0].mxu0
    %2421 = vdwg.mxu0
    %v2422 = vld [vmem:[%s9] sm:$0xf]
    %s2423 = scalar_lea.vmem %s9, 4
    %v2424 = vld [vmem:[%s2423] sm:$0xf]
    %v2426 = vsel %vm314, %v2348, 0
    %v2429 = vsel %vm327, %v2424, 0
    %2431 = vmatprep.subr.mxu0 0.0
    %2432 = vmatpush1.msra.mxu0 %v2429
    %2433 = vmatprep.subr.mxu0 0.0
    %2434 = vmatpush1.msra.mxu0 0.0
    %2435 = vmatprep.subr.mxu0 0.0
    %2436 = vmatpush1.msra.mxu0 0.0
    %2437 = vmatprep.subr.mxu0 0.0
    %2438 = vmatpush1.msra.mxu0 0.0
    %2439 = vmatprep.subr.mxu0 0.0
    %2440 = vmatpush1.msra.mxu0 0.0
    %2441 = vmatprep.subr.mxu0 0.0
    %2442 = vmatpush1.msra.mxu0 0.0
    %2443 = vmatprep.subr.mxu0 0.0
    %2444 = vmatpush1.msra.mxu0 0.0
    %2445 = vmatprep.subr.mxu0 0.0
    %2446 = vmatpush1.msra.mxu0 0.0
    %2447 = vmatprep.subr.mxu0 0.0
    %2448 = vmatpush1.msra.mxu0 0.0
    %2449 = vmatprep.subr.mxu0 0.0
    %2450 = vmatpush1.msra.mxu0 0.0
    %2451 = vmatprep.subr.mxu0 0.0
    %2452 = vmatpush1.msra.mxu0 0.0
    %2453 = vmatprep.subr.mxu0 0.0
    %2454 = vmatpush1.msra.mxu0 0.0
    %2455 = vmatprep.subr.mxu0 0.0
    %2456 = vmatpush1.msra.mxu0 0.0
    %2457 = vmatprep.subr.mxu0 0.0
    %2458 = vmatpush1.msra.mxu0 0.0
    %2459 = vmatprep.subr.mxu0 0.0
    %2460 = vmatpush1.msra.mxu0 0.0
    %2461 = vmatprep.subr.mxu0 0.0
    %2462 = vmatpush1.msra.mxu0 0.0
    %2463 = vmatprep.subr.mxu0 0.0
    %2464 = vmatpush1.msra.mxu0 0.0
    %2465 = vmatprep.subr.mxu0 0.0
    %2466 = vmatpush1.msra.mxu0 0.0
    %2467 = vmatprep.subr.mxu0 0.0
    %2468 = vmatpush1.msra.mxu0 0.0
    %2469 = vmatprep.subr.mxu0 0.0
    %2470 = vmatpush1.msra.mxu0 0.0
    %2471 = vmatprep.subr.mxu0 0.0
    %2472 = vmatpush1.msra.mxu0 0.0
    %2473 = vmatprep.subr.mxu0 0.0
    %2474 = vmatpush1.msra.mxu0 0.0
    %2475 = vmatprep.subr.mxu0 0.0
    %2476 = vmatpush1.msra.mxu0 0.0
    %2477 = vmatprep.subr.mxu0 0.0
    %2478 = vmatpush1.msra.mxu0 0.0
    %2479 = vmatprep.subr.mxu0 0.0
    %2480 = vmatpush1.msra.mxu0 0.0
    %2481 = vmatprep.subr.mxu0 0.0
    %2482 = vmatpush1.msra.mxu0 0.0
    %2483 = vmatprep.subr.mxu0 0.0
    %2484 = vmatpush1.msra.mxu0 0.0
    %2485 = vmatprep.subr.mxu0 0.0
    %2486 = vmatpush1.msra.mxu0 0.0
    %2487 = vmatprep.subr.mxu0 0.0
    %2488 = vmatpush1.msra.mxu0 0.0
    %2489 = vmatprep.subr.mxu0 0.0
    %2490 = vmatpush1.msra.mxu0 0.0
    %2491 = vmatprep.subr.mxu0 0.0
    %2492 = vmatpush1.msra.mxu0 0.0
    %2493 = vmatprep.subr.mxu0 0.0
    %2494 = vmatpush1.msra.mxu0 0.0
    %2495 = vmatprep.mubr.f32.mxu0 0.0
    %2496 = vmatmul.mubr.f32.gmra.mrb[0].mxu0 %v2426
    %v2497 = vpop.f32.mrb[0].mxu0
    %v2498 = vadd.f32 0.0, %v2497
    %v2499 = vpop.f32.mrb[0].mxu0
    %2500 = vdwg.mxu0
    %v2502 = vsel %vm314, %v2419, 0
    %v2505 = vsel %vm327, %v2422, 0
    %2507 = vmatprep.subr.mxu0 0.0
    %2508 = vmatpush1.msra.mxu0 %v2505
    %2509 = vmatprep.subr.mxu0 0.0
    %2510 = vmatpush1.msra.mxu0 0.0
    %2511 = vmatprep.subr.mxu0 0.0
    %2512 = vmatpush1.msra.mxu0 0.0
    %2513 = vmatprep.subr.mxu0 0.0
    %2514 = vmatpush1.msra.mxu0 0.0
    %2515 = vmatprep.subr.mxu0 0.0
    %2516 = vmatpush1.msra.mxu0 0.0
    %2517 = vmatprep.subr.mxu0 0.0
    %2518 = vmatpush1.msra.mxu0 0.0
    %2519 = vmatprep.subr.mxu0 0.0
    %2520 = vmatpush1.msra.mxu0 0.0
    %2521 = vmatprep.subr.mxu0 0.0
    %2522 = vmatpush1.msra.mxu0 0.0
    %2523 = vmatprep.subr.mxu0 0.0
    %2524 = vmatpush1.msra.mxu0 0.0
    %2525 = vmatprep.subr.mxu0 0.0
    %2526 = vmatpush1.msra.mxu0 0.0
    %2527 = vmatprep.subr.mxu0 0.0
    %2528 = vmatpush1.msra.mxu0 0.0
    %2529 = vmatprep.subr.mxu0 0.0
    %2530 = vmatpush1.msra.mxu0 0.0
    %2531 = vmatprep.subr.mxu0 0.0
    %2532 = vmatpush1.msra.mxu0 0.0
    %2533 = vmatprep.subr.mxu0 0.0
    %2534 = vmatpush1.msra.mxu0 0.0
    %2535 = vmatprep.subr.mxu0 0.0
    %2536 = vmatpush1.msra.mxu0 0.0
    %2537 = vmatprep.subr.mxu0 0.0
    %2538 = vmatpush1.msra.mxu0 0.0
    %2539 = vmatprep.subr.mxu0 0.0
    %2540 = vmatpush1.msra.mxu0 0.0
    %2541 = vmatprep.subr.mxu0 0.0
    %2542 = vmatpush1.msra.mxu0 0.0
    %2543 = vmatprep.subr.mxu0 0.0
    %2544 = vmatpush1.msra.mxu0 0.0
    %2545 = vmatprep.subr.mxu0 0.0
    %2546 = vmatpush1.msra.mxu0 0.0
    %2547 = vmatprep.subr.mxu0 0.0
    %2548 = vmatpush1.msra.mxu0 0.0
    %2549 = vmatprep.subr.mxu0 0.0
    %2550 = vmatpush1.msra.mxu0 0.0
    %2551 = vmatprep.subr.mxu0 0.0
    %2552 = vmatpush1.msra.mxu0 0.0
    %2553 = vmatprep.subr.mxu0 0.0
    %2554 = vmatpush1.msra.mxu0 0.0
    %2555 = vmatprep.subr.mxu0 0.0
    %2556 = vmatpush1.msra.mxu0 0.0
    %2557 = vmatprep.subr.mxu0 0.0
    %2558 = vmatpush1.msra.mxu0 0.0
    %2559 = vmatprep.subr.mxu0 0.0
    %2560 = vmatpush1.msra.mxu0 0.0
    %2561 = vmatprep.subr.mxu0 0.0
    %2562 = vmatpush1.msra.mxu0 0.0
    %2563 = vmatprep.subr.mxu0 0.0
    %2564 = vmatpush1.msra.mxu0 0.0
    %2565 = vmatprep.subr.mxu0 0.0
    %2566 = vmatpush1.msra.mxu0 0.0
    %2567 = vmatprep.subr.mxu0 0.0
    %2568 = vmatpush1.msra.mxu0 0.0
    %2569 = vmatprep.subr.mxu0 0.0
    %2570 = vmatpush1.msra.mxu0 0.0
    %2571 = vmatprep.mubr.f32.mxu0 0.0
    %2572 = vmatmul.mubr.f32.gmra.mrb[0].mxu0 %v2502
    %v2573 = vpop.f32.mrb[0].mxu0
    %v2574 = vadd.f32 %v2498, %v2573
    %v2575 = vpop.f32.mrb[0].mxu0
    %2576 = vdwg.mxu0
    %v2577 = vsel %vm2349, %v528, 0
    %2579 = vmatprep.subr.mxu0 0.0
    %2580 = vmatpush1.msra.mxu0 %v2348
    %2581 = vmatprep.subr.mxu0 0.0
    %2582 = vmatpush1.msra.mxu0 0.0
    %2583 = vmatprep.subr.mxu0 0.0
    %2584 = vmatpush1.msra.mxu0 0.0
    %2585 = vmatprep.subr.mxu0 0.0
    %2586 = vmatpush1.msra.mxu0 0.0
    %2587 = vmatprep.subr.mxu0 0.0
    %2588 = vmatpush1.msra.mxu0 0.0
    %2589 = vmatprep.subr.mxu0 0.0
    %2590 = vmatpush1.msra.mxu0 0.0
    %2591 = vmatprep.subr.mxu0 0.0
    %2592 = vmatpush1.msra.mxu0 0.0
    %2593 = vmatprep.subr.mxu0 0.0
    %2594 = vmatpush1.msra.mxu0 0.0
    %2595 = vmatprep.subr.mxu0 0.0
    %2596 = vmatpush1.msra.mxu0 0.0
    %2597 = vmatprep.subr.mxu0 0.0
    %2598 = vmatpush1.msra.mxu0 0.0
    %2599 = vmatprep.subr.mxu0 0.0
    %2600 = vmatpush1.msra.mxu0 0.0
    %2601 = vmatprep.subr.mxu0 0.0
    %2602 = vmatpush1.msra.mxu0 0.0
    %2603 = vmatprep.subr.mxu0 0.0
    %2604 = vmatpush1.msra.mxu0 0.0
    %2605 = vmatprep.subr.mxu0 0.0
    %2606 = vmatpush1.msra.mxu0 0.0
    %2607 = vmatprep.subr.mxu0 0.0
    %2608 = vmatpush1.msra.mxu0 0.0
    %2609 = vmatprep.subr.mxu0 0.0
    %2610 = vmatpush1.msra.mxu0 0.0
    %2611 = vmatprep.subr.mxu0 0.0
    %2612 = vmatpush1.msra.mxu0 0.0
    %2613 = vmatprep.subr.mxu0 0.0
    %2614 = vmatpush1.msra.mxu0 0.0
    %2615 = vmatprep.subr.mxu0 0.0
    %2616 = vmatpush1.msra.mxu0 0.0
    %2617 = vmatprep.subr.mxu0 0.0
    %2618 = vmatpush1.msra.mxu0 0.0
    %2619 = vmatprep.subr.mxu0 0.0
    %2620 = vmatpush1.msra.mxu0 0.0
    %2621 = vmatprep.subr.mxu0 0.0
    %2622 = vmatpush1.msra.mxu0 0.0
    %2623 = vmatprep.subr.mxu0 0.0
    %2624 = vmatpush1.msra.mxu0 0.0
    %2625 = vmatprep.subr.mxu0 0.0
    %2626 = vmatpush1.msra.mxu0 0.0
    %2627 = vmatprep.subr.mxu0 0.0
    %2628 = vmatpush1.msra.mxu0 0.0
    %2629 = vmatprep.subr.mxu0 0.0
    %2630 = vmatpush1.msra.mxu0 0.0
    %2631 = vmatprep.subr.mxu0 0.0
    %2632 = vmatpush1.msra.mxu0 0.0
    %2633 = vmatprep.subr.mxu0 0.0
    %2634 = vmatpush1.msra.mxu0 0.0
    %2635 = vmatprep.subr.mxu0 0.0
    %2636 = vmatpush1.msra.mxu0 0.0
    %2637 = vmatprep.subr.mxu0 0.0
    %2638 = vmatpush1.msra.mxu0 0.0
    %2639 = vmatprep.subr.mxu0 0.0
    %2640 = vmatpush1.msra.mxu0 0.0
    %2641 = vmatprep.subr.mxu0 0.0
    %2642 = vmatpush1.msra.mxu0 0.0
    %2643 = vmatprep.mubr.f32.mxu0 0.0
    %2644 = vmatmul.mubr.f32.gmra.mrb[0].mxu0 %v2577
    %v2645 = vpop.f32.mrb[0].mxu0
    %v2646 = vadd.f32 0.0, %v2645
    %v2647 = vpop.f32.mrb[0].mxu0
    %2648 = vdwg.mxu0
    %s2649 = scalar_lea.vmem %s9, 8
    %v2650 = vld [vmem:[%s2649] sm:$0xf]
    %v2652 = vsel %vm314, %v2646, 0
    %v2655 = vsel %vm327, %v2650, 0
    %2657 = vmatprep.subr.mxu0 0.0
    %2658 = vmatpush1.msra.mxu0 %v2655
    %2659 = vmatprep.subr.mxu0 0.0
    %2660 = vmatpush1.msra.mxu0 0.0
    %2661 = vmatprep.subr.mxu0 0.0
    %2662 = vmatpush1.msra.mxu0 0.0
    %2663 = vmatprep.subr.mxu0 0.0
    %2664 = vmatpush1.msra.mxu0 0.0
    %2665 = vmatprep.subr.mxu0 0.0
    %2666 = vmatpush1.msra.mxu0 0.0
    %2667 = vmatprep.subr.mxu0 0.0
    %2668 = vmatpush1.msra.mxu0 0.0
    %2669 = vmatprep.subr.mxu0 0.0
    %2670 = vmatpush1.msra.mxu0 0.0
    %2671 = vmatprep.subr.mxu0 0.0
    %2672 = vmatpush1.msra.mxu0 0.0
    %2673 = vmatprep.subr.mxu0 0.0
    %2674 = vmatpush1.msra.mxu0 0.0
    %2675 = vmatprep.subr.mxu0 0.0
    %2676 = vmatpush1.msra.mxu0 0.0
    %2677 = vmatprep.subr.mxu0 0.0
    %2678 = vmatpush1.msra.mxu0 0.0
    %2679 = vmatprep.subr.mxu0 0.0
    %2680 = vmatpush1.msra.mxu0 0.0
    %2681 = vmatprep.subr.mxu0 0.0
    %2682 = vmatpush1.msra.mxu0 0.0
    %2683 = vmatprep.subr.mxu0 0.0
    %2684 = vmatpush1.msra.mxu0 0.0
    %2685 = vmatprep.subr.mxu0 0.0
    %2686 = vmatpush1.msra.mxu0 0.0
    %2687 = vmatprep.subr.mxu0 0.0
    %2688 = vmatpush1.msra.mxu0 0.0
    %2689 = vmatprep.subr.mxu0 0.0
    %2690 = vmatpush1.msra.mxu0 0.0
    %2691 = vmatprep.subr.mxu0 0.0
    %2692 = vmatpush1.msra.mxu0 0.0
    %2693 = vmatprep.subr.mxu0 0.0
    %2694 = vmatpush1.msra.mxu0 0.0
    %2695 = vmatprep.subr.mxu0 0.0
    %2696 = vmatpush1.msra.mxu0 0.0
    %2697 = vmatprep.subr.mxu0 0.0
    %2698 = vmatpush1.msra.mxu0 0.0
    %2699 = vmatprep.subr.mxu0 0.0
    %2700 = vmatpush1.msra.mxu0 0.0
    %2701 = vmatprep.subr.mxu0 0.0
    %2702 = vmatpush1.msra.mxu0 0.0
    %2703 = vmatprep.subr.mxu0 0.0
    %2704 = vmatpush1.msra.mxu0 0.0
    %2705 = vmatprep.subr.mxu0 0.0
    %2706 = vmatpush1.msra.mxu0 0.0
    %2707 = vmatprep.subr.mxu0 0.0
    %2708 = vmatpush1.msra.mxu0 0.0
    %2709 = vmatprep.subr.mxu0 0.0
    %2710 = vmatpush1.msra.mxu0 0.0
    %2711 = vmatprep.subr.mxu0 0.0
    %2712 = vmatpush1.msra.mxu0 0.0
    %2713 = vmatprep.subr.mxu0 0.0
    %2714 = vmatpush1.msra.mxu0 0.0
    %2715 = vmatprep.subr.mxu0 0.0
    %2716 = vmatpush1.msra.mxu0 0.0
    %2717 = vmatprep.subr.mxu0 0.0
    %2718 = vmatpush1.msra.mxu0 0.0
    %2719 = vmatprep.subr.mxu0 0.0
    %2720 = vmatpush1.msra.mxu0 0.0
    %2721 = vmatprep.mubr.f32.mxu0 0.0
    %2722 = vmatmul.mubr.f32.gmra.mrb[0].mxu0 %v2652
    %v2723 = vpop.f32.mrb[0].mxu0
    %v2724 = vadd.f32 0.0, %v2723
    %v2725 = vpop.f32.mrb[0].mxu0
    %2726 = vdwg.mxu0
    %v2727 = vadd.f32 %v2574, %v2724
    %v2728 = vld [vmem:[%s10] sm:$0x1]
    %v2730 = vlaneseq
    %v2731 = vshrl.u32 %v2730, 7
    %v2732 = vsub.s32 0, %v2731
    %v2733 = vrot.slane %v2728, %v2732
    %v2735 = vadd.f32 %v2727, %v2733
    %v2736 = vmax.f32 %v2735, 0.0
    %2738 = vrot.lane.b32.xlu0 %v2735, 120
    %v2739 = vpop.permute.xlu0 %2738
    %v2741 = vsel %vm2349, %v756, 0
    %2743 = vmatprep.subr.mxu0 0.0
    %2744 = vmatpush1.msra.mxu0 %v2739
    %2745 = vmatprep.subr.mxu0 0.0
    %2746 = vmatpush1.msra.mxu0 0.0
    %2747 = vmatprep.subr.mxu0 0.0
    %2748 = vmatpush1.msra.mxu0 0.0
    %2749 = vmatprep.subr.mxu0 0.0
    %2750 = vmatpush1.msra.mxu0 0.0
    %2751 = vmatprep.subr.mxu0 0.0
    %2752 = vmatpush1.msra.mxu0 0.0
    %2753 = vmatprep.subr.mxu0 0.0
    %2754 = vmatpush1.msra.mxu0 0.0
    %2755 = vmatprep.subr.mxu0 0.0
    %2756 = vmatpush1.msra.mxu0 0.0
    %2757 = vmatprep.subr.mxu0 0.0
    %2758 = vmatpush1.msra.mxu0 0.0
    %2759 = vmatprep.subr.mxu0 0.0
    %2760 = vmatpush1.msra.mxu0 0.0
    %2761 = vmatprep.subr.mxu0 0.0
    %2762 = vmatpush1.msra.mxu0 0.0
    %2763 = vmatprep.subr.mxu0 0.0
    %2764 = vmatpush1.msra.mxu0 0.0
    %2765 = vmatprep.subr.mxu0 0.0
    %2766 = vmatpush1.msra.mxu0 0.0
    %2767 = vmatprep.subr.mxu0 0.0
    %2768 = vmatpush1.msra.mxu0 0.0
    %2769 = vmatprep.subr.mxu0 0.0
    %2770 = vmatpush1.msra.mxu0 0.0
    %2771 = vmatprep.subr.mxu0 0.0
    %2772 = vmatpush1.msra.mxu0 0.0
    %2773 = vmatprep.subr.mxu0 0.0
    %2774 = vmatpush1.msra.mxu0 0.0
    %2775 = vmatprep.subr.mxu0 0.0
    %2776 = vmatpush1.msra.mxu0 0.0
    %2777 = vmatprep.subr.mxu0 0.0
    %2778 = vmatpush1.msra.mxu0 0.0
    %2779 = vmatprep.subr.mxu0 0.0
    %2780 = vmatpush1.msra.mxu0 0.0
    %2781 = vmatprep.subr.mxu0 0.0
    %2782 = vmatpush1.msra.mxu0 0.0
    %2783 = vmatprep.subr.mxu0 0.0
    %2784 = vmatpush1.msra.mxu0 0.0
    %2785 = vmatprep.subr.mxu0 0.0
    %2786 = vmatpush1.msra.mxu0 0.0
    %2787 = vmatprep.subr.mxu0 0.0
    %2788 = vmatpush1.msra.mxu0 0.0
    %2789 = vmatprep.subr.mxu0 0.0
    %2790 = vmatpush1.msra.mxu0 0.0
    %2791 = vmatprep.subr.mxu0 0.0
    %2792 = vmatpush1.msra.mxu0 0.0
    %2793 = vmatprep.subr.mxu0 0.0
    %2794 = vmatpush1.msra.mxu0 0.0
    %2795 = vmatprep.subr.mxu0 0.0
    %2796 = vmatpush1.msra.mxu0 0.0
    %2797 = vmatprep.subr.mxu0 0.0
    %2798 = vmatpush1.msra.mxu0 0.0
    %2799 = vmatprep.subr.mxu0 0.0
    %2800 = vmatpush1.msra.mxu0 0.0
    %2801 = vmatprep.subr.mxu0 0.0
    %2802 = vmatpush1.msra.mxu0 0.0
    %2803 = vmatprep.subr.mxu0 0.0
    %2804 = vmatpush1.msra.mxu0 0.0
    %2805 = vmatprep.subr.mxu0 0.0
    %2806 = vmatpush1.msra.mxu0 0.0
    %2807 = vmatprep.mubr.f32.mxu0 0.0
    %2808 = vmatmul.mubr.f32.gmra.mrb[0].mxu0 %v2741
    %v2809 = vpop.f32.mrb[0].mxu0
    %v2810 = vadd.f32 0.0, %v2809
    %v2811 = vpop.f32.mrb[0].mxu0
    %2812 = vdwg.mxu0
    %v2813 = vsel %vm2349, %v861, 0
    %2815 = vmatprep.subr.mxu0 0.0
    %2816 = vmatpush1.msra.mxu0 %v2736
    %2817 = vmatprep.subr.mxu0 0.0
    %2818 = vmatpush1.msra.mxu0 0.0
    %2819 = vmatprep.subr.mxu0 0.0
    %2820 = vmatpush1.msra.mxu0 0.0
    %2821 = vmatprep.subr.mxu0 0.0
    %2822 = vmatpush1.msra.mxu0 0.0
    %2823 = vmatprep.subr.mxu0 0.0
    %2824 = vmatpush1.msra.mxu0 0.0
    %2825 = vmatprep.subr.mxu0 0.0
    %2826 = vmatpush1.msra.mxu0 0.0
    %2827 = vmatprep.subr.mxu0 0.0
    %2828 = vmatpush1.msra.mxu0 0.0
    %2829 = vmatprep.subr.mxu0 0.0
    %2830 = vmatpush1.msra.mxu0 0.0
    %2831 = vmatprep.subr.mxu0 0.0
    %2832 = vmatpush1.msra.mxu0 0.0
    %2833 = vmatprep.subr.mxu0 0.0
    %2834 = vmatpush1.msra.mxu0 0.0
    %2835 = vmatprep.subr.mxu0 0.0
    %2836 = vmatpush1.msra.mxu0 0.0
    %2837 = vmatprep.subr.mxu0 0.0
    %2838 = vmatpush1.msra.mxu0 0.0
    %2839 = vmatprep.subr.mxu0 0.0
    %2840 = vmatpush1.msra.mxu0 0.0
    %2841 = vmatprep.subr.mxu0 0.0
    %2842 = vmatpush1.msra.mxu0 0.0
    %2843 = vmatprep.subr.mxu0 0.0
    %2844 = vmatpush1.msra.mxu0 0.0
    %2845 = vmatprep.subr.mxu0 0.0
    %2846 = vmatpush1.msra.mxu0 0.0
    %2847 = vmatprep.subr.mxu0 0.0
    %2848 = vmatpush1.msra.mxu0 0.0
    %2849 = vmatprep.subr.mxu0 0.0
    %2850 = vmatpush1.msra.mxu0 0.0
    %2851 = vmatprep.subr.mxu0 0.0
    %2852 = vmatpush1.msra.mxu0 0.0
    %2853 = vmatprep.subr.mxu0 0.0
    %2854 = vmatpush1.msra.mxu0 0.0
    %2855 = vmatprep.subr.mxu0 0.0
    %2856 = vmatpush1.msra.mxu0 0.0
    %2857 = vmatprep.subr.mxu0 0.0
    %2858 = vmatpush1.msra.mxu0 0.0
    %2859 = vmatprep.subr.mxu0 0.0
    %2860 = vmatpush1.msra.mxu0 0.0
    %2861 = vmatprep.subr.mxu0 0.0
    %2862 = vmatpush1.msra.mxu0 0.0
    %2863 = vmatprep.subr.mxu0 0.0
    %2864 = vmatpush1.msra.mxu0 0.0
    %2865 = vmatprep.subr.mxu0 0.0
    %2866 = vmatpush1.msra.mxu0 0.0
    %2867 = vmatprep.subr.mxu0 0.0
    %2868 = vmatpush1.msra.mxu0 0.0
    %2869 = vmatprep.subr.mxu0 0.0
    %2870 = vmatpush1.msra.mxu0 0.0
    %2871 = vmatprep.subr.mxu0 0.0
    %2872 = vmatpush1.msra.mxu0 0.0
    %2873 = vmatprep.subr.mxu0 0.0
    %2874 = vmatpush1.msra.mxu0 0.0
    %2875 = vmatprep.subr.mxu0 0.0
    %2876 = vmatpush1.msra.mxu0 0.0
    %2877 = vmatprep.subr.mxu0 0.0
    %2878 = vmatpush1.msra.mxu0 0.0
    %2879 = vmatprep.mubr.f32.mxu0 0.0
    %2880 = vmatmul.mubr.f32.gmra.mrb[0].mxu0 %v2813
    %v2881 = vpop.f32.mrb[0].mxu0
    %v2882 = vadd.f32 0.0, %v2881
    %v2883 = vpop.f32.mrb[0].mxu0
    %2884 = vdwg.mxu0
    %v2885 = vld [vmem:[#allocation10] sm:$0xff]
    %2886 = vmatprep.subr.mxu0 0.0
    %2887 = vmatpush1.msra.mxu0 %v2736
    %2888 = vmatprep.subr.mxu0 0.0
    %2889 = vmatpush1.msra.mxu0 0.0
    %2890 = vmatprep.subr.mxu0 0.0
    %2891 = vmatpush1.msra.mxu0 0.0
    %2892 = vmatprep.subr.mxu0 0.0
    %2893 = vmatpush1.msra.mxu0 0.0
    %2894 = vmatprep.subr.mxu0 0.0
    %2895 = vmatpush1.msra.mxu0 0.0
    %2896 = vmatprep.subr.mxu0 0.0
    %2897 = vmatpush1.msra.mxu0 0.0
    %2898 = vmatprep.subr.mxu0 0.0
    %2899 = vmatpush1.msra.mxu0 0.0
    %2900 = vmatprep.subr.mxu0 0.0
    %2901 = vmatpush1.msra.mxu0 0.0
    %2902 = vmatprep.subr.mxu0 0.0
    %2903 = vmatpush1.msra.mxu0 0.0
    %2904 = vmatprep.subr.mxu0 0.0
    %2905 = vmatpush1.msra.mxu0 0.0
    %2906 = vmatprep.subr.mxu0 0.0
    %2907 = vmatpush1.msra.mxu0 0.0
    %2908 = vmatprep.subr.mxu0 0.0
    %2909 = vmatpush1.msra.mxu0 0.0
    %2910 = vmatprep.subr.mxu0 0.0
    %2911 = vmatpush1.msra.mxu0 0.0
    %2912 = vmatprep.subr.mxu0 0.0
    %2913 = vmatpush1.msra.mxu0 0.0
    %2914 = vmatprep.subr.mxu0 0.0
    %2915 = vmatpush1.msra.mxu0 0.0
    %2916 = vmatprep.subr.mxu0 0.0
    %2917 = vmatpush1.msra.mxu0 0.0
    %2918 = vmatprep.subr.mxu0 0.0
    %2919 = vmatpush1.msra.mxu0 0.0
    %2920 = vmatprep.subr.mxu0 0.0
    %2921 = vmatpush1.msra.mxu0 0.0
    %2922 = vmatprep.subr.mxu0 0.0
    %2923 = vmatpush1.msra.mxu0 0.0
    %2924 = vmatprep.subr.mxu0 0.0
    %2925 = vmatpush1.msra.mxu0 0.0
    %2926 = vmatprep.subr.mxu0 0.0
    %2927 = vmatpush1.msra.mxu0 0.0
    %2928 = vmatprep.subr.mxu0 0.0
    %2929 = vmatpush1.msra.mxu0 0.0
    %2930 = vmatprep.subr.mxu0 0.0
    %2931 = vmatpush1.msra.mxu0 0.0
    %2932 = vmatprep.subr.mxu0 0.0
    %2933 = vmatpush1.msra.mxu0 0.0
    %2934 = vmatprep.subr.mxu0 0.0
    %2935 = vmatpush1.msra.mxu0 0.0
    %2936 = vmatprep.subr.mxu0 0.0
    %2937 = vmatpush1.msra.mxu0 0.0
    %2938 = vmatprep.subr.mxu0 0.0
    %2939 = vmatpush1.msra.mxu0 0.0
    %2940 = vmatprep.subr.mxu0 0.0
    %2941 = vmatpush1.msra.mxu0 0.0
    %2942 = vmatprep.subr.mxu0 0.0
    %2943 = vmatpush1.msra.mxu0 0.0
    %2944 = vmatprep.subr.mxu0 0.0
    %2945 = vmatpush1.msra.mxu0 0.0
    %2946 = vmatprep.subr.mxu0 0.0
    %2947 = vmatpush1.msra.mxu0 0.0
    %2948 = vmatprep.subr.mxu0 0.0
    %2949 = vmatpush1.msra.mxu0 0.0
    %2950 = vmatprep.mubr.f32.mxu0 0.0
    %2951 = vmatmul.mubr.f32.gmra.mrb[0].mxu0 %v2741
    %v2952 = vpop.f32.mrb[0].mxu0
    %v2953 = vadd.f32 0.0, %v2952
    %v2954 = vpop.f32.mrb[0].mxu0
    %2955 = vdwg.mxu0
    %s2956 = scalar_lea.vmem [#allocation10], 8
    %v2957 = vld [vmem:[%s2956] sm:$0xff]
    %v2959 = vsel %vm2349, %v2953, 0
    %2961 = vmatprep.subr.mxu0 0.0
    %2962 = vmatpush1.msra.mxu0 %v2957
    %2963 = vmatprep.subr.mxu0 0.0
    %2964 = vmatpush1.msra.mxu0 0.0
    %2965 = vmatprep.subr.mxu0 0.0
    %2966 = vmatpush1.msra.mxu0 0.0
    %2967 = vmatprep.subr.mxu0 0.0
    %2968 = vmatpush1.msra.mxu0 0.0
    %2969 = vmatprep.subr.mxu0 0.0
    %2970 = vmatpush1.msra.mxu0 0.0
    %2971 = vmatprep.subr.mxu0 0.0
    %2972 = vmatpush1.msra.mxu0 0.0
    %2973 = vmatprep.subr.mxu0 0.0
    %2974 = vmatpush1.msra.mxu0 0.0
    %2975 = vmatprep.subr.mxu0 0.0
    %2976 = vmatpush1.msra.mxu0 0.0
    %2977 = vmatprep.subr.mxu0 0.0
    %2978 = vmatpush1.msra.mxu0 0.0
    %2979 = vmatprep.subr.mxu0 0.0
    %2980 = vmatpush1.msra.mxu0 0.0
    %2981 = vmatprep.subr.mxu0 0.0
    %2982 = vmatpush1.msra.mxu0 0.0
    %2983 = vmatprep.subr.mxu0 0.0
    %2984 = vmatpush1.msra.mxu0 0.0
    %2985 = vmatprep.subr.mxu0 0.0
    %2986 = vmatpush1.msra.mxu0 0.0
    %2987 = vmatprep.subr.mxu0 0.0
    %2988 = vmatpush1.msra.mxu0 0.0
    %2989 = vmatprep.subr.mxu0 0.0
    %2990 = vmatpush1.msra.mxu0 0.0
    %2991 = vmatprep.subr.mxu0 0.0
    %2992 = vmatpush1.msra.mxu0 0.0
    %2993 = vmatprep.subr.mxu0 0.0
    %2994 = vmatpush1.msra.mxu0 0.0
    %2995 = vmatprep.subr.mxu0 0.0
    %2996 = vmatpush1.msra.mxu0 0.0
    %2997 = vmatprep.subr.mxu0 0.0
    %2998 = vmatpush1.msra.mxu0 0.0
    %2999 = vmatprep.subr.mxu0 0.0
    %3000 = vmatpush1.msra.mxu0 0.0
    %3001 = vmatprep.subr.mxu0 0.0
    %3002 = vmatpush1.msra.mxu0 0.0
    %3003 = vmatprep.subr.mxu0 0.0
    %3004 = vmatpush1.msra.mxu0 0.0
    %3005 = vmatprep.subr.mxu0 0.0
    %3006 = vmatpush1.msra.mxu0 0.0
    %3007 = vmatprep.subr.mxu0 0.0
    %3008 = vmatpush1.msra.mxu0 0.0
    %3009 = vmatprep.subr.mxu0 0.0
    %3010 = vmatpush1.msra.mxu0 0.0
    %3011 = vmatprep.subr.mxu0 0.0
    %3012 = vmatpush1.msra.mxu0 0.0
    %3013 = vmatprep.subr.mxu0 0.0
    %3014 = vmatpush1.msra.mxu0 0.0
    %3015 = vmatprep.subr.mxu0 0.0
    %3016 = vmatpush1.msra.mxu0 0.0
    %3017 = vmatprep.subr.mxu0 0.0
    %3018 = vmatpush1.msra.mxu0 0.0
    %3019 = vmatprep.subr.mxu0 0.0
    %3020 = vmatpush1.msra.mxu0 0.0
    %3021 = vmatprep.subr.mxu0 0.0
    %3022 = vmatpush1.msra.mxu0 0.0
    %3023 = vmatprep.subr.mxu0 0.0
    %3024 = vmatpush1.msra.mxu0 0.0
    %3025 = vmatprep.mubr.f32.mxu0 0.0
    %3026 = vmatmul.mubr.f32.gmra.mrb[0].mxu0 %v2959
    %v3027 = vpop.f32.mrb[0].mxu0
    %v3028 = vadd.f32 0.0, %v3027
    %v3029 = vpop.f32.mrb[0].mxu0
    %3030 = vdwg.mxu0
    %v3032 = vsel %vm2349, %v2882, 0
    %3034 = vmatprep.subr.mxu0 0.0
    %3035 = vmatpush1.msra.mxu0 %v2885
    %3036 = vmatprep.subr.mxu0 0.0
    %3037 = vmatpush1.msra.mxu0 0.0
    %3038 = vmatprep.subr.mxu0 0.0
    %3039 = vmatpush1.msra.mxu0 0.0
    %3040 = vmatprep.subr.mxu0 0.0
    %3041 = vmatpush1.msra.mxu0 0.0
    %3042 = vmatprep.subr.mxu0 0.0
    %3043 = vmatpush1.msra.mxu0 0.0
    %3044 = vmatprep.subr.mxu0 0.0
    %3045 = vmatpush1.msra.mxu0 0.0
    %3046 = vmatprep.subr.mxu0 0.0
    %3047 = vmatpush1.msra.mxu0 0.0
    %3048 = vmatprep.subr.mxu0 0.0
    %3049 = vmatpush1.msra.mxu0 0.0
    %3050 = vmatprep.subr.mxu0 0.0
    %3051 = vmatpush1.msra.mxu0 0.0
    %3052 = vmatprep.subr.mxu0 0.0
    %3053 = vmatpush1.msra.mxu0 0.0
    %3054 = vmatprep.subr.mxu0 0.0
    %3055 = vmatpush1.msra.mxu0 0.0
    %3056 = vmatprep.subr.mxu0 0.0
    %3057 = vmatpush1.msra.mxu0 0.0
    %3058 = vmatprep.subr.mxu0 0.0
    %3059 = vmatpush1.msra.mxu0 0.0
    %3060 = vmatprep.subr.mxu0 0.0
    %3061 = vmatpush1.msra.mxu0 0.0
    %3062 = vmatprep.subr.mxu0 0.0
    %3063 = vmatpush1.msra.mxu0 0.0
    %3064 = vmatprep.subr.mxu0 0.0
    %3065 = vmatpush1.msra.mxu0 0.0
    %3066 = vmatprep.subr.mxu0 0.0
    %3067 = vmatpush1.msra.mxu0 0.0
    %3068 = vmatprep.subr.mxu0 0.0
    %3069 = vmatpush1.msra.mxu0 0.0
    %3070 = vmatprep.subr.mxu0 0.0
    %3071 = vmatpush1.msra.mxu0 0.0
    %3072 = vmatprep.subr.mxu0 0.0
    %3073 = vmatpush1.msra.mxu0 0.0
    %3074 = vmatprep.subr.mxu0 0.0
    %3075 = vmatpush1.msra.mxu0 0.0
    %3076 = vmatprep.subr.mxu0 0.0
    %3077 = vmatpush1.msra.mxu0 0.0
    %3078 = vmatprep.subr.mxu0 0.0
    %3079 = vmatpush1.msra.mxu0 0.0
    %3080 = vmatprep.subr.mxu0 0.0
    %3081 = vmatpush1.msra.mxu0 0.0
    %3082 = vmatprep.subr.mxu0 0.0
    %3083 = vmatpush1.msra.mxu0 0.0
    %3084 = vmatprep.subr.mxu0 0.0
    %3085 = vmatpush1.msra.mxu0 0.0
    %3086 = vmatprep.subr.mxu0 0.0
    %3087 = vmatpush1.msra.mxu0 0.0
    %3088 = vmatprep.subr.mxu0 0.0
    %3089 = vmatpush1.msra.mxu0 0.0
    %3090 = vmatprep.subr.mxu0 0.0
    %3091 = vmatpush1.msra.mxu0 0.0
    %3092 = vmatprep.subr.mxu0 0.0
    %3093 = vmatpush1.msra.mxu0 0.0
    %3094 = vmatprep.subr.mxu0 0.0
    %3095 = vmatpush1.msra.mxu0 0.0
    %3096 = vmatprep.subr.mxu0 0.0
    %3097 = vmatpush1.msra.mxu0 0.0
    %3098 = vmatprep.mubr.f32.mxu0 0.0
    %3099 = vmatmul.mubr.f32.gmra.mrb[0].mxu0 %v3032
    %v3100 = vpop.f32.mrb[0].mxu0
    %v3101 = vadd.f32 %v3028, %v3100
    %v3102 = vpop.f32.mrb[0].mxu0
    %3103 = vdwg.mxu0
    %v3104 = vsel %vm2349, %v1198, 0
    %3106 = vmatprep.subr.mxu0 0.0
    %3107 = vmatpush1.msra.mxu0 %v2736
    %3108 = vmatprep.subr.mxu0 0.0
    %3109 = vmatpush1.msra.mxu0 0.0
    %3110 = vmatprep.subr.mxu0 0.0
    %3111 = vmatpush1.msra.mxu0 0.0
    %3112 = vmatprep.subr.mxu0 0.0
    %3113 = vmatpush1.msra.mxu0 0.0
    %3114 = vmatprep.subr.mxu0 0.0
    %3115 = vmatpush1.msra.mxu0 0.0
    %3116 = vmatprep.subr.mxu0 0.0
    %3117 = vmatpush1.msra.mxu0 0.0
    %3118 = vmatprep.subr.mxu0 0.0
    %3119 = vmatpush1.msra.mxu0 0.0
    %3120 = vmatprep.subr.mxu0 0.0
    %3121 = vmatpush1.msra.mxu0 0.0
    %3122 = vmatprep.subr.mxu0 0.0
    %3123 = vmatpush1.msra.mxu0 0.0
    %3124 = vmatprep.subr.mxu0 0.0
    %3125 = vmatpush1.msra.mxu0 0.0
    %3126 = vmatprep.subr.mxu0 0.0
    %3127 = vmatpush1.msra.mxu0 0.0
    %3128 = vmatprep.subr.mxu0 0.0
    %3129 = vmatpush1.msra.mxu0 0.0
    %3130 = vmatprep.subr.mxu0 0.0
    %3131 = vmatpush1.msra.mxu0 0.0
    %3132 = vmatprep.subr.mxu0 0.0
    %3133 = vmatpush1.msra.mxu0 0.0
    %3134 = vmatprep.subr.mxu0 0.0
    %3135 = vmatpush1.msra.mxu0 0.0
    %3136 = vmatprep.subr.mxu0 0.0
    %3137 = vmatpush1.msra.mxu0 0.0
    %3138 = vmatprep.subr.mxu0 0.0
    %3139 = vmatpush1.msra.mxu0 0.0
    %3140 = vmatprep.subr.mxu0 0.0
    %3141 = vmatpush1.msra.mxu0 0.0
    %3142 = vmatprep.subr.mxu0 0.0
    %3143 = vmatpush1.msra.mxu0 0.0
    %3144 = vmatprep.subr.mxu0 0.0
    %3145 = vmatpush1.msra.mxu0 0.0
    %3146 = vmatprep.subr.mxu0 0.0
    %3147 = vmatpush1.msra.mxu0 0.0
    %3148 = vmatprep.subr.mxu0 0.0
    %3149 = vmatpush1.msra.mxu0 0.0
    %3150 = vmatprep.subr.mxu0 0.0
    %3151 = vmatpush1.msra.mxu0 0.0
    %3152 = vmatprep.subr.mxu0 0.0
    %3153 = vmatpush1.msra.mxu0 0.0
    %3154 = vmatprep.subr.mxu0 0.0
    %3155 = vmatpush1.msra.mxu0 0.0
    %3156 = vmatprep.subr.mxu0 0.0
    %3157 = vmatpush1.msra.mxu0 0.0
    %3158 = vmatprep.subr.mxu0 0.0
    %3159 = vmatpush1.msra.mxu0 0.0
    %3160 = vmatprep.subr.mxu0 0.0
    %3161 = vmatpush1.msra.mxu0 0.0
    %3162 = vmatprep.subr.mxu0 0.0
    %3163 = vmatpush1.msra.mxu0 0.0
    %3164 = vmatprep.subr.mxu0 0.0
    %3165 = vmatpush1.msra.mxu0 0.0
    %3166 = vmatprep.subr.mxu0 0.0
    %3167 = vmatpush1.msra.mxu0 0.0
    %3168 = vmatprep.subr.mxu0 0.0
    %3169 = vmatpush1.msra.mxu0 0.0
    %3170 = vmatprep.mubr.f32.mxu0 0.0
    %3171 = vmatmul.mubr.f32.gmra.mrb[0].mxu0 %v3104
    %v3172 = vpop.f32.mrb[0].mxu0
    %v3173 = vadd.f32 0.0, %v3172
    %v3174 = vpop.f32.mrb[0].mxu0
    %3175 = vdwg.mxu0
    %s3176 = scalar_lea.vmem [#allocation10], 16
    %v3177 = vld [vmem:[%s3176] sm:$0xff]
    %v3179 = vsel %vm2349, %v3173, 0
    %3181 = vmatprep.subr.mxu0 0.0
    %3182 = vmatpush1.msra.mxu0 %v3177
    %3183 = vmatprep.subr.mxu0 0.0
    %3184 = vmatpush1.msra.mxu0 0.0
    %3185 = vmatprep.subr.mxu0 0.0
    %3186 = vmatpush1.msra.mxu0 0.0
    %3187 = vmatprep.subr.mxu0 0.0
    %3188 = vmatpush1.msra.mxu0 0.0
    %3189 = vmatprep.subr.mxu0 0.0
    %3190 = vmatpush1.msra.mxu0 0.0
    %3191 = vmatprep.subr.mxu0 0.0
    %3192 = vmatpush1.msra.mxu0 0.0
    %3193 = vmatprep.subr.mxu0 0.0
    %3194 = vmatpush1.msra.mxu0 0.0
    %3195 = vmatprep.subr.mxu0 0.0
    %3196 = vmatpush1.msra.mxu0 0.0
    %3197 = vmatprep.subr.mxu0 0.0
    %3198 = vmatpush1.msra.mxu0 0.0
    %3199 = vmatprep.subr.mxu0 0.0
    %3200 = vmatpush1.msra.mxu0 0.0
    %3201 = vmatprep.subr.mxu0 0.0
    %3202 = vmatpush1.msra.mxu0 0.0
    %3203 = vmatprep.subr.mxu0 0.0
    %3204 = vmatpush1.msra.mxu0 0.0
    %3205 = vmatprep.subr.mxu0 0.0
    %3206 = vmatpush1.msra.mxu0 0.0
    %3207 = vmatprep.subr.mxu0 0.0
    %3208 = vmatpush1.msra.mxu0 0.0
    %3209 = vmatprep.subr.mxu0 0.0
    %3210 = vmatpush1.msra.mxu0 0.0
    %3211 = vmatprep.subr.mxu0 0.0
    %3212 = vmatpush1.msra.mxu0 0.0
    %3213 = vmatprep.subr.mxu0 0.0
    %3214 = vmatpush1.msra.mxu0 0.0
    %3215 = vmatprep.subr.mxu0 0.0
    %3216 = vmatpush1.msra.mxu0 0.0
    %3217 = vmatprep.subr.mxu0 0.0
    %3218 = vmatpush1.msra.mxu0 0.0
    %3219 = vmatprep.subr.mxu0 0.0
    %3220 = vmatpush1.msra.mxu0 0.0
    %3221 = vmatprep.subr.mxu0 0.0
    %3222 = vmatpush1.msra.mxu0 0.0
    %3223 = vmatprep.subr.mxu0 0.0
    %3224 = vmatpush1.msra.mxu0 0.0
    %3225 = vmatprep.subr.mxu0 0.0
    %3226 = vmatpush1.msra.mxu0 0.0
    %3227 = vmatprep.subr.mxu0 0.0
    %3228 = vmatpush1.msra.mxu0 0.0
    %3229 = vmatprep.subr.mxu0 0.0
    %3230 = vmatpush1.msra.mxu0 0.0
    %3231 = vmatprep.subr.mxu0 0.0
    %3232 = vmatpush1.msra.mxu0 0.0
    %3233 = vmatprep.subr.mxu0 0.0
    %3234 = vmatpush1.msra.mxu0 0.0
    %3235 = vmatprep.subr.mxu0 0.0
    %3236 = vmatpush1.msra.mxu0 0.0
    %3237 = vmatprep.subr.mxu0 0.0
    %3238 = vmatpush1.msra.mxu0 0.0
    %3239 = vmatprep.subr.mxu0 0.0
    %3240 = vmatpush1.msra.mxu0 0.0
    %3241 = vmatprep.subr.mxu0 0.0
    %3242 = vmatpush1.msra.mxu0 0.0
    %3243 = vmatprep.subr.mxu0 0.0
    %3244 = vmatpush1.msra.mxu0 0.0
    %3245 = vmatprep.mubr.f32.mxu0 0.0
    %3246 = vmatmul.mubr.f32.gmra.mrb[0].mxu0 %v3179
    %v3247 = vpop.f32.mrb[0].mxu0
    %v3248 = vadd.f32 0.0, %v3247
    %v3249 = vpop.f32.mrb[0].mxu0
    %3250 = vdwg.mxu0
    %v3251 = vadd.f32 %v3101, %v3248
    %v3252 = vld [vmem:[%s12] sm:$0x1]
    %v3254 = vlaneseq
    %v3255 = vshrl.u32 %v3254, 7
    %v3256 = vsub.s32 0, %v3255
    %v3257 = vrot.slane %v3252, %v3256
    %v3259 = vadd.f32 %v3251, %v3257
    %v3260 = vadd.f32 %v3259, %v2810
    %v3261 = vmax.f32 %v3260, 0.0
    %v3262 = vsel %vm314, %v209, 0
    %v3265 = vsel %vm327, %v3261, 0
    %3267 = vmatprep.subr.mxu0 0.0
    %3268 = vmatpush1.msra.mxu0 %v3265
    %3269 = vmatprep.subr.mxu0 0.0
    %3270 = vmatpush1.msra.mxu0 0.0
    %3271 = vmatprep.subr.mxu0 0.0
    %3272 = vmatpush1.msra.mxu0 0.0
    %3273 = vmatprep.subr.mxu0 0.0
    %3274 = vmatpush1.msra.mxu0 0.0
    %3275 = vmatprep.subr.mxu0 0.0
    %3276 = vmatpush1.msra.mxu0 0.0
    %3277 = vmatprep.subr.mxu0 0.0
    %3278 = vmatpush1.msra.mxu0 0.0
    %3279 = vmatprep.subr.mxu0 0.0
    %3280 = vmatpush1.msra.mxu0 0.0
    %3281 = vmatprep.subr.mxu0 0.0
    %3282 = vmatpush1.msra.mxu0 0.0
    %3283 = vmatprep.subr.mxu0 0.0
    %3284 = vmatpush1.msra.mxu0 0.0
    %3285 = vmatprep.subr.mxu0 0.0
    %3286 = vmatpush1.msra.mxu0 0.0
    %3287 = vmatprep.subr.mxu0 0.0
    %3288 = vmatpush1.msra.mxu0 0.0
    %3289 = vmatprep.subr.mxu0 0.0
    %3290 = vmatpush1.msra.mxu0 0.0
    %3291 = vmatprep.subr.mxu0 0.0
    %3292 = vmatpush1.msra.mxu0 0.0
    %3293 = vmatprep.subr.mxu0 0.0
    %3294 = vmatpush1.msra.mxu0 0.0
    %3295 = vmatprep.subr.mxu0 0.0
    %3296 = vmatpush1.msra.mxu0 0.0
    %3297 = vmatprep.subr.mxu0 0.0
    %3298 = vmatpush1.msra.mxu0 0.0
    %3299 = vmatprep.subr.mxu0 0.0
    %3300 = vmatpush1.msra.mxu0 0.0
    %3301 = vmatprep.subr.mxu0 0.0
    %3302 = vmatpush1.msra.mxu0 0.0
    %3303 = vmatprep.subr.mxu0 0.0
    %3304 = vmatpush1.msra.mxu0 0.0
    %3305 = vmatprep.subr.mxu0 0.0
    %3306 = vmatpush1.msra.mxu0 0.0
    %3307 = vmatprep.subr.mxu0 0.0
    %3308 = vmatpush1.msra.mxu0 0.0
    %3309 = vmatprep.subr.mxu0 0.0
    %3310 = vmatpush1.msra.mxu0 0.0
    %3311 = vmatprep.subr.mxu0 0.0
    %3312 = vmatpush1.msra.mxu0 0.0
    %3313 = vmatprep.subr.mxu0 0.0
    %3314 = vmatpush1.msra.mxu0 0.0
    %3315 = vmatprep.subr.mxu0 0.0
    %3316 = vmatpush1.msra.mxu0 0.0
    %3317 = vmatprep.subr.mxu0 0.0
    %3318 = vmatpush1.msra.mxu0 0.0
    %3319 = vmatprep.subr.mxu0 0.0
    %3320 = vmatpush1.msra.mxu0 0.0
    %3321 = vmatprep.subr.mxu0 0.0
    %3322 = vmatpush1.msra.mxu0 0.0
    %3323 = vmatprep.subr.mxu0 0.0
    %3324 = vmatpush1.msra.mxu0 0.0
    %3325 = vmatprep.subr.mxu0 0.0
    %3326 = vmatpush1.msra.mxu0 0.0
    %3327 = vmatprep.subr.mxu0 0.0
    %3328 = vmatpush1.msra.mxu0 0.0
    %3329 = vmatprep.subr.mxu0 0.0
    %3330 = vmatpush1.msra.mxu0 0.0
    %3331 = vmatprep.mubr.f32.mxu0 0.0
    %3332 = vmatmul.mubr.f32.gmra.mrb[0].mxu0 %v3262
    %v3333 = vpop.f32.mrb[0].mxu0
    %v3334 = vadd.f32 0.0, %v3333
    %v3335 = vpop.f32.mrb[0].mxu0
    %3336 = vdwg.mxu0
    %v3337 = vld [vmem:[#allocation11] sm:$0xff]
    %s3338 = scalar_lea.vmem [#allocation11], 8
    %v3339 = vld [vmem:[%s3338] sm:$0xff]
    %v3340 = vsel %vm2349, %v3261, 0
    %3342 = vmatprep.subr.mxu0 0.0
    %3343 = vmatpush1.msra.mxu0 %v3339
    %3344 = vmatprep.subr.mxu0 0.0
    %3345 = vmatpush1.msra.mxu0 0.0
    %3346 = vmatprep.subr.mxu0 0.0
    %3347 = vmatpush1.msra.mxu0 0.0
    %3348 = vmatprep.subr.mxu0 0.0
    %3349 = vmatpush1.msra.mxu0 0.0
    %3350 = vmatprep.subr.mxu0 0.0
    %3351 = vmatpush1.msra.mxu0 0.0
    %3352 = vmatprep.subr.mxu0 0.0
    %3353 = vmatpush1.msra.mxu0 0.0
    %3354 = vmatprep.subr.mxu0 0.0
    %3355 = vmatpush1.msra.mxu0 0.0
    %3356 = vmatprep.subr.mxu0 0.0
    %3357 = vmatpush1.msra.mxu0 0.0
    %3358 = vmatprep.subr.mxu0 0.0
    %3359 = vmatpush1.msra.mxu0 0.0
    %3360 = vmatprep.subr.mxu0 0.0
    %3361 = vmatpush1.msra.mxu0 0.0
    %3362 = vmatprep.subr.mxu0 0.0
    %3363 = vmatpush1.msra.mxu0 0.0
    %3364 = vmatprep.subr.mxu0 0.0
    %3365 = vmatpush1.msra.mxu0 0.0
    %3366 = vmatprep.subr.mxu0 0.0
    %3367 = vmatpush1.msra.mxu0 0.0
    %3368 = vmatprep.subr.mxu0 0.0
    %3369 = vmatpush1.msra.mxu0 0.0
    %3370 = vmatprep.subr.mxu0 0.0
    %3371 = vmatpush1.msra.mxu0 0.0
    %3372 = vmatprep.subr.mxu0 0.0
    %3373 = vmatpush1.msra.mxu0 0.0
    %3374 = vmatprep.subr.mxu0 0.0
    %3375 = vmatpush1.msra.mxu0 0.0
    %3376 = vmatprep.subr.mxu0 0.0
    %3377 = vmatpush1.msra.mxu0 0.0
    %3378 = vmatprep.subr.mxu0 0.0
    %3379 = vmatpush1.msra.mxu0 0.0
    %3380 = vmatprep.subr.mxu0 0.0
    %3381 = vmatpush1.msra.mxu0 0.0
    %3382 = vmatprep.subr.mxu0 0.0
    %3383 = vmatpush1.msra.mxu0 0.0
    %3384 = vmatprep.subr.mxu0 0.0
    %3385 = vmatpush1.msra.mxu0 0.0
    %3386 = vmatprep.subr.mxu0 0.0
    %3387 = vmatpush1.msra.mxu0 0.0
    %3388 = vmatprep.subr.mxu0 0.0
    %3389 = vmatpush1.msra.mxu0 0.0
    %3390 = vmatprep.subr.mxu0 0.0
    %3391 = vmatpush1.msra.mxu0 0.0
    %3392 = vmatprep.subr.mxu0 0.0
    %3393 = vmatpush1.msra.mxu0 0.0
    %3394 = vmatprep.subr.mxu0 0.0
    %3395 = vmatpush1.msra.mxu0 0.0
    %3396 = vmatprep.subr.mxu0 0.0
    %3397 = vmatpush1.msra.mxu0 0.0
    %3398 = vmatprep.subr.mxu0 0.0
    %3399 = vmatpush1.msra.mxu0 0.0
    %3400 = vmatprep.subr.mxu0 0.0
    %3401 = vmatpush1.msra.mxu0 0.0
    %3402 = vmatprep.subr.mxu0 0.0
    %3403 = vmatpush1.msra.mxu0 0.0
    %3404 = vmatprep.subr.mxu0 0.0
    %3405 = vmatpush1.msra.mxu0 0.0
    %3406 = vmatprep.mubr.f32.mxu0 0.0
    %3407 = vmatmul.mubr.f32.gmra.mrb[0].mxu0 %v3340
    %v3408 = vpop.f32.mrb[0].mxu0
    %v3409 = vadd.f32 0.0, %v3408
    %v3410 = vpop.f32.mrb[0].mxu0
    %3411 = vdwg.mxu0
    %v3413 = vsel %vm2349, %v3334, 0
    %3415 = vmatprep.subr.mxu0 0.0
    %3416 = vmatpush1.msra.mxu0 %v3337
    %3417 = vmatprep.subr.mxu0 0.0
    %3418 = vmatpush1.msra.mxu0 0.0
    %3419 = vmatprep.subr.mxu0 0.0
    %3420 = vmatpush1.msra.mxu0 0.0
    %3421 = vmatprep.subr.mxu0 0.0
    %3422 = vmatpush1.msra.mxu0 0.0
    %3423 = vmatprep.subr.mxu0 0.0
    %3424 = vmatpush1.msra.mxu0 0.0
    %3425 = vmatprep.subr.mxu0 0.0
    %3426 = vmatpush1.msra.mxu0 0.0
    %3427 = vmatprep.subr.mxu0 0.0
    %3428 = vmatpush1.msra.mxu0 0.0
    %3429 = vmatprep.subr.mxu0 0.0
    %3430 = vmatpush1.msra.mxu0 0.0
    %3431 = vmatprep.subr.mxu0 0.0
    %3432 = vmatpush1.msra.mxu0 0.0
    %3433 = vmatprep.subr.mxu0 0.0
    %3434 = vmatpush1.msra.mxu0 0.0
    %3435 = vmatprep.subr.mxu0 0.0
    %3436 = vmatpush1.msra.mxu0 0.0
    %3437 = vmatprep.subr.mxu0 0.0
    %3438 = vmatpush1.msra.mxu0 0.0
    %3439 = vmatprep.subr.mxu0 0.0
    %3440 = vmatpush1.msra.mxu0 0.0
    %3441 = vmatprep.subr.mxu0 0.0
    %3442 = vmatpush1.msra.mxu0 0.0
    %3443 = vmatprep.subr.mxu0 0.0
    %3444 = vmatpush1.msra.mxu0 0.0
    %3445 = vmatprep.subr.mxu0 0.0
    %3446 = vmatpush1.msra.mxu0 0.0
    %3447 = vmatprep.subr.mxu0 0.0
    %3448 = vmatpush1.msra.mxu0 0.0
    %3449 = vmatprep.subr.mxu0 0.0
    %3450 = vmatpush1.msra.mxu0 0.0
    %3451 = vmatprep.subr.mxu0 0.0
    %3452 = vmatpush1.msra.mxu0 0.0
    %3453 = vmatprep.subr.mxu0 0.0
    %3454 = vmatpush1.msra.mxu0 0.0
    %3455 = vmatprep.subr.mxu0 0.0
    %3456 = vmatpush1.msra.mxu0 0.0
    %3457 = vmatprep.subr.mxu0 0.0
    %3458 = vmatpush1.msra.mxu0 0.0
    %3459 = vmatprep.subr.mxu0 0.0
    %3460 = vmatpush1.msra.mxu0 0.0
    %3461 = vmatprep.subr.mxu0 0.0
    %3462 = vmatpush1.msra.mxu0 0.0
    %3463 = vmatprep.subr.mxu0 0.0
    %3464 = vmatpush1.msra.mxu0 0.0
    %3465 = vmatprep.subr.mxu0 0.0
    %3466 = vmatpush1.msra.mxu0 0.0
    %3467 = vmatprep.subr.mxu0 0.0
    %3468 = vmatpush1.msra.mxu0 0.0
    %3469 = vmatprep.subr.mxu0 0.0
    %3470 = vmatpush1.msra.mxu0 0.0
    %3471 = vmatprep.subr.mxu0 0.0
    %3472 = vmatpush1.msra.mxu0 0.0
    %3473 = vmatprep.subr.mxu0 0.0
    %3474 = vmatpush1.msra.mxu0 0.0
    %3475 = vmatprep.subr.mxu0 0.0
    %3476 = vmatpush1.msra.mxu0 0.0
    %3477 = vmatprep.subr.mxu0 0.0
    %3478 = vmatpush1.msra.mxu0 0.0
    %3479 = vmatprep.mubr.f32.mxu0 0.0
    %3480 = vmatmul.mubr.f32.gmra.mrb[0].mxu0 %v3413
    %v3481 = vpop.f32.mrb[0].mxu0
    %v3482 = vadd.f32 %v3409, %v3481
    %v3483 = vpop.f32.mrb[0].mxu0
    %3484 = vdwg.mxu0
    %v3485 = vsel %vm314, %v528, 0
    %3487 = vmatprep.subr.mxu0 0.0
    %3488 = vmatpush1.msra.mxu0 %v3265
    %3489 = vmatprep.subr.mxu0 0.0
    %3490 = vmatpush1.msra.mxu0 0.0
    %3491 = vmatprep.subr.mxu0 0.0
    %3492 = vmatpush1.msra.mxu0 0.0
    %3493 = vmatprep.subr.mxu0 0.0
    %3494 = vmatpush1.msra.mxu0 0.0
    %3495 = vmatprep.subr.mxu0 0.0
    %3496 = vmatpush1.msra.mxu0 0.0
    %3497 = vmatprep.subr.mxu0 0.0
    %3498 = vmatpush1.msra.mxu0 0.0
    %3499 = vmatprep.subr.mxu0 0.0
    %3500 = vmatpush1.msra.mxu0 0.0
    %3501 = vmatprep.subr.mxu0 0.0
    %3502 = vmatpush1.msra.mxu0 0.0
    %3503 = vmatprep.subr.mxu0 0.0
    %3504 = vmatpush1.msra.mxu0 0.0
    %3505 = vmatprep.subr.mxu0 0.0
    %3506 = vmatpush1.msra.mxu0 0.0
    %3507 = vmatprep.subr.mxu0 0.0
    %3508 = vmatpush1.msra.mxu0 0.0
    %3509 = vmatprep.subr.mxu0 0.0
    %3510 = vmatpush1.msra.mxu0 0.0
    %3511 = vmatprep.subr.mxu0 0.0
    %3512 = vmatpush1.msra.mxu0 0.0
    %3513 = vmatprep.subr.mxu0 0.0
    %3514 = vmatpush1.msra.mxu0 0.0
    %3515 = vmatprep.subr.mxu0 0.0
    %3516 = vmatpush1.msra.mxu0 0.0
    %3517 = vmatprep.subr.mxu0 0.0
    %3518 = vmatpush1.msra.mxu0 0.0
    %3519 = vmatprep.subr.mxu0 0.0
    %3520 = vmatpush1.msra.mxu0 0.0
    %3521 = vmatprep.subr.mxu0 0.0
    %3522 = vmatpush1.msra.mxu0 0.0
    %3523 = vmatprep.subr.mxu0 0.0
    %3524 = vmatpush1.msra.mxu0 0.0
    %3525 = vmatprep.subr.mxu0 0.0
    %3526 = vmatpush1.msra.mxu0 0.0
    %3527 = vmatprep.subr.mxu0 0.0
    %3528 = vmatpush1.msra.mxu0 0.0
    %3529 = vmatprep.subr.mxu0 0.0
    %3530 = vmatpush1.msra.mxu0 0.0
    %3531 = vmatprep.subr.mxu0 0.0
    %3532 = vmatpush1.msra.mxu0 0.0
    %3533 = vmatprep.subr.mxu0 0.0
    %3534 = vmatpush1.msra.mxu0 0.0
    %3535 = vmatprep.subr.mxu0 0.0
    %3536 = vmatpush1.msra.mxu0 0.0
    %3537 = vmatprep.subr.mxu0 0.0
    %3538 = vmatpush1.msra.mxu0 0.0
    %3539 = vmatprep.subr.mxu0 0.0
    %3540 = vmatpush1.msra.mxu0 0.0
    %3541 = vmatprep.subr.mxu0 0.0
    %3542 = vmatpush1.msra.mxu0 0.0
    %3543 = vmatprep.subr.mxu0 0.0
    %3544 = vmatpush1.msra.mxu0 0.0
    %3545 = vmatprep.subr.mxu0 0.0
    %3546 = vmatpush1.msra.mxu0 0.0
    %3547 = vmatprep.subr.mxu0 0.0
    %3548 = vmatpush1.msra.mxu0 0.0
    %3549 = vmatprep.subr.mxu0 0.0
    %3550 = vmatpush1.msra.mxu0 0.0
    %3551 = vmatprep.mubr.f32.mxu0 0.0
    %3552 = vmatmul.mubr.f32.gmra.mrb[0].mxu0 %v3485
    %v3553 = vpop.f32.mrb[0].mxu0
    %v3554 = vadd.f32 0.0, %v3553
    %v3555 = vpop.f32.mrb[0].mxu0
    %3556 = vdwg.mxu0
    %s3557 = scalar_lea.vmem [#allocation11], 16
    %v3558 = vld [vmem:[%s3557] sm:$0xff]
    %v3560 = vsel %vm2349, %v3554, 0
    %3562 = vmatprep.subr.mxu0 0.0
    %3563 = vmatpush1.msra.mxu0 %v3558
    %3564 = vmatprep.subr.mxu0 0.0
    %3565 = vmatpush1.msra.mxu0 0.0
    %3566 = vmatprep.subr.mxu0 0.0
    %3567 = vmatpush1.msra.mxu0 0.0
    %3568 = vmatprep.subr.mxu0 0.0
    %3569 = vmatpush1.msra.mxu0 0.0
    %3570 = vmatprep.subr.mxu0 0.0
    %3571 = vmatpush1.msra.mxu0 0.0
    %3572 = vmatprep.subr.mxu0 0.0
    %3573 = vmatpush1.msra.mxu0 0.0
    %3574 = vmatprep.subr.mxu0 0.0
    %3575 = vmatpush1.msra.mxu0 0.0
    %3576 = vmatprep.subr.mxu0 0.0
    %3577 = vmatpush1.msra.mxu0 0.0
    %3578 = vmatprep.subr.mxu0 0.0
    %3579 = vmatpush1.msra.mxu0 0.0
    %3580 = vmatprep.subr.mxu0 0.0
    %3581 = vmatpush1.msra.mxu0 0.0
    %3582 = vmatprep.subr.mxu0 0.0
    %3583 = vmatpush1.msra.mxu0 0.0
    %3584 = vmatprep.subr.mxu0 0.0
    %3585 = vmatpush1.msra.mxu0 0.0
    %3586 = vmatprep.subr.mxu0 0.0
    %3587 = vmatpush1.msra.mxu0 0.0
    %3588 = vmatprep.subr.mxu0 0.0
    %3589 = vmatpush1.msra.mxu0 0.0
    %3590 = vmatprep.subr.mxu0 0.0
    %3591 = vmatpush1.msra.mxu0 0.0
    %3592 = vmatprep.subr.mxu0 0.0
    %3593 = vmatpush1.msra.mxu0 0.0
    %3594 = vmatprep.subr.mxu0 0.0
    %3595 = vmatpush1.msra.mxu0 0.0
    %3596 = vmatprep.subr.mxu0 0.0
    %3597 = vmatpush1.msra.mxu0 0.0
    %3598 = vmatprep.subr.mxu0 0.0
    %3599 = vmatpush1.msra.mxu0 0.0
    %3600 = vmatprep.subr.mxu0 0.0
    %3601 = vmatpush1.msra.mxu0 0.0
    %3602 = vmatprep.subr.mxu0 0.0
    %3603 = vmatpush1.msra.mxu0 0.0
    %3604 = vmatprep.subr.mxu0 0.0
    %3605 = vmatpush1.msra.mxu0 0.0
    %3606 = vmatprep.subr.mxu0 0.0
    %3607 = vmatpush1.msra.mxu0 0.0
    %3608 = vmatprep.subr.mxu0 0.0
    %3609 = vmatpush1.msra.mxu0 0.0
    %3610 = vmatprep.subr.mxu0 0.0
    %3611 = vmatpush1.msra.mxu0 0.0
    %3612 = vmatprep.subr.mxu0 0.0
    %3613 = vmatpush1.msra.mxu0 0.0
    %3614 = vmatprep.subr.mxu0 0.0
    %3615 = vmatpush1.msra.mxu0 0.0
    %3616 = vmatprep.subr.mxu0 0.0
    %3617 = vmatpush1.msra.mxu0 0.0
    %3618 = vmatprep.subr.mxu0 0.0
    %3619 = vmatpush1.msra.mxu0 0.0
    %3620 = vmatprep.subr.mxu0 0.0
    %3621 = vmatpush1.msra.mxu0 0.0
    %3622 = vmatprep.subr.mxu0 0.0
    %3623 = vmatpush1.msra.mxu0 0.0
    %3624 = vmatprep.subr.mxu0 0.0
    %3625 = vmatpush1.msra.mxu0 0.0
    %3626 = vmatprep.mubr.f32.mxu0 0.0
    %3627 = vmatmul.mubr.f32.gmra.mrb[0].mxu0 %v3560
    %v3628 = vpop.f32.mrb[0].mxu0
    %v3629 = vadd.f32 0.0, %v3628
    %v3630 = vpop.f32.mrb[0].mxu0
    %3631 = vdwg.mxu0
    %v3632 = vadd.f32 %v3482, %v3629
    %v3633 = vld [vmem:[%s14] sm:$0x1]
    %v3635 = vlaneseq
    %v3636 = vshrl.u32 %v3635, 7
    %v3637 = vsub.s32 0, %v3636
    %v3638 = vrot.slane %v3633, %v3637
    %v3640 = vadd.f32 %v3632, %v3638
    %v3641 = vmax.f32 %v3640, 0.0
    %3643 = vrot.lane.b32.xlu0 %v3640, 112
    %v3644 = vpop.permute.xlu0 %3643
    %v3645 = vsel %vm314, %v756, 0
    %v3647 = vsel %vm327, %v3644, 0
    %3649 = vmatprep.subr.mxu0 0.0
    %3650 = vmatpush1.msra.mxu0 %v3647
    %3651 = vmatprep.subr.mxu0 0.0
    %3652 = vmatpush1.msra.mxu0 0.0
    %3653 = vmatprep.subr.mxu0 0.0
    %3654 = vmatpush1.msra.mxu0 0.0
    %3655 = vmatprep.subr.mxu0 0.0
    %3656 = vmatpush1.msra.mxu0 0.0
    %3657 = vmatprep.subr.mxu0 0.0
    %3658 = vmatpush1.msra.mxu0 0.0
    %3659 = vmatprep.subr.mxu0 0.0
    %3660 = vmatpush1.msra.mxu0 0.0
    %3661 = vmatprep.subr.mxu0 0.0
    %3662 = vmatpush1.msra.mxu0 0.0
    %3663 = vmatprep.subr.mxu0 0.0
    %3664 = vmatpush1.msra.mxu0 0.0
    %3665 = vmatprep.subr.mxu0 0.0
    %3666 = vmatpush1.msra.mxu0 0.0
    %3667 = vmatprep.subr.mxu0 0.0
    %3668 = vmatpush1.msra.mxu0 0.0
    %3669 = vmatprep.subr.mxu0 0.0
    %3670 = vmatpush1.msra.mxu0 0.0
    %3671 = vmatprep.subr.mxu0 0.0
    %3672 = vmatpush1.msra.mxu0 0.0
    %3673 = vmatprep.subr.mxu0 0.0
    %3674 = vmatpush1.msra.mxu0 0.0
    %3675 = vmatprep.subr.mxu0 0.0
    %3676 = vmatpush1.msra.mxu0 0.0
    %3677 = vmatprep.subr.mxu0 0.0
    %3678 = vmatpush1.msra.mxu0 0.0
    %3679 = vmatprep.subr.mxu0 0.0
    %3680 = vmatpush1.msra.mxu0 0.0
    %3681 = vmatprep.subr.mxu0 0.0
    %3682 = vmatpush1.msra.mxu0 0.0
    %3683 = vmatprep.subr.mxu0 0.0
    %3684 = vmatpush1.msra.mxu0 0.0
    %3685 = vmatprep.subr.mxu0 0.0
    %3686 = vmatpush1.msra.mxu0 0.0
    %3687 = vmatprep.subr.mxu0 0.0
    %3688 = vmatpush1.msra.mxu0 0.0
    %3689 = vmatprep.subr.mxu0 0.0
    %3690 = vmatpush1.msra.mxu0 0.0
    %3691 = vmatprep.subr.mxu0 0.0
    %3692 = vmatpush1.msra.mxu0 0.0
    %3693 = vmatprep.subr.mxu0 0.0
    %3694 = vmatpush1.msra.mxu0 0.0
    %3695 = vmatprep.subr.mxu0 0.0
    %3696 = vmatpush1.msra.mxu0 0.0
    %3697 = vmatprep.subr.mxu0 0.0
    %3698 = vmatpush1.msra.mxu0 0.0
    %3699 = vmatprep.subr.mxu0 0.0
    %3700 = vmatpush1.msra.mxu0 0.0
    %3701 = vmatprep.subr.mxu0 0.0
    %3702 = vmatpush1.msra.mxu0 0.0
    %3703 = vmatprep.subr.mxu0 0.0
    %3704 = vmatpush1.msra.mxu0 0.0
    %3705 = vmatprep.subr.mxu0 0.0
    %3706 = vmatpush1.msra.mxu0 0.0
    %3707 = vmatprep.subr.mxu0 0.0
    %3708 = vmatpush1.msra.mxu0 0.0
    %3709 = vmatprep.subr.mxu0 0.0
    %3710 = vmatpush1.msra.mxu0 0.0
    %3711 = vmatprep.subr.mxu0 0.0
    %3712 = vmatpush1.msra.mxu0 0.0
    %3713 = vmatprep.mubr.f32.mxu0 0.0
    %3714 = vmatmul.mubr.f32.gmra.mrb[0].mxu0 %v3645
    %v3715 = vpop.f32.mrb[0].mxu0
    %v3716 = vadd.f32 0.0, %v3715
    %v3717 = vpop.f32.mrb[0].mxu0
    %3718 = vdwg.mxu0
    %v3719 = vsel %vm314, %v861, 0
    %v3722 = vsel %vm327, %v3641, 0
    %3724 = vmatprep.subr.mxu0 0.0
    %3725 = vmatpush1.msra.mxu0 %v3722
    %3726 = vmatprep.subr.mxu0 0.0
    %3727 = vmatpush1.msra.mxu0 0.0
    %3728 = vmatprep.subr.mxu0 0.0
    %3729 = vmatpush1.msra.mxu0 0.0
    %3730 = vmatprep.subr.mxu0 0.0
    %3731 = vmatpush1.msra.mxu0 0.0
    %3732 = vmatprep.subr.mxu0 0.0
    %3733 = vmatpush1.msra.mxu0 0.0
    %3734 = vmatprep.subr.mxu0 0.0
    %3735 = vmatpush1.msra.mxu0 0.0
    %3736 = vmatprep.subr.mxu0 0.0
    %3737 = vmatpush1.msra.mxu0 0.0
    %3738 = vmatprep.subr.mxu0 0.0
    %3739 = vmatpush1.msra.mxu0 0.0
    %3740 = vmatprep.subr.mxu0 0.0
    %3741 = vmatpush1.msra.mxu0 0.0
    %3742 = vmatprep.subr.mxu0 0.0
    %3743 = vmatpush1.msra.mxu0 0.0
    %3744 = vmatprep.subr.mxu0 0.0
    %3745 = vmatpush1.msra.mxu0 0.0
    %3746 = vmatprep.subr.mxu0 0.0
    %3747 = vmatpush1.msra.mxu0 0.0
    %3748 = vmatprep.subr.mxu0 0.0
    %3749 = vmatpush1.msra.mxu0 0.0
    %3750 = vmatprep.subr.mxu0 0.0
    %3751 = vmatpush1.msra.mxu0 0.0
    %3752 = vmatprep.subr.mxu0 0.0
    %3753 = vmatpush1.msra.mxu0 0.0
    %3754 = vmatprep.subr.mxu0 0.0
    %3755 = vmatpush1.msra.mxu0 0.0
    %3756 = vmatprep.subr.mxu0 0.0
    %3757 = vmatpush1.msra.mxu0 0.0
    %3758 = vmatprep.subr.mxu0 0.0
    %3759 = vmatpush1.msra.mxu0 0.0
    %3760 = vmatprep.subr.mxu0 0.0
    %3761 = vmatpush1.msra.mxu0 0.0
    %3762 = vmatprep.subr.mxu0 0.0
    %3763 = vmatpush1.msra.mxu0 0.0
    %3764 = vmatprep.subr.mxu0 0.0
    %3765 = vmatpush1.msra.mxu0 0.0
    %3766 = vmatprep.subr.mxu0 0.0
    %3767 = vmatpush1.msra.mxu0 0.0
    %3768 = vmatprep.subr.mxu0 0.0
    %3769 = vmatpush1.msra.mxu0 0.0
    %3770 = vmatprep.subr.mxu0 0.0
    %3771 = vmatpush1.msra.mxu0 0.0
    %3772 = vmatprep.subr.mxu0 0.0
    %3773 = vmatpush1.msra.mxu0 0.0
    %3774 = vmatprep.subr.mxu0 0.0
    %3775 = vmatpush1.msra.mxu0 0.0
    %3776 = vmatprep.subr.mxu0 0.0
    %3777 = vmatpush1.msra.mxu0 0.0
    %3778 = vmatprep.subr.mxu0 0.0
    %3779 = vmatpush1.msra.mxu0 0.0
    %3780 = vmatprep.subr.mxu0 0.0
    %3781 = vmatpush1.msra.mxu0 0.0
    %3782 = vmatprep.subr.mxu0 0.0
    %3783 = vmatpush1.msra.mxu0 0.0
    %3784 = vmatprep.subr.mxu0 0.0
    %3785 = vmatpush1.msra.mxu0 0.0
    %3786 = vmatprep.subr.mxu0 0.0
    %3787 = vmatpush1.msra.mxu0 0.0
    %3788 = vmatprep.mubr.f32.mxu0 0.0
    %3789 = vmatmul.mubr.f32.gmra.mrb[0].mxu0 %v3719
    %v3790 = vpop.f32.mrb[0].mxu0
    %v3791 = vadd.f32 0.0, %v3790
    %v3792 = vpop.f32.mrb[0].mxu0
    %3793 = vdwg.mxu0
    %v3794 = vld [vmem:[#allocation13] sm:$0xff]
    %v3795 = vld [vmem:[#allocation13 + $0x8] sm:$0xff]
    %3796 = vmatprep.subr.mxu0 0.0
    %3797 = vmatpush1.msra.mxu0 %v3722
    %3798 = vmatprep.subr.mxu0 0.0
    %3799 = vmatpush1.msra.mxu0 0.0
    %3800 = vmatprep.subr.mxu0 0.0
    %3801 = vmatpush1.msra.mxu0 0.0
    %3802 = vmatprep.subr.mxu0 0.0
    %3803 = vmatpush1.msra.mxu0 0.0
    %3804 = vmatprep.subr.mxu0 0.0
    %3805 = vmatpush1.msra.mxu0 0.0
    %3806 = vmatprep.subr.mxu0 0.0
    %3807 = vmatpush1.msra.mxu0 0.0
    %3808 = vmatprep.subr.mxu0 0.0
    %3809 = vmatpush1.msra.mxu0 0.0
    %3810 = vmatprep.subr.mxu0 0.0
    %3811 = vmatpush1.msra.mxu0 0.0
    %3812 = vmatprep.subr.mxu0 0.0
    %3813 = vmatpush1.msra.mxu0 0.0
    %3814 = vmatprep.subr.mxu0 0.0
    %3815 = vmatpush1.msra.mxu0 0.0
    %3816 = vmatprep.subr.mxu0 0.0
    %3817 = vmatpush1.msra.mxu0 0.0
    %3818 = vmatprep.subr.mxu0 0.0
    %3819 = vmatpush1.msra.mxu0 0.0
    %3820 = vmatprep.subr.mxu0 0.0
    %3821 = vmatpush1.msra.mxu0 0.0
    %3822 = vmatprep.subr.mxu0 0.0
    %3823 = vmatpush1.msra.mxu0 0.0
    %3824 = vmatprep.subr.mxu0 0.0
    %3825 = vmatpush1.msra.mxu0 0.0
    %3826 = vmatprep.subr.mxu0 0.0
    %3827 = vmatpush1.msra.mxu0 0.0
    %3828 = vmatprep.subr.mxu0 0.0
    %3829 = vmatpush1.msra.mxu0 0.0
    %3830 = vmatprep.subr.mxu0 0.0
    %3831 = vmatpush1.msra.mxu0 0.0
    %3832 = vmatprep.subr.mxu0 0.0
    %3833 = vmatpush1.msra.mxu0 0.0
    %3834 = vmatprep.subr.mxu0 0.0
    %3835 = vmatpush1.msra.mxu0 0.0
    %3836 = vmatprep.subr.mxu0 0.0
    %3837 = vmatpush1.msra.mxu0 0.0
    %3838 = vmatprep.subr.mxu0 0.0
    %3839 = vmatpush1.msra.mxu0 0.0
    %3840 = vmatprep.subr.mxu0 0.0
    %3841 = vmatpush1.msra.mxu0 0.0
    %3842 = vmatprep.subr.mxu0 0.0
    %3843 = vmatpush1.msra.mxu0 0.0
    %3844 = vmatprep.subr.mxu0 0.0
    %3845 = vmatpush1.msra.mxu0 0.0
    %3846 = vmatprep.subr.mxu0 0.0
    %3847 = vmatpush1.msra.mxu0 0.0
    %3848 = vmatprep.subr.mxu0 0.0
    %3849 = vmatpush1.msra.mxu0 0.0
    %3850 = vmatprep.subr.mxu0 0.0
    %3851 = vmatpush1.msra.mxu0 0.0
    %3852 = vmatprep.subr.mxu0 0.0
    %3853 = vmatpush1.msra.mxu0 0.0
    %3854 = vmatprep.subr.mxu0 0.0
    %3855 = vmatpush1.msra.mxu0 0.0
    %3856 = vmatprep.subr.mxu0 0.0
    %3857 = vmatpush1.msra.mxu0 0.0
    %3858 = vmatprep.subr.mxu0 0.0
    %3859 = vmatpush1.msra.mxu0 0.0
    %3860 = vmatprep.mubr.f32.mxu0 0.0
    %3861 = vmatmul.mubr.f32.gmra.mrb[0].mxu0 %v3645
    %v3862 = vpop.f32.mrb[0].mxu0
    %v3863 = vadd.f32 0.0, %v3862
    %v3864 = vpop.f32.mrb[0].mxu0
    %3865 = vdwg.mxu0
    %s3866 = scalar_lea.vmem [#allocation13], 16
    %v3867 = vld [vmem:[%s3866] sm:$0xff]
    %v3868 = vld [vmem:[%s3866 + $0x8] sm:$0xff]
    %v3870 = vsel %vm1382, %v3863, 0
    %3872 = vmatprep.subr.mxu0 0.0
    %3873 = vmatpush1.msra.mxu0 %v3867
    %3874 = vmatprep.subr.mxu0 0.0
    %3875 = vmatpush1.msra.mxu0 %v3868
    %3876 = vmatprep.subr.mxu0 0.0
    %3877 = vmatpush1.msra.mxu0 0.0
    %3878 = vmatprep.subr.mxu0 0.0
    %3879 = vmatpush1.msra.mxu0 0.0
    %3880 = vmatprep.subr.mxu0 0.0
    %3881 = vmatpush1.msra.mxu0 0.0
    %3882 = vmatprep.subr.mxu0 0.0
    %3883 = vmatpush1.msra.mxu0 0.0
    %3884 = vmatprep.subr.mxu0 0.0
    %3885 = vmatpush1.msra.mxu0 0.0
    %3886 = vmatprep.subr.mxu0 0.0
    %3887 = vmatpush1.msra.mxu0 0.0
    %3888 = vmatprep.subr.mxu0 0.0
    %3889 = vmatpush1.msra.mxu0 0.0
    %3890 = vmatprep.subr.mxu0 0.0
    %3891 = vmatpush1.msra.mxu0 0.0
    %3892 = vmatprep.subr.mxu0 0.0
    %3893 = vmatpush1.msra.mxu0 0.0
    %3894 = vmatprep.subr.mxu0 0.0
    %3895 = vmatpush1.msra.mxu0 0.0
    %3896 = vmatprep.subr.mxu0 0.0
    %3897 = vmatpush1.msra.mxu0 0.0
    %3898 = vmatprep.subr.mxu0 0.0
    %3899 = vmatpush1.msra.mxu0 0.0
    %3900 = vmatprep.subr.mxu0 0.0
    %3901 = vmatpush1.msra.mxu0 0.0
    %3902 = vmatprep.subr.mxu0 0.0
    %3903 = vmatpush1.msra.mxu0 0.0
    %3904 = vmatprep.subr.mxu0 0.0
    %3905 = vmatpush1.msra.mxu0 0.0
    %3906 = vmatprep.subr.mxu0 0.0
    %3907 = vmatpush1.msra.mxu0 0.0
    %3908 = vmatprep.subr.mxu0 0.0
    %3909 = vmatpush1.msra.mxu0 0.0
    %3910 = vmatprep.subr.mxu0 0.0
    %3911 = vmatpush1.msra.mxu0 0.0
    %3912 = vmatprep.subr.mxu0 0.0
    %3913 = vmatpush1.msra.mxu0 0.0
    %3914 = vmatprep.subr.mxu0 0.0
    %3915 = vmatpush1.msra.mxu0 0.0
    %3916 = vmatprep.subr.mxu0 0.0
    %3917 = vmatpush1.msra.mxu0 0.0
    %3918 = vmatprep.subr.mxu0 0.0
    %3919 = vmatpush1.msra.mxu0 0.0
    %3920 = vmatprep.subr.mxu0 0.0
    %3921 = vmatpush1.msra.mxu0 0.0
    %3922 = vmatprep.subr.mxu0 0.0
    %3923 = vmatpush1.msra.mxu0 0.0
    %3924 = vmatprep.subr.mxu0 0.0
    %3925 = vmatpush1.msra.mxu0 0.0
    %3926 = vmatprep.subr.mxu0 0.0
    %3927 = vmatpush1.msra.mxu0 0.0
    %3928 = vmatprep.subr.mxu0 0.0
    %3929 = vmatpush1.msra.mxu0 0.0
    %3930 = vmatprep.subr.mxu0 0.0
    %3931 = vmatpush1.msra.mxu0 0.0
    %3932 = vmatprep.subr.mxu0 0.0
    %3933 = vmatpush1.msra.mxu0 0.0
    %3934 = vmatprep.subr.mxu0 0.0
    %3935 = vmatpush1.msra.mxu0 0.0
    %3936 = vmatprep.mubr.f32.mxu0 0.0
    %3937 = vmatmul.mubr.f32.gmra.mrb[0].mxu0 %v3870
    %v3938 = vpop.f32.mrb[0].mxu0
    %v3939 = vadd.f32 0.0, %v3938
    %v3940 = vpop.f32.mrb[0].mxu0
    %3941 = vdwg.mxu0
    %v3943 = vsel %vm1382, %v3791, 0
    %3945 = vmatprep.subr.mxu0 0.0
    %3946 = vmatpush1.msra.mxu0 %v3794
    %3947 = vmatprep.subr.mxu0 0.0
    %3948 = vmatpush1.msra.mxu0 %v3795
    %3949 = vmatprep.subr.mxu0 0.0
    %3950 = vmatpush1.msra.mxu0 0.0
    %3951 = vmatprep.subr.mxu0 0.0
    %3952 = vmatpush1.msra.mxu0 0.0
    %3953 = vmatprep.subr.mxu0 0.0
    %3954 = vmatpush1.msra.mxu0 0.0
    %3955 = vmatprep.subr.mxu0 0.0
    %3956 = vmatpush1.msra.mxu0 0.0
    %3957 = vmatprep.subr.mxu0 0.0
    %3958 = vmatpush1.msra.mxu0 0.0
    %3959 = vmatprep.subr.mxu0 0.0
    %3960 = vmatpush1.msra.mxu0 0.0
    %3961 = vmatprep.subr.mxu0 0.0
    %3962 = vmatpush1.msra.mxu0 0.0
    %3963 = vmatprep.subr.mxu0 0.0
    %3964 = vmatpush1.msra.mxu0 0.0
    %3965 = vmatprep.subr.mxu0 0.0
    %3966 = vmatpush1.msra.mxu0 0.0
    %3967 = vmatprep.subr.mxu0 0.0
    %3968 = vmatpush1.msra.mxu0 0.0
    %3969 = vmatprep.subr.mxu0 0.0
    %3970 = vmatpush1.msra.mxu0 0.0
    %3971 = vmatprep.subr.mxu0 0.0
    %3972 = vmatpush1.msra.mxu0 0.0
    %3973 = vmatprep.subr.mxu0 0.0
    %3974 = vmatpush1.msra.mxu0 0.0
    %3975 = vmatprep.subr.mxu0 0.0
    %3976 = vmatpush1.msra.mxu0 0.0
    %3977 = vmatprep.subr.mxu0 0.0
    %3978 = vmatpush1.msra.mxu0 0.0
    %3979 = vmatprep.subr.mxu0 0.0
    %3980 = vmatpush1.msra.mxu0 0.0
    %3981 = vmatprep.subr.mxu0 0.0
    %3982 = vmatpush1.msra.mxu0 0.0
    %3983 = vmatprep.subr.mxu0 0.0
    %3984 = vmatpush1.msra.mxu0 0.0
    %3985 = vmatprep.subr.mxu0 0.0
    %3986 = vmatpush1.msra.mxu0 0.0
    %3987 = vmatprep.subr.mxu0 0.0
    %3988 = vmatpush1.msra.mxu0 0.0
    %3989 = vmatprep.subr.mxu0 0.0
    %3990 = vmatpush1.msra.mxu0 0.0
    %3991 = vmatprep.subr.mxu0 0.0
    %3992 = vmatpush1.msra.mxu0 0.0
    %3993 = vmatprep.subr.mxu0 0.0
    %3994 = vmatpush1.msra.mxu0 0.0
    %3995 = vmatprep.subr.mxu0 0.0
    %3996 = vmatpush1.msra.mxu0 0.0
    %3997 = vmatprep.subr.mxu0 0.0
    %3998 = vmatpush1.msra.mxu0 0.0
    %3999 = vmatprep.subr.mxu0 0.0
    %4000 = vmatpush1.msra.mxu0 0.0
    %4001 = vmatprep.subr.mxu0 0.0
    %4002 = vmatpush1.msra.mxu0 0.0
    %4003 = vmatprep.subr.mxu0 0.0
    %4004 = vmatpush1.msra.mxu0 0.0
    %4005 = vmatprep.subr.mxu0 0.0
    %4006 = vmatpush1.msra.mxu0 0.0
    %4007 = vmatprep.subr.mxu0 0.0
    %4008 = vmatpush1.msra.mxu0 0.0
    %4009 = vmatprep.mubr.f32.mxu0 0.0
    %4010 = vmatmul.mubr.f32.gmra.mrb[0].mxu0 %v3943
    %v4011 = vpop.f32.mrb[0].mxu0
    %v4012 = vadd.f32 %v3939, %v4011
    %v4013 = vpop.f32.mrb[0].mxu0
    %4014 = vdwg.mxu0
    %v4015 = vsel %vm314, %v1198, 0
    %4017 = vmatprep.subr.mxu0 0.0
    %4018 = vmatpush1.msra.mxu0 %v3722
    %4019 = vmatprep.subr.mxu0 0.0
    %4020 = vmatpush1.msra.mxu0 0.0
    %4021 = vmatprep.subr.mxu0 0.0
    %4022 = vmatpush1.msra.mxu0 0.0
    %4023 = vmatprep.subr.mxu0 0.0
    %4024 = vmatpush1.msra.mxu0 0.0
    %4025 = vmatprep.subr.mxu0 0.0
    %4026 = vmatpush1.msra.mxu0 0.0
    %4027 = vmatprep.subr.mxu0 0.0
    %4028 = vmatpush1.msra.mxu0 0.0
    %4029 = vmatprep.subr.mxu0 0.0
    %4030 = vmatpush1.msra.mxu0 0.0
    %4031 = vmatprep.subr.mxu0 0.0
    %4032 = vmatpush1.msra.mxu0 0.0
    %4033 = vmatprep.subr.mxu0 0.0
    %4034 = vmatpush1.msra.mxu0 0.0
    %4035 = vmatprep.subr.mxu0 0.0
    %4036 = vmatpush1.msra.mxu0 0.0
    %4037 = vmatprep.subr.mxu0 0.0
    %4038 = vmatpush1.msra.mxu0 0.0
    %4039 = vmatprep.subr.mxu0 0.0
    %4040 = vmatpush1.msra.mxu0 0.0
    %4041 = vmatprep.subr.mxu0 0.0
    %4042 = vmatpush1.msra.mxu0 0.0
    %4043 = vmatprep.subr.mxu0 0.0
    %4044 = vmatpush1.msra.mxu0 0.0
    %4045 = vmatprep.subr.mxu0 0.0
    %4046 = vmatpush1.msra.mxu0 0.0
    %4047 = vmatprep.subr.mxu0 0.0
    %4048 = vmatpush1.msra.mxu0 0.0
    %4049 = vmatprep.subr.mxu0 0.0
    %4050 = vmatpush1.msra.mxu0 0.0
    %4051 = vmatprep.subr.mxu0 0.0
    %4052 = vmatpush1.msra.mxu0 0.0
    %4053 = vmatprep.subr.mxu0 0.0
    %4054 = vmatpush1.msra.mxu0 0.0
    %4055 = vmatprep.subr.mxu0 0.0
    %4056 = vmatpush1.msra.mxu0 0.0
    %4057 = vmatprep.subr.mxu0 0.0
    %4058 = vmatpush1.msra.mxu0 0.0
    %4059 = vmatprep.subr.mxu0 0.0
    %4060 = vmatpush1.msra.mxu0 0.0
    %4061 = vmatprep.subr.mxu0 0.0
    %4062 = vmatpush1.msra.mxu0 0.0
    %4063 = vmatprep.subr.mxu0 0.0
    %4064 = vmatpush1.msra.mxu0 0.0
    %4065 = vmatprep.subr.mxu0 0.0
    %4066 = vmatpush1.msra.mxu0 0.0
    %4067 = vmatprep.subr.mxu0 0.0
    %4068 = vmatpush1.msra.mxu0 0.0
    %4069 = vmatprep.subr.mxu0 0.0
    %4070 = vmatpush1.msra.mxu0 0.0
    %4071 = vmatprep.subr.mxu0 0.0
    %4072 = vmatpush1.msra.mxu0 0.0
    %4073 = vmatprep.subr.mxu0 0.0
    %4074 = vmatpush1.msra.mxu0 0.0
    %4075 = vmatprep.subr.mxu0 0.0
    %4076 = vmatpush1.msra.mxu0 0.0
    %4077 = vmatprep.subr.mxu0 0.0
    %4078 = vmatpush1.msra.mxu0 0.0
    %4079 = vmatprep.subr.mxu0 0.0
    %4080 = vmatpush1.msra.mxu0 0.0
    %4081 = vmatprep.mubr.f32.mxu0 0.0
    %4082 = vmatmul.mubr.f32.gmra.mrb[0].mxu0 %v4015
    %v4083 = vpop.f32.mrb[0].mxu0
    %v4084 = vadd.f32 0.0, %v4083
    %v4085 = vpop.f32.mrb[0].mxu0
    %4086 = vdwg.mxu0
    %s4087 = scalar_lea.vmem [#allocation13], 32
    %v4088 = vld [vmem:[%s4087] sm:$0xff]
    %v4089 = vld [vmem:[%s4087 + $0x8] sm:$0xff]
    %v4091 = vsel %vm1382, %v4084, 0
    %4093 = vmatprep.subr.mxu0 0.0
    %4094 = vmatpush1.msra.mxu0 %v4088
    %4095 = vmatprep.subr.mxu0 0.0
    %4096 = vmatpush1.msra.mxu0 %v4089
    %4097 = vmatprep.subr.mxu0 0.0
    %4098 = vmatpush1.msra.mxu0 0.0
    %4099 = vmatprep.subr.mxu0 0.0
    %4100 = vmatpush1.msra.mxu0 0.0
    %4101 = vmatprep.subr.mxu0 0.0
    %4102 = vmatpush1.msra.mxu0 0.0
    %4103 = vmatprep.subr.mxu0 0.0
    %4104 = vmatpush1.msra.mxu0 0.0
    %4105 = vmatprep.subr.mxu0 0.0
    %4106 = vmatpush1.msra.mxu0 0.0
    %4107 = vmatprep.subr.mxu0 0.0
    %4108 = vmatpush1.msra.mxu0 0.0
    %4109 = vmatprep.subr.mxu0 0.0
    %4110 = vmatpush1.msra.mxu0 0.0
    %4111 = vmatprep.subr.mxu0 0.0
    %4112 = vmatpush1.msra.mxu0 0.0
    %4113 = vmatprep.subr.mxu0 0.0
    %4114 = vmatpush1.msra.mxu0 0.0
    %4115 = vmatprep.subr.mxu0 0.0
    %4116 = vmatpush1.msra.mxu0 0.0
    %4117 = vmatprep.subr.mxu0 0.0
    %4118 = vmatpush1.msra.mxu0 0.0
    %4119 = vmatprep.subr.mxu0 0.0
    %4120 = vmatpush1.msra.mxu0 0.0
    %4121 = vmatprep.subr.mxu0 0.0
    %4122 = vmatpush1.msra.mxu0 0.0
    %4123 = vmatprep.subr.mxu0 0.0
    %4124 = vmatpush1.msra.mxu0 0.0
    %4125 = vmatprep.subr.mxu0 0.0
    %4126 = vmatpush1.msra.mxu0 0.0
    %4127 = vmatprep.subr.mxu0 0.0
    %4128 = vmatpush1.msra.mxu0 0.0
    %4129 = vmatprep.subr.mxu0 0.0
    %4130 = vmatpush1.msra.mxu0 0.0
    %4131 = vmatprep.subr.mxu0 0.0
    %4132 = vmatpush1.msra.mxu0 0.0
    %4133 = vmatprep.subr.mxu0 0.0
    %4134 = vmatpush1.msra.mxu0 0.0
    %4135 = vmatprep.subr.mxu0 0.0
    %4136 = vmatpush1.msra.mxu0 0.0
    %4137 = vmatprep.subr.mxu0 0.0
    %4138 = vmatpush1.msra.mxu0 0.0
    %4139 = vmatprep.subr.mxu0 0.0
    %4140 = vmatpush1.msra.mxu0 0.0
    %4141 = vmatprep.subr.mxu0 0.0
    %4142 = vmatpush1.msra.mxu0 0.0
    %4143 = vmatprep.subr.mxu0 0.0
    %4144 = vmatpush1.msra.mxu0 0.0
    %4145 = vmatprep.subr.mxu0 0.0
    %4146 = vmatpush1.msra.mxu0 0.0
    %4147 = vmatprep.subr.mxu0 0.0
    %4148 = vmatpush1.msra.mxu0 0.0
    %4149 = vmatprep.subr.mxu0 0.0
    %4150 = vmatpush1.msra.mxu0 0.0
    %4151 = vmatprep.subr.mxu0 0.0
    %4152 = vmatpush1.msra.mxu0 0.0
    %4153 = vmatprep.subr.mxu0 0.0
    %4154 = vmatpush1.msra.mxu0 0.0
    %4155 = vmatprep.subr.mxu0 0.0
    %4156 = vmatpush1.msra.mxu0 0.0
    %4157 = vmatprep.mubr.f32.mxu0 0.0
    %4158 = vmatmul.mubr.f32.gmra.mrb[0].mxu0 %v4091
    %v4159 = vpop.f32.mrb[0].mxu0
    %v4160 = vadd.f32 0.0, %v4159
    %v4161 = vpop.f32.mrb[0].mxu0
    %4162 = vdwg.mxu0
    %v4163 = vadd.f32 %v4012, %v4160
    %v4164 = vld [vmem:[%s16] sm:$0x1]
    %v4166 = vlaneseq
    %v4167 = vshrl.u32 %v4166, 7
    %v4168 = vsub.s32 0, %v4167
    %v4169 = vrot.slane %v4164, %v4168
    %v4171 = vadd.f32 %v4163, %v4169
    %v4172 = vadd.f32 %v4171, %v3716
    %v4173 = vmax.f32 %v4172, 0.0
    %v4174 = vsel %vm1022, %v209, 0
    %v4177 = vsel %vm1029, %v4173, 0
    %4179 = vmatprep.subr.mxu0 0.0
    %4180 = vmatpush1.msra.mxu0 %v4177
    %4181 = vmatprep.subr.mxu0 0.0
    %4182 = vmatpush1.msra.mxu0 0.0
    %4183 = vmatprep.subr.mxu0 0.0
    %4184 = vmatpush1.msra.mxu0 0.0
    %4185 = vmatprep.subr.mxu0 0.0
    %4186 = vmatpush1.msra.mxu0 0.0
    %4187 = vmatprep.subr.mxu0 0.0
    %4188 = vmatpush1.msra.mxu0 0.0
    %4189 = vmatprep.subr.mxu0 0.0
    %4190 = vmatpush1.msra.mxu0 0.0
    %4191 = vmatprep.subr.mxu0 0.0
    %4192 = vmatpush1.msra.mxu0 0.0
    %4193 = vmatprep.subr.mxu0 0.0
    %4194 = vmatpush1.msra.mxu0 0.0
    %4195 = vmatprep.subr.mxu0 0.0
    %4196 = vmatpush1.msra.mxu0 0.0
    %4197 = vmatprep.subr.mxu0 0.0
    %4198 = vmatpush1.msra.mxu0 0.0
    %4199 = vmatprep.subr.mxu0 0.0
    %4200 = vmatpush1.msra.mxu0 0.0
    %4201 = vmatprep.subr.mxu0 0.0
    %4202 = vmatpush1.msra.mxu0 0.0
    %4203 = vmatprep.subr.mxu0 0.0
    %4204 = vmatpush1.msra.mxu0 0.0
    %4205 = vmatprep.subr.mxu0 0.0
    %4206 = vmatpush1.msra.mxu0 0.0
    %4207 = vmatprep.subr.mxu0 0.0
    %4208 = vmatpush1.msra.mxu0 0.0
    %4209 = vmatprep.subr.mxu0 0.0
    %4210 = vmatpush1.msra.mxu0 0.0
    %4211 = vmatprep.subr.mxu0 0.0
    %4212 = vmatpush1.msra.mxu0 0.0
    %4213 = vmatprep.subr.mxu0 0.0
    %4214 = vmatpush1.msra.mxu0 0.0
    %4215 = vmatprep.subr.mxu0 0.0
    %4216 = vmatpush1.msra.mxu0 0.0
    %4217 = vmatprep.subr.mxu0 0.0
    %4218 = vmatpush1.msra.mxu0 0.0
    %4219 = vmatprep.subr.mxu0 0.0
    %4220 = vmatpush1.msra.mxu0 0.0
    %4221 = vmatprep.subr.mxu0 0.0
    %4222 = vmatpush1.msra.mxu0 0.0
    %4223 = vmatprep.subr.mxu0 0.0
    %4224 = vmatpush1.msra.mxu0 0.0
    %4225 = vmatprep.subr.mxu0 0.0
    %4226 = vmatpush1.msra.mxu0 0.0
    %4227 = vmatprep.subr.mxu0 0.0
    %4228 = vmatpush1.msra.mxu0 0.0
    %4229 = vmatprep.subr.mxu0 0.0
    %4230 = vmatpush1.msra.mxu0 0.0
    %4231 = vmatprep.subr.mxu0 0.0
    %4232 = vmatpush1.msra.mxu0 0.0
    %4233 = vmatprep.subr.mxu0 0.0
    %4234 = vmatpush1.msra.mxu0 0.0
    %4235 = vmatprep.subr.mxu0 0.0
    %4236 = vmatpush1.msra.mxu0 0.0
    %4237 = vmatprep.subr.mxu0 0.0
    %4238 = vmatpush1.msra.mxu0 0.0
    %4239 = vmatprep.subr.mxu0 0.0
    %4240 = vmatpush1.msra.mxu0 0.0
    %4241 = vmatprep.subr.mxu0 0.0
    %4242 = vmatpush1.msra.mxu0 0.0
    %4243 = vmatprep.mubr.f32.mxu0 0.0
    %4244 = vmatmul.mubr.f32.gmra.mrb[0].mxu0 %v4174
    %v4245 = vpop.f32.mrb[0].mxu0
    %v4246 = vadd.f32 0.0, %v4245
    %v4247 = vpop.f32.mrb[0].mxu0
    %4248 = vdwg.mxu0
    %v4249 = vld [vmem:[#allocation14] sm:$0xff]
    %v4250 = vld [vmem:[#allocation14 + $0x8] sm:$0xff]
    %s4251 = scalar_lea.vmem [#allocation14], 16
    %v4252 = vld [vmem:[%s4251] sm:$0xff]
    %v4253 = vld [vmem:[%s4251 + $0x8] sm:$0xff]
    %v4254 = vsel %vm1382, %v4173, 0
    %4256 = vmatprep.subr.mxu0 0.0
    %4257 = vmatpush1.msra.mxu0 %v4252
    %4258 = vmatprep.subr.mxu0 0.0
    %4259 = vmatpush1.msra.mxu0 %v4253
    %4260 = vmatprep.subr.mxu0 0.0
    %4261 = vmatpush1.msra.mxu0 0.0
    %4262 = vmatprep.subr.mxu0 0.0
    %4263 = vmatpush1.msra.mxu0 0.0
    %4264 = vmatprep.subr.mxu0 0.0
    %4265 = vmatpush1.msra.mxu0 0.0
    %4266 = vmatprep.subr.mxu0 0.0
    %4267 = vmatpush1.msra.mxu0 0.0
    %4268 = vmatprep.subr.mxu0 0.0
    %4269 = vmatpush1.msra.mxu0 0.0
    %4270 = vmatprep.subr.mxu0 0.0
    %4271 = vmatpush1.msra.mxu0 0.0
    %4272 = vmatprep.subr.mxu0 0.0
    %4273 = vmatpush1.msra.mxu0 0.0
    %4274 = vmatprep.subr.mxu0 0.0
    %4275 = vmatpush1.msra.mxu0 0.0
    %4276 = vmatprep.subr.mxu0 0.0
    %4277 = vmatpush1.msra.mxu0 0.0
    %4278 = vmatprep.subr.mxu0 0.0
    %4279 = vmatpush1.msra.mxu0 0.0
    %4280 = vmatprep.subr.mxu0 0.0
    %4281 = vmatpush1.msra.mxu0 0.0
    %4282 = vmatprep.subr.mxu0 0.0
    %4283 = vmatpush1.msra.mxu0 0.0
    %4284 = vmatprep.subr.mxu0 0.0
    %4285 = vmatpush1.msra.mxu0 0.0
    %4286 = vmatprep.subr.mxu0 0.0
    %4287 = vmatpush1.msra.mxu0 0.0
    %4288 = vmatprep.subr.mxu0 0.0
    %4289 = vmatpush1.msra.mxu0 0.0
    %4290 = vmatprep.subr.mxu0 0.0
    %4291 = vmatpush1.msra.mxu0 0.0
    %4292 = vmatprep.subr.mxu0 0.0
    %4293 = vmatpush1.msra.mxu0 0.0
    %4294 = vmatprep.subr.mxu0 0.0
    %4295 = vmatpush1.msra.mxu0 0.0
    %4296 = vmatprep.subr.mxu0 0.0
    %4297 = vmatpush1.msra.mxu0 0.0
    %4298 = vmatprep.subr.mxu0 0.0
    %4299 = vmatpush1.msra.mxu0 0.0
    %4300 = vmatprep.subr.mxu0 0.0
    %4301 = vmatpush1.msra.mxu0 0.0
    %4302 = vmatprep.subr.mxu0 0.0
    %4303 = vmatpush1.msra.mxu0 0.0
    %4304 = vmatprep.subr.mxu0 0.0
    %4305 = vmatpush1.msra.mxu0 0.0
    %4306 = vmatprep.subr.mxu0 0.0
    %4307 = vmatpush1.msra.mxu0 0.0
    %4308 = vmatprep.subr.mxu0 0.0
    %4309 = vmatpush1.msra.mxu0 0.0
    %4310 = vmatprep.subr.mxu0 0.0
    %4311 = vmatpush1.msra.mxu0 0.0
    %4312 = vmatprep.subr.mxu0 0.0
    %4313 = vmatpush1.msra.mxu0 0.0
    %4314 = vmatprep.subr.mxu0 0.0
    %4315 = vmatpush1.msra.mxu0 0.0
    %4316 = vmatprep.subr.mxu0 0.0
    %4317 = vmatpush1.msra.mxu0 0.0
    %4318 = vmatprep.subr.mxu0 0.0
    %4319 = vmatpush1.msra.mxu0 0.0
    %4320 = vmatprep.mubr.f32.mxu0 0.0
    %4321 = vmatmul.mubr.f32.gmra.mrb[0].mxu0 %v4254
    %v4322 = vpop.f32.mrb[0].mxu0
    %v4323 = vadd.f32 0.0, %v4322
    %v4324 = vpop.f32.mrb[0].mxu0
    %4325 = vdwg.mxu0
    %v4327 = vsel %vm1382, %v4246, 0
    %4329 = vmatprep.subr.mxu0 0.0
    %4330 = vmatpush1.msra.mxu0 %v4249
    %4331 = vmatprep.subr.mxu0 0.0
    %4332 = vmatpush1.msra.mxu0 %v4250
    %4333 = vmatprep.subr.mxu0 0.0
    %4334 = vmatpush1.msra.mxu0 0.0
    %4335 = vmatprep.subr.mxu0 0.0
    %4336 = vmatpush1.msra.mxu0 0.0
    %4337 = vmatprep.subr.mxu0 0.0
    %4338 = vmatpush1.msra.mxu0 0.0
    %4339 = vmatprep.subr.mxu0 0.0
    %4340 = vmatpush1.msra.mxu0 0.0
    %4341 = vmatprep.subr.mxu0 0.0
    %4342 = vmatpush1.msra.mxu0 0.0
    %4343 = vmatprep.subr.mxu0 0.0
    %4344 = vmatpush1.msra.mxu0 0.0
    %4345 = vmatprep.subr.mxu0 0.0
    %4346 = vmatpush1.msra.mxu0 0.0
    %4347 = vmatprep.subr.mxu0 0.0
    %4348 = vmatpush1.msra.mxu0 0.0
    %4349 = vmatprep.subr.mxu0 0.0
    %4350 = vmatpush1.msra.mxu0 0.0
    %4351 = vmatprep.subr.mxu0 0.0
    %4352 = vmatpush1.msra.mxu0 0.0
    %4353 = vmatprep.subr.mxu0 0.0
    %4354 = vmatpush1.msra.mxu0 0.0
    %4355 = vmatprep.subr.mxu0 0.0
    %4356 = vmatpush1.msra.mxu0 0.0
    %4357 = vmatprep.subr.mxu0 0.0
    %4358 = vmatpush1.msra.mxu0 0.0
    %4359 = vmatprep.subr.mxu0 0.0
    %4360 = vmatpush1.msra.mxu0 0.0
    %4361 = vmatprep.subr.mxu0 0.0
    %4362 = vmatpush1.msra.mxu0 0.0
    %4363 = vmatprep.subr.mxu0 0.0
    %4364 = vmatpush1.msra.mxu0 0.0
    %4365 = vmatprep.subr.mxu0 0.0
    %4366 = vmatpush1.msra.mxu0 0.0
    %4367 = vmatprep.subr.mxu0 0.0
    %4368 = vmatpush1.msra.mxu0 0.0
    %4369 = vmatprep.subr.mxu0 0.0
    %4370 = vmatpush1.msra.mxu0 0.0
    %4371 = vmatprep.subr.mxu0 0.0
    %4372 = vmatpush1.msra.mxu0 0.0
    %4373 = vmatprep.subr.mxu0 0.0
    %4374 = vmatpush1.msra.mxu0 0.0
    %4375 = vmatprep.subr.mxu0 0.0
    %4376 = vmatpush1.msra.mxu0 0.0
    %4377 = vmatprep.subr.mxu0 0.0
    %4378 = vmatpush1.msra.mxu0 0.0
    %4379 = vmatprep.subr.mxu0 0.0
    %4380 = vmatpush1.msra.mxu0 0.0
    %4381 = vmatprep.subr.mxu0 0.0
    %4382 = vmatpush1.msra.mxu0 0.0
    %4383 = vmatprep.subr.mxu0 0.0
    %4384 = vmatpush1.msra.mxu0 0.0
    %4385 = vmatprep.subr.mxu0 0.0
    %4386 = vmatpush1.msra.mxu0 0.0
    %4387 = vmatprep.subr.mxu0 0.0
    %4388 = vmatpush1.msra.mxu0 0.0
    %4389 = vmatprep.subr.mxu0 0.0
    %4390 = vmatpush1.msra.mxu0 0.0
    %4391 = vmatprep.subr.mxu0 0.0
    %4392 = vmatpush1.msra.mxu0 0.0
    %4393 = vmatprep.mubr.f32.mxu0 0.0
    %4394 = vmatmul.mubr.f32.gmra.mrb[0].mxu0 %v4327
    %v4395 = vpop.f32.mrb[0].mxu0
    %v4396 = vadd.f32 %v4323, %v4395
    %v4397 = vpop.f32.mrb[0].mxu0
    %4398 = vdwg.mxu0
    %v4399 = vsel %vm1022, %v528, 0
    %4401 = vmatprep.subr.mxu0 0.0
    %4402 = vmatpush1.msra.mxu0 %v4177
    %4403 = vmatprep.subr.mxu0 0.0
    %4404 = vmatpush1.msra.mxu0 0.0
    %4405 = vmatprep.subr.mxu0 0.0
    %4406 = vmatpush1.msra.mxu0 0.0
    %4407 = vmatprep.subr.mxu0 0.0
    %4408 = vmatpush1.msra.mxu0 0.0
    %4409 = vmatprep.subr.mxu0 0.0
    %4410 = vmatpush1.msra.mxu0 0.0
    %4411 = vmatprep.subr.mxu0 0.0
    %4412 = vmatpush1.msra.mxu0 0.0
    %4413 = vmatprep.subr.mxu0 0.0
    %4414 = vmatpush1.msra.mxu0 0.0
    %4415 = vmatprep.subr.mxu0 0.0
    %4416 = vmatpush1.msra.mxu0 0.0
    %4417 = vmatprep.subr.mxu0 0.0
    %4418 = vmatpush1.msra.mxu0 0.0
    %4419 = vmatprep.subr.mxu0 0.0
    %4420 = vmatpush1.msra.mxu0 0.0
    %4421 = vmatprep.subr.mxu0 0.0
    %4422 = vmatpush1.msra.mxu0 0.0
    %4423 = vmatprep.subr.mxu0 0.0
    %4424 = vmatpush1.msra.mxu0 0.0
    %4425 = vmatprep.subr.mxu0 0.0
    %4426 = vmatpush1.msra.mxu0 0.0
    %4427 = vmatprep.subr.mxu0 0.0
    %4428 = vmatpush1.msra.mxu0 0.0
    %4429 = vmatprep.subr.mxu0 0.0
    %4430 = vmatpush1.msra.mxu0 0.0
    %4431 = vmatprep.subr.mxu0 0.0
    %4432 = vmatpush1.msra.mxu0 0.0
    %4433 = vmatprep.subr.mxu0 0.0
    %4434 = vmatpush1.msra.mxu0 0.0
    %4435 = vmatprep.subr.mxu0 0.0
    %4436 = vmatpush1.msra.mxu0 0.0
    %4437 = vmatprep.subr.mxu0 0.0
    %4438 = vmatpush1.msra.mxu0 0.0
    %4439 = vmatprep.subr.mxu0 0.0
    %4440 = vmatpush1.msra.mxu0 0.0
    %4441 = vmatprep.subr.mxu0 0.0
    %4442 = vmatpush1.msra.mxu0 0.0
    %4443 = vmatprep.subr.mxu0 0.0
    %4444 = vmatpush1.msra.mxu0 0.0
    %4445 = vmatprep.subr.mxu0 0.0
    %4446 = vmatpush1.msra.mxu0 0.0
    %4447 = vmatprep.subr.mxu0 0.0
    %4448 = vmatpush1.msra.mxu0 0.0
    %4449 = vmatprep.subr.mxu0 0.0
    %4450 = vmatpush1.msra.mxu0 0.0
    %4451 = vmatprep.subr.mxu0 0.0
    %4452 = vmatpush1.msra.mxu0 0.0
    %4453 = vmatprep.subr.mxu0 0.0
    %4454 = vmatpush1.msra.mxu0 0.0
    %4455 = vmatprep.subr.mxu0 0.0
    %4456 = vmatpush1.msra.mxu0 0.0
    %4457 = vmatprep.subr.mxu0 0.0
    %4458 = vmatpush1.msra.mxu0 0.0
    %4459 = vmatprep.subr.mxu0 0.0
    %4460 = vmatpush1.msra.mxu0 0.0
    %4461 = vmatprep.subr.mxu0 0.0
    %4462 = vmatpush1.msra.mxu0 0.0
    %4463 = vmatprep.subr.mxu0 0.0
    %4464 = vmatpush1.msra.mxu0 0.0
    %4465 = vmatprep.mubr.f32.mxu0 0.0
    %4466 = vmatmul.mubr.f32.gmra.mrb[0].mxu0 %v4399
    %v4467 = vpop.f32.mrb[0].mxu0
    %v4468 = vadd.f32 0.0, %v4467
    %v4469 = vpop.f32.mrb[0].mxu0
    %4470 = vdwg.mxu0
    %s4471 = scalar_lea.vmem [#allocation14], 32
    %v4472 = vld [vmem:[%s4471] sm:$0xff]
    %v4473 = vld [vmem:[%s4471 + $0x8] sm:$0xff]
    %v4475 = vsel %vm1382, %v4468, 0
    %4477 = vmatprep.subr.mxu0 0.0
    %4478 = vmatpush1.msra.mxu0 %v4472
    %4479 = vmatprep.subr.mxu0 0.0
    %4480 = vmatpush1.msra.mxu0 %v4473
    %4481 = vmatprep.subr.mxu0 0.0
    %4482 = vmatpush1.msra.mxu0 0.0
    %4483 = vmatprep.subr.mxu0 0.0
    %4484 = vmatpush1.msra.mxu0 0.0
    %4485 = vmatprep.subr.mxu0 0.0
    %4486 = vmatpush1.msra.mxu0 0.0
    %4487 = vmatprep.subr.mxu0 0.0
    %4488 = vmatpush1.msra.mxu0 0.0
    %4489 = vmatprep.subr.mxu0 0.0
    %4490 = vmatpush1.msra.mxu0 0.0
    %4491 = vmatprep.subr.mxu0 0.0
    %4492 = vmatpush1.msra.mxu0 0.0
    %4493 = vmatprep.subr.mxu0 0.0
    %4494 = vmatpush1.msra.mxu0 0.0
    %4495 = vmatprep.subr.mxu0 0.0
    %4496 = vmatpush1.msra.mxu0 0.0
    %4497 = vmatprep.subr.mxu0 0.0
    %4498 = vmatpush1.msra.mxu0 0.0
    %4499 = vmatprep.subr.mxu0 0.0
    %4500 = vmatpush1.msra.mxu0 0.0
    %4501 = vmatprep.subr.mxu0 0.0
    %4502 = vmatpush1.msra.mxu0 0.0
    %4503 = vmatprep.subr.mxu0 0.0
    %4504 = vmatpush1.msra.mxu0 0.0
    %4505 = vmatprep.subr.mxu0 0.0
    %4506 = vmatpush1.msra.mxu0 0.0
    %4507 = vmatprep.subr.mxu0 0.0
    %4508 = vmatpush1.msra.mxu0 0.0
    %4509 = vmatprep.subr.mxu0 0.0
    %4510 = vmatpush1.msra.mxu0 0.0
    %4511 = vmatprep.subr.mxu0 0.0
    %4512 = vmatpush1.msra.mxu0 0.0
    %4513 = vmatprep.subr.mxu0 0.0
    %4514 = vmatpush1.msra.mxu0 0.0
    %4515 = vmatprep.subr.mxu0 0.0
    %4516 = vmatpush1.msra.mxu0 0.0
    %4517 = vmatprep.subr.mxu0 0.0
    %4518 = vmatpush1.msra.mxu0 0.0
    %4519 = vmatprep.subr.mxu0 0.0
    %4520 = vmatpush1.msra.mxu0 0.0
    %4521 = vmatprep.subr.mxu0 0.0
    %4522 = vmatpush1.msra.mxu0 0.0
    %4523 = vmatprep.subr.mxu0 0.0
    %4524 = vmatpush1.msra.mxu0 0.0
    %4525 = vmatprep.subr.mxu0 0.0
    %4526 = vmatpush1.msra.mxu0 0.0
    %4527 = vmatprep.subr.mxu0 0.0
    %4528 = vmatpush1.msra.mxu0 0.0
    %4529 = vmatprep.subr.mxu0 0.0
    %4530 = vmatpush1.msra.mxu0 0.0
    %4531 = vmatprep.subr.mxu0 0.0
    %4532 = vmatpush1.msra.mxu0 0.0
    %4533 = vmatprep.subr.mxu0 0.0
    %4534 = vmatpush1.msra.mxu0 0.0
    %4535 = vmatprep.subr.mxu0 0.0
    %4536 = vmatpush1.msra.mxu0 0.0
    %4537 = vmatprep.subr.mxu0 0.0
    %4538 = vmatpush1.msra.mxu0 0.0
    %4539 = vmatprep.subr.mxu0 0.0
    %4540 = vmatpush1.msra.mxu0 0.0
    %4541 = vmatprep.mubr.f32.mxu0 0.0
    %4542 = vmatmul.mubr.f32.gmra.mrb[0].mxu0 %v4475
    %v4543 = vpop.f32.mrb[0].mxu0
    %v4544 = vadd.f32 0.0, %v4543
    %v4545 = vpop.f32.mrb[0].mxu0
    %4546 = vdwg.mxu0
    %v4547 = vadd.f32 %v4396, %v4544
    %v4548 = vld [vmem:[%s18] sm:$0x1]
    %v4550 = vlaneseq
    %v4551 = vshrl.u32 %v4550, 7
    %v4552 = vsub.s32 0, %v4551
    %v4553 = vrot.slane %v4548, %v4552
    %v4555 = vadd.f32 %v4547, %v4553
    %v4556 = vmax.f32 %v4555, 0.0
    %4558 = vrot.lane.b32.xlu0 %v4555, 96
    %v4559 = vpop.permute.xlu0 %4558
    %v4560 = vsel %vm1022, %v756, 0
    %v4562 = vsel %vm1029, %v4559, 0
    %4564 = vmatprep.subr.mxu0 0.0
    %4565 = vmatpush1.msra.mxu0 %v4562
    %4566 = vmatprep.subr.mxu0 0.0
    %4567 = vmatpush1.msra.mxu0 0.0
    %4568 = vmatprep.subr.mxu0 0.0
    %4569 = vmatpush1.msra.mxu0 0.0
    %4570 = vmatprep.subr.mxu0 0.0
    %4571 = vmatpush1.msra.mxu0 0.0
    %4572 = vmatprep.subr.mxu0 0.0
    %4573 = vmatpush1.msra.mxu0 0.0
    %4574 = vmatprep.subr.mxu0 0.0
    %4575 = vmatpush1.msra.mxu0 0.0
    %4576 = vmatprep.subr.mxu0 0.0
    %4577 = vmatpush1.msra.mxu0 0.0
    %4578 = vmatprep.subr.mxu0 0.0
    %4579 = vmatpush1.msra.mxu0 0.0
    %4580 = vmatprep.subr.mxu0 0.0
    %4581 = vmatpush1.msra.mxu0 0.0
    %4582 = vmatprep.subr.mxu0 0.0
    %4583 = vmatpush1.msra.mxu0 0.0
    %4584 = vmatprep.subr.mxu0 0.0
    %4585 = vmatpush1.msra.mxu0 0.0
    %4586 = vmatprep.subr.mxu0 0.0
    %4587 = vmatpush1.msra.mxu0 0.0
    %4588 = vmatprep.subr.mxu0 0.0
    %4589 = vmatpush1.msra.mxu0 0.0
    %4590 = vmatprep.subr.mxu0 0.0
    %4591 = vmatpush1.msra.mxu0 0.0
    %4592 = vmatprep.subr.mxu0 0.0
    %4593 = vmatpush1.msra.mxu0 0.0
    %4594 = vmatprep.subr.mxu0 0.0
    %4595 = vmatpush1.msra.mxu0 0.0
    %4596 = vmatprep.subr.mxu0 0.0
    %4597 = vmatpush1.msra.mxu0 0.0
    %4598 = vmatprep.subr.mxu0 0.0
    %4599 = vmatpush1.msra.mxu0 0.0
    %4600 = vmatprep.subr.mxu0 0.0
    %4601 = vmatpush1.msra.mxu0 0.0
    %4602 = vmatprep.subr.mxu0 0.0
    %4603 = vmatpush1.msra.mxu0 0.0
    %4604 = vmatprep.subr.mxu0 0.0
    %4605 = vmatpush1.msra.mxu0 0.0
    %4606 = vmatprep.subr.mxu0 0.0
    %4607 = vmatpush1.msra.mxu0 0.0
    %4608 = vmatprep.subr.mxu0 0.0
    %4609 = vmatpush1.msra.mxu0 0.0
    %4610 = vmatprep.subr.mxu0 0.0
    %4611 = vmatpush1.msra.mxu0 0.0
    %4612 = vmatprep.subr.mxu0 0.0
    %4613 = vmatpush1.msra.mxu0 0.0
    %4614 = vmatprep.subr.mxu0 0.0
    %4615 = vmatpush1.msra.mxu0 0.0
    %4616 = vmatprep.subr.mxu0 0.0
    %4617 = vmatpush1.msra.mxu0 0.0
    %4618 = vmatprep.subr.mxu0 0.0
    %4619 = vmatpush1.msra.mxu0 0.0
    %4620 = vmatprep.subr.mxu0 0.0
    %4621 = vmatpush1.msra.mxu0 0.0
    %4622 = vmatprep.subr.mxu0 0.0
    %4623 = vmatpush1.msra.mxu0 0.0
    %4624 = vmatprep.subr.mxu0 0.0
    %4625 = vmatpush1.msra.mxu0 0.0
    %4626 = vmatprep.subr.mxu0 0.0
    %4627 = vmatpush1.msra.mxu0 0.0
    %4628 = vmatprep.mubr.f32.mxu0 0.0
    %4629 = vmatmul.mubr.f32.gmra.mrb[0].mxu0 %v4560
    %v4630 = vpop.f32.mrb[0].mxu0
    %v4631 = vadd.f32 0.0, %v4630
    %v4632 = vpop.f32.mrb[0].mxu0
    %4633 = vdwg.mxu0
    %v4634 = vsel %vm1022, %v861, 0
    %v4637 = vsel %vm1029, %v4556, 0
    %4639 = vmatprep.subr.mxu0 0.0
    %4640 = vmatpush1.msra.mxu0 %v4637
    %4641 = vmatprep.subr.mxu0 0.0
    %4642 = vmatpush1.msra.mxu0 0.0
    %4643 = vmatprep.subr.mxu0 0.0
    %4644 = vmatpush1.msra.mxu0 0.0
    %4645 = vmatprep.subr.mxu0 0.0
    %4646 = vmatpush1.msra.mxu0 0.0
    %4647 = vmatprep.subr.mxu0 0.0
    %4648 = vmatpush1.msra.mxu0 0.0
    %4649 = vmatprep.subr.mxu0 0.0
    %4650 = vmatpush1.msra.mxu0 0.0
    %4651 = vmatprep.subr.mxu0 0.0
    %4652 = vmatpush1.msra.mxu0 0.0
    %4653 = vmatprep.subr.mxu0 0.0
    %4654 = vmatpush1.msra.mxu0 0.0
    %4655 = vmatprep.subr.mxu0 0.0
    %4656 = vmatpush1.msra.mxu0 0.0
    %4657 = vmatprep.subr.mxu0 0.0
    %4658 = vmatpush1.msra.mxu0 0.0
    %4659 = vmatprep.subr.mxu0 0.0
    %4660 = vmatpush1.msra.mxu0 0.0
    %4661 = vmatprep.subr.mxu0 0.0
    %4662 = vmatpush1.msra.mxu0 0.0
    %4663 = vmatprep.subr.mxu0 0.0
    %4664 = vmatpush1.msra.mxu0 0.0
    %4665 = vmatprep.subr.mxu0 0.0
    %4666 = vmatpush1.msra.mxu0 0.0
    %4667 = vmatprep.subr.mxu0 0.0
    %4668 = vmatpush1.msra.mxu0 0.0
    %4669 = vmatprep.subr.mxu0 0.0
    %4670 = vmatpush1.msra.mxu0 0.0
    %4671 = vmatprep.subr.mxu0 0.0
    %4672 = vmatpush1.msra.mxu0 0.0
    %4673 = vmatprep.subr.mxu0 0.0
    %4674 = vmatpush1.msra.mxu0 0.0
    %4675 = vmatprep.subr.mxu0 0.0
    %4676 = vmatpush1.msra.mxu0 0.0
    %4677 = vmatprep.subr.mxu0 0.0
    %4678 = vmatpush1.msra.mxu0 0.0
    %4679 = vmatprep.subr.mxu0 0.0
    %4680 = vmatpush1.msra.mxu0 0.0
    %4681 = vmatprep.subr.mxu0 0.0
    %4682 = vmatpush1.msra.mxu0 0.0
    %4683 = vmatprep.subr.mxu0 0.0
    %4684 = vmatpush1.msra.mxu0 0.0
    %4685 = vmatprep.subr.mxu0 0.0
    %4686 = vmatpush1.msra.mxu0 0.0
    %4687 = vmatprep.subr.mxu0 0.0
    %4688 = vmatpush1.msra.mxu0 0.0
    %4689 = vmatprep.subr.mxu0 0.0
    %4690 = vmatpush1.msra.mxu0 0.0
    %4691 = vmatprep.subr.mxu0 0.0
    %4692 = vmatpush1.msra.mxu0 0.0
    %4693 = vmatprep.subr.mxu0 0.0
    %4694 = vmatpush1.msra.mxu0 0.0
    %4695 = vmatprep.subr.mxu0 0.0
    %4696 = vmatpush1.msra.mxu0 0.0
    %4697 = vmatprep.subr.mxu0 0.0
    %4698 = vmatpush1.msra.mxu0 0.0
    %4699 = vmatprep.subr.mxu0 0.0
    %4700 = vmatpush1.msra.mxu0 0.0
    %4701 = vmatprep.subr.mxu0 0.0
    %4702 = vmatpush1.msra.mxu0 0.0
    %4703 = vmatprep.mubr.f32.mxu0 0.0
    %4704 = vmatmul.mubr.f32.gmra.mrb[0].mxu0 %v4634
    %v4705 = vpop.f32.mrb[0].mxu0
    %v4706 = vadd.f32 0.0, %v4705
    %v4707 = vpop.f32.mrb[0].mxu0
    %4708 = vdwg.mxu0
    %v4709 = vld [vmem:[%s19] sm:$0xff]
    %v4710 = vld [vmem:[%s19 + $0x8] sm:$0xff]
    %v4711 = vld [vmem:[%s19 + $0x10] sm:$0xff]
    %v4712 = vld [vmem:[%s19 + $0x18] sm:$0xff]
    %4713 = vmatprep.subr.mxu0 0.0
    %4714 = vmatpush1.msra.mxu0 %v4637
    %4715 = vmatprep.subr.mxu0 0.0
    %4716 = vmatpush1.msra.mxu0 0.0
    %4717 = vmatprep.subr.mxu0 0.0
    %4718 = vmatpush1.msra.mxu0 0.0
    %4719 = vmatprep.subr.mxu0 0.0
    %4720 = vmatpush1.msra.mxu0 0.0
    %4721 = vmatprep.subr.mxu0 0.0
    %4722 = vmatpush1.msra.mxu0 0.0
    %4723 = vmatprep.subr.mxu0 0.0
    %4724 = vmatpush1.msra.mxu0 0.0
    %4725 = vmatprep.subr.mxu0 0.0
    %4726 = vmatpush1.msra.mxu0 0.0
    %4727 = vmatprep.subr.mxu0 0.0
    %4728 = vmatpush1.msra.mxu0 0.0
    %4729 = vmatprep.subr.mxu0 0.0
    %4730 = vmatpush1.msra.mxu0 0.0
    %4731 = vmatprep.subr.mxu0 0.0
    %4732 = vmatpush1.msra.mxu0 0.0
    %4733 = vmatprep.subr.mxu0 0.0
    %4734 = vmatpush1.msra.mxu0 0.0
    %4735 = vmatprep.subr.mxu0 0.0
    %4736 = vmatpush1.msra.mxu0 0.0
    %4737 = vmatprep.subr.mxu0 0.0
    %4738 = vmatpush1.msra.mxu0 0.0
    %4739 = vmatprep.subr.mxu0 0.0
    %4740 = vmatpush1.msra.mxu0 0.0
    %4741 = vmatprep.subr.mxu0 0.0
    %4742 = vmatpush1.msra.mxu0 0.0
    %4743 = vmatprep.subr.mxu0 0.0
    %4744 = vmatpush1.msra.mxu0 0.0
    %4745 = vmatprep.subr.mxu0 0.0
    %4746 = vmatpush1.msra.mxu0 0.0
    %4747 = vmatprep.subr.mxu0 0.0
    %4748 = vmatpush1.msra.mxu0 0.0
    %4749 = vmatprep.subr.mxu0 0.0
    %4750 = vmatpush1.msra.mxu0 0.0
    %4751 = vmatprep.subr.mxu0 0.0
    %4752 = vmatpush1.msra.mxu0 0.0
    %4753 = vmatprep.subr.mxu0 0.0
    %4754 = vmatpush1.msra.mxu0 0.0
    %4755 = vmatprep.subr.mxu0 0.0
    %4756 = vmatpush1.msra.mxu0 0.0
    %4757 = vmatprep.subr.mxu0 0.0
    %4758 = vmatpush1.msra.mxu0 0.0
    %4759 = vmatprep.subr.mxu0 0.0
    %4760 = vmatpush1.msra.mxu0 0.0
    %4761 = vmatprep.subr.mxu0 0.0
    %4762 = vmatpush1.msra.mxu0 0.0
    %4763 = vmatprep.subr.mxu0 0.0
    %4764 = vmatpush1.msra.mxu0 0.0
    %4765 = vmatprep.subr.mxu0 0.0
    %4766 = vmatpush1.msra.mxu0 0.0
    %4767 = vmatprep.subr.mxu0 0.0
    %4768 = vmatpush1.msra.mxu0 0.0
    %4769 = vmatprep.subr.mxu0 0.0
    %4770 = vmatpush1.msra.mxu0 0.0
    %4771 = vmatprep.subr.mxu0 0.0
    %4772 = vmatpush1.msra.mxu0 0.0
    %4773 = vmatprep.subr.mxu0 0.0
    %4774 = vmatpush1.msra.mxu0 0.0
    %4775 = vmatprep.subr.mxu0 0.0
    %4776 = vmatpush1.msra.mxu0 0.0
    %4777 = vmatprep.mubr.f32.mxu0 0.0
    %4778 = vmatmul.mubr.f32.gmra.mrb[0].mxu0 %v4560
    %v4779 = vpop.f32.mrb[0].mxu0
    %v4780 = vadd.f32 0.0, %v4779
    %v4781 = vpop.f32.mrb[0].mxu0
    %4782 = vdwg.mxu0
    %s4783 = scalar_lea.vmem %s19, 32
    %v4784 = vld [vmem:[%s4783] sm:$0xff]
    %v4785 = vld [vmem:[%s4783 + $0x8] sm:$0xff]
    %v4786 = vld [vmem:[%s4783 + $0x10] sm:$0xff]
    %v4787 = vld [vmem:[%s4783 + $0x18] sm:$0xff]
    %v4789 = vsel %vm213, %v4780, 0
    %4791 = vmatprep.subr.mxu0 0.0
    %4792 = vmatpush1.msra.mxu0 %v4784
    %4793 = vmatprep.subr.mxu0 0.0
    %4794 = vmatpush1.msra.mxu0 %v4785
    %4795 = vmatprep.subr.mxu0 0.0
    %4796 = vmatpush1.msra.mxu0 %v4786
    %4797 = vmatprep.subr.mxu0 0.0
    %4798 = vmatpush1.msra.mxu0 %v4787
    %4799 = vmatprep.subr.mxu0 0.0
    %4800 = vmatpush1.msra.mxu0 0.0
    %4801 = vmatprep.subr.mxu0 0.0
    %4802 = vmatpush1.msra.mxu0 0.0
    %4803 = vmatprep.subr.mxu0 0.0
    %4804 = vmatpush1.msra.mxu0 0.0
    %4805 = vmatprep.subr.mxu0 0.0
    %4806 = vmatpush1.msra.mxu0 0.0
    %4807 = vmatprep.subr.mxu0 0.0
    %4808 = vmatpush1.msra.mxu0 0.0
    %4809 = vmatprep.subr.mxu0 0.0
    %4810 = vmatpush1.msra.mxu0 0.0
    %4811 = vmatprep.subr.mxu0 0.0
    %4812 = vmatpush1.msra.mxu0 0.0
    %4813 = vmatprep.subr.mxu0 0.0
    %4814 = vmatpush1.msra.mxu0 0.0
    %4815 = vmatprep.subr.mxu0 0.0
    %4816 = vmatpush1.msra.mxu0 0.0
    %4817 = vmatprep.subr.mxu0 0.0
    %4818 = vmatpush1.msra.mxu0 0.0
    %4819 = vmatprep.subr.mxu0 0.0
    %4820 = vmatpush1.msra.mxu0 0.0
    %4821 = vmatprep.subr.mxu0 0.0
    %4822 = vmatpush1.msra.mxu0 0.0
    %4823 = vmatprep.subr.mxu0 0.0
    %4824 = vmatpush1.msra.mxu0 0.0
    %4825 = vmatprep.subr.mxu0 0.0
    %4826 = vmatpush1.msra.mxu0 0.0
    %4827 = vmatprep.subr.mxu0 0.0
    %4828 = vmatpush1.msra.mxu0 0.0
    %4829 = vmatprep.subr.mxu0 0.0
    %4830 = vmatpush1.msra.mxu0 0.0
    %4831 = vmatprep.subr.mxu0 0.0
    %4832 = vmatpush1.msra.mxu0 0.0
    %4833 = vmatprep.subr.mxu0 0.0
    %4834 = vmatpush1.msra.mxu0 0.0
    %4835 = vmatprep.subr.mxu0 0.0
    %4836 = vmatpush1.msra.mxu0 0.0
    %4837 = vmatprep.subr.mxu0 0.0
    %4838 = vmatpush1.msra.mxu0 0.0
    %4839 = vmatprep.subr.mxu0 0.0
    %4840 = vmatpush1.msra.mxu0 0.0
    %4841 = vmatprep.subr.mxu0 0.0
    %4842 = vmatpush1.msra.mxu0 0.0
    %4843 = vmatprep.subr.mxu0 0.0
    %4844 = vmatpush1.msra.mxu0 0.0
    %4845 = vmatprep.subr.mxu0 0.0
    %4846 = vmatpush1.msra.mxu0 0.0
    %4847 = vmatprep.subr.mxu0 0.0
    %4848 = vmatpush1.msra.mxu0 0.0
    %4849 = vmatprep.subr.mxu0 0.0
    %4850 = vmatpush1.msra.mxu0 0.0
    %4851 = vmatprep.subr.mxu0 0.0
    %4852 = vmatpush1.msra.mxu0 0.0
    %4853 = vmatprep.subr.mxu0 0.0
    %4854 = vmatpush1.msra.mxu0 0.0
    %4855 = vmatprep.mubr.f32.mxu0 0.0
    %4856 = vmatmul.mubr.f32.gmra.mrb[0].mxu0 %v4789
    %v4857 = vpop.f32.mrb[0].mxu0
    %v4858 = vadd.f32 0.0, %v4857
    %v4859 = vpop.f32.mrb[0].mxu0
    %4860 = vdwg.mxu0
    %v4862 = vsel %vm213, %v4706, 0
    %4864 = vmatprep.subr.mxu0 0.0
    %4865 = vmatpush1.msra.mxu0 %v4709
    %4866 = vmatprep.subr.mxu0 0.0
    %4867 = vmatpush1.msra.mxu0 %v4710
    %4868 = vmatprep.subr.mxu0 0.0
    %4869 = vmatpush1.msra.mxu0 %v4711
    %4870 = vmatprep.subr.mxu0 0.0
    %4871 = vmatpush1.msra.mxu0 %v4712
    %4872 = vmatprep.subr.mxu0 0.0
    %4873 = vmatpush1.msra.mxu0 0.0
    %4874 = vmatprep.subr.mxu0 0.0
    %4875 = vmatpush1.msra.mxu0 0.0
    %4876 = vmatprep.subr.mxu0 0.0
    %4877 = vmatpush1.msra.mxu0 0.0
    %4878 = vmatprep.subr.mxu0 0.0
    %4879 = vmatpush1.msra.mxu0 0.0
    %4880 = vmatprep.subr.mxu0 0.0
    %4881 = vmatpush1.msra.mxu0 0.0
    %4882 = vmatprep.subr.mxu0 0.0
    %4883 = vmatpush1.msra.mxu0 0.0
    %4884 = vmatprep.subr.mxu0 0.0
    %4885 = vmatpush1.msra.mxu0 0.0
    %4886 = vmatprep.subr.mxu0 0.0
    %4887 = vmatpush1.msra.mxu0 0.0
    %4888 = vmatprep.subr.mxu0 0.0
    %4889 = vmatpush1.msra.mxu0 0.0
    %4890 = vmatprep.subr.mxu0 0.0
    %4891 = vmatpush1.msra.mxu0 0.0
    %4892 = vmatprep.subr.mxu0 0.0
    %4893 = vmatpush1.msra.mxu0 0.0
    %4894 = vmatprep.subr.mxu0 0.0
    %4895 = vmatpush1.msra.mxu0 0.0
    %4896 = vmatprep.subr.mxu0 0.0
    %4897 = vmatpush1.msra.mxu0 0.0
    %4898 = vmatprep.subr.mxu0 0.0
    %4899 = vmatpush1.msra.mxu0 0.0
    %4900 = vmatprep.subr.mxu0 0.0
    %4901 = vmatpush1.msra.mxu0 0.0
    %4902 = vmatprep.subr.mxu0 0.0
    %4903 = vmatpush1.msra.mxu0 0.0
    %4904 = vmatprep.subr.mxu0 0.0
    %4905 = vmatpush1.msra.mxu0 0.0
    %4906 = vmatprep.subr.mxu0 0.0
    %4907 = vmatpush1.msra.mxu0 0.0
    %4908 = vmatprep.subr.mxu0 0.0
    %4909 = vmatpush1.msra.mxu0 0.0
    %4910 = vmatprep.subr.mxu0 0.0
    %4911 = vmatpush1.msra.mxu0 0.0
    %4912 = vmatprep.subr.mxu0 0.0
    %4913 = vmatpush1.msra.mxu0 0.0
    %4914 = vmatprep.subr.mxu0 0.0
    %4915 = vmatpush1.msra.mxu0 0.0
    %4916 = vmatprep.subr.mxu0 0.0
    %4917 = vmatpush1.msra.mxu0 0.0
    %4918 = vmatprep.subr.mxu0 0.0
    %4919 = vmatpush1.msra.mxu0 0.0
    %4920 = vmatprep.subr.mxu0 0.0
    %4921 = vmatpush1.msra.mxu0 0.0
    %4922 = vmatprep.subr.mxu0 0.0
    %4923 = vmatpush1.msra.mxu0 0.0
    %4924 = vmatprep.subr.mxu0 0.0
    %4925 = vmatpush1.msra.mxu0 0.0
    %4926 = vmatprep.subr.mxu0 0.0
    %4927 = vmatpush1.msra.mxu0 0.0
    %4928 = vmatprep.mubr.f32.mxu0 0.0
    %4929 = vmatmul.mubr.f32.gmra.mrb[0].mxu0 %v4862
    %v4930 = vpop.f32.mrb[0].mxu0
    %v4931 = vadd.f32 %v4858, %v4930
    %v4932 = vpop.f32.mrb[0].mxu0
    %4933 = vdwg.mxu0
    %v4934 = vsel %vm1022, %v1198, 0
    %4936 = vmatprep.subr.mxu0 0.0
    %4937 = vmatpush1.msra.mxu0 %v4637
    %4938 = vmatprep.subr.mxu0 0.0
    %4939 = vmatpush1.msra.mxu0 0.0
    %4940 = vmatprep.subr.mxu0 0.0
    %4941 = vmatpush1.msra.mxu0 0.0
    %4942 = vmatprep.subr.mxu0 0.0
    %4943 = vmatpush1.msra.mxu0 0.0
    %4944 = vmatprep.subr.mxu0 0.0
    %4945 = vmatpush1.msra.mxu0 0.0
    %4946 = vmatprep.subr.mxu0 0.0
    %4947 = vmatpush1.msra.mxu0 0.0
    %4948 = vmatprep.subr.mxu0 0.0
    %4949 = vmatpush1.msra.mxu0 0.0
    %4950 = vmatprep.subr.mxu0 0.0
    %4951 = vmatpush1.msra.mxu0 0.0
    %4952 = vmatprep.subr.mxu0 0.0
    %4953 = vmatpush1.msra.mxu0 0.0
    %4954 = vmatprep.subr.mxu0 0.0
    %4955 = vmatpush1.msra.mxu0 0.0
    %4956 = vmatprep.subr.mxu0 0.0
    %4957 = vmatpush1.msra.mxu0 0.0
    %4958 = vmatprep.subr.mxu0 0.0
    %4959 = vmatpush1.msra.mxu0 0.0
    %4960 = vmatprep.subr.mxu0 0.0
    %4961 = vmatpush1.msra.mxu0 0.0
    %4962 = vmatprep.subr.mxu0 0.0
    %4963 = vmatpush1.msra.mxu0 0.0
    %4964 = vmatprep.subr.mxu0 0.0
    %4965 = vmatpush1.msra.mxu0 0.0
    %4966 = vmatprep.subr.mxu0 0.0
    %4967 = vmatpush1.msra.mxu0 0.0
    %4968 = vmatprep.subr.mxu0 0.0
    %4969 = vmatpush1.msra.mxu0 0.0
    %4970 = vmatprep.subr.mxu0 0.0
    %4971 = vmatpush1.msra.mxu0 0.0
    %4972 = vmatprep.subr.mxu0 0.0
    %4973 = vmatpush1.msra.mxu0 0.0
    %4974 = vmatprep.subr.mxu0 0.0
    %4975 = vmatpush1.msra.mxu0 0.0
    %4976 = vmatprep.subr.mxu0 0.0
    %4977 = vmatpush1.msra.mxu0 0.0
    %4978 = vmatprep.subr.mxu0 0.0
    %4979 = vmatpush1.msra.mxu0 0.0
    %4980 = vmatprep.subr.mxu0 0.0
    %4981 = vmatpush1.msra.mxu0 0.0
    %4982 = vmatprep.subr.mxu0 0.0
    %4983 = vmatpush1.msra.mxu0 0.0
    %4984 = vmatprep.subr.mxu0 0.0
    %4985 = vmatpush1.msra.mxu0 0.0
    %4986 = vmatprep.subr.mxu0 0.0
    %4987 = vmatpush1.msra.mxu0 0.0
    %4988 = vmatprep.subr.mxu0 0.0
    %4989 = vmatpush1.msra.mxu0 0.0
    %4990 = vmatprep.subr.mxu0 0.0
    %4991 = vmatpush1.msra.mxu0 0.0
    %4992 = vmatprep.subr.mxu0 0.0
    %4993 = vmatpush1.msra.mxu0 0.0
    %4994 = vmatprep.subr.mxu0 0.0
    %4995 = vmatpush1.msra.mxu0 0.0
    %4996 = vmatprep.subr.mxu0 0.0
    %4997 = vmatpush1.msra.mxu0 0.0
    %4998 = vmatprep.subr.mxu0 0.0
    %4999 = vmatpush1.msra.mxu0 0.0
    %5000 = vmatprep.mubr.f32.mxu0 0.0
    %5001 = vmatmul.mubr.f32.gmra.mrb[0].mxu0 %v4934
    %v5002 = vpop.f32.mrb[0].mxu0
    %v5003 = vadd.f32 0.0, %v5002
    %v5004 = vpop.f32.mrb[0].mxu0
    %5005 = vdwg.mxu0
    %s5006 = scalar_lea.vmem %s19, 64
    %v5007 = vld [vmem:[%s5006] sm:$0xff]
    %v5008 = vld [vmem:[%s5006 + $0x8] sm:$0xff]
    %v5009 = vld [vmem:[%s5006 + $0x10] sm:$0xff]
    %v5010 = vld [vmem:[%s5006 + $0x18] sm:$0xff]
    %v5012 = vsel %vm213, %v5003, 0
    %5014 = vmatprep.subr.mxu0 0.0
    %5015 = vmatpush1.msra.mxu0 %v5007
    %5016 = vmatprep.subr.mxu0 0.0
    %5017 = vmatpush1.msra.mxu0 %v5008
    %5018 = vmatprep.subr.mxu0 0.0
    %5019 = vmatpush1.msra.mxu0 %v5009
    %5020 = vmatprep.subr.mxu0 0.0
    %5021 = vmatpush1.msra.mxu0 %v5010
    %5022 = vmatprep.subr.mxu0 0.0
    %5023 = vmatpush1.msra.mxu0 0.0
    %5024 = vmatprep.subr.mxu0 0.0
    %5025 = vmatpush1.msra.mxu0 0.0
    %5026 = vmatprep.subr.mxu0 0.0
    %5027 = vmatpush1.msra.mxu0 0.0
    %5028 = vmatprep.subr.mxu0 0.0
    %5029 = vmatpush1.msra.mxu0 0.0
    %5030 = vmatprep.subr.mxu0 0.0
    %5031 = vmatpush1.msra.mxu0 0.0
    %5032 = vmatprep.subr.mxu0 0.0
    %5033 = vmatpush1.msra.mxu0 0.0
    %5034 = vmatprep.subr.mxu0 0.0
    %5035 = vmatpush1.msra.mxu0 0.0
    %5036 = vmatprep.subr.mxu0 0.0
    %5037 = vmatpush1.msra.mxu0 0.0
    %5038 = vmatprep.subr.mxu0 0.0
    %5039 = vmatpush1.msra.mxu0 0.0
    %5040 = vmatprep.subr.mxu0 0.0
    %5041 = vmatpush1.msra.mxu0 0.0
    %5042 = vmatprep.subr.mxu0 0.0
    %5043 = vmatpush1.msra.mxu0 0.0
    %5044 = vmatprep.subr.mxu0 0.0
    %5045 = vmatpush1.msra.mxu0 0.0
    %5046 = vmatprep.subr.mxu0 0.0
    %5047 = vmatpush1.msra.mxu0 0.0
    %5048 = vmatprep.subr.mxu0 0.0
    %5049 = vmatpush1.msra.mxu0 0.0
    %5050 = vmatprep.subr.mxu0 0.0
    %5051 = vmatpush1.msra.mxu0 0.0
    %5052 = vmatprep.subr.mxu0 0.0
    %5053 = vmatpush1.msra.mxu0 0.0
    %5054 = vmatprep.subr.mxu0 0.0
    %5055 = vmatpush1.msra.mxu0 0.0
    %5056 = vmatprep.subr.mxu0 0.0
    %5057 = vmatpush1.msra.mxu0 0.0
    %5058 = vmatprep.subr.mxu0 0.0
    %5059 = vmatpush1.msra.mxu0 0.0
    %5060 = vmatprep.subr.mxu0 0.0
    %5061 = vmatpush1.msra.mxu0 0.0
    %5062 = vmatprep.subr.mxu0 0.0
    %5063 = vmatpush1.msra.mxu0 0.0
    %5064 = vmatprep.subr.mxu0 0.0
    %5065 = vmatpush1.msra.mxu0 0.0
    %5066 = vmatprep.subr.mxu0 0.0
    %5067 = vmatpush1.msra.mxu0 0.0
    %5068 = vmatprep.subr.mxu0 0.0
    %5069 = vmatpush1.msra.mxu0 0.0
    %5070 = vmatprep.subr.mxu0 0.0
    %5071 = vmatpush1.msra.mxu0 0.0
    %5072 = vmatprep.subr.mxu0 0.0
    %5073 = vmatpush1.msra.mxu0 0.0
    %5074 = vmatprep.subr.mxu0 0.0
    %5075 = vmatpush1.msra.mxu0 0.0
    %5076 = vmatprep.subr.mxu0 0.0
    %5077 = vmatpush1.msra.mxu0 0.0
    %5078 = vmatprep.mubr.f32.mxu0 0.0
    %5079 = vmatmul.mubr.f32.gmra.mrb[0].mxu0 %v5012
    %v5080 = vpop.f32.mrb[0].mxu0
    %v5081 = vadd.f32 0.0, %v5080
    %v5082 = vpop.f32.mrb[0].mxu0
    %5083 = vdwg.mxu0
    %v5084 = vadd.f32 %v4931, %v5081
    %v5085 = vld [vmem:[%s20] sm:$0x1]
    %v5086 = vadd.f32 %v5084, %v5085
    %v5087 = vadd.f32 %v5086, %v4631
    %v5088 = vmax.f32 %v5087, 0.0
    %v5089 = vld [vmem:[%s21] sm:$0xff]
    %v5090 = vld [vmem:[%s21 + $0x8] sm:$0xff]
    %v5091 = vld [vmem:[%s21 + $0x10] sm:$0xff]
    %v5092 = vld [vmem:[%s21 + $0x18] sm:$0xff]
    %v5093 = vld [vmem:[%s22] sm:$0x1]
    %v5095 = vsel %vm213, %v5088, 0
    %5097 = vmatprep.subr.mxu0 0.0
    %5098 = vmatpush1.msra.mxu0 %v5089
    %5099 = vmatprep.subr.mxu0 0.0
    %5100 = vmatpush1.msra.mxu0 %v5090
    %5101 = vmatprep.subr.mxu0 0.0
    %5102 = vmatpush1.msra.mxu0 %v5091
    %5103 = vmatprep.subr.mxu0 0.0
    %5104 = vmatpush1.msra.mxu0 %v5092
    %5105 = vmatprep.subr.mxu0 0.0
    %5106 = vmatpush1.msra.mxu0 0.0
    %5107 = vmatprep.subr.mxu0 0.0
    %5108 = vmatpush1.msra.mxu0 0.0
    %5109 = vmatprep.subr.mxu0 0.0
    %5110 = vmatpush1.msra.mxu0 0.0
    %5111 = vmatprep.subr.mxu0 0.0
    %5112 = vmatpush1.msra.mxu0 0.0
    %5113 = vmatprep.subr.mxu0 0.0
    %5114 = vmatpush1.msra.mxu0 0.0
    %5115 = vmatprep.subr.mxu0 0.0
    %5116 = vmatpush1.msra.mxu0 0.0
    %5117 = vmatprep.subr.mxu0 0.0
    %5118 = vmatpush1.msra.mxu0 0.0
    %5119 = vmatprep.subr.mxu0 0.0
    %5120 = vmatpush1.msra.mxu0 0.0
    %5121 = vmatprep.subr.mxu0 0.0
    %5122 = vmatpush1.msra.mxu0 0.0
    %5123 = vmatprep.subr.mxu0 0.0
    %5124 = vmatpush1.msra.mxu0 0.0
    %5125 = vmatprep.subr.mxu0 0.0
    %5126 = vmatpush1.msra.mxu0 0.0
    %5127 = vmatprep.subr.mxu0 0.0
    %5128 = vmatpush1.msra.mxu0 0.0
    %5129 = vmatprep.subr.mxu0 0.0
    %5130 = vmatpush1.msra.mxu0 0.0
    %5131 = vmatprep.subr.mxu0 0.0
    %5132 = vmatpush1.msra.mxu0 0.0
    %5133 = vmatprep.subr.mxu0 0.0
    %5134 = vmatpush1.msra.mxu0 0.0
    %5135 = vmatprep.subr.mxu0 0.0
    %5136 = vmatpush1.msra.mxu0 0.0
    %5137 = vmatprep.subr.mxu0 0.0
    %5138 = vmatpush1.msra.mxu0 0.0
    %5139 = vmatprep.subr.mxu0 0.0
    %5140 = vmatpush1.msra.mxu0 0.0
    %5141 = vmatprep.subr.mxu0 0.0
    %5142 = vmatpush1.msra.mxu0 0.0
    %5143 = vmatprep.subr.mxu0 0.0
    %5144 = vmatpush1.msra.mxu0 0.0
    %5145 = vmatprep.subr.mxu0 0.0
    %5146 = vmatpush1.msra.mxu0 0.0
    %5147 = vmatprep.subr.mxu0 0.0
    %5148 = vmatpush1.msra.mxu0 0.0
    %5149 = vmatprep.subr.mxu0 0.0
    %5150 = vmatpush1.msra.mxu0 0.0
    %5151 = vmatprep.subr.mxu0 0.0
    %5152 = vmatpush1.msra.mxu0 0.0
    %5153 = vmatprep.subr.mxu0 0.0
    %5154 = vmatpush1.msra.mxu0 0.0
    %5155 = vmatprep.subr.mxu0 0.0
    %5156 = vmatpush1.msra.mxu0 0.0
    %5157 = vmatprep.subr.mxu0 0.0
    %5158 = vmatpush1.msra.mxu0 0.0
    %5159 = vmatprep.subr.mxu0 0.0
    %5160 = vmatpush1.msra.mxu0 0.0
    %5161 = vmatprep.mubr.f32.mxu0 0.0
    %5162 = vmatmul.mubr.f32.gmra.mrb[0].mxu0 %v5095
    %v5163 = vpop.f32.mrb[0].mxu0
    %v5164 = vadd.f32 %v5093, %v5163
    %v5165 = vpop.f32.mrb[0].mxu0
    %5166 = vdwg.mxu0
    %vm5167 = vcmp.gt.f32.partialorder %v5164, 20.0
    %v5168 = vmin.f32 %v5164, 20.0
    %v5169 = vmul.f32 %v5168, 1.442695
    %v5170 = vpow.pop %v5169
    %v5171 = vadd.f32 %v5170, 1.0
    %v5172 = vlog2.pop %v5171
    %v5173 = vmul.f32 %v5172, 0.6931472
    %v5174 = vsel %vm5167, %v5164, %v5173
    %v5175 = vmax.f32 %v5174, 1e-05
    %v5176 = vmin.f32 %v5175, 5.0
    %vm5177 = vcmask 57344
    %5178 = vst.msk [vmem:[%s23] sm:$0x1] %vm5177, %v5164
    %5180 = vrot.lane.b32.xlu0 %v5176, 120
    %v5181 = vpop.permute.xlu0 %5180
    %5183 = vst.msk [vmem:[#allocation16] sm:$0x1] %vm5177, %v5181
    %s5184 = scalar_lea.vmem %s0, 32
    %v5185 = vld [vmem:[%s5184] sm:$0xff]
    %v5186 = vld [vmem:[%s5184 + $0x8] sm:$0xff]
    %v5187 = vld [vmem:[%s5184 + $0x10] sm:$0xff]
    %v5188 = vld [vmem:[%s5184 + $0x18] sm:$0xff]
    %5189 = vmatprep.subr.mxu0 0.0
    %5190 = vmatpush1.msra.mxu0 %v5185
    %5191 = vmatprep.subr.mxu0 0.0
    %5192 = vmatpush1.msra.mxu0 %v5186
    %5193 = vmatprep.subr.mxu0 0.0
    %5194 = vmatpush1.msra.mxu0 %v5187
    %5195 = vmatprep.subr.mxu0 0.0
    %5196 = vmatpush1.msra.mxu0 %v5188
    %5197 = vmatprep.subr.mxu0 0.0
    %5198 = vmatpush1.msra.mxu0 0.0
    %5199 = vmatprep.subr.mxu0 0.0
    %5200 = vmatpush1.msra.mxu0 0.0
    %5201 = vmatprep.subr.mxu0 0.0
    %5202 = vmatpush1.msra.mxu0 0.0
    %5203 = vmatprep.subr.mxu0 0.0
    %5204 = vmatpush1.msra.mxu0 0.0
    %5205 = vmatprep.subr.mxu0 0.0
    %5206 = vmatpush1.msra.mxu0 0.0
    %5207 = vmatprep.subr.mxu0 0.0
    %5208 = vmatpush1.msra.mxu0 0.0
    %5209 = vmatprep.subr.mxu0 0.0
    %5210 = vmatpush1.msra.mxu0 0.0
    %5211 = vmatprep.subr.mxu0 0.0
    %5212 = vmatpush1.msra.mxu0 0.0
    %5213 = vmatprep.subr.mxu0 0.0
    %5214 = vmatpush1.msra.mxu0 0.0
    %5215 = vmatprep.subr.mxu0 0.0
    %5216 = vmatpush1.msra.mxu0 0.0
    %5217 = vmatprep.subr.mxu0 0.0
    %5218 = vmatpush1.msra.mxu0 0.0
    %5219 = vmatprep.subr.mxu0 0.0
    %5220 = vmatpush1.msra.mxu0 0.0
    %5221 = vmatprep.subr.mxu0 0.0
    %5222 = vmatpush1.msra.mxu0 0.0
    %5223 = vmatprep.subr.mxu0 0.0
    %5224 = vmatpush1.msra.mxu0 0.0
    %5225 = vmatprep.subr.mxu0 0.0
    %5226 = vmatpush1.msra.mxu0 0.0
    %5227 = vmatprep.subr.mxu0 0.0
    %5228 = vmatpush1.msra.mxu0 0.0
    %5229 = vmatprep.subr.mxu0 0.0
    %5230 = vmatpush1.msra.mxu0 0.0
    %5231 = vmatprep.subr.mxu0 0.0
    %5232 = vmatpush1.msra.mxu0 0.0
    %5233 = vmatprep.subr.mxu0 0.0
    %5234 = vmatpush1.msra.mxu0 0.0
    %5235 = vmatprep.subr.mxu0 0.0
    %5236 = vmatpush1.msra.mxu0 0.0
    %5237 = vmatprep.subr.mxu0 0.0
    %5238 = vmatpush1.msra.mxu0 0.0
    %5239 = vmatprep.subr.mxu0 0.0
    %5240 = vmatpush1.msra.mxu0 0.0
    %5241 = vmatprep.subr.mxu0 0.0
    %5242 = vmatpush1.msra.mxu0 0.0
    %5243 = vmatprep.subr.mxu0 0.0
    %5244 = vmatpush1.msra.mxu0 0.0
    %5245 = vmatprep.subr.mxu0 0.0
    %5246 = vmatpush1.msra.mxu0 0.0
    %5247 = vmatprep.subr.mxu0 0.0
    %5248 = vmatpush1.msra.mxu0 0.0
    %5249 = vmatprep.subr.mxu0 0.0
    %5250 = vmatpush1.msra.mxu0 0.0
    %5251 = vmatprep.subr.mxu0 0.0
    %5252 = vmatpush1.msra.mxu0 0.0
    %5253 = vmatprep.mubr.f32.mxu0 0.0
    %5254 = vmatmul.mubr.f32.gmra.mrb[0].mxu0 %v215
    %v5255 = vpop.f32.mrb[0].mxu0
    %v5256 = vadd.f32 0.0, %v5255
    %v5257 = vpop.f32.mrb[0].mxu0
    %5258 = vmatprep.mubr.f32.mxu0 0.0
    %5259 = vmatmul.mubr.f32.gmra.mrb[0].mxu0 %v218
    %v5260 = vpop.f32.mrb[0].mxu0
    %v5261 = vadd.f32 0.0, %v5260
    %v5262 = vpop.f32.mrb[0].mxu0
    %5263 = vmatprep.mubr.f32.mxu0 0.0
    %5264 = vmatmul.mubr.f32.gmra.mrb[0].mxu0 %v221
    %v5265 = vpop.f32.mrb[0].mxu0
    %v5266 = vadd.f32 0.0, %v5265
    %v5267 = vpop.f32.mrb[0].mxu0
    %5268 = vmatprep.mubr.f32.mxu0 0.0
    %5269 = vmatmul.mubr.f32.gmra.mrb[0].mxu0 %v224
    %v5270 = vpop.f32.mrb[0].mxu0
    %v5271 = vadd.f32 0.0, %v5270
    %v5272 = vpop.f32.mrb[0].mxu0
    %5273 = vdwg.mxu0
    %v5274 = vld [vmem:[#allocation2] sm:$0xf]
    %v5275 = vld [vmem:[%s312] sm:$0xf]
    %v5277 = vsel %vm314, %v5185, 0
    %v5280 = vsel %vm314, %v5186, 0
    %v5283 = vsel %vm314, %v5187, 0
    %v5286 = vsel %vm314, %v5188, 0
    %v5289 = vsel %vm327, %v5275, 0
    %5291 = vmatprep.subr.mxu0 0.0
    %5292 = vmatpush1.msra.mxu0 %v5289
    %5293 = vmatprep.subr.mxu0 0.0
    %5294 = vmatpush1.msra.mxu0 0.0
    %5295 = vmatprep.subr.mxu0 0.0
    %5296 = vmatpush1.msra.mxu0 0.0
    %5297 = vmatprep.subr.mxu0 0.0
    %5298 = vmatpush1.msra.mxu0 0.0
    %5299 = vmatprep.subr.mxu0 0.0
    %5300 = vmatpush1.msra.mxu0 0.0
    %5301 = vmatprep.subr.mxu0 0.0
    %5302 = vmatpush1.msra.mxu0 0.0
    %5303 = vmatprep.subr.mxu0 0.0
    %5304 = vmatpush1.msra.mxu0 0.0
    %5305 = vmatprep.subr.mxu0 0.0
    %5306 = vmatpush1.msra.mxu0 0.0
    %5307 = vmatprep.subr.mxu0 0.0
    %5308 = vmatpush1.msra.mxu0 0.0
    %5309 = vmatprep.subr.mxu0 0.0
    %5310 = vmatpush1.msra.mxu0 0.0
    %5311 = vmatprep.subr.mxu0 0.0
    %5312 = vmatpush1.msra.mxu0 0.0
    %5313 = vmatprep.subr.mxu0 0.0
    %5314 = vmatpush1.msra.mxu0 0.0
    %5315 = vmatprep.subr.mxu0 0.0
    %5316 = vmatpush1.msra.mxu0 0.0
    %5317 = vmatprep.subr.mxu0 0.0
    %5318 = vmatpush1.msra.mxu0 0.0
    %5319 = vmatprep.subr.mxu0 0.0
    %5320 = vmatpush1.msra.mxu0 0.0
    %5321 = vmatprep.subr.mxu0 0.0
    %5322 = vmatpush1.msra.mxu0 0.0
    %5323 = vmatprep.subr.mxu0 0.0
    %5324 = vmatpush1.msra.mxu0 0.0
    %5325 = vmatprep.subr.mxu0 0.0
    %5326 = vmatpush1.msra.mxu0 0.0
    %5327 = vmatprep.subr.mxu0 0.0
    %5328 = vmatpush1.msra.mxu0 0.0
    %5329 = vmatprep.subr.mxu0 0.0
    %5330 = vmatpush1.msra.mxu0 0.0
    %5331 = vmatprep.subr.mxu0 0.0
    %5332 = vmatpush1.msra.mxu0 0.0
    %5333 = vmatprep.subr.mxu0 0.0
    %5334 = vmatpush1.msra.mxu0 0.0
    %5335 = vmatprep.subr.mxu0 0.0
    %5336 = vmatpush1.msra.mxu0 0.0
    %5337 = vmatprep.subr.mxu0 0.0
    %5338 = vmatpush1.msra.mxu0 0.0
    %5339 = vmatprep.subr.mxu0 0.0
    %5340 = vmatpush1.msra.mxu0 0.0
    %5341 = vmatprep.subr.mxu0 0.0
    %5342 = vmatpush1.msra.mxu0 0.0
    %5343 = vmatprep.subr.mxu0 0.0
    %5344 = vmatpush1.msra.mxu0 0.0
    %5345 = vmatprep.subr.mxu0 0.0
    %5346 = vmatpush1.msra.mxu0 0.0
    %5347 = vmatprep.subr.mxu0 0.0
    %5348 = vmatpush1.msra.mxu0 0.0
    %5349 = vmatprep.subr.mxu0 0.0
    %5350 = vmatpush1.msra.mxu0 0.0
    %5351 = vmatprep.subr.mxu0 0.0
    %5352 = vmatpush1.msra.mxu0 0.0
    %5353 = vmatprep.subr.mxu0 0.0
    %5354 = vmatpush1.msra.mxu0 0.0
    %5355 = vmatprep.mubr.f32.mxu0 0.0
    %5356 = vmatmul.mubr.f32.gmra.mrb[0].mxu0 %v5277
    %v5357 = vpop.f32.mrb[0].mxu0
    %v5358 = vadd.f32 0.0, %v5357
    %v5359 = vpop.f32.mrb[0].mxu0
    %5360 = vmatprep.mubr.f32.mxu0 0.0
    %5361 = vmatmul.mubr.f32.gmra.mrb[0].mxu0 %v5280
    %v5362 = vpop.f32.mrb[0].mxu0
    %v5363 = vadd.f32 0.0, %v5362
    %v5364 = vpop.f32.mrb[0].mxu0
    %5365 = vmatprep.mubr.f32.mxu0 0.0
    %5366 = vmatmul.mubr.f32.gmra.mrb[0].mxu0 %v5283
    %v5367 = vpop.f32.mrb[0].mxu0
    %v5368 = vadd.f32 0.0, %v5367
    %v5369 = vpop.f32.mrb[0].mxu0
    %5370 = vmatprep.mubr.f32.mxu0 0.0
    %5371 = vmatmul.mubr.f32.gmra.mrb[0].mxu0 %v5286
    %v5372 = vpop.f32.mrb[0].mxu0
    %v5373 = vadd.f32 0.0, %v5372
    %v5374 = vpop.f32.mrb[0].mxu0
    %5375 = vdwg.mxu0
    %v5377 = vsel %vm314, %v5256, 0
    %v5380 = vsel %vm314, %v5261, 0
    %v5383 = vsel %vm314, %v5266, 0
    %v5386 = vsel %vm314, %v5271, 0
    %v5389 = vsel %vm327, %v5274, 0
    %5391 = vmatprep.subr.mxu0 0.0
    %5392 = vmatpush1.msra.mxu0 %v5389
    %5393 = vmatprep.subr.mxu0 0.0
    %5394 = vmatpush1.msra.mxu0 0.0
    %5395 = vmatprep.subr.mxu0 0.0
    %5396 = vmatpush1.msra.mxu0 0.0
    %5397 = vmatprep.subr.mxu0 0.0
    %5398 = vmatpush1.msra.mxu0 0.0
    %5399 = vmatprep.subr.mxu0 0.0
    %5400 = vmatpush1.msra.mxu0 0.0
    %5401 = vmatprep.subr.mxu0 0.0
    %5402 = vmatpush1.msra.mxu0 0.0
    %5403 = vmatprep.subr.mxu0 0.0
    %5404 = vmatpush1.msra.mxu0 0.0
    %5405 = vmatprep.subr.mxu0 0.0
    %5406 = vmatpush1.msra.mxu0 0.0
    %5407 = vmatprep.subr.mxu0 0.0
    %5408 = vmatpush1.msra.mxu0 0.0
    %5409 = vmatprep.subr.mxu0 0.0
    %5410 = vmatpush1.msra.mxu0 0.0
    %5411 = vmatprep.subr.mxu0 0.0
    %5412 = vmatpush1.msra.mxu0 0.0
    %5413 = vmatprep.subr.mxu0 0.0
    %5414 = vmatpush1.msra.mxu0 0.0
    %5415 = vmatprep.subr.mxu0 0.0
    %5416 = vmatpush1.msra.mxu0 0.0
    %5417 = vmatprep.subr.mxu0 0.0
    %5418 = vmatpush1.msra.mxu0 0.0
    %5419 = vmatprep.subr.mxu0 0.0
    %5420 = vmatpush1.msra.mxu0 0.0
    %5421 = vmatprep.subr.mxu0 0.0
    %5422 = vmatpush1.msra.mxu0 0.0
    %5423 = vmatprep.subr.mxu0 0.0
    %5424 = vmatpush1.msra.mxu0 0.0
    %5425 = vmatprep.subr.mxu0 0.0
    %5426 = vmatpush1.msra.mxu0 0.0
    %5427 = vmatprep.subr.mxu0 0.0
    %5428 = vmatpush1.msra.mxu0 0.0
    %5429 = vmatprep.subr.mxu0 0.0
    %5430 = vmatpush1.msra.mxu0 0.0
    %5431 = vmatprep.subr.mxu0 0.0
    %5432 = vmatpush1.msra.mxu0 0.0
    %5433 = vmatprep.subr.mxu0 0.0
    %5434 = vmatpush1.msra.mxu0 0.0
    %5435 = vmatprep.subr.mxu0 0.0
    %5436 = vmatpush1.msra.mxu0 0.0
    %5437 = vmatprep.subr.mxu0 0.0
    %5438 = vmatpush1.msra.mxu0 0.0
    %5439 = vmatprep.subr.mxu0 0.0
    %5440 = vmatpush1.msra.mxu0 0.0
    %5441 = vmatprep.subr.mxu0 0.0
    %5442 = vmatpush1.msra.mxu0 0.0
    %5443 = vmatprep.subr.mxu0 0.0
    %5444 = vmatpush1.msra.mxu0 0.0
    %5445 = vmatprep.subr.mxu0 0.0
    %5446 = vmatpush1.msra.mxu0 0.0
    %5447 = vmatprep.subr.mxu0 0.0
    %5448 = vmatpush1.msra.mxu0 0.0
    %5449 = vmatprep.subr.mxu0 0.0
    %5450 = vmatpush1.msra.mxu0 0.0
    %5451 = vmatprep.subr.mxu0 0.0
    %5452 = vmatpush1.msra.mxu0 0.0
    %5453 = vmatprep.subr.mxu0 0.0
    %5454 = vmatpush1.msra.mxu0 0.0
    %5455 = vmatprep.mubr.f32.mxu0 0.0
    %5456 = vmatmul.mubr.f32.gmra.mrb[0].mxu0 %v5377
    %v5457 = vpop.f32.mrb[0].mxu0
    %v5458 = vadd.f32 %v5358, %v5457
    %v5459 = vpop.f32.mrb[0].mxu0
    %5460 = vmatprep.mubr.f32.mxu0 0.0
    %5461 = vmatmul.mubr.f32.gmra.mrb[0].mxu0 %v5380
    %v5462 = vpop.f32.mrb[0].mxu0
    %v5463 = vadd.f32 %v5363, %v5462
    %v5464 = vpop.f32.mrb[0].mxu0
    %5465 = vmatprep.mubr.f32.mxu0 0.0
    %5466 = vmatmul.mubr.f32.gmra.mrb[0].mxu0 %v5383
    %v5467 = vpop.f32.mrb[0].mxu0
    %v5468 = vadd.f32 %v5368, %v5467
    %v5469 = vpop.f32.mrb[0].mxu0
    %5470 = vmatprep.mubr.f32.mxu0 0.0
    %5471 = vmatmul.mubr.f32.gmra.mrb[0].mxu0 %v5386
    %v5472 = vpop.f32.mrb[0].mxu0
    %v5473 = vadd.f32 %v5373, %v5472
    %v5474 = vpop.f32.mrb[0].mxu0
    %5475 = vdwg.mxu0
    %5476 = vmatprep.subr.mxu0 0.0
    %5477 = vmatpush1.msra.mxu0 %v5185
    %5478 = vmatprep.subr.mxu0 0.0
    %5479 = vmatpush1.msra.mxu0 %v5186
    %5480 = vmatprep.subr.mxu0 0.0
    %5481 = vmatpush1.msra.mxu0 %v5187
    %5482 = vmatprep.subr.mxu0 0.0
    %5483 = vmatpush1.msra.mxu0 %v5188
    %5484 = vmatprep.subr.mxu0 0.0
    %5485 = vmatpush1.msra.mxu0 0.0
    %5486 = vmatprep.subr.mxu0 0.0
    %5487 = vmatpush1.msra.mxu0 0.0
    %5488 = vmatprep.subr.mxu0 0.0
    %5489 = vmatpush1.msra.mxu0 0.0
    %5490 = vmatprep.subr.mxu0 0.0
    %5491 = vmatpush1.msra.mxu0 0.0
    %5492 = vmatprep.subr.mxu0 0.0
    %5493 = vmatpush1.msra.mxu0 0.0
    %5494 = vmatprep.subr.mxu0 0.0
    %5495 = vmatpush1.msra.mxu0 0.0
    %5496 = vmatprep.subr.mxu0 0.0
    %5497 = vmatpush1.msra.mxu0 0.0
    %5498 = vmatprep.subr.mxu0 0.0
    %5499 = vmatpush1.msra.mxu0 0.0
    %5500 = vmatprep.subr.mxu0 0.0
    %5501 = vmatpush1.msra.mxu0 0.0
    %5502 = vmatprep.subr.mxu0 0.0
    %5503 = vmatpush1.msra.mxu0 0.0
    %5504 = vmatprep.subr.mxu0 0.0
    %5505 = vmatpush1.msra.mxu0 0.0
    %5506 = vmatprep.subr.mxu0 0.0
    %5507 = vmatpush1.msra.mxu0 0.0
    %5508 = vmatprep.subr.mxu0 0.0
    %5509 = vmatpush1.msra.mxu0 0.0
    %5510 = vmatprep.subr.mxu0 0.0
    %5511 = vmatpush1.msra.mxu0 0.0
    %5512 = vmatprep.subr.mxu0 0.0
    %5513 = vmatpush1.msra.mxu0 0.0
    %5514 = vmatprep.subr.mxu0 0.0
    %5515 = vmatpush1.msra.mxu0 0.0
    %5516 = vmatprep.subr.mxu0 0.0
    %5517 = vmatpush1.msra.mxu0 0.0
    %5518 = vmatprep.subr.mxu0 0.0
    %5519 = vmatpush1.msra.mxu0 0.0
    %5520 = vmatprep.subr.mxu0 0.0
    %5521 = vmatpush1.msra.mxu0 0.0
    %5522 = vmatprep.subr.mxu0 0.0
    %5523 = vmatpush1.msra.mxu0 0.0
    %5524 = vmatprep.subr.mxu0 0.0
    %5525 = vmatpush1.msra.mxu0 0.0
    %5526 = vmatprep.subr.mxu0 0.0
    %5527 = vmatpush1.msra.mxu0 0.0
    %5528 = vmatprep.subr.mxu0 0.0
    %5529 = vmatpush1.msra.mxu0 0.0
    %5530 = vmatprep.subr.mxu0 0.0
    %5531 = vmatpush1.msra.mxu0 0.0
    %5532 = vmatprep.subr.mxu0 0.0
    %5533 = vmatpush1.msra.mxu0 0.0
    %5534 = vmatprep.subr.mxu0 0.0
    %5535 = vmatpush1.msra.mxu0 0.0
    %5536 = vmatprep.subr.mxu0 0.0
    %5537 = vmatpush1.msra.mxu0 0.0
    %5538 = vmatprep.subr.mxu0 0.0
    %5539 = vmatpush1.msra.mxu0 0.0
    %5540 = vmatprep.mubr.f32.mxu0 0.0
    %5541 = vmatmul.mubr.f32.gmra.mrb[0].mxu0 %v533
    %v5542 = vpop.f32.mrb[0].mxu0
    %v5543 = vadd.f32 0.0, %v5542
    %v5544 = vpop.f32.mrb[0].mxu0
    %5545 = vmatprep.mubr.f32.mxu0 0.0
    %5546 = vmatmul.mubr.f32.gmra.mrb[0].mxu0 %v536
    %v5547 = vpop.f32.mrb[0].mxu0
    %v5548 = vadd.f32 0.0, %v5547
    %v5549 = vpop.f32.mrb[0].mxu0
    %5550 = vmatprep.mubr.f32.mxu0 0.0
    %5551 = vmatmul.mubr.f32.gmra.mrb[0].mxu0 %v539
    %v5552 = vpop.f32.mrb[0].mxu0
    %v5553 = vadd.f32 0.0, %v5552
    %v5554 = vpop.f32.mrb[0].mxu0
    %5555 = vmatprep.mubr.f32.mxu0 0.0
    %5556 = vmatmul.mubr.f32.gmra.mrb[0].mxu0 %v542
    %v5557 = vpop.f32.mrb[0].mxu0
    %v5558 = vadd.f32 0.0, %v5557
    %v5559 = vpop.f32.mrb[0].mxu0
    %5560 = vdwg.mxu0
    %v5561 = vld [vmem:[%s629] sm:$0xf]
    %v5563 = vsel %vm314, %v5543, 0
    %v5566 = vsel %vm314, %v5548, 0
    %v5569 = vsel %vm314, %v5553, 0
    %v5572 = vsel %vm314, %v5558, 0
    %v5575 = vsel %vm327, %v5561, 0
    %5577 = vmatprep.subr.mxu0 0.0
    %5578 = vmatpush1.msra.mxu0 %v5575
    %5579 = vmatprep.subr.mxu0 0.0
    %5580 = vmatpush1.msra.mxu0 0.0
    %5581 = vmatprep.subr.mxu0 0.0
    %5582 = vmatpush1.msra.mxu0 0.0
    %5583 = vmatprep.subr.mxu0 0.0
    %5584 = vmatpush1.msra.mxu0 0.0
    %5585 = vmatprep.subr.mxu0 0.0
    %5586 = vmatpush1.msra.mxu0 0.0
    %5587 = vmatprep.subr.mxu0 0.0
    %5588 = vmatpush1.msra.mxu0 0.0
    %5589 = vmatprep.subr.mxu0 0.0
    %5590 = vmatpush1.msra.mxu0 0.0
    %5591 = vmatprep.subr.mxu0 0.0
    %5592 = vmatpush1.msra.mxu0 0.0
    %5593 = vmatprep.subr.mxu0 0.0
    %5594 = vmatpush1.msra.mxu0 0.0
    %5595 = vmatprep.subr.mxu0 0.0
    %5596 = vmatpush1.msra.mxu0 0.0
    %5597 = vmatprep.subr.mxu0 0.0
    %5598 = vmatpush1.msra.mxu0 0.0
    %5599 = vmatprep.subr.mxu0 0.0
    %5600 = vmatpush1.msra.mxu0 0.0
    %5601 = vmatprep.subr.mxu0 0.0
    %5602 = vmatpush1.msra.mxu0 0.0
    %5603 = vmatprep.subr.mxu0 0.0
    %5604 = vmatpush1.msra.mxu0 0.0
    %5605 = vmatprep.subr.mxu0 0.0
    %5606 = vmatpush1.msra.mxu0 0.0
    %5607 = vmatprep.subr.mxu0 0.0
    %5608 = vmatpush1.msra.mxu0 0.0
    %5609 = vmatprep.subr.mxu0 0.0
    %5610 = vmatpush1.msra.mxu0 0.0
    %5611 = vmatprep.subr.mxu0 0.0
    %5612 = vmatpush1.msra.mxu0 0.0
    %5613 = vmatprep.subr.mxu0 0.0
    %5614 = vmatpush1.msra.mxu0 0.0
    %5615 = vmatprep.subr.mxu0 0.0
    %5616 = vmatpush1.msra.mxu0 0.0
    %5617 = vmatprep.subr.mxu0 0.0
    %5618 = vmatpush1.msra.mxu0 0.0
    %5619 = vmatprep.subr.mxu0 0.0
    %5620 = vmatpush1.msra.mxu0 0.0
    %5621 = vmatprep.subr.mxu0 0.0
    %5622 = vmatpush1.msra.mxu0 0.0
    %5623 = vmatprep.subr.mxu0 0.0
    %5624 = vmatpush1.msra.mxu0 0.0
    %5625 = vmatprep.subr.mxu0 0.0
    %5626 = vmatpush1.msra.mxu0 0.0
    %5627 = vmatprep.subr.mxu0 0.0
    %5628 = vmatpush1.msra.mxu0 0.0
    %5629 = vmatprep.subr.mxu0 0.0
    %5630 = vmatpush1.msra.mxu0 0.0
    %5631 = vmatprep.subr.mxu0 0.0
    %5632 = vmatpush1.msra.mxu0 0.0
    %5633 = vmatprep.subr.mxu0 0.0
    %5634 = vmatpush1.msra.mxu0 0.0
    %5635 = vmatprep.subr.mxu0 0.0
    %5636 = vmatpush1.msra.mxu0 0.0
    %5637 = vmatprep.subr.mxu0 0.0
    %5638 = vmatpush1.msra.mxu0 0.0
    %5639 = vmatprep.subr.mxu0 0.0
    %5640 = vmatpush1.msra.mxu0 0.0
    %5641 = vmatprep.mubr.f32.mxu0 0.0
    %5642 = vmatmul.mubr.f32.gmra.mrb[0].mxu0 %v5563
    %v5643 = vpop.f32.mrb[0].mxu0
    %v5644 = vadd.f32 0.0, %v5643
    %v5645 = vpop.f32.mrb[0].mxu0
    %5646 = vmatprep.mubr.f32.mxu0 0.0
    %5647 = vmatmul.mubr.f32.gmra.mrb[0].mxu0 %v5566
    %v5648 = vpop.f32.mrb[0].mxu0
    %v5649 = vadd.f32 0.0, %v5648
    %v5650 = vpop.f32.mrb[0].mxu0
    %5651 = vmatprep.mubr.f32.mxu0 0.0
    %5652 = vmatmul.mubr.f32.gmra.mrb[0].mxu0 %v5569
    %v5653 = vpop.f32.mrb[0].mxu0
    %v5654 = vadd.f32 0.0, %v5653
    %v5655 = vpop.f32.mrb[0].mxu0
    %5656 = vmatprep.mubr.f32.mxu0 0.0
    %5657 = vmatmul.mubr.f32.gmra.mrb[0].mxu0 %v5572
    %v5658 = vpop.f32.mrb[0].mxu0
    %v5659 = vadd.f32 0.0, %v5658
    %v5660 = vpop.f32.mrb[0].mxu0
    %5661 = vdwg.mxu0
    %v5662 = vadd.f32 %v5458, %v5644
    %v5663 = vadd.f32 %v5463, %v5649
    %v5664 = vadd.f32 %v5468, %v5654
    %v5665 = vadd.f32 %v5473, %v5659
    %v5666 = vld [vmem:[%s2] sm:$0x1]
    %v5668 = vlaneseq
    %v5669 = vshrl.u32 %v5668, 7
    %v5670 = vsub.s32 0, %v5669
    %v5671 = vrot.slane %v5666, %v5670
    %v5673 = vadd.f32 %v5662, %v5671
    %v5674 = vadd.f32 %v5663, %v5671
    %v5675 = vadd.f32 %v5664, %v5671
    %v5676 = vadd.f32 %v5665, %v5671
    %v5677 = vmax.f32 %v5673, 0.0
    %v5678 = vmax.f32 %v5674, 0.0
    %v5679 = vmax.f32 %v5675, 0.0
    %v5680 = vmax.f32 %v5676, 0.0
    %5685 = vrot.lane.b32.xlu0 %v5673, 126
    %v5686 = vpop.permute.xlu0 %5685
    %5687 = vrot.lane.b32.xlu0 %v5674, 126
    %v5688 = vpop.permute.xlu0 %5687
    %5689 = vrot.lane.b32.xlu0 %v5675, 126
    %v5690 = vpop.permute.xlu0 %5689
    %5691 = vrot.lane.b32.xlu0 %v5676, 126
    %v5692 = vpop.permute.xlu0 %5691
    %5697 = vmatprep.subr.mxu0 0.0
    %5698 = vmatpush1.msra.mxu0 %v5686
    %5699 = vmatprep.subr.mxu0 0.0
    %5700 = vmatpush1.msra.mxu0 %v5688
    %5701 = vmatprep.subr.mxu0 0.0
    %5702 = vmatpush1.msra.mxu0 %v5690
    %5703 = vmatprep.subr.mxu0 0.0
    %5704 = vmatpush1.msra.mxu0 %v5692
    %5705 = vmatprep.subr.mxu0 0.0
    %5706 = vmatpush1.msra.mxu0 0.0
    %5707 = vmatprep.subr.mxu0 0.0
    %5708 = vmatpush1.msra.mxu0 0.0
    %5709 = vmatprep.subr.mxu0 0.0
    %5710 = vmatpush1.msra.mxu0 0.0
    %5711 = vmatprep.subr.mxu0 0.0
    %5712 = vmatpush1.msra.mxu0 0.0
    %5713 = vmatprep.subr.mxu0 0.0
    %5714 = vmatpush1.msra.mxu0 0.0
    %5715 = vmatprep.subr.mxu0 0.0
    %5716 = vmatpush1.msra.mxu0 0.0
    %5717 = vmatprep.subr.mxu0 0.0
    %5718 = vmatpush1.msra.mxu0 0.0
    %5719 = vmatprep.subr.mxu0 0.0
    %5720 = vmatpush1.msra.mxu0 0.0
    %5721 = vmatprep.subr.mxu0 0.0
    %5722 = vmatpush1.msra.mxu0 0.0
    %5723 = vmatprep.subr.mxu0 0.0
    %5724 = vmatpush1.msra.mxu0 0.0
    %5725 = vmatprep.subr.mxu0 0.0
    %5726 = vmatpush1.msra.mxu0 0.0
    %5727 = vmatprep.subr.mxu0 0.0
    %5728 = vmatpush1.msra.mxu0 0.0
    %5729 = vmatprep.subr.mxu0 0.0
    %5730 = vmatpush1.msra.mxu0 0.0
    %5731 = vmatprep.subr.mxu0 0.0
    %5732 = vmatpush1.msra.mxu0 0.0
    %5733 = vmatprep.subr.mxu0 0.0
    %5734 = vmatpush1.msra.mxu0 0.0
    %5735 = vmatprep.subr.mxu0 0.0
    %5736 = vmatpush1.msra.mxu0 0.0
    %5737 = vmatprep.subr.mxu0 0.0
    %5738 = vmatpush1.msra.mxu0 0.0
    %5739 = vmatprep.subr.mxu0 0.0
    %5740 = vmatpush1.msra.mxu0 0.0
    %5741 = vmatprep.subr.mxu0 0.0
    %5742 = vmatpush1.msra.mxu0 0.0
    %5743 = vmatprep.subr.mxu0 0.0
    %5744 = vmatpush1.msra.mxu0 0.0
    %5745 = vmatprep.subr.mxu0 0.0
    %5746 = vmatpush1.msra.mxu0 0.0
    %5747 = vmatprep.subr.mxu0 0.0
    %5748 = vmatpush1.msra.mxu0 0.0
    %5749 = vmatprep.subr.mxu0 0.0
    %5750 = vmatpush1.msra.mxu0 0.0
    %5751 = vmatprep.subr.mxu0 0.0
    %5752 = vmatpush1.msra.mxu0 0.0
    %5753 = vmatprep.subr.mxu0 0.0
    %5754 = vmatpush1.msra.mxu0 0.0
    %5755 = vmatprep.subr.mxu0 0.0
    %5756 = vmatpush1.msra.mxu0 0.0
    %5757 = vmatprep.subr.mxu0 0.0
    %5758 = vmatpush1.msra.mxu0 0.0
    %5759 = vmatprep.subr.mxu0 0.0
    %5760 = vmatpush1.msra.mxu0 0.0
    %5761 = vmatprep.mubr.f32.mxu0 0.0
    %5762 = vmatmul.mubr.f32.gmra.mrb[0].mxu0 %v775
    %v5763 = vpop.f32.mrb[0].mxu0
    %v5764 = vadd.f32 0.0, %v5763
    %v5765 = vpop.f32.mrb[0].mxu0
    %5766 = vmatprep.mubr.f32.mxu0 0.0
    %5767 = vmatmul.mubr.f32.gmra.mrb[0].mxu0 %v778
    %v5768 = vpop.f32.mrb[0].mxu0
    %v5769 = vadd.f32 0.0, %v5768
    %v5770 = vpop.f32.mrb[0].mxu0
    %5771 = vdwg.mxu0
    %5772 = vmatprep.subr.mxu0 0.0
    %5773 = vmatpush1.msra.mxu0 %v5677
    %5774 = vmatprep.subr.mxu0 0.0
    %5775 = vmatpush1.msra.mxu0 %v5678
    %5776 = vmatprep.subr.mxu0 0.0
    %5777 = vmatpush1.msra.mxu0 %v5679
    %5778 = vmatprep.subr.mxu0 0.0
    %5779 = vmatpush1.msra.mxu0 %v5680
    %5780 = vmatprep.subr.mxu0 0.0
    %5781 = vmatpush1.msra.mxu0 0.0
    %5782 = vmatprep.subr.mxu0 0.0
    %5783 = vmatpush1.msra.mxu0 0.0
    %5784 = vmatprep.subr.mxu0 0.0
    %5785 = vmatpush1.msra.mxu0 0.0
    %5786 = vmatprep.subr.mxu0 0.0
    %5787 = vmatpush1.msra.mxu0 0.0
    %5788 = vmatprep.subr.mxu0 0.0
    %5789 = vmatpush1.msra.mxu0 0.0
    %5790 = vmatprep.subr.mxu0 0.0
    %5791 = vmatpush1.msra.mxu0 0.0
    %5792 = vmatprep.subr.mxu0 0.0
    %5793 = vmatpush1.msra.mxu0 0.0
    %5794 = vmatprep.subr.mxu0 0.0
    %5795 = vmatpush1.msra.mxu0 0.0
    %5796 = vmatprep.subr.mxu0 0.0
    %5797 = vmatpush1.msra.mxu0 0.0
    %5798 = vmatprep.subr.mxu0 0.0
    %5799 = vmatpush1.msra.mxu0 0.0
    %5800 = vmatprep.subr.mxu0 0.0
    %5801 = vmatpush1.msra.mxu0 0.0
    %5802 = vmatprep.subr.mxu0 0.0
    %5803 = vmatpush1.msra.mxu0 0.0
    %5804 = vmatprep.subr.mxu0 0.0
    %5805 = vmatpush1.msra.mxu0 0.0
    %5806 = vmatprep.subr.mxu0 0.0
    %5807 = vmatpush1.msra.mxu0 0.0
    %5808 = vmatprep.subr.mxu0 0.0
    %5809 = vmatpush1.msra.mxu0 0.0
    %5810 = vmatprep.subr.mxu0 0.0
    %5811 = vmatpush1.msra.mxu0 0.0
    %5812 = vmatprep.subr.mxu0 0.0
    %5813 = vmatpush1.msra.mxu0 0.0
    %5814 = vmatprep.subr.mxu0 0.0
    %5815 = vmatpush1.msra.mxu0 0.0
    %5816 = vmatprep.subr.mxu0 0.0
    %5817 = vmatpush1.msra.mxu0 0.0
    %5818 = vmatprep.subr.mxu0 0.0
    %5819 = vmatpush1.msra.mxu0 0.0
    %5820 = vmatprep.subr.mxu0 0.0
    %5821 = vmatpush1.msra.mxu0 0.0
    %5822 = vmatprep.subr.mxu0 0.0
    %5823 = vmatpush1.msra.mxu0 0.0
    %5824 = vmatprep.subr.mxu0 0.0
    %5825 = vmatpush1.msra.mxu0 0.0
    %5826 = vmatprep.subr.mxu0 0.0
    %5827 = vmatpush1.msra.mxu0 0.0
    %5828 = vmatprep.subr.mxu0 0.0
    %5829 = vmatpush1.msra.mxu0 0.0
    %5830 = vmatprep.subr.mxu0 0.0
    %5831 = vmatpush1.msra.mxu0 0.0
    %5832 = vmatprep.subr.mxu0 0.0
    %5833 = vmatpush1.msra.mxu0 0.0
    %5834 = vmatprep.subr.mxu0 0.0
    %5835 = vmatpush1.msra.mxu0 0.0
    %5836 = vmatprep.mubr.f32.mxu0 0.0
    %5837 = vmatmul.mubr.f32.gmra.mrb[0].mxu0 %v864
    %v5838 = vpop.f32.mrb[0].mxu0
    %v5839 = vadd.f32 0.0, %v5838
    %v5840 = vpop.f32.mrb[0].mxu0
    %5841 = vmatprep.mubr.f32.mxu0 0.0
    %5842 = vmatmul.mubr.f32.gmra.mrb[0].mxu0 %v867
    %v5843 = vpop.f32.mrb[0].mxu0
    %v5844 = vadd.f32 0.0, %v5843
    %v5845 = vpop.f32.mrb[0].mxu0
    %5846 = vdwg.mxu0
    %v5847 = vld [vmem:[#allocation5] sm:$0x3]
    %5848 = vmatprep.subr.mxu0 0.0
    %5849 = vmatpush1.msra.mxu0 %v5677
    %5850 = vmatprep.subr.mxu0 0.0
    %5851 = vmatpush1.msra.mxu0 %v5678
    %5852 = vmatprep.subr.mxu0 0.0
    %5853 = vmatpush1.msra.mxu0 %v5679
    %5854 = vmatprep.subr.mxu0 0.0
    %5855 = vmatpush1.msra.mxu0 %v5680
    %5856 = vmatprep.subr.mxu0 0.0
    %5857 = vmatpush1.msra.mxu0 0.0
    %5858 = vmatprep.subr.mxu0 0.0
    %5859 = vmatpush1.msra.mxu0 0.0
    %5860 = vmatprep.subr.mxu0 0.0
    %5861 = vmatpush1.msra.mxu0 0.0
    %5862 = vmatprep.subr.mxu0 0.0
    %5863 = vmatpush1.msra.mxu0 0.0
    %5864 = vmatprep.subr.mxu0 0.0
    %5865 = vmatpush1.msra.mxu0 0.0
    %5866 = vmatprep.subr.mxu0 0.0
    %5867 = vmatpush1.msra.mxu0 0.0
    %5868 = vmatprep.subr.mxu0 0.0
    %5869 = vmatpush1.msra.mxu0 0.0
    %5870 = vmatprep.subr.mxu0 0.0
    %5871 = vmatpush1.msra.mxu0 0.0
    %5872 = vmatprep.subr.mxu0 0.0
    %5873 = vmatpush1.msra.mxu0 0.0
    %5874 = vmatprep.subr.mxu0 0.0
    %5875 = vmatpush1.msra.mxu0 0.0
    %5876 = vmatprep.subr.mxu0 0.0
    %5877 = vmatpush1.msra.mxu0 0.0
    %5878 = vmatprep.subr.mxu0 0.0
    %5879 = vmatpush1.msra.mxu0 0.0
    %5880 = vmatprep.subr.mxu0 0.0
    %5881 = vmatpush1.msra.mxu0 0.0
    %5882 = vmatprep.subr.mxu0 0.0
    %5883 = vmatpush1.msra.mxu0 0.0
    %5884 = vmatprep.subr.mxu0 0.0
    %5885 = vmatpush1.msra.mxu0 0.0
    %5886 = vmatprep.subr.mxu0 0.0
    %5887 = vmatpush1.msra.mxu0 0.0
    %5888 = vmatprep.subr.mxu0 0.0
    %5889 = vmatpush1.msra.mxu0 0.0
    %5890 = vmatprep.subr.mxu0 0.0
    %5891 = vmatpush1.msra.mxu0 0.0
    %5892 = vmatprep.subr.mxu0 0.0
    %5893 = vmatpush1.msra.mxu0 0.0
    %5894 = vmatprep.subr.mxu0 0.0
    %5895 = vmatpush1.msra.mxu0 0.0
    %5896 = vmatprep.subr.mxu0 0.0
    %5897 = vmatpush1.msra.mxu0 0.0
    %5898 = vmatprep.subr.mxu0 0.0
    %5899 = vmatpush1.msra.mxu0 0.0
    %5900 = vmatprep.subr.mxu0 0.0
    %5901 = vmatpush1.msra.mxu0 0.0
    %5902 = vmatprep.subr.mxu0 0.0
    %5903 = vmatpush1.msra.mxu0 0.0
    %5904 = vmatprep.subr.mxu0 0.0
    %5905 = vmatpush1.msra.mxu0 0.0
    %5906 = vmatprep.subr.mxu0 0.0
    %5907 = vmatpush1.msra.mxu0 0.0
    %5908 = vmatprep.subr.mxu0 0.0
    %5909 = vmatpush1.msra.mxu0 0.0
    %5910 = vmatprep.subr.mxu0 0.0
    %5911 = vmatpush1.msra.mxu0 0.0
    %5912 = vmatprep.mubr.f32.mxu0 0.0
    %5913 = vmatmul.mubr.f32.gmra.mrb[0].mxu0 %v775
    %v5914 = vpop.f32.mrb[0].mxu0
    %v5915 = vadd.f32 0.0, %v5914
    %v5916 = vpop.f32.mrb[0].mxu0
    %5917 = vmatprep.mubr.f32.mxu0 0.0
    %5918 = vmatmul.mubr.f32.gmra.mrb[0].mxu0 %v778
    %v5919 = vpop.f32.mrb[0].mxu0
    %v5920 = vadd.f32 0.0, %v5919
    %v5921 = vpop.f32.mrb[0].mxu0
    %5922 = vdwg.mxu0
    %v5923 = vld [vmem:[%s1020] sm:$0x3]
    %v5925 = vsel %vm1022, %v5915, 0
    %v5928 = vsel %vm1022, %v5920, 0
    %v5931 = vsel %vm1029, %v5923, 0
    %5933 = vmatprep.subr.mxu0 0.0
    %5934 = vmatpush1.msra.mxu0 %v5931
    %5935 = vmatprep.subr.mxu0 0.0
    %5936 = vmatpush1.msra.mxu0 0.0
    %5937 = vmatprep.subr.mxu0 0.0
    %5938 = vmatpush1.msra.mxu0 0.0
    %5939 = vmatprep.subr.mxu0 0.0
    %5940 = vmatpush1.msra.mxu0 0.0
    %5941 = vmatprep.subr.mxu0 0.0
    %5942 = vmatpush1.msra.mxu0 0.0
    %5943 = vmatprep.subr.mxu0 0.0
    %5944 = vmatpush1.msra.mxu0 0.0
    %5945 = vmatprep.subr.mxu0 0.0
    %5946 = vmatpush1.msra.mxu0 0.0
    %5947 = vmatprep.subr.mxu0 0.0
    %5948 = vmatpush1.msra.mxu0 0.0
    %5949 = vmatprep.subr.mxu0 0.0
    %5950 = vmatpush1.msra.mxu0 0.0
    %5951 = vmatprep.subr.mxu0 0.0
    %5952 = vmatpush1.msra.mxu0 0.0
    %5953 = vmatprep.subr.mxu0 0.0
    %5954 = vmatpush1.msra.mxu0 0.0
    %5955 = vmatprep.subr.mxu0 0.0
    %5956 = vmatpush1.msra.mxu0 0.0
    %5957 = vmatprep.subr.mxu0 0.0
    %5958 = vmatpush1.msra.mxu0 0.0
    %5959 = vmatprep.subr.mxu0 0.0
    %5960 = vmatpush1.msra.mxu0 0.0
    %5961 = vmatprep.subr.mxu0 0.0
    %5962 = vmatpush1.msra.mxu0 0.0
    %5963 = vmatprep.subr.mxu0 0.0
    %5964 = vmatpush1.msra.mxu0 0.0
    %5965 = vmatprep.subr.mxu0 0.0
    %5966 = vmatpush1.msra.mxu0 0.0
    %5967 = vmatprep.subr.mxu0 0.0
    %5968 = vmatpush1.msra.mxu0 0.0
    %5969 = vmatprep.subr.mxu0 0.0
    %5970 = vmatpush1.msra.mxu0 0.0
    %5971 = vmatprep.subr.mxu0 0.0
    %5972 = vmatpush1.msra.mxu0 0.0
    %5973 = vmatprep.subr.mxu0 0.0
    %5974 = vmatpush1.msra.mxu0 0.0
    %5975 = vmatprep.subr.mxu0 0.0
    %5976 = vmatpush1.msra.mxu0 0.0
    %5977 = vmatprep.subr.mxu0 0.0
    %5978 = vmatpush1.msra.mxu0 0.0
    %5979 = vmatprep.subr.mxu0 0.0
    %5980 = vmatpush1.msra.mxu0 0.0
    %5981 = vmatprep.subr.mxu0 0.0
    %5982 = vmatpush1.msra.mxu0 0.0
    %5983 = vmatprep.subr.mxu0 0.0
    %5984 = vmatpush1.msra.mxu0 0.0
    %5985 = vmatprep.subr.mxu0 0.0
    %5986 = vmatpush1.msra.mxu0 0.0
    %5987 = vmatprep.subr.mxu0 0.0
    %5988 = vmatpush1.msra.mxu0 0.0
    %5989 = vmatprep.subr.mxu0 0.0
    %5990 = vmatpush1.msra.mxu0 0.0
    %5991 = vmatprep.subr.mxu0 0.0
    %5992 = vmatpush1.msra.mxu0 0.0
    %5993 = vmatprep.subr.mxu0 0.0
    %5994 = vmatpush1.msra.mxu0 0.0
    %5995 = vmatprep.subr.mxu0 0.0
    %5996 = vmatpush1.msra.mxu0 0.0
    %5997 = vmatprep.mubr.f32.mxu0 0.0
    %5998 = vmatmul.mubr.f32.gmra.mrb[0].mxu0 %v5925
    %v5999 = vpop.f32.mrb[0].mxu0
    %v6000 = vadd.f32 0.0, %v5999
    %v6001 = vpop.f32.mrb[0].mxu0
    %6002 = vmatprep.mubr.f32.mxu0 0.0
    %6003 = vmatmul.mubr.f32.gmra.mrb[0].mxu0 %v5928
    %v6004 = vpop.f32.mrb[0].mxu0
    %v6005 = vadd.f32 0.0, %v6004
    %v6006 = vpop.f32.mrb[0].mxu0
    %6007 = vdwg.mxu0
    %v6009 = vsel %vm1022, %v5839, 0
    %v6012 = vsel %vm1022, %v5844, 0
    %v6015 = vsel %vm1029, %v5847, 0
    %6017 = vmatprep.subr.mxu0 0.0
    %6018 = vmatpush1.msra.mxu0 %v6015
    %6019 = vmatprep.subr.mxu0 0.0
    %6020 = vmatpush1.msra.mxu0 0.0
    %6021 = vmatprep.subr.mxu0 0.0
    %6022 = vmatpush1.msra.mxu0 0.0
    %6023 = vmatprep.subr.mxu0 0.0
    %6024 = vmatpush1.msra.mxu0 0.0
    %6025 = vmatprep.subr.mxu0 0.0
    %6026 = vmatpush1.msra.mxu0 0.0
    %6027 = vmatprep.subr.mxu0 0.0
    %6028 = vmatpush1.msra.mxu0 0.0
    %6029 = vmatprep.subr.mxu0 0.0
    %6030 = vmatpush1.msra.mxu0 0.0
    %6031 = vmatprep.subr.mxu0 0.0
    %6032 = vmatpush1.msra.mxu0 0.0
    %6033 = vmatprep.subr.mxu0 0.0
    %6034 = vmatpush1.msra.mxu0 0.0
    %6035 = vmatprep.subr.mxu0 0.0
    %6036 = vmatpush1.msra.mxu0 0.0
    %6037 = vmatprep.subr.mxu0 0.0
    %6038 = vmatpush1.msra.mxu0 0.0
    %6039 = vmatprep.subr.mxu0 0.0
    %6040 = vmatpush1.msra.mxu0 0.0
    %6041 = vmatprep.subr.mxu0 0.0
    %6042 = vmatpush1.msra.mxu0 0.0
    %6043 = vmatprep.subr.mxu0 0.0
    %6044 = vmatpush1.msra.mxu0 0.0
    %6045 = vmatprep.subr.mxu0 0.0
    %6046 = vmatpush1.msra.mxu0 0.0
    %6047 = vmatprep.subr.mxu0 0.0
    %6048 = vmatpush1.msra.mxu0 0.0
    %6049 = vmatprep.subr.mxu0 0.0
    %6050 = vmatpush1.msra.mxu0 0.0
    %6051 = vmatprep.subr.mxu0 0.0
    %6052 = vmatpush1.msra.mxu0 0.0
    %6053 = vmatprep.subr.mxu0 0.0
    %6054 = vmatpush1.msra.mxu0 0.0
    %6055 = vmatprep.subr.mxu0 0.0
    %6056 = vmatpush1.msra.mxu0 0.0
    %6057 = vmatprep.subr.mxu0 0.0
    %6058 = vmatpush1.msra.mxu0 0.0
    %6059 = vmatprep.subr.mxu0 0.0
    %6060 = vmatpush1.msra.mxu0 0.0
    %6061 = vmatprep.subr.mxu0 0.0
    %6062 = vmatpush1.msra.mxu0 0.0
    %6063 = vmatprep.subr.mxu0 0.0
    %6064 = vmatpush1.msra.mxu0 0.0
    %6065 = vmatprep.subr.mxu0 0.0
    %6066 = vmatpush1.msra.mxu0 0.0
    %6067 = vmatprep.subr.mxu0 0.0
    %6068 = vmatpush1.msra.mxu0 0.0
    %6069 = vmatprep.subr.mxu0 0.0
    %6070 = vmatpush1.msra.mxu0 0.0
    %6071 = vmatprep.subr.mxu0 0.0
    %6072 = vmatpush1.msra.mxu0 0.0
    %6073 = vmatprep.subr.mxu0 0.0
    %6074 = vmatpush1.msra.mxu0 0.0
    %6075 = vmatprep.subr.mxu0 0.0
    %6076 = vmatpush1.msra.mxu0 0.0
    %6077 = vmatprep.subr.mxu0 0.0
    %6078 = vmatpush1.msra.mxu0 0.0
    %6079 = vmatprep.subr.mxu0 0.0
    %6080 = vmatpush1.msra.mxu0 0.0
    %6081 = vmatprep.mubr.f32.mxu0 0.0
    %6082 = vmatmul.mubr.f32.gmra.mrb[0].mxu0 %v6009
    %v6083 = vpop.f32.mrb[0].mxu0
    %v6084 = vadd.f32 %v6000, %v6083
    %v6085 = vpop.f32.mrb[0].mxu0
    %6086 = vmatprep.mubr.f32.mxu0 0.0
    %6087 = vmatmul.mubr.f32.gmra.mrb[0].mxu0 %v6012
    %v6088 = vpop.f32.mrb[0].mxu0
    %v6089 = vadd.f32 %v6005, %v6088
    %v6090 = vpop.f32.mrb[0].mxu0
    %6091 = vdwg.mxu0
    %6092 = vmatprep.subr.mxu0 0.0
    %6093 = vmatpush1.msra.mxu0 %v5677
    %6094 = vmatprep.subr.mxu0 0.0
    %6095 = vmatpush1.msra.mxu0 %v5678
    %6096 = vmatprep.subr.mxu0 0.0
    %6097 = vmatpush1.msra.mxu0 %v5679
    %6098 = vmatprep.subr.mxu0 0.0
    %6099 = vmatpush1.msra.mxu0 %v5680
    %6100 = vmatprep.subr.mxu0 0.0
    %6101 = vmatpush1.msra.mxu0 0.0
    %6102 = vmatprep.subr.mxu0 0.0
    %6103 = vmatpush1.msra.mxu0 0.0
    %6104 = vmatprep.subr.mxu0 0.0
    %6105 = vmatpush1.msra.mxu0 0.0
    %6106 = vmatprep.subr.mxu0 0.0
    %6107 = vmatpush1.msra.mxu0 0.0
    %6108 = vmatprep.subr.mxu0 0.0
    %6109 = vmatpush1.msra.mxu0 0.0
    %6110 = vmatprep.subr.mxu0 0.0
    %6111 = vmatpush1.msra.mxu0 0.0
    %6112 = vmatprep.subr.mxu0 0.0
    %6113 = vmatpush1.msra.mxu0 0.0
    %6114 = vmatprep.subr.mxu0 0.0
    %6115 = vmatpush1.msra.mxu0 0.0
    %6116 = vmatprep.subr.mxu0 0.0
    %6117 = vmatpush1.msra.mxu0 0.0
    %6118 = vmatprep.subr.mxu0 0.0
    %6119 = vmatpush1.msra.mxu0 0.0
    %6120 = vmatprep.subr.mxu0 0.0
    %6121 = vmatpush1.msra.mxu0 0.0
    %6122 = vmatprep.subr.mxu0 0.0
    %6123 = vmatpush1.msra.mxu0 0.0
    %6124 = vmatprep.subr.mxu0 0.0
    %6125 = vmatpush1.msra.mxu0 0.0
    %6126 = vmatprep.subr.mxu0 0.0
    %6127 = vmatpush1.msra.mxu0 0.0
    %6128 = vmatprep.subr.mxu0 0.0
    %6129 = vmatpush1.msra.mxu0 0.0
    %6130 = vmatprep.subr.mxu0 0.0
    %6131 = vmatpush1.msra.mxu0 0.0
    %6132 = vmatprep.subr.mxu0 0.0
    %6133 = vmatpush1.msra.mxu0 0.0
    %6134 = vmatprep.subr.mxu0 0.0
    %6135 = vmatpush1.msra.mxu0 0.0
    %6136 = vmatprep.subr.mxu0 0.0
    %6137 = vmatpush1.msra.mxu0 0.0
    %6138 = vmatprep.subr.mxu0 0.0
    %6139 = vmatpush1.msra.mxu0 0.0
    %6140 = vmatprep.subr.mxu0 0.0
    %6141 = vmatpush1.msra.mxu0 0.0
    %6142 = vmatprep.subr.mxu0 0.0
    %6143 = vmatpush1.msra.mxu0 0.0
    %6144 = vmatprep.subr.mxu0 0.0
    %6145 = vmatpush1.msra.mxu0 0.0
    %6146 = vmatprep.subr.mxu0 0.0
    %6147 = vmatpush1.msra.mxu0 0.0
    %6148 = vmatprep.subr.mxu0 0.0
    %6149 = vmatpush1.msra.mxu0 0.0
    %6150 = vmatprep.subr.mxu0 0.0
    %6151 = vmatpush1.msra.mxu0 0.0
    %6152 = vmatprep.subr.mxu0 0.0
    %6153 = vmatpush1.msra.mxu0 0.0
    %6154 = vmatprep.subr.mxu0 0.0
    %6155 = vmatpush1.msra.mxu0 0.0
    %6156 = vmatprep.mubr.f32.mxu0 0.0
    %6157 = vmatmul.mubr.f32.gmra.mrb[0].mxu0 %v1201
    %v6158 = vpop.f32.mrb[0].mxu0
    %v6159 = vadd.f32 0.0, %v6158
    %v6160 = vpop.f32.mrb[0].mxu0
    %6161 = vmatprep.mubr.f32.mxu0 0.0
    %6162 = vmatmul.mubr.f32.gmra.mrb[0].mxu0 %v1204
    %v6163 = vpop.f32.mrb[0].mxu0
    %v6164 = vadd.f32 0.0, %v6163
    %v6165 = vpop.f32.mrb[0].mxu0
    %6166 = vdwg.mxu0
    %v6167 = vld [vmem:[%s1281] sm:$0x3]
    %v6169 = vsel %vm1022, %v6159, 0
    %v6172 = vsel %vm1022, %v6164, 0
    %v6175 = vsel %vm1029, %v6167, 0
    %6177 = vmatprep.subr.mxu0 0.0
    %6178 = vmatpush1.msra.mxu0 %v6175
    %6179 = vmatprep.subr.mxu0 0.0
    %6180 = vmatpush1.msra.mxu0 0.0
    %6181 = vmatprep.subr.mxu0 0.0
    %6182 = vmatpush1.msra.mxu0 0.0
    %6183 = vmatprep.subr.mxu0 0.0
    %6184 = vmatpush1.msra.mxu0 0.0
    %6185 = vmatprep.subr.mxu0 0.0
    %6186 = vmatpush1.msra.mxu0 0.0
    %6187 = vmatprep.subr.mxu0 0.0
    %6188 = vmatpush1.msra.mxu0 0.0
    %6189 = vmatprep.subr.mxu0 0.0
    %6190 = vmatpush1.msra.mxu0 0.0
    %6191 = vmatprep.subr.mxu0 0.0
    %6192 = vmatpush1.msra.mxu0 0.0
    %6193 = vmatprep.subr.mxu0 0.0
    %6194 = vmatpush1.msra.mxu0 0.0
    %6195 = vmatprep.subr.mxu0 0.0
    %6196 = vmatpush1.msra.mxu0 0.0
    %6197 = vmatprep.subr.mxu0 0.0
    %6198 = vmatpush1.msra.mxu0 0.0
    %6199 = vmatprep.subr.mxu0 0.0
    %6200 = vmatpush1.msra.mxu0 0.0
    %6201 = vmatprep.subr.mxu0 0.0
    %6202 = vmatpush1.msra.mxu0 0.0
    %6203 = vmatprep.subr.mxu0 0.0
    %6204 = vmatpush1.msra.mxu0 0.0
    %6205 = vmatprep.subr.mxu0 0.0
    %6206 = vmatpush1.msra.mxu0 0.0
    %6207 = vmatprep.subr.mxu0 0.0
    %6208 = vmatpush1.msra.mxu0 0.0
    %6209 = vmatprep.subr.mxu0 0.0
    %6210 = vmatpush1.msra.mxu0 0.0
    %6211 = vmatprep.subr.mxu0 0.0
    %6212 = vmatpush1.msra.mxu0 0.0
    %6213 = vmatprep.subr.mxu0 0.0
    %6214 = vmatpush1.msra.mxu0 0.0
    %6215 = vmatprep.subr.mxu0 0.0
    %6216 = vmatpush1.msra.mxu0 0.0
    %6217 = vmatprep.subr.mxu0 0.0
    %6218 = vmatpush1.msra.mxu0 0.0
    %6219 = vmatprep.subr.mxu0 0.0
    %6220 = vmatpush1.msra.mxu0 0.0
    %6221 = vmatprep.subr.mxu0 0.0
    %6222 = vmatpush1.msra.mxu0 0.0
    %6223 = vmatprep.subr.mxu0 0.0
    %6224 = vmatpush1.msra.mxu0 0.0
    %6225 = vmatprep.subr.mxu0 0.0
    %6226 = vmatpush1.msra.mxu0 0.0
    %6227 = vmatprep.subr.mxu0 0.0
    %6228 = vmatpush1.msra.mxu0 0.0
    %6229 = vmatprep.subr.mxu0 0.0
    %6230 = vmatpush1.msra.mxu0 0.0
    %6231 = vmatprep.subr.mxu0 0.0
    %6232 = vmatpush1.msra.mxu0 0.0
    %6233 = vmatprep.subr.mxu0 0.0
    %6234 = vmatpush1.msra.mxu0 0.0
    %6235 = vmatprep.subr.mxu0 0.0
    %6236 = vmatpush1.msra.mxu0 0.0
    %6237 = vmatprep.subr.mxu0 0.0
    %6238 = vmatpush1.msra.mxu0 0.0
    %6239 = vmatprep.subr.mxu0 0.0
    %6240 = vmatpush1.msra.mxu0 0.0
    %6241 = vmatprep.mubr.f32.mxu0 0.0
    %6242 = vmatmul.mubr.f32.gmra.mrb[0].mxu0 %v6169
    %v6243 = vpop.f32.mrb[0].mxu0
    %v6244 = vadd.f32 0.0, %v6243
    %v6245 = vpop.f32.mrb[0].mxu0
    %6246 = vmatprep.mubr.f32.mxu0 0.0
    %6247 = vmatmul.mubr.f32.gmra.mrb[0].mxu0 %v6172
    %v6248 = vpop.f32.mrb[0].mxu0
    %v6249 = vadd.f32 0.0, %v6248
    %v6250 = vpop.f32.mrb[0].mxu0
    %6251 = vdwg.mxu0
    %v6252 = vadd.f32 %v6084, %v6244
    %v6253 = vadd.f32 %v6089, %v6249
    %v6254 = vld [vmem:[%s4] sm:$0x1]
    %v6256 = vlaneseq
    %v6257 = vshrl.u32 %v6256, 7
    %v6258 = vsub.s32 0, %v6257
    %v6259 = vrot.slane %v6254, %v6258
    %v6261 = vadd.f32 %v6252, %v6259
    %v6262 = vadd.f32 %v6253, %v6259
    %v6263 = vadd.f32 %v6261, %v5764
    %v6264 = vadd.f32 %v6262, %v5769
    %v6265 = vmax.f32 %v6263, 0.0
    %v6266 = vmax.f32 %v6264, 0.0
    %6267 = vmatprep.subr.mxu0 0.0
    %6268 = vmatpush1.msra.mxu0 %v6265
    %6269 = vmatprep.subr.mxu0 0.0
    %6270 = vmatpush1.msra.mxu0 %v6266
    %6271 = vmatprep.subr.mxu0 0.0
    %6272 = vmatpush1.msra.mxu0 0.0
    %6273 = vmatprep.subr.mxu0 0.0
    %6274 = vmatpush1.msra.mxu0 0.0
    %6275 = vmatprep.subr.mxu0 0.0
    %6276 = vmatpush1.msra.mxu0 0.0
    %6277 = vmatprep.subr.mxu0 0.0
    %6278 = vmatpush1.msra.mxu0 0.0
    %6279 = vmatprep.subr.mxu0 0.0
    %6280 = vmatpush1.msra.mxu0 0.0
    %6281 = vmatprep.subr.mxu0 0.0
    %6282 = vmatpush1.msra.mxu0 0.0
    %6283 = vmatprep.subr.mxu0 0.0
    %6284 = vmatpush1.msra.mxu0 0.0
    %6285 = vmatprep.subr.mxu0 0.0
    %6286 = vmatpush1.msra.mxu0 0.0
    %6287 = vmatprep.subr.mxu0 0.0
    %6288 = vmatpush1.msra.mxu0 0.0
    %6289 = vmatprep.subr.mxu0 0.0
    %6290 = vmatpush1.msra.mxu0 0.0
    %6291 = vmatprep.subr.mxu0 0.0
    %6292 = vmatpush1.msra.mxu0 0.0
    %6293 = vmatprep.subr.mxu0 0.0
    %6294 = vmatpush1.msra.mxu0 0.0
    %6295 = vmatprep.subr.mxu0 0.0
    %6296 = vmatpush1.msra.mxu0 0.0
    %6297 = vmatprep.subr.mxu0 0.0
    %6298 = vmatpush1.msra.mxu0 0.0
    %6299 = vmatprep.subr.mxu0 0.0
    %6300 = vmatpush1.msra.mxu0 0.0
    %6301 = vmatprep.subr.mxu0 0.0
    %6302 = vmatpush1.msra.mxu0 0.0
    %6303 = vmatprep.subr.mxu0 0.0
    %6304 = vmatpush1.msra.mxu0 0.0
    %6305 = vmatprep.subr.mxu0 0.0
    %6306 = vmatpush1.msra.mxu0 0.0
    %6307 = vmatprep.subr.mxu0 0.0
    %6308 = vmatpush1.msra.mxu0 0.0
    %6309 = vmatprep.subr.mxu0 0.0
    %6310 = vmatpush1.msra.mxu0 0.0
    %6311 = vmatprep.subr.mxu0 0.0
    %6312 = vmatpush1.msra.mxu0 0.0
    %6313 = vmatprep.subr.mxu0 0.0
    %6314 = vmatpush1.msra.mxu0 0.0
    %6315 = vmatprep.subr.mxu0 0.0
    %6316 = vmatpush1.msra.mxu0 0.0
    %6317 = vmatprep.subr.mxu0 0.0
    %6318 = vmatpush1.msra.mxu0 0.0
    %6319 = vmatprep.subr.mxu0 0.0
    %6320 = vmatpush1.msra.mxu0 0.0
    %6321 = vmatprep.subr.mxu0 0.0
    %6322 = vmatpush1.msra.mxu0 0.0
    %6323 = vmatprep.subr.mxu0 0.0
    %6324 = vmatpush1.msra.mxu0 0.0
    %6325 = vmatprep.subr.mxu0 0.0
    %6326 = vmatpush1.msra.mxu0 0.0
    %6327 = vmatprep.subr.mxu0 0.0
    %6328 = vmatpush1.msra.mxu0 0.0
    %6329 = vmatprep.subr.mxu0 0.0
    %6330 = vmatpush1.msra.mxu0 0.0
    %6331 = vmatprep.mubr.f32.mxu0 0.0
    %6332 = vmatmul.mubr.f32.gmra.mrb[0].mxu0 %v1383
    %v6333 = vpop.f32.mrb[0].mxu0
    %v6334 = vadd.f32 0.0, %v6333
    %v6335 = vpop.f32.mrb[0].mxu0
    %6336 = vmatprep.mubr.f32.mxu0 0.0
    %6337 = vmatmul.mubr.f32.gmra.mrb[0].mxu0 %v1385
    %v6338 = vpop.f32.mrb[0].mxu0
    %v6339 = vadd.f32 0.0, %v6338
    %v6340 = vpop.f32.mrb[0].mxu0
    %6341 = vdwg.mxu0
    %v6342 = vld [vmem:[#allocation7] sm:$0x3]
    %v6343 = vld [vmem:[%s1463] sm:$0x3]
    %v6345 = vsel %vm1022, %v6265, 0
    %v6348 = vsel %vm1022, %v6266, 0
    %v6351 = vsel %vm1029, %v6343, 0
    %6353 = vmatprep.subr.mxu0 0.0
    %6354 = vmatpush1.msra.mxu0 %v6351
    %6355 = vmatprep.subr.mxu0 0.0
    %6356 = vmatpush1.msra.mxu0 0.0
    %6357 = vmatprep.subr.mxu0 0.0
    %6358 = vmatpush1.msra.mxu0 0.0
    %6359 = vmatprep.subr.mxu0 0.0
    %6360 = vmatpush1.msra.mxu0 0.0
    %6361 = vmatprep.subr.mxu0 0.0
    %6362 = vmatpush1.msra.mxu0 0.0
    %6363 = vmatprep.subr.mxu0 0.0
    %6364 = vmatpush1.msra.mxu0 0.0
    %6365 = vmatprep.subr.mxu0 0.0
    %6366 = vmatpush1.msra.mxu0 0.0
    %6367 = vmatprep.subr.mxu0 0.0
    %6368 = vmatpush1.msra.mxu0 0.0
    %6369 = vmatprep.subr.mxu0 0.0
    %6370 = vmatpush1.msra.mxu0 0.0
    %6371 = vmatprep.subr.mxu0 0.0
    %6372 = vmatpush1.msra.mxu0 0.0
    %6373 = vmatprep.subr.mxu0 0.0
    %6374 = vmatpush1.msra.mxu0 0.0
    %6375 = vmatprep.subr.mxu0 0.0
    %6376 = vmatpush1.msra.mxu0 0.0
    %6377 = vmatprep.subr.mxu0 0.0
    %6378 = vmatpush1.msra.mxu0 0.0
    %6379 = vmatprep.subr.mxu0 0.0
    %6380 = vmatpush1.msra.mxu0 0.0
    %6381 = vmatprep.subr.mxu0 0.0
    %6382 = vmatpush1.msra.mxu0 0.0
    %6383 = vmatprep.subr.mxu0 0.0
    %6384 = vmatpush1.msra.mxu0 0.0
    %6385 = vmatprep.subr.mxu0 0.0
    %6386 = vmatpush1.msra.mxu0 0.0
    %6387 = vmatprep.subr.mxu0 0.0
    %6388 = vmatpush1.msra.mxu0 0.0
    %6389 = vmatprep.subr.mxu0 0.0
    %6390 = vmatpush1.msra.mxu0 0.0
    %6391 = vmatprep.subr.mxu0 0.0
    %6392 = vmatpush1.msra.mxu0 0.0
    %6393 = vmatprep.subr.mxu0 0.0
    %6394 = vmatpush1.msra.mxu0 0.0
    %6395 = vmatprep.subr.mxu0 0.0
    %6396 = vmatpush1.msra.mxu0 0.0
    %6397 = vmatprep.subr.mxu0 0.0
    %6398 = vmatpush1.msra.mxu0 0.0
    %6399 = vmatprep.subr.mxu0 0.0
    %6400 = vmatpush1.msra.mxu0 0.0
    %6401 = vmatprep.subr.mxu0 0.0
    %6402 = vmatpush1.msra.mxu0 0.0
    %6403 = vmatprep.subr.mxu0 0.0
    %6404 = vmatpush1.msra.mxu0 0.0
    %6405 = vmatprep.subr.mxu0 0.0
    %6406 = vmatpush1.msra.mxu0 0.0
    %6407 = vmatprep.subr.mxu0 0.0
    %6408 = vmatpush1.msra.mxu0 0.0
    %6409 = vmatprep.subr.mxu0 0.0
    %6410 = vmatpush1.msra.mxu0 0.0
    %6411 = vmatprep.subr.mxu0 0.0
    %6412 = vmatpush1.msra.mxu0 0.0
    %6413 = vmatprep.subr.mxu0 0.0
    %6414 = vmatpush1.msra.mxu0 0.0
    %6415 = vmatprep.subr.mxu0 0.0
    %6416 = vmatpush1.msra.mxu0 0.0
    %6417 = vmatprep.mubr.f32.mxu0 0.0
    %6418 = vmatmul.mubr.f32.gmra.mrb[0].mxu0 %v6345
    %v6419 = vpop.f32.mrb[0].mxu0
    %v6420 = vadd.f32 0.0, %v6419
    %v6421 = vpop.f32.mrb[0].mxu0
    %6422 = vmatprep.mubr.f32.mxu0 0.0
    %6423 = vmatmul.mubr.f32.gmra.mrb[0].mxu0 %v6348
    %v6424 = vpop.f32.mrb[0].mxu0
    %v6425 = vadd.f32 0.0, %v6424
    %v6426 = vpop.f32.mrb[0].mxu0
    %6427 = vdwg.mxu0
    %v6429 = vsel %vm1022, %v6334, 0
    %v6432 = vsel %vm1022, %v6339, 0
    %v6435 = vsel %vm1029, %v6342, 0
    %6437 = vmatprep.subr.mxu0 0.0
    %6438 = vmatpush1.msra.mxu0 %v6435
    %6439 = vmatprep.subr.mxu0 0.0
    %6440 = vmatpush1.msra.mxu0 0.0
    %6441 = vmatprep.subr.mxu0 0.0
    %6442 = vmatpush1.msra.mxu0 0.0
    %6443 = vmatprep.subr.mxu0 0.0
    %6444 = vmatpush1.msra.mxu0 0.0
    %6445 = vmatprep.subr.mxu0 0.0
    %6446 = vmatpush1.msra.mxu0 0.0
    %6447 = vmatprep.subr.mxu0 0.0
    %6448 = vmatpush1.msra.mxu0 0.0
    %6449 = vmatprep.subr.mxu0 0.0
    %6450 = vmatpush1.msra.mxu0 0.0
    %6451 = vmatprep.subr.mxu0 0.0
    %6452 = vmatpush1.msra.mxu0 0.0
    %6453 = vmatprep.subr.mxu0 0.0
    %6454 = vmatpush1.msra.mxu0 0.0
    %6455 = vmatprep.subr.mxu0 0.0
    %6456 = vmatpush1.msra.mxu0 0.0
    %6457 = vmatprep.subr.mxu0 0.0
    %6458 = vmatpush1.msra.mxu0 0.0
    %6459 = vmatprep.subr.mxu0 0.0
    %6460 = vmatpush1.msra.mxu0 0.0
    %6461 = vmatprep.subr.mxu0 0.0
    %6462 = vmatpush1.msra.mxu0 0.0
    %6463 = vmatprep.subr.mxu0 0.0
    %6464 = vmatpush1.msra.mxu0 0.0
    %6465 = vmatprep.subr.mxu0 0.0
    %6466 = vmatpush1.msra.mxu0 0.0
    %6467 = vmatprep.subr.mxu0 0.0
    %6468 = vmatpush1.msra.mxu0 0.0
    %6469 = vmatprep.subr.mxu0 0.0
    %6470 = vmatpush1.msra.mxu0 0.0
    %6471 = vmatprep.subr.mxu0 0.0
    %6472 = vmatpush1.msra.mxu0 0.0
    %6473 = vmatprep.subr.mxu0 0.0
    %6474 = vmatpush1.msra.mxu0 0.0
    %6475 = vmatprep.subr.mxu0 0.0
    %6476 = vmatpush1.msra.mxu0 0.0
    %6477 = vmatprep.subr.mxu0 0.0
    %6478 = vmatpush1.msra.mxu0 0.0
    %6479 = vmatprep.subr.mxu0 0.0
    %6480 = vmatpush1.msra.mxu0 0.0
    %6481 = vmatprep.subr.mxu0 0.0
    %6482 = vmatpush1.msra.mxu0 0.0
    %6483 = vmatprep.subr.mxu0 0.0
    %6484 = vmatpush1.msra.mxu0 0.0
    %6485 = vmatprep.subr.mxu0 0.0
    %6486 = vmatpush1.msra.mxu0 0.0
    %6487 = vmatprep.subr.mxu0 0.0
    %6488 = vmatpush1.msra.mxu0 0.0
    %6489 = vmatprep.subr.mxu0 0.0
    %6490 = vmatpush1.msra.mxu0 0.0
    %6491 = vmatprep.subr.mxu0 0.0
    %6492 = vmatpush1.msra.mxu0 0.0
    %6493 = vmatprep.subr.mxu0 0.0
    %6494 = vmatpush1.msra.mxu0 0.0
    %6495 = vmatprep.subr.mxu0 0.0
    %6496 = vmatpush1.msra.mxu0 0.0
    %6497 = vmatprep.subr.mxu0 0.0
    %6498 = vmatpush1.msra.mxu0 0.0
    %6499 = vmatprep.subr.mxu0 0.0
    %6500 = vmatpush1.msra.mxu0 0.0
    %6501 = vmatprep.mubr.f32.mxu0 0.0
    %6502 = vmatmul.mubr.f32.gmra.mrb[0].mxu0 %v6429
    %v6503 = vpop.f32.mrb[0].mxu0
    %v6504 = vadd.f32 %v6420, %v6503
    %v6505 = vpop.f32.mrb[0].mxu0
    %6506 = vmatprep.mubr.f32.mxu0 0.0
    %6507 = vmatmul.mubr.f32.gmra.mrb[0].mxu0 %v6432
    %v6508 = vpop.f32.mrb[0].mxu0
    %v6509 = vadd.f32 %v6425, %v6508
    %v6510 = vpop.f32.mrb[0].mxu0
    %6511 = vdwg.mxu0
    %6512 = vmatprep.subr.mxu0 0.0
    %6513 = vmatpush1.msra.mxu0 %v6265
    %6514 = vmatprep.subr.mxu0 0.0
    %6515 = vmatpush1.msra.mxu0 %v6266
    %6516 = vmatprep.subr.mxu0 0.0
    %6517 = vmatpush1.msra.mxu0 0.0
    %6518 = vmatprep.subr.mxu0 0.0
    %6519 = vmatpush1.msra.mxu0 0.0
    %6520 = vmatprep.subr.mxu0 0.0
    %6521 = vmatpush1.msra.mxu0 0.0
    %6522 = vmatprep.subr.mxu0 0.0
    %6523 = vmatpush1.msra.mxu0 0.0
    %6524 = vmatprep.subr.mxu0 0.0
    %6525 = vmatpush1.msra.mxu0 0.0
    %6526 = vmatprep.subr.mxu0 0.0
    %6527 = vmatpush1.msra.mxu0 0.0
    %6528 = vmatprep.subr.mxu0 0.0
    %6529 = vmatpush1.msra.mxu0 0.0
    %6530 = vmatprep.subr.mxu0 0.0
    %6531 = vmatpush1.msra.mxu0 0.0
    %6532 = vmatprep.subr.mxu0 0.0
    %6533 = vmatpush1.msra.mxu0 0.0
    %6534 = vmatprep.subr.mxu0 0.0
    %6535 = vmatpush1.msra.mxu0 0.0
    %6536 = vmatprep.subr.mxu0 0.0
    %6537 = vmatpush1.msra.mxu0 0.0
    %6538 = vmatprep.subr.mxu0 0.0
    %6539 = vmatpush1.msra.mxu0 0.0
    %6540 = vmatprep.subr.mxu0 0.0
    %6541 = vmatpush1.msra.mxu0 0.0
    %6542 = vmatprep.subr.mxu0 0.0
    %6543 = vmatpush1.msra.mxu0 0.0
    %6544 = vmatprep.subr.mxu0 0.0
    %6545 = vmatpush1.msra.mxu0 0.0
    %6546 = vmatprep.subr.mxu0 0.0
    %6547 = vmatpush1.msra.mxu0 0.0
    %6548 = vmatprep.subr.mxu0 0.0
    %6549 = vmatpush1.msra.mxu0 0.0
    %6550 = vmatprep.subr.mxu0 0.0
    %6551 = vmatpush1.msra.mxu0 0.0
    %6552 = vmatprep.subr.mxu0 0.0
    %6553 = vmatpush1.msra.mxu0 0.0
    %6554 = vmatprep.subr.mxu0 0.0
    %6555 = vmatpush1.msra.mxu0 0.0
    %6556 = vmatprep.subr.mxu0 0.0
    %6557 = vmatpush1.msra.mxu0 0.0
    %6558 = vmatprep.subr.mxu0 0.0
    %6559 = vmatpush1.msra.mxu0 0.0
    %6560 = vmatprep.subr.mxu0 0.0
    %6561 = vmatpush1.msra.mxu0 0.0
    %6562 = vmatprep.subr.mxu0 0.0
    %6563 = vmatpush1.msra.mxu0 0.0
    %6564 = vmatprep.subr.mxu0 0.0
    %6565 = vmatpush1.msra.mxu0 0.0
    %6566 = vmatprep.subr.mxu0 0.0
    %6567 = vmatpush1.msra.mxu0 0.0
    %6568 = vmatprep.subr.mxu0 0.0
    %6569 = vmatpush1.msra.mxu0 0.0
    %6570 = vmatprep.subr.mxu0 0.0
    %6571 = vmatpush1.msra.mxu0 0.0
    %6572 = vmatprep.subr.mxu0 0.0
    %6573 = vmatpush1.msra.mxu0 0.0
    %6574 = vmatprep.subr.mxu0 0.0
    %6575 = vmatpush1.msra.mxu0 0.0
    %6576 = vmatprep.mubr.f32.mxu0 0.0
    %6577 = vmatmul.mubr.f32.gmra.mrb[0].mxu0 %v1633
    %v6578 = vpop.f32.mrb[0].mxu0
    %v6579 = vadd.f32 0.0, %v6578
    %v6580 = vpop.f32.mrb[0].mxu0
    %6581 = vmatprep.mubr.f32.mxu0 0.0
    %6582 = vmatmul.mubr.f32.gmra.mrb[0].mxu0 %v1635
    %v6583 = vpop.f32.mrb[0].mxu0
    %v6584 = vadd.f32 0.0, %v6583
    %v6585 = vpop.f32.mrb[0].mxu0
    %6586 = vdwg.mxu0
    %v6587 = vld [vmem:[%s1712] sm:$0x3]
    %v6589 = vsel %vm1022, %v6579, 0
    %v6592 = vsel %vm1022, %v6584, 0
    %v6595 = vsel %vm1029, %v6587, 0
    %6597 = vmatprep.subr.mxu0 0.0
    %6598 = vmatpush1.msra.mxu0 %v6595
    %6599 = vmatprep.subr.mxu0 0.0
    %6600 = vmatpush1.msra.mxu0 0.0
    %6601 = vmatprep.subr.mxu0 0.0
    %6602 = vmatpush1.msra.mxu0 0.0
    %6603 = vmatprep.subr.mxu0 0.0
    %6604 = vmatpush1.msra.mxu0 0.0
    %6605 = vmatprep.subr.mxu0 0.0
    %6606 = vmatpush1.msra.mxu0 0.0
    %6607 = vmatprep.subr.mxu0 0.0
    %6608 = vmatpush1.msra.mxu0 0.0
    %6609 = vmatprep.subr.mxu0 0.0
    %6610 = vmatpush1.msra.mxu0 0.0
    %6611 = vmatprep.subr.mxu0 0.0
    %6612 = vmatpush1.msra.mxu0 0.0
    %6613 = vmatprep.subr.mxu0 0.0
    %6614 = vmatpush1.msra.mxu0 0.0
    %6615 = vmatprep.subr.mxu0 0.0
    %6616 = vmatpush1.msra.mxu0 0.0
    %6617 = vmatprep.subr.mxu0 0.0
    %6618 = vmatpush1.msra.mxu0 0.0
    %6619 = vmatprep.subr.mxu0 0.0
    %6620 = vmatpush1.msra.mxu0 0.0
    %6621 = vmatprep.subr.mxu0 0.0
    %6622 = vmatpush1.msra.mxu0 0.0
    %6623 = vmatprep.subr.mxu0 0.0
    %6624 = vmatpush1.msra.mxu0 0.0
    %6625 = vmatprep.subr.mxu0 0.0
    %6626 = vmatpush1.msra.mxu0 0.0
    %6627 = vmatprep.subr.mxu0 0.0
    %6628 = vmatpush1.msra.mxu0 0.0
    %6629 = vmatprep.subr.mxu0 0.0
    %6630 = vmatpush1.msra.mxu0 0.0
    %6631 = vmatprep.subr.mxu0 0.0
    %6632 = vmatpush1.msra.mxu0 0.0
    %6633 = vmatprep.subr.mxu0 0.0
    %6634 = vmatpush1.msra.mxu0 0.0
    %6635 = vmatprep.subr.mxu0 0.0
    %6636 = vmatpush1.msra.mxu0 0.0
    %6637 = vmatprep.subr.mxu0 0.0
    %6638 = vmatpush1.msra.mxu0 0.0
    %6639 = vmatprep.subr.mxu0 0.0
    %6640 = vmatpush1.msra.mxu0 0.0
    %6641 = vmatprep.subr.mxu0 0.0
    %6642 = vmatpush1.msra.mxu0 0.0
    %6643 = vmatprep.subr.mxu0 0.0
    %6644 = vmatpush1.msra.mxu0 0.0
    %6645 = vmatprep.subr.mxu0 0.0
    %6646 = vmatpush1.msra.mxu0 0.0
    %6647 = vmatprep.subr.mxu0 0.0
    %6648 = vmatpush1.msra.mxu0 0.0
    %6649 = vmatprep.subr.mxu0 0.0
    %6650 = vmatpush1.msra.mxu0 0.0
    %6651 = vmatprep.subr.mxu0 0.0
    %6652 = vmatpush1.msra.mxu0 0.0
    %6653 = vmatprep.subr.mxu0 0.0
    %6654 = vmatpush1.msra.mxu0 0.0
    %6655 = vmatprep.subr.mxu0 0.0
    %6656 = vmatpush1.msra.mxu0 0.0
    %6657 = vmatprep.subr.mxu0 0.0
    %6658 = vmatpush1.msra.mxu0 0.0
    %6659 = vmatprep.subr.mxu0 0.0
    %6660 = vmatpush1.msra.mxu0 0.0
    %6661 = vmatprep.mubr.f32.mxu0 0.0
    %6662 = vmatmul.mubr.f32.gmra.mrb[0].mxu0 %v6589
    %v6663 = vpop.f32.mrb[0].mxu0
    %v6664 = vadd.f32 0.0, %v6663
    %v6665 = vpop.f32.mrb[0].mxu0
    %6666 = vmatprep.mubr.f32.mxu0 0.0
    %6667 = vmatmul.mubr.f32.gmra.mrb[0].mxu0 %v6592
    %v6668 = vpop.f32.mrb[0].mxu0
    %v6669 = vadd.f32 0.0, %v6668
    %v6670 = vpop.f32.mrb[0].mxu0
    %6671 = vdwg.mxu0
    %v6672 = vadd.f32 %v6504, %v6664
    %v6673 = vadd.f32 %v6509, %v6669
    %v6674 = vld [vmem:[%s6] sm:$0x1]
    %v6676 = vlaneseq
    %v6677 = vshrl.u32 %v6676, 7
    %v6678 = vsub.s32 0, %v6677
    %v6679 = vrot.slane %v6674, %v6678
    %v6681 = vadd.f32 %v6672, %v6679
    %v6682 = vadd.f32 %v6673, %v6679
    %v6683 = vmax.f32 %v6681, 0.0
    %v6684 = vmax.f32 %v6682, 0.0
    %6687 = vrot.lane.b32.xlu0 %v6681, 124
    %v6688 = vpop.permute.xlu0 %6687
    %6689 = vrot.lane.b32.xlu0 %v6682, 124
    %v6690 = vpop.permute.xlu0 %6689
    %6693 = vmatprep.subr.mxu0 0.0
    %6694 = vmatpush1.msra.mxu0 %v6688
    %6695 = vmatprep.subr.mxu0 0.0
    %6696 = vmatpush1.msra.mxu0 %v6690
    %6697 = vmatprep.subr.mxu0 0.0
    %6698 = vmatpush1.msra.mxu0 0.0
    %6699 = vmatprep.subr.mxu0 0.0
    %6700 = vmatpush1.msra.mxu0 0.0
    %6701 = vmatprep.subr.mxu0 0.0
    %6702 = vmatpush1.msra.mxu0 0.0
    %6703 = vmatprep.subr.mxu0 0.0
    %6704 = vmatpush1.msra.mxu0 0.0
    %6705 = vmatprep.subr.mxu0 0.0
    %6706 = vmatpush1.msra.mxu0 0.0
    %6707 = vmatprep.subr.mxu0 0.0
    %6708 = vmatpush1.msra.mxu0 0.0
    %6709 = vmatprep.subr.mxu0 0.0
    %6710 = vmatpush1.msra.mxu0 0.0
    %6711 = vmatprep.subr.mxu0 0.0
    %6712 = vmatpush1.msra.mxu0 0.0
    %6713 = vmatprep.subr.mxu0 0.0
    %6714 = vmatpush1.msra.mxu0 0.0
    %6715 = vmatprep.subr.mxu0 0.0
    %6716 = vmatpush1.msra.mxu0 0.0
    %6717 = vmatprep.subr.mxu0 0.0
    %6718 = vmatpush1.msra.mxu0 0.0
    %6719 = vmatprep.subr.mxu0 0.0
    %6720 = vmatpush1.msra.mxu0 0.0
    %6721 = vmatprep.subr.mxu0 0.0
    %6722 = vmatpush1.msra.mxu0 0.0
    %6723 = vmatprep.subr.mxu0 0.0
    %6724 = vmatpush1.msra.mxu0 0.0
    %6725 = vmatprep.subr.mxu0 0.0
    %6726 = vmatpush1.msra.mxu0 0.0
    %6727 = vmatprep.subr.mxu0 0.0
    %6728 = vmatpush1.msra.mxu0 0.0
    %6729 = vmatprep.subr.mxu0 0.0
    %6730 = vmatpush1.msra.mxu0 0.0
    %6731 = vmatprep.subr.mxu0 0.0
    %6732 = vmatpush1.msra.mxu0 0.0
    %6733 = vmatprep.subr.mxu0 0.0
    %6734 = vmatpush1.msra.mxu0 0.0
    %6735 = vmatprep.subr.mxu0 0.0
    %6736 = vmatpush1.msra.mxu0 0.0
    %6737 = vmatprep.subr.mxu0 0.0
    %6738 = vmatpush1.msra.mxu0 0.0
    %6739 = vmatprep.subr.mxu0 0.0
    %6740 = vmatpush1.msra.mxu0 0.0
    %6741 = vmatprep.subr.mxu0 0.0
    %6742 = vmatpush1.msra.mxu0 0.0
    %6743 = vmatprep.subr.mxu0 0.0
    %6744 = vmatpush1.msra.mxu0 0.0
    %6745 = vmatprep.subr.mxu0 0.0
    %6746 = vmatpush1.msra.mxu0 0.0
    %6747 = vmatprep.subr.mxu0 0.0
    %6748 = vmatpush1.msra.mxu0 0.0
    %6749 = vmatprep.subr.mxu0 0.0
    %6750 = vmatpush1.msra.mxu0 0.0
    %6751 = vmatprep.subr.mxu0 0.0
    %6752 = vmatpush1.msra.mxu0 0.0
    %6753 = vmatprep.subr.mxu0 0.0
    %6754 = vmatpush1.msra.mxu0 0.0
    %6755 = vmatprep.subr.mxu0 0.0
    %6756 = vmatpush1.msra.mxu0 0.0
    %6757 = vmatprep.mubr.f32.mxu0 0.0
    %6758 = vmatmul.mubr.f32.gmra.mrb[0].mxu0 %v1819
    %v6759 = vpop.f32.mrb[0].mxu0
    %v6760 = vadd.f32 0.0, %v6759
    %v6761 = vpop.f32.mrb[0].mxu0
    %6762 = vdwg.mxu0
    %6763 = vmatprep.subr.mxu0 0.0
    %6764 = vmatpush1.msra.mxu0 %v6683
    %6765 = vmatprep.subr.mxu0 0.0
    %6766 = vmatpush1.msra.mxu0 %v6684
    %6767 = vmatprep.subr.mxu0 0.0
    %6768 = vmatpush1.msra.mxu0 0.0
    %6769 = vmatprep.subr.mxu0 0.0
    %6770 = vmatpush1.msra.mxu0 0.0
    %6771 = vmatprep.subr.mxu0 0.0
    %6772 = vmatpush1.msra.mxu0 0.0
    %6773 = vmatprep.subr.mxu0 0.0
    %6774 = vmatpush1.msra.mxu0 0.0
    %6775 = vmatprep.subr.mxu0 0.0
    %6776 = vmatpush1.msra.mxu0 0.0
    %6777 = vmatprep.subr.mxu0 0.0
    %6778 = vmatpush1.msra.mxu0 0.0
    %6779 = vmatprep.subr.mxu0 0.0
    %6780 = vmatpush1.msra.mxu0 0.0
    %6781 = vmatprep.subr.mxu0 0.0
    %6782 = vmatpush1.msra.mxu0 0.0
    %6783 = vmatprep.subr.mxu0 0.0
    %6784 = vmatpush1.msra.mxu0 0.0
    %6785 = vmatprep.subr.mxu0 0.0
    %6786 = vmatpush1.msra.mxu0 0.0
    %6787 = vmatprep.subr.mxu0 0.0
    %6788 = vmatpush1.msra.mxu0 0.0
    %6789 = vmatprep.subr.mxu0 0.0
    %6790 = vmatpush1.msra.mxu0 0.0
    %6791 = vmatprep.subr.mxu0 0.0
    %6792 = vmatpush1.msra.mxu0 0.0
    %6793 = vmatprep.subr.mxu0 0.0
    %6794 = vmatpush1.msra.mxu0 0.0
    %6795 = vmatprep.subr.mxu0 0.0
    %6796 = vmatpush1.msra.mxu0 0.0
    %6797 = vmatprep.subr.mxu0 0.0
    %6798 = vmatpush1.msra.mxu0 0.0
    %6799 = vmatprep.subr.mxu0 0.0
    %6800 = vmatpush1.msra.mxu0 0.0
    %6801 = vmatprep.subr.mxu0 0.0
    %6802 = vmatpush1.msra.mxu0 0.0
    %6803 = vmatprep.subr.mxu0 0.0
    %6804 = vmatpush1.msra.mxu0 0.0
    %6805 = vmatprep.subr.mxu0 0.0
    %6806 = vmatpush1.msra.mxu0 0.0
    %6807 = vmatprep.subr.mxu0 0.0
    %6808 = vmatpush1.msra.mxu0 0.0
    %6809 = vmatprep.subr.mxu0 0.0
    %6810 = vmatpush1.msra.mxu0 0.0
    %6811 = vmatprep.subr.mxu0 0.0
    %6812 = vmatpush1.msra.mxu0 0.0
    %6813 = vmatprep.subr.mxu0 0.0
    %6814 = vmatpush1.msra.mxu0 0.0
    %6815 = vmatprep.subr.mxu0 0.0
    %6816 = vmatpush1.msra.mxu0 0.0
    %6817 = vmatprep.subr.mxu0 0.0
    %6818 = vmatpush1.msra.mxu0 0.0
    %6819 = vmatprep.subr.mxu0 0.0
    %6820 = vmatpush1.msra.mxu0 0.0
    %6821 = vmatprep.subr.mxu0 0.0
    %6822 = vmatpush1.msra.mxu0 0.0
    %6823 = vmatprep.subr.mxu0 0.0
    %6824 = vmatpush1.msra.mxu0 0.0
    %6825 = vmatprep.subr.mxu0 0.0
    %6826 = vmatpush1.msra.mxu0 0.0
    %6827 = vmatprep.mubr.f32.mxu0 0.0
    %6828 = vmatmul.mubr.f32.gmra.mrb[0].mxu0 %v1891
    %v6829 = vpop.f32.mrb[0].mxu0
    %v6830 = vadd.f32 0.0, %v6829
    %v6831 = vpop.f32.mrb[0].mxu0
    %6832 = vdwg.mxu0
    %v6833 = vld [vmem:[#allocation8] sm:$0xf]
    %6834 = vmatprep.subr.mxu0 0.0
    %6835 = vmatpush1.msra.mxu0 %v6683
    %6836 = vmatprep.subr.mxu0 0.0
    %6837 = vmatpush1.msra.mxu0 %v6684
    %6838 = vmatprep.subr.mxu0 0.0
    %6839 = vmatpush1.msra.mxu0 0.0
    %6840 = vmatprep.subr.mxu0 0.0
    %6841 = vmatpush1.msra.mxu0 0.0
    %6842 = vmatprep.subr.mxu0 0.0
    %6843 = vmatpush1.msra.mxu0 0.0
    %6844 = vmatprep.subr.mxu0 0.0
    %6845 = vmatpush1.msra.mxu0 0.0
    %6846 = vmatprep.subr.mxu0 0.0
    %6847 = vmatpush1.msra.mxu0 0.0
    %6848 = vmatprep.subr.mxu0 0.0
    %6849 = vmatpush1.msra.mxu0 0.0
    %6850 = vmatprep.subr.mxu0 0.0
    %6851 = vmatpush1.msra.mxu0 0.0
    %6852 = vmatprep.subr.mxu0 0.0
    %6853 = vmatpush1.msra.mxu0 0.0
    %6854 = vmatprep.subr.mxu0 0.0
    %6855 = vmatpush1.msra.mxu0 0.0
    %6856 = vmatprep.subr.mxu0 0.0
    %6857 = vmatpush1.msra.mxu0 0.0
    %6858 = vmatprep.subr.mxu0 0.0
    %6859 = vmatpush1.msra.mxu0 0.0
    %6860 = vmatprep.subr.mxu0 0.0
    %6861 = vmatpush1.msra.mxu0 0.0
    %6862 = vmatprep.subr.mxu0 0.0
    %6863 = vmatpush1.msra.mxu0 0.0
    %6864 = vmatprep.subr.mxu0 0.0
    %6865 = vmatpush1.msra.mxu0 0.0
    %6866 = vmatprep.subr.mxu0 0.0
    %6867 = vmatpush1.msra.mxu0 0.0
    %6868 = vmatprep.subr.mxu0 0.0
    %6869 = vmatpush1.msra.mxu0 0.0
    %6870 = vmatprep.subr.mxu0 0.0
    %6871 = vmatpush1.msra.mxu0 0.0
    %6872 = vmatprep.subr.mxu0 0.0
    %6873 = vmatpush1.msra.mxu0 0.0
    %6874 = vmatprep.subr.mxu0 0.0
    %6875 = vmatpush1.msra.mxu0 0.0
    %6876 = vmatprep.subr.mxu0 0.0
    %6877 = vmatpush1.msra.mxu0 0.0
    %6878 = vmatprep.subr.mxu0 0.0
    %6879 = vmatpush1.msra.mxu0 0.0
    %6880 = vmatprep.subr.mxu0 0.0
    %6881 = vmatpush1.msra.mxu0 0.0
    %6882 = vmatprep.subr.mxu0 0.0
    %6883 = vmatpush1.msra.mxu0 0.0
    %6884 = vmatprep.subr.mxu0 0.0
    %6885 = vmatpush1.msra.mxu0 0.0
    %6886 = vmatprep.subr.mxu0 0.0
    %6887 = vmatpush1.msra.mxu0 0.0
    %6888 = vmatprep.subr.mxu0 0.0
    %6889 = vmatpush1.msra.mxu0 0.0
    %6890 = vmatprep.subr.mxu0 0.0
    %6891 = vmatpush1.msra.mxu0 0.0
    %6892 = vmatprep.subr.mxu0 0.0
    %6893 = vmatpush1.msra.mxu0 0.0
    %6894 = vmatprep.subr.mxu0 0.0
    %6895 = vmatpush1.msra.mxu0 0.0
    %6896 = vmatprep.subr.mxu0 0.0
    %6897 = vmatpush1.msra.mxu0 0.0
    %6898 = vmatprep.mubr.f32.mxu0 0.0
    %6899 = vmatmul.mubr.f32.gmra.mrb[0].mxu0 %v1819
    %v6900 = vpop.f32.mrb[0].mxu0
    %v6901 = vadd.f32 0.0, %v6900
    %v6902 = vpop.f32.mrb[0].mxu0
    %6903 = vdwg.mxu0
    %v6904 = vld [vmem:[%s2034] sm:$0xf]
    %v6906 = vsel %vm314, %v6901, 0
    %v6909 = vsel %vm327, %v6904, 0
    %6911 = vmatprep.subr.mxu0 0.0
    %6912 = vmatpush1.msra.mxu0 %v6909
    %6913 = vmatprep.subr.mxu0 0.0
    %6914 = vmatpush1.msra.mxu0 0.0
    %6915 = vmatprep.subr.mxu0 0.0
    %6916 = vmatpush1.msra.mxu0 0.0
    %6917 = vmatprep.subr.mxu0 0.0
    %6918 = vmatpush1.msra.mxu0 0.0
    %6919 = vmatprep.subr.mxu0 0.0
    %6920 = vmatpush1.msra.mxu0 0.0
    %6921 = vmatprep.subr.mxu0 0.0
    %6922 = vmatpush1.msra.mxu0 0.0
    %6923 = vmatprep.subr.mxu0 0.0
    %6924 = vmatpush1.msra.mxu0 0.0
    %6925 = vmatprep.subr.mxu0 0.0
    %6926 = vmatpush1.msra.mxu0 0.0
    %6927 = vmatprep.subr.mxu0 0.0
    %6928 = vmatpush1.msra.mxu0 0.0
    %6929 = vmatprep.subr.mxu0 0.0
    %6930 = vmatpush1.msra.mxu0 0.0
    %6931 = vmatprep.subr.mxu0 0.0
    %6932 = vmatpush1.msra.mxu0 0.0
    %6933 = vmatprep.subr.mxu0 0.0
    %6934 = vmatpush1.msra.mxu0 0.0
    %6935 = vmatprep.subr.mxu0 0.0
    %6936 = vmatpush1.msra.mxu0 0.0
    %6937 = vmatprep.subr.mxu0 0.0
    %6938 = vmatpush1.msra.mxu0 0.0
    %6939 = vmatprep.subr.mxu0 0.0
    %6940 = vmatpush1.msra.mxu0 0.0
    %6941 = vmatprep.subr.mxu0 0.0
    %6942 = vmatpush1.msra.mxu0 0.0
    %6943 = vmatprep.subr.mxu0 0.0
    %6944 = vmatpush1.msra.mxu0 0.0
    %6945 = vmatprep.subr.mxu0 0.0
    %6946 = vmatpush1.msra.mxu0 0.0
    %6947 = vmatprep.subr.mxu0 0.0
    %6948 = vmatpush1.msra.mxu0 0.0
    %6949 = vmatprep.subr.mxu0 0.0
    %6950 = vmatpush1.msra.mxu0 0.0
    %6951 = vmatprep.subr.mxu0 0.0
    %6952 = vmatpush1.msra.mxu0 0.0
    %6953 = vmatprep.subr.mxu0 0.0
    %6954 = vmatpush1.msra.mxu0 0.0
    %6955 = vmatprep.subr.mxu0 0.0
    %6956 = vmatpush1.msra.mxu0 0.0
    %6957 = vmatprep.subr.mxu0 0.0
    %6958 = vmatpush1.msra.mxu0 0.0
    %6959 = vmatprep.subr.mxu0 0.0
    %6960 = vmatpush1.msra.mxu0 0.0
    %6961 = vmatprep.subr.mxu0 0.0
    %6962 = vmatpush1.msra.mxu0 0.0
    %6963 = vmatprep.subr.mxu0 0.0
    %6964 = vmatpush1.msra.mxu0 0.0
    %6965 = vmatprep.subr.mxu0 0.0
    %6966 = vmatpush1.msra.mxu0 0.0
    %6967 = vmatprep.subr.mxu0 0.0
    %6968 = vmatpush1.msra.mxu0 0.0
    %6969 = vmatprep.subr.mxu0 0.0
    %6970 = vmatpush1.msra.mxu0 0.0
    %6971 = vmatprep.subr.mxu0 0.0
    %6972 = vmatpush1.msra.mxu0 0.0
    %6973 = vmatprep.subr.mxu0 0.0
    %6974 = vmatpush1.msra.mxu0 0.0
    %6975 = vmatprep.mubr.f32.mxu0 0.0
    %6976 = vmatmul.mubr.f32.gmra.mrb[0].mxu0 %v6906
    %v6977 = vpop.f32.mrb[0].mxu0
    %v6978 = vadd.f32 0.0, %v6977
    %v6979 = vpop.f32.mrb[0].mxu0
    %6980 = vdwg.mxu0
    %v6982 = vsel %vm314, %v6830, 0
    %v6985 = vsel %vm327, %v6833, 0
    %6987 = vmatprep.subr.mxu0 0.0
    %6988 = vmatpush1.msra.mxu0 %v6985
    %6989 = vmatprep.subr.mxu0 0.0
    %6990 = vmatpush1.msra.mxu0 0.0
    %6991 = vmatprep.subr.mxu0 0.0
    %6992 = vmatpush1.msra.mxu0 0.0
    %6993 = vmatprep.subr.mxu0 0.0
    %6994 = vmatpush1.msra.mxu0 0.0
    %6995 = vmatprep.subr.mxu0 0.0
    %6996 = vmatpush1.msra.mxu0 0.0
    %6997 = vmatprep.subr.mxu0 0.0
    %6998 = vmatpush1.msra.mxu0 0.0
    %6999 = vmatprep.subr.mxu0 0.0
    %7000 = vmatpush1.msra.mxu0 0.0
    %7001 = vmatprep.subr.mxu0 0.0
    %7002 = vmatpush1.msra.mxu0 0.0
    %7003 = vmatprep.subr.mxu0 0.0
    %7004 = vmatpush1.msra.mxu0 0.0
    %7005 = vmatprep.subr.mxu0 0.0
    %7006 = vmatpush1.msra.mxu0 0.0
    %7007 = vmatprep.subr.mxu0 0.0
    %7008 = vmatpush1.msra.mxu0 0.0
    %7009 = vmatprep.subr.mxu0 0.0
    %7010 = vmatpush1.msra.mxu0 0.0
    %7011 = vmatprep.subr.mxu0 0.0
    %7012 = vmatpush1.msra.mxu0 0.0
    %7013 = vmatprep.subr.mxu0 0.0
    %7014 = vmatpush1.msra.mxu0 0.0
    %7015 = vmatprep.subr.mxu0 0.0
    %7016 = vmatpush1.msra.mxu0 0.0
    %7017 = vmatprep.subr.mxu0 0.0
    %7018 = vmatpush1.msra.mxu0 0.0
    %7019 = vmatprep.subr.mxu0 0.0
    %7020 = vmatpush1.msra.mxu0 0.0
    %7021 = vmatprep.subr.mxu0 0.0
    %7022 = vmatpush1.msra.mxu0 0.0
    %7023 = vmatprep.subr.mxu0 0.0
    %7024 = vmatpush1.msra.mxu0 0.0
    %7025 = vmatprep.subr.mxu0 0.0
    %7026 = vmatpush1.msra.mxu0 0.0
    %7027 = vmatprep.subr.mxu0 0.0
    %7028 = vmatpush1.msra.mxu0 0.0
    %7029 = vmatprep.subr.mxu0 0.0
    %7030 = vmatpush1.msra.mxu0 0.0
    %7031 = vmatprep.subr.mxu0 0.0
    %7032 = vmatpush1.msra.mxu0 0.0
    %7033 = vmatprep.subr.mxu0 0.0
    %7034 = vmatpush1.msra.mxu0 0.0
    %7035 = vmatprep.subr.mxu0 0.0
    %7036 = vmatpush1.msra.mxu0 0.0
    %7037 = vmatprep.subr.mxu0 0.0
    %7038 = vmatpush1.msra.mxu0 0.0
    %7039 = vmatprep.subr.mxu0 0.0
    %7040 = vmatpush1.msra.mxu0 0.0
    %7041 = vmatprep.subr.mxu0 0.0
    %7042 = vmatpush1.msra.mxu0 0.0
    %7043 = vmatprep.subr.mxu0 0.0
    %7044 = vmatpush1.msra.mxu0 0.0
    %7045 = vmatprep.subr.mxu0 0.0
    %7046 = vmatpush1.msra.mxu0 0.0
    %7047 = vmatprep.subr.mxu0 0.0
    %7048 = vmatpush1.msra.mxu0 0.0
    %7049 = vmatprep.subr.mxu0 0.0
    %7050 = vmatpush1.msra.mxu0 0.0
    %7051 = vmatprep.mubr.f32.mxu0 0.0
    %7052 = vmatmul.mubr.f32.gmra.mrb[0].mxu0 %v6982
    %v7053 = vpop.f32.mrb[0].mxu0
    %v7054 = vadd.f32 %v6978, %v7053
    %v7055 = vpop.f32.mrb[0].mxu0
    %7056 = vdwg.mxu0
    %7057 = vmatprep.subr.mxu0 0.0
    %7058 = vmatpush1.msra.mxu0 %v6683
    %7059 = vmatprep.subr.mxu0 0.0
    %7060 = vmatpush1.msra.mxu0 %v6684
    %7061 = vmatprep.subr.mxu0 0.0
    %7062 = vmatpush1.msra.mxu0 0.0
    %7063 = vmatprep.subr.mxu0 0.0
    %7064 = vmatpush1.msra.mxu0 0.0
    %7065 = vmatprep.subr.mxu0 0.0
    %7066 = vmatpush1.msra.mxu0 0.0
    %7067 = vmatprep.subr.mxu0 0.0
    %7068 = vmatpush1.msra.mxu0 0.0
    %7069 = vmatprep.subr.mxu0 0.0
    %7070 = vmatpush1.msra.mxu0 0.0
    %7071 = vmatprep.subr.mxu0 0.0
    %7072 = vmatpush1.msra.mxu0 0.0
    %7073 = vmatprep.subr.mxu0 0.0
    %7074 = vmatpush1.msra.mxu0 0.0
    %7075 = vmatprep.subr.mxu0 0.0
    %7076 = vmatpush1.msra.mxu0 0.0
    %7077 = vmatprep.subr.mxu0 0.0
    %7078 = vmatpush1.msra.mxu0 0.0
    %7079 = vmatprep.subr.mxu0 0.0
    %7080 = vmatpush1.msra.mxu0 0.0
    %7081 = vmatprep.subr.mxu0 0.0
    %7082 = vmatpush1.msra.mxu0 0.0
    %7083 = vmatprep.subr.mxu0 0.0
    %7084 = vmatpush1.msra.mxu0 0.0
    %7085 = vmatprep.subr.mxu0 0.0
    %7086 = vmatpush1.msra.mxu0 0.0
    %7087 = vmatprep.subr.mxu0 0.0
    %7088 = vmatpush1.msra.mxu0 0.0
    %7089 = vmatprep.subr.mxu0 0.0
    %7090 = vmatpush1.msra.mxu0 0.0
    %7091 = vmatprep.subr.mxu0 0.0
    %7092 = vmatpush1.msra.mxu0 0.0
    %7093 = vmatprep.subr.mxu0 0.0
    %7094 = vmatpush1.msra.mxu0 0.0
    %7095 = vmatprep.subr.mxu0 0.0
    %7096 = vmatpush1.msra.mxu0 0.0
    %7097 = vmatprep.subr.mxu0 0.0
    %7098 = vmatpush1.msra.mxu0 0.0
    %7099 = vmatprep.subr.mxu0 0.0
    %7100 = vmatpush1.msra.mxu0 0.0
    %7101 = vmatprep.subr.mxu0 0.0
    %7102 = vmatpush1.msra.mxu0 0.0
    %7103 = vmatprep.subr.mxu0 0.0
    %7104 = vmatpush1.msra.mxu0 0.0
    %7105 = vmatprep.subr.mxu0 0.0
    %7106 = vmatpush1.msra.mxu0 0.0
    %7107 = vmatprep.subr.mxu0 0.0
    %7108 = vmatpush1.msra.mxu0 0.0
    %7109 = vmatprep.subr.mxu0 0.0
    %7110 = vmatpush1.msra.mxu0 0.0
    %7111 = vmatprep.subr.mxu0 0.0
    %7112 = vmatpush1.msra.mxu0 0.0
    %7113 = vmatprep.subr.mxu0 0.0
    %7114 = vmatpush1.msra.mxu0 0.0
    %7115 = vmatprep.subr.mxu0 0.0
    %7116 = vmatpush1.msra.mxu0 0.0
    %7117 = vmatprep.subr.mxu0 0.0
    %7118 = vmatpush1.msra.mxu0 0.0
    %7119 = vmatprep.subr.mxu0 0.0
    %7120 = vmatpush1.msra.mxu0 0.0
    %7121 = vmatprep.mubr.f32.mxu0 0.0
    %7122 = vmatmul.mubr.f32.gmra.mrb[0].mxu0 %v2188
    %v7123 = vpop.f32.mrb[0].mxu0
    %v7124 = vadd.f32 0.0, %v7123
    %v7125 = vpop.f32.mrb[0].mxu0
    %7126 = vdwg.mxu0
    %v7127 = vld [vmem:[%s2260] sm:$0xf]
    %v7129 = vsel %vm314, %v7124, 0
    %v7132 = vsel %vm327, %v7127, 0
    %7134 = vmatprep.subr.mxu0 0.0
    %7135 = vmatpush1.msra.mxu0 %v7132
    %7136 = vmatprep.subr.mxu0 0.0
    %7137 = vmatpush1.msra.mxu0 0.0
    %7138 = vmatprep.subr.mxu0 0.0
    %7139 = vmatpush1.msra.mxu0 0.0
    %7140 = vmatprep.subr.mxu0 0.0
    %7141 = vmatpush1.msra.mxu0 0.0
    %7142 = vmatprep.subr.mxu0 0.0
    %7143 = vmatpush1.msra.mxu0 0.0
    %7144 = vmatprep.subr.mxu0 0.0
    %7145 = vmatpush1.msra.mxu0 0.0
    %7146 = vmatprep.subr.mxu0 0.0
    %7147 = vmatpush1.msra.mxu0 0.0
    %7148 = vmatprep.subr.mxu0 0.0
    %7149 = vmatpush1.msra.mxu0 0.0
    %7150 = vmatprep.subr.mxu0 0.0
    %7151 = vmatpush1.msra.mxu0 0.0
    %7152 = vmatprep.subr.mxu0 0.0
    %7153 = vmatpush1.msra.mxu0 0.0
    %7154 = vmatprep.subr.mxu0 0.0
    %7155 = vmatpush1.msra.mxu0 0.0
    %7156 = vmatprep.subr.mxu0 0.0
    %7157 = vmatpush1.msra.mxu0 0.0
    %7158 = vmatprep.subr.mxu0 0.0
    %7159 = vmatpush1.msra.mxu0 0.0
    %7160 = vmatprep.subr.mxu0 0.0
    %7161 = vmatpush1.msra.mxu0 0.0
    %7162 = vmatprep.subr.mxu0 0.0
    %7163 = vmatpush1.msra.mxu0 0.0
    %7164 = vmatprep.subr.mxu0 0.0
    %7165 = vmatpush1.msra.mxu0 0.0
    %7166 = vmatprep.subr.mxu0 0.0
    %7167 = vmatpush1.msra.mxu0 0.0
    %7168 = vmatprep.subr.mxu0 0.0
    %7169 = vmatpush1.msra.mxu0 0.0
    %7170 = vmatprep.subr.mxu0 0.0
    %7171 = vmatpush1.msra.mxu0 0.0
    %7172 = vmatprep.subr.mxu0 0.0
    %7173 = vmatpush1.msra.mxu0 0.0
    %7174 = vmatprep.subr.mxu0 0.0
    %7175 = vmatpush1.msra.mxu0 0.0
    %7176 = vmatprep.subr.mxu0 0.0
    %7177 = vmatpush1.msra.mxu0 0.0
    %7178 = vmatprep.subr.mxu0 0.0
    %7179 = vmatpush1.msra.mxu0 0.0
    %7180 = vmatprep.subr.mxu0 0.0
    %7181 = vmatpush1.msra.mxu0 0.0
    %7182 = vmatprep.subr.mxu0 0.0
    %7183 = vmatpush1.msra.mxu0 0.0
    %7184 = vmatprep.subr.mxu0 0.0
    %7185 = vmatpush1.msra.mxu0 0.0
    %7186 = vmatprep.subr.mxu0 0.0
    %7187 = vmatpush1.msra.mxu0 0.0
    %7188 = vmatprep.subr.mxu0 0.0
    %7189 = vmatpush1.msra.mxu0 0.0
    %7190 = vmatprep.subr.mxu0 0.0
    %7191 = vmatpush1.msra.mxu0 0.0
    %7192 = vmatprep.subr.mxu0 0.0
    %7193 = vmatpush1.msra.mxu0 0.0
    %7194 = vmatprep.subr.mxu0 0.0
    %7195 = vmatpush1.msra.mxu0 0.0
    %7196 = vmatprep.subr.mxu0 0.0
    %7197 = vmatpush1.msra.mxu0 0.0
    %7198 = vmatprep.mubr.f32.mxu0 0.0
    %7199 = vmatmul.mubr.f32.gmra.mrb[0].mxu0 %v7129
    %v7200 = vpop.f32.mrb[0].mxu0
    %v7201 = vadd.f32 0.0, %v7200
    %v7202 = vpop.f32.mrb[0].mxu0
    %7203 = vdwg.mxu0
    %v7204 = vadd.f32 %v7054, %v7201
    %v7205 = vld [vmem:[%s8] sm:$0x1]
    %v7207 = vlaneseq
    %v7208 = vshrl.u32 %v7207, 7
    %v7209 = vsub.s32 0, %v7208
    %v7210 = vrot.slane %v7205, %v7209
    %v7212 = vadd.f32 %v7204, %v7210
    %v7213 = vadd.f32 %v7212, %v6760
    %v7214 = vmax.f32 %v7213, 0.0
    %7215 = vmatprep.subr.mxu0 0.0
    %7216 = vmatpush1.msra.mxu0 %v7214
    %7217 = vmatprep.subr.mxu0 0.0
    %7218 = vmatpush1.msra.mxu0 0.0
    %7219 = vmatprep.subr.mxu0 0.0
    %7220 = vmatpush1.msra.mxu0 0.0
    %7221 = vmatprep.subr.mxu0 0.0
    %7222 = vmatpush1.msra.mxu0 0.0
    %7223 = vmatprep.subr.mxu0 0.0
    %7224 = vmatpush1.msra.mxu0 0.0
    %7225 = vmatprep.subr.mxu0 0.0
    %7226 = vmatpush1.msra.mxu0 0.0
    %7227 = vmatprep.subr.mxu0 0.0
    %7228 = vmatpush1.msra.mxu0 0.0
    %7229 = vmatprep.subr.mxu0 0.0
    %7230 = vmatpush1.msra.mxu0 0.0
    %7231 = vmatprep.subr.mxu0 0.0
    %7232 = vmatpush1.msra.mxu0 0.0
    %7233 = vmatprep.subr.mxu0 0.0
    %7234 = vmatpush1.msra.mxu0 0.0
    %7235 = vmatprep.subr.mxu0 0.0
    %7236 = vmatpush1.msra.mxu0 0.0
    %7237 = vmatprep.subr.mxu0 0.0
    %7238 = vmatpush1.msra.mxu0 0.0
    %7239 = vmatprep.subr.mxu0 0.0
    %7240 = vmatpush1.msra.mxu0 0.0
    %7241 = vmatprep.subr.mxu0 0.0
    %7242 = vmatpush1.msra.mxu0 0.0
    %7243 = vmatprep.subr.mxu0 0.0
    %7244 = vmatpush1.msra.mxu0 0.0
    %7245 = vmatprep.subr.mxu0 0.0
    %7246 = vmatpush1.msra.mxu0 0.0
    %7247 = vmatprep.subr.mxu0 0.0
    %7248 = vmatpush1.msra.mxu0 0.0
    %7249 = vmatprep.subr.mxu0 0.0
    %7250 = vmatpush1.msra.mxu0 0.0
    %7251 = vmatprep.subr.mxu0 0.0
    %7252 = vmatpush1.msra.mxu0 0.0
    %7253 = vmatprep.subr.mxu0 0.0
    %7254 = vmatpush1.msra.mxu0 0.0
    %7255 = vmatprep.subr.mxu0 0.0
    %7256 = vmatpush1.msra.mxu0 0.0
    %7257 = vmatprep.subr.mxu0 0.0
    %7258 = vmatpush1.msra.mxu0 0.0
    %7259 = vmatprep.subr.mxu0 0.0
    %7260 = vmatpush1.msra.mxu0 0.0
    %7261 = vmatprep.subr.mxu0 0.0
    %7262 = vmatpush1.msra.mxu0 0.0
    %7263 = vmatprep.subr.mxu0 0.0
    %7264 = vmatpush1.msra.mxu0 0.0
    %7265 = vmatprep.subr.mxu0 0.0
    %7266 = vmatpush1.msra.mxu0 0.0
    %7267 = vmatprep.subr.mxu0 0.0
    %7268 = vmatpush1.msra.mxu0 0.0
    %7269 = vmatprep.subr.mxu0 0.0
    %7270 = vmatpush1.msra.mxu0 0.0
    %7271 = vmatprep.subr.mxu0 0.0
    %7272 = vmatpush1.msra.mxu0 0.0
    %7273 = vmatprep.subr.mxu0 0.0
    %7274 = vmatpush1.msra.mxu0 0.0
    %7275 = vmatprep.subr.mxu0 0.0
    %7276 = vmatpush1.msra.mxu0 0.0
    %7277 = vmatprep.subr.mxu0 0.0
    %7278 = vmatpush1.msra.mxu0 0.0
    %7279 = vmatprep.mubr.f32.mxu0 0.0
    %7280 = vmatmul.mubr.f32.gmra.mrb[0].mxu0 %v2350
    %v7281 = vpop.f32.mrb[0].mxu0
    %v7282 = vadd.f32 0.0, %v7281
    %v7283 = vpop.f32.mrb[0].mxu0
    %7284 = vdwg.mxu0
    %v7285 = vld [vmem:[%s9] sm:$0xf]
    %v7286 = vld [vmem:[%s2423] sm:$0xf]
    %v7288 = vsel %vm314, %v7214, 0
    %v7291 = vsel %vm327, %v7286, 0
    %7293 = vmatprep.subr.mxu0 0.0
    %7294 = vmatpush1.msra.mxu0 %v7291
    %7295 = vmatprep.subr.mxu0 0.0
    %7296 = vmatpush1.msra.mxu0 0.0
    %7297 = vmatprep.subr.mxu0 0.0
    %7298 = vmatpush1.msra.mxu0 0.0
    %7299 = vmatprep.subr.mxu0 0.0
    %7300 = vmatpush1.msra.mxu0 0.0
    %7301 = vmatprep.subr.mxu0 0.0
    %7302 = vmatpush1.msra.mxu0 0.0
    %7303 = vmatprep.subr.mxu0 0.0
    %7304 = vmatpush1.msra.mxu0 0.0
    %7305 = vmatprep.subr.mxu0 0.0
    %7306 = vmatpush1.msra.mxu0 0.0
    %7307 = vmatprep.subr.mxu0 0.0
    %7308 = vmatpush1.msra.mxu0 0.0
    %7309 = vmatprep.subr.mxu0 0.0
    %7310 = vmatpush1.msra.mxu0 0.0
    %7311 = vmatprep.subr.mxu0 0.0
    %7312 = vmatpush1.msra.mxu0 0.0
    %7313 = vmatprep.subr.mxu0 0.0
    %7314 = vmatpush1.msra.mxu0 0.0
    %7315 = vmatprep.subr.mxu0 0.0
    %7316 = vmatpush1.msra.mxu0 0.0
    %7317 = vmatprep.subr.mxu0 0.0
    %7318 = vmatpush1.msra.mxu0 0.0
    %7319 = vmatprep.subr.mxu0 0.0
    %7320 = vmatpush1.msra.mxu0 0.0
    %7321 = vmatprep.subr.mxu0 0.0
    %7322 = vmatpush1.msra.mxu0 0.0
    %7323 = vmatprep.subr.mxu0 0.0
    %7324 = vmatpush1.msra.mxu0 0.0
    %7325 = vmatprep.subr.mxu0 0.0
    %7326 = vmatpush1.msra.mxu0 0.0
    %7327 = vmatprep.subr.mxu0 0.0
    %7328 = vmatpush1.msra.mxu0 0.0
    %7329 = vmatprep.subr.mxu0 0.0
    %7330 = vmatpush1.msra.mxu0 0.0
    %7331 = vmatprep.subr.mxu0 0.0
    %7332 = vmatpush1.msra.mxu0 0.0
    %7333 = vmatprep.subr.mxu0 0.0
    %7334 = vmatpush1.msra.mxu0 0.0
    %7335 = vmatprep.subr.mxu0 0.0
    %7336 = vmatpush1.msra.mxu0 0.0
    %7337 = vmatprep.subr.mxu0 0.0
    %7338 = vmatpush1.msra.mxu0 0.0
    %7339 = vmatprep.subr.mxu0 0.0
    %7340 = vmatpush1.msra.mxu0 0.0
    %7341 = vmatprep.subr.mxu0 0.0
    %7342 = vmatpush1.msra.mxu0 0.0
    %7343 = vmatprep.subr.mxu0 0.0
    %7344 = vmatpush1.msra.mxu0 0.0
    %7345 = vmatprep.subr.mxu0 0.0
    %7346 = vmatpush1.msra.mxu0 0.0
    %7347 = vmatprep.subr.mxu0 0.0
    %7348 = vmatpush1.msra.mxu0 0.0
    %7349 = vmatprep.subr.mxu0 0.0
    %7350 = vmatpush1.msra.mxu0 0.0
    %7351 = vmatprep.subr.mxu0 0.0
    %7352 = vmatpush1.msra.mxu0 0.0
    %7353 = vmatprep.subr.mxu0 0.0
    %7354 = vmatpush1.msra.mxu0 0.0
    %7355 = vmatprep.subr.mxu0 0.0
    %7356 = vmatpush1.msra.mxu0 0.0
    %7357 = vmatprep.mubr.f32.mxu0 0.0
    %7358 = vmatmul.mubr.f32.gmra.mrb[0].mxu0 %v7288
    %v7359 = vpop.f32.mrb[0].mxu0
    %v7360 = vadd.f32 0.0, %v7359
    %v7361 = vpop.f32.mrb[0].mxu0
    %7362 = vdwg.mxu0
    %v7364 = vsel %vm314, %v7282, 0
    %v7367 = vsel %vm327, %v7285, 0
    %7369 = vmatprep.subr.mxu0 0.0
    %7370 = vmatpush1.msra.mxu0 %v7367
    %7371 = vmatprep.subr.mxu0 0.0
    %7372 = vmatpush1.msra.mxu0 0.0
    %7373 = vmatprep.subr.mxu0 0.0
    %7374 = vmatpush1.msra.mxu0 0.0
    %7375 = vmatprep.subr.mxu0 0.0
    %7376 = vmatpush1.msra.mxu0 0.0
    %7377 = vmatprep.subr.mxu0 0.0
    %7378 = vmatpush1.msra.mxu0 0.0
    %7379 = vmatprep.subr.mxu0 0.0
    %7380 = vmatpush1.msra.mxu0 0.0
    %7381 = vmatprep.subr.mxu0 0.0
    %7382 = vmatpush1.msra.mxu0 0.0
    %7383 = vmatprep.subr.mxu0 0.0
    %7384 = vmatpush1.msra.mxu0 0.0
    %7385 = vmatprep.subr.mxu0 0.0
    %7386 = vmatpush1.msra.mxu0 0.0
    %7387 = vmatprep.subr.mxu0 0.0
    %7388 = vmatpush1.msra.mxu0 0.0
    %7389 = vmatprep.subr.mxu0 0.0
    %7390 = vmatpush1.msra.mxu0 0.0
    %7391 = vmatprep.subr.mxu0 0.0
    %7392 = vmatpush1.msra.mxu0 0.0
    %7393 = vmatprep.subr.mxu0 0.0
    %7394 = vmatpush1.msra.mxu0 0.0
    %7395 = vmatprep.subr.mxu0 0.0
    %7396 = vmatpush1.msra.mxu0 0.0
    %7397 = vmatprep.subr.mxu0 0.0
    %7398 = vmatpush1.msra.mxu0 0.0
    %7399 = vmatprep.subr.mxu0 0.0
    %7400 = vmatpush1.msra.mxu0 0.0
    %7401 = vmatprep.subr.mxu0 0.0
    %7402 = vmatpush1.msra.mxu0 0.0
    %7403 = vmatprep.subr.mxu0 0.0
    %7404 = vmatpush1.msra.mxu0 0.0
    %7405 = vmatprep.subr.mxu0 0.0
    %7406 = vmatpush1.msra.mxu0 0.0
    %7407 = vmatprep.subr.mxu0 0.0
    %7408 = vmatpush1.msra.mxu0 0.0
    %7409 = vmatprep.subr.mxu0 0.0
    %7410 = vmatpush1.msra.mxu0 0.0
    %7411 = vmatprep.subr.mxu0 0.0
    %7412 = vmatpush1.msra.mxu0 0.0
    %7413 = vmatprep.subr.mxu0 0.0
    %7414 = vmatpush1.msra.mxu0 0.0
    %7415 = vmatprep.subr.mxu0 0.0
    %7416 = vmatpush1.msra.mxu0 0.0
    %7417 = vmatprep.subr.mxu0 0.0
    %7418 = vmatpush1.msra.mxu0 0.0
    %7419 = vmatprep.subr.mxu0 0.0
    %7420 = vmatpush1.msra.mxu0 0.0
    %7421 = vmatprep.subr.mxu0 0.0
    %7422 = vmatpush1.msra.mxu0 0.0
    %7423 = vmatprep.subr.mxu0 0.0
    %7424 = vmatpush1.msra.mxu0 0.0
    %7425 = vmatprep.subr.mxu0 0.0
    %7426 = vmatpush1.msra.mxu0 0.0
    %7427 = vmatprep.subr.mxu0 0.0
    %7428 = vmatpush1.msra.mxu0 0.0
    %7429 = vmatprep.subr.mxu0 0.0
    %7430 = vmatpush1.msra.mxu0 0.0
    %7431 = vmatprep.subr.mxu0 0.0
    %7432 = vmatpush1.msra.mxu0 0.0
    %7433 = vmatprep.mubr.f32.mxu0 0.0
    %7434 = vmatmul.mubr.f32.gmra.mrb[0].mxu0 %v7364
    %v7435 = vpop.f32.mrb[0].mxu0
    %v7436 = vadd.f32 %v7360, %v7435
    %v7437 = vpop.f32.mrb[0].mxu0
    %7438 = vdwg.mxu0
    %7439 = vmatprep.subr.mxu0 0.0
    %7440 = vmatpush1.msra.mxu0 %v7214
    %7441 = vmatprep.subr.mxu0 0.0
    %7442 = vmatpush1.msra.mxu0 0.0
    %7443 = vmatprep.subr.mxu0 0.0
    %7444 = vmatpush1.msra.mxu0 0.0
    %7445 = vmatprep.subr.mxu0 0.0
    %7446 = vmatpush1.msra.mxu0 0.0
    %7447 = vmatprep.subr.mxu0 0.0
    %7448 = vmatpush1.msra.mxu0 0.0
    %7449 = vmatprep.subr.mxu0 0.0
    %7450 = vmatpush1.msra.mxu0 0.0
    %7451 = vmatprep.subr.mxu0 0.0
    %7452 = vmatpush1.msra.mxu0 0.0
    %7453 = vmatprep.subr.mxu0 0.0
    %7454 = vmatpush1.msra.mxu0 0.0
    %7455 = vmatprep.subr.mxu0 0.0
    %7456 = vmatpush1.msra.mxu0 0.0
    %7457 = vmatprep.subr.mxu0 0.0
    %7458 = vmatpush1.msra.mxu0 0.0
    %7459 = vmatprep.subr.mxu0 0.0
    %7460 = vmatpush1.msra.mxu0 0.0
    %7461 = vmatprep.subr.mxu0 0.0
    %7462 = vmatpush1.msra.mxu0 0.0
    %7463 = vmatprep.subr.mxu0 0.0
    %7464 = vmatpush1.msra.mxu0 0.0
    %7465 = vmatprep.subr.mxu0 0.0
    %7466 = vmatpush1.msra.mxu0 0.0
    %7467 = vmatprep.subr.mxu0 0.0
    %7468 = vmatpush1.msra.mxu0 0.0
    %7469 = vmatprep.subr.mxu0 0.0
    %7470 = vmatpush1.msra.mxu0 0.0
    %7471 = vmatprep.subr.mxu0 0.0
    %7472 = vmatpush1.msra.mxu0 0.0
    %7473 = vmatprep.subr.mxu0 0.0
    %7474 = vmatpush1.msra.mxu0 0.0
    %7475 = vmatprep.subr.mxu0 0.0
    %7476 = vmatpush1.msra.mxu0 0.0
    %7477 = vmatprep.subr.mxu0 0.0
    %7478 = vmatpush1.msra.mxu0 0.0
    %7479 = vmatprep.subr.mxu0 0.0
    %7480 = vmatpush1.msra.mxu0 0.0
    %7481 = vmatprep.subr.mxu0 0.0
    %7482 = vmatpush1.msra.mxu0 0.0
    %7483 = vmatprep.subr.mxu0 0.0
    %7484 = vmatpush1.msra.mxu0 0.0
    %7485 = vmatprep.subr.mxu0 0.0
    %7486 = vmatpush1.msra.mxu0 0.0
    %7487 = vmatprep.subr.mxu0 0.0
    %7488 = vmatpush1.msra.mxu0 0.0
    %7489 = vmatprep.subr.mxu0 0.0
    %7490 = vmatpush1.msra.mxu0 0.0
    %7491 = vmatprep.subr.mxu0 0.0
    %7492 = vmatpush1.msra.mxu0 0.0
    %7493 = vmatprep.subr.mxu0 0.0
    %7494 = vmatpush1.msra.mxu0 0.0
    %7495 = vmatprep.subr.mxu0 0.0
    %7496 = vmatpush1.msra.mxu0 0.0
    %7497 = vmatprep.subr.mxu0 0.0
    %7498 = vmatpush1.msra.mxu0 0.0
    %7499 = vmatprep.subr.mxu0 0.0
    %7500 = vmatpush1.msra.mxu0 0.0
    %7501 = vmatprep.subr.mxu0 0.0
    %7502 = vmatpush1.msra.mxu0 0.0
    %7503 = vmatprep.mubr.f32.mxu0 0.0
    %7504 = vmatmul.mubr.f32.gmra.mrb[0].mxu0 %v2577
    %v7505 = vpop.f32.mrb[0].mxu0
    %v7506 = vadd.f32 0.0, %v7505
    %v7507 = vpop.f32.mrb[0].mxu0
    %7508 = vdwg.mxu0
    %v7509 = vld [vmem:[%s2649] sm:$0xf]
    %v7511 = vsel %vm314, %v7506, 0
    %v7514 = vsel %vm327, %v7509, 0
    %7516 = vmatprep.subr.mxu0 0.0
    %7517 = vmatpush1.msra.mxu0 %v7514
    %7518 = vmatprep.subr.mxu0 0.0
    %7519 = vmatpush1.msra.mxu0 0.0
    %7520 = vmatprep.subr.mxu0 0.0
    %7521 = vmatpush1.msra.mxu0 0.0
    %7522 = vmatprep.subr.mxu0 0.0
    %7523 = vmatpush1.msra.mxu0 0.0
    %7524 = vmatprep.subr.mxu0 0.0
    %7525 = vmatpush1.msra.mxu0 0.0
    %7526 = vmatprep.subr.mxu0 0.0
    %7527 = vmatpush1.msra.mxu0 0.0
    %7528 = vmatprep.subr.mxu0 0.0
    %7529 = vmatpush1.msra.mxu0 0.0
    %7530 = vmatprep.subr.mxu0 0.0
    %7531 = vmatpush1.msra.mxu0 0.0
    %7532 = vmatprep.subr.mxu0 0.0
    %7533 = vmatpush1.msra.mxu0 0.0
    %7534 = vmatprep.subr.mxu0 0.0
    %7535 = vmatpush1.msra.mxu0 0.0
    %7536 = vmatprep.subr.mxu0 0.0
    %7537 = vmatpush1.msra.mxu0 0.0
    %7538 = vmatprep.subr.mxu0 0.0
    %7539 = vmatpush1.msra.mxu0 0.0
    %7540 = vmatprep.subr.mxu0 0.0
    %7541 = vmatpush1.msra.mxu0 0.0
    %7542 = vmatprep.subr.mxu0 0.0
    %7543 = vmatpush1.msra.mxu0 0.0
    %7544 = vmatprep.subr.mxu0 0.0
    %7545 = vmatpush1.msra.mxu0 0.0
    %7546 = vmatprep.subr.mxu0 0.0
    %7547 = vmatpush1.msra.mxu0 0.0
    %7548 = vmatprep.subr.mxu0 0.0
    %7549 = vmatpush1.msra.mxu0 0.0
    %7550 = vmatprep.subr.mxu0 0.0
    %7551 = vmatpush1.msra.mxu0 0.0
    %7552 = vmatprep.subr.mxu0 0.0
    %7553 = vmatpush1.msra.mxu0 0.0
    %7554 = vmatprep.subr.mxu0 0.0
    %7555 = vmatpush1.msra.mxu0 0.0
    %7556 = vmatprep.subr.mxu0 0.0
    %7557 = vmatpush1.msra.mxu0 0.0
    %7558 = vmatprep.subr.mxu0 0.0
    %7559 = vmatpush1.msra.mxu0 0.0
    %7560 = vmatprep.subr.mxu0 0.0
    %7561 = vmatpush1.msra.mxu0 0.0
    %7562 = vmatprep.subr.mxu0 0.0
    %7563 = vmatpush1.msra.mxu0 0.0
    %7564 = vmatprep.subr.mxu0 0.0
    %7565 = vmatpush1.msra.mxu0 0.0
    %7566 = vmatprep.subr.mxu0 0.0
    %7567 = vmatpush1.msra.mxu0 0.0
    %7568 = vmatprep.subr.mxu0 0.0
    %7569 = vmatpush1.msra.mxu0 0.0
    %7570 = vmatprep.subr.mxu0 0.0
    %7571 = vmatpush1.msra.mxu0 0.0
    %7572 = vmatprep.subr.mxu0 0.0
    %7573 = vmatpush1.msra.mxu0 0.0
    %7574 = vmatprep.subr.mxu0 0.0
    %7575 = vmatpush1.msra.mxu0 0.0
    %7576 = vmatprep.subr.mxu0 0.0
    %7577 = vmatpush1.msra.mxu0 0.0
    %7578 = vmatprep.subr.mxu0 0.0
    %7579 = vmatpush1.msra.mxu0 0.0
    %7580 = vmatprep.mubr.f32.mxu0 0.0
    %7581 = vmatmul.mubr.f32.gmra.mrb[0].mxu0 %v7511
    %v7582 = vpop.f32.mrb[0].mxu0
    %v7583 = vadd.f32 0.0, %v7582
    %v7584 = vpop.f32.mrb[0].mxu0
    %7585 = vdwg.mxu0
    %v7586 = vadd.f32 %v7436, %v7583
    %v7587 = vld [vmem:[%s10] sm:$0x1]
    %v7589 = vlaneseq
    %v7590 = vshrl.u32 %v7589, 7
    %v7591 = vsub.s32 0, %v7590
    %v7592 = vrot.slane %v7587, %v7591
    %v7594 = vadd.f32 %v7586, %v7592
    %v7595 = vmax.f32 %v7594, 0.0
    %7597 = vrot.lane.b32.xlu0 %v7594, 120
    %v7598 = vpop.permute.xlu0 %7597
    %7600 = vmatprep.subr.mxu0 0.0
    %7601 = vmatpush1.msra.mxu0 %v7598
    %7602 = vmatprep.subr.mxu0 0.0
    %7603 = vmatpush1.msra.mxu0 0.0
    %7604 = vmatprep.subr.mxu0 0.0
    %7605 = vmatpush1.msra.mxu0 0.0
    %7606 = vmatprep.subr.mxu0 0.0
    %7607 = vmatpush1.msra.mxu0 0.0
    %7608 = vmatprep.subr.mxu0 0.0
    %7609 = vmatpush1.msra.mxu0 0.0
    %7610 = vmatprep.subr.mxu0 0.0
    %7611 = vmatpush1.msra.mxu0 0.0
    %7612 = vmatprep.subr.mxu0 0.0
    %7613 = vmatpush1.msra.mxu0 0.0
    %7614 = vmatprep.subr.mxu0 0.0
    %7615 = vmatpush1.msra.mxu0 0.0
    %7616 = vmatprep.subr.mxu0 0.0
    %7617 = vmatpush1.msra.mxu0 0.0
    %7618 = vmatprep.subr.mxu0 0.0
    %7619 = vmatpush1.msra.mxu0 0.0
    %7620 = vmatprep.subr.mxu0 0.0
    %7621 = vmatpush1.msra.mxu0 0.0
    %7622 = vmatprep.subr.mxu0 0.0
    %7623 = vmatpush1.msra.mxu0 0.0
    %7624 = vmatprep.subr.mxu0 0.0
    %7625 = vmatpush1.msra.mxu0 0.0
    %7626 = vmatprep.subr.mxu0 0.0
    %7627 = vmatpush1.msra.mxu0 0.0
    %7628 = vmatprep.subr.mxu0 0.0
    %7629 = vmatpush1.msra.mxu0 0.0
    %7630 = vmatprep.subr.mxu0 0.0
    %7631 = vmatpush1.msra.mxu0 0.0
    %7632 = vmatprep.subr.mxu0 0.0
    %7633 = vmatpush1.msra.mxu0 0.0
    %7634 = vmatprep.subr.mxu0 0.0
    %7635 = vmatpush1.msra.mxu0 0.0
    %7636 = vmatprep.subr.mxu0 0.0
    %7637 = vmatpush1.msra.mxu0 0.0
    %7638 = vmatprep.subr.mxu0 0.0
    %7639 = vmatpush1.msra.mxu0 0.0
    %7640 = vmatprep.subr.mxu0 0.0
    %7641 = vmatpush1.msra.mxu0 0.0
    %7642 = vmatprep.subr.mxu0 0.0
    %7643 = vmatpush1.msra.mxu0 0.0
    %7644 = vmatprep.subr.mxu0 0.0
    %7645 = vmatpush1.msra.mxu0 0.0
    %7646 = vmatprep.subr.mxu0 0.0
    %7647 = vmatpush1.msra.mxu0 0.0
    %7648 = vmatprep.subr.mxu0 0.0
    %7649 = vmatpush1.msra.mxu0 0.0
    %7650 = vmatprep.subr.mxu0 0.0
    %7651 = vmatpush1.msra.mxu0 0.0
    %7652 = vmatprep.subr.mxu0 0.0
    %7653 = vmatpush1.msra.mxu0 0.0
    %7654 = vmatprep.subr.mxu0 0.0
    %7655 = vmatpush1.msra.mxu0 0.0
    %7656 = vmatprep.subr.mxu0 0.0
    %7657 = vmatpush1.msra.mxu0 0.0
    %7658 = vmatprep.subr.mxu0 0.0
    %7659 = vmatpush1.msra.mxu0 0.0
    %7660 = vmatprep.subr.mxu0 0.0
    %7661 = vmatpush1.msra.mxu0 0.0
    %7662 = vmatprep.subr.mxu0 0.0
    %7663 = vmatpush1.msra.mxu0 0.0
    %7664 = vmatprep.mubr.f32.mxu0 0.0
    %7665 = vmatmul.mubr.f32.gmra.mrb[0].mxu0 %v2741
    %v7666 = vpop.f32.mrb[0].mxu0
    %v7667 = vadd.f32 0.0, %v7666
    %v7668 = vpop.f32.mrb[0].mxu0
    %7669 = vdwg.mxu0
    %7670 = vmatprep.subr.mxu0 0.0
    %7671 = vmatpush1.msra.mxu0 %v7595
    %7672 = vmatprep.subr.mxu0 0.0
    %7673 = vmatpush1.msra.mxu0 0.0
    %7674 = vmatprep.subr.mxu0 0.0
    %7675 = vmatpush1.msra.mxu0 0.0
    %7676 = vmatprep.subr.mxu0 0.0
    %7677 = vmatpush1.msra.mxu0 0.0
    %7678 = vmatprep.subr.mxu0 0.0
    %7679 = vmatpush1.msra.mxu0 0.0
    %7680 = vmatprep.subr.mxu0 0.0
    %7681 = vmatpush1.msra.mxu0 0.0
    %7682 = vmatprep.subr.mxu0 0.0
    %7683 = vmatpush1.msra.mxu0 0.0
    %7684 = vmatprep.subr.mxu0 0.0
    %7685 = vmatpush1.msra.mxu0 0.0
    %7686 = vmatprep.subr.mxu0 0.0
    %7687 = vmatpush1.msra.mxu0 0.0
    %7688 = vmatprep.subr.mxu0 0.0
    %7689 = vmatpush1.msra.mxu0 0.0
    %7690 = vmatprep.subr.mxu0 0.0
    %7691 = vmatpush1.msra.mxu0 0.0
    %7692 = vmatprep.subr.mxu0 0.0
    %7693 = vmatpush1.msra.mxu0 0.0
    %7694 = vmatprep.subr.mxu0 0.0
    %7695 = vmatpush1.msra.mxu0 0.0
    %7696 = vmatprep.subr.mxu0 0.0
    %7697 = vmatpush1.msra.mxu0 0.0
    %7698 = vmatprep.subr.mxu0 0.0
    %7699 = vmatpush1.msra.mxu0 0.0
    %7700 = vmatprep.subr.mxu0 0.0
    %7701 = vmatpush1.msra.mxu0 0.0
    %7702 = vmatprep.subr.mxu0 0.0
    %7703 = vmatpush1.msra.mxu0 0.0
    %7704 = vmatprep.subr.mxu0 0.0
    %7705 = vmatpush1.msra.mxu0 0.0
    %7706 = vmatprep.subr.mxu0 0.0
    %7707 = vmatpush1.msra.mxu0 0.0
    %7708 = vmatprep.subr.mxu0 0.0
    %7709 = vmatpush1.msra.mxu0 0.0
    %7710 = vmatprep.subr.mxu0 0.0
    %7711 = vmatpush1.msra.mxu0 0.0
    %7712 = vmatprep.subr.mxu0 0.0
    %7713 = vmatpush1.msra.mxu0 0.0
    %7714 = vmatprep.subr.mxu0 0.0
    %7715 = vmatpush1.msra.mxu0 0.0
    %7716 = vmatprep.subr.mxu0 0.0
    %7717 = vmatpush1.msra.mxu0 0.0
    %7718 = vmatprep.subr.mxu0 0.0
    %7719 = vmatpush1.msra.mxu0 0.0
    %7720 = vmatprep.subr.mxu0 0.0
    %7721 = vmatpush1.msra.mxu0 0.0
    %7722 = vmatprep.subr.mxu0 0.0
    %7723 = vmatpush1.msra.mxu0 0.0
    %7724 = vmatprep.subr.mxu0 0.0
    %7725 = vmatpush1.msra.mxu0 0.0
    %7726 = vmatprep.subr.mxu0 0.0
    %7727 = vmatpush1.msra.mxu0 0.0
    %7728 = vmatprep.subr.mxu0 0.0
    %7729 = vmatpush1.msra.mxu0 0.0
    %7730 = vmatprep.subr.mxu0 0.0
    %7731 = vmatpush1.msra.mxu0 0.0
    %7732 = vmatprep.subr.mxu0 0.0
    %7733 = vmatpush1.msra.mxu0 0.0
    %7734 = vmatprep.mubr.f32.mxu0 0.0
    %7735 = vmatmul.mubr.f32.gmra.mrb[0].mxu0 %v2813
    %v7736 = vpop.f32.mrb[0].mxu0
    %v7737 = vadd.f32 0.0, %v7736
    %v7738 = vpop.f32.mrb[0].mxu0
    %7739 = vdwg.mxu0
    %v7740 = vld [vmem:[#allocation10] sm:$0xff]
    %7741 = vmatprep.subr.mxu0 0.0
    %7742 = vmatpush1.msra.mxu0 %v7595
    %7743 = vmatprep.subr.mxu0 0.0
    %7744 = vmatpush1.msra.mxu0 0.0
    %7745 = vmatprep.subr.mxu0 0.0
    %7746 = vmatpush1.msra.mxu0 0.0
    %7747 = vmatprep.subr.mxu0 0.0
    %7748 = vmatpush1.msra.mxu0 0.0
    %7749 = vmatprep.subr.mxu0 0.0
    %7750 = vmatpush1.msra.mxu0 0.0
    %7751 = vmatprep.subr.mxu0 0.0
    %7752 = vmatpush1.msra.mxu0 0.0
    %7753 = vmatprep.subr.mxu0 0.0
    %7754 = vmatpush1.msra.mxu0 0.0
    %7755 = vmatprep.subr.mxu0 0.0
    %7756 = vmatpush1.msra.mxu0 0.0
    %7757 = vmatprep.subr.mxu0 0.0
    %7758 = vmatpush1.msra.mxu0 0.0
    %7759 = vmatprep.subr.mxu0 0.0
    %7760 = vmatpush1.msra.mxu0 0.0
    %7761 = vmatprep.subr.mxu0 0.0
    %7762 = vmatpush1.msra.mxu0 0.0
    %7763 = vmatprep.subr.mxu0 0.0
    %7764 = vmatpush1.msra.mxu0 0.0
    %7765 = vmatprep.subr.mxu0 0.0
    %7766 = vmatpush1.msra.mxu0 0.0
    %7767 = vmatprep.subr.mxu0 0.0
    %7768 = vmatpush1.msra.mxu0 0.0
    %7769 = vmatprep.subr.mxu0 0.0
    %7770 = vmatpush1.msra.mxu0 0.0
    %7771 = vmatprep.subr.mxu0 0.0
    %7772 = vmatpush1.msra.mxu0 0.0
    %7773 = vmatprep.subr.mxu0 0.0
    %7774 = vmatpush1.msra.mxu0 0.0
    %7775 = vmatprep.subr.mxu0 0.0
    %7776 = vmatpush1.msra.mxu0 0.0
    %7777 = vmatprep.subr.mxu0 0.0
    %7778 = vmatpush1.msra.mxu0 0.0
    %7779 = vmatprep.subr.mxu0 0.0
    %7780 = vmatpush1.msra.mxu0 0.0
    %7781 = vmatprep.subr.mxu0 0.0
    %7782 = vmatpush1.msra.mxu0 0.0
    %7783 = vmatprep.subr.mxu0 0.0
    %7784 = vmatpush1.msra.mxu0 0.0
    %7785 = vmatprep.subr.mxu0 0.0
    %7786 = vmatpush1.msra.mxu0 0.0
    %7787 = vmatprep.subr.mxu0 0.0
    %7788 = vmatpush1.msra.mxu0 0.0
    %7789 = vmatprep.subr.mxu0 0.0
    %7790 = vmatpush1.msra.mxu0 0.0
    %7791 = vmatprep.subr.mxu0 0.0
    %7792 = vmatpush1.msra.mxu0 0.0
    %7793 = vmatprep.subr.mxu0 0.0
    %7794 = vmatpush1.msra.mxu0 0.0
    %7795 = vmatprep.subr.mxu0 0.0
    %7796 = vmatpush1.msra.mxu0 0.0
    %7797 = vmatprep.subr.mxu0 0.0
    %7798 = vmatpush1.msra.mxu0 0.0
    %7799 = vmatprep.subr.mxu0 0.0
    %7800 = vmatpush1.msra.mxu0 0.0
    %7801 = vmatprep.subr.mxu0 0.0
    %7802 = vmatpush1.msra.mxu0 0.0
    %7803 = vmatprep.subr.mxu0 0.0
    %7804 = vmatpush1.msra.mxu0 0.0
    %7805 = vmatprep.mubr.f32.mxu0 0.0
    %7806 = vmatmul.mubr.f32.gmra.mrb[0].mxu0 %v2741
    %v7807 = vpop.f32.mrb[0].mxu0
    %v7808 = vadd.f32 0.0, %v7807
    %v7809 = vpop.f32.mrb[0].mxu0
    %7810 = vdwg.mxu0
    %v7811 = vld [vmem:[%s2956] sm:$0xff]
    %v7813 = vsel %vm2349, %v7808, 0
    %7815 = vmatprep.subr.mxu0 0.0
    %7816 = vmatpush1.msra.mxu0 %v7811
    %7817 = vmatprep.subr.mxu0 0.0
    %7818 = vmatpush1.msra.mxu0 0.0
    %7819 = vmatprep.subr.mxu0 0.0
    %7820 = vmatpush1.msra.mxu0 0.0
    %7821 = vmatprep.subr.mxu0 0.0
    %7822 = vmatpush1.msra.mxu0 0.0
    %7823 = vmatprep.subr.mxu0 0.0
    %7824 = vmatpush1.msra.mxu0 0.0
    %7825 = vmatprep.subr.mxu0 0.0
    %7826 = vmatpush1.msra.mxu0 0.0
    %7827 = vmatprep.subr.mxu0 0.0
    %7828 = vmatpush1.msra.mxu0 0.0
    %7829 = vmatprep.subr.mxu0 0.0
    %7830 = vmatpush1.msra.mxu0 0.0
    %7831 = vmatprep.subr.mxu0 0.0
    %7832 = vmatpush1.msra.mxu0 0.0
    %7833 = vmatprep.subr.mxu0 0.0
    %7834 = vmatpush1.msra.mxu0 0.0
    %7835 = vmatprep.subr.mxu0 0.0
    %7836 = vmatpush1.msra.mxu0 0.0
    %7837 = vmatprep.subr.mxu0 0.0
    %7838 = vmatpush1.msra.mxu0 0.0
    %7839 = vmatprep.subr.mxu0 0.0
    %7840 = vmatpush1.msra.mxu0 0.0
    %7841 = vmatprep.subr.mxu0 0.0
    %7842 = vmatpush1.msra.mxu0 0.0
    %7843 = vmatprep.subr.mxu0 0.0
    %7844 = vmatpush1.msra.mxu0 0.0
    %7845 = vmatprep.subr.mxu0 0.0
    %7846 = vmatpush1.msra.mxu0 0.0
    %7847 = vmatprep.subr.mxu0 0.0
    %7848 = vmatpush1.msra.mxu0 0.0
    %7849 = vmatprep.subr.mxu0 0.0
    %7850 = vmatpush1.msra.mxu0 0.0
    %7851 = vmatprep.subr.mxu0 0.0
    %7852 = vmatpush1.msra.mxu0 0.0
    %7853 = vmatprep.subr.mxu0 0.0
    %7854 = vmatpush1.msra.mxu0 0.0
    %7855 = vmatprep.subr.mxu0 0.0
    %7856 = vmatpush1.msra.mxu0 0.0
    %7857 = vmatprep.subr.mxu0 0.0
    %7858 = vmatpush1.msra.mxu0 0.0
    %7859 = vmatprep.subr.mxu0 0.0
    %7860 = vmatpush1.msra.mxu0 0.0
    %7861 = vmatprep.subr.mxu0 0.0
    %7862 = vmatpush1.msra.mxu0 0.0
    %7863 = vmatprep.subr.mxu0 0.0
    %7864 = vmatpush1.msra.mxu0 0.0
    %7865 = vmatprep.subr.mxu0 0.0
    %7866 = vmatpush1.msra.mxu0 0.0
    %7867 = vmatprep.subr.mxu0 0.0
    %7868 = vmatpush1.msra.mxu0 0.0
    %7869 = vmatprep.subr.mxu0 0.0
    %7870 = vmatpush1.msra.mxu0 0.0
    %7871 = vmatprep.subr.mxu0 0.0
    %7872 = vmatpush1.msra.mxu0 0.0
    %7873 = vmatprep.subr.mxu0 0.0
    %7874 = vmatpush1.msra.mxu0 0.0
    %7875 = vmatprep.subr.mxu0 0.0
    %7876 = vmatpush1.msra.mxu0 0.0
    %7877 = vmatprep.subr.mxu0 0.0
    %7878 = vmatpush1.msra.mxu0 0.0
    %7879 = vmatprep.mubr.f32.mxu0 0.0
    %7880 = vmatmul.mubr.f32.gmra.mrb[0].mxu0 %v7813
    %v7881 = vpop.f32.mrb[0].mxu0
    %v7882 = vadd.f32 0.0, %v7881
    %v7883 = vpop.f32.mrb[0].mxu0
    %7884 = vdwg.mxu0
    %v7886 = vsel %vm2349, %v7737, 0
    %7888 = vmatprep.subr.mxu0 0.0
    %7889 = vmatpush1.msra.mxu0 %v7740
    %7890 = vmatprep.subr.mxu0 0.0
    %7891 = vmatpush1.msra.mxu0 0.0
    %7892 = vmatprep.subr.mxu0 0.0
    %7893 = vmatpush1.msra.mxu0 0.0
    %7894 = vmatprep.subr.mxu0 0.0
    %7895 = vmatpush1.msra.mxu0 0.0
    %7896 = vmatprep.subr.mxu0 0.0
    %7897 = vmatpush1.msra.mxu0 0.0
    %7898 = vmatprep.subr.mxu0 0.0
    %7899 = vmatpush1.msra.mxu0 0.0
    %7900 = vmatprep.subr.mxu0 0.0
    %7901 = vmatpush1.msra.mxu0 0.0
    %7902 = vmatprep.subr.mxu0 0.0
    %7903 = vmatpush1.msra.mxu0 0.0
    %7904 = vmatprep.subr.mxu0 0.0
    %7905 = vmatpush1.msra.mxu0 0.0
    %7906 = vmatprep.subr.mxu0 0.0
    %7907 = vmatpush1.msra.mxu0 0.0
    %7908 = vmatprep.subr.mxu0 0.0
    %7909 = vmatpush1.msra.mxu0 0.0
    %7910 = vmatprep.subr.mxu0 0.0
    %7911 = vmatpush1.msra.mxu0 0.0
    %7912 = vmatprep.subr.mxu0 0.0
    %7913 = vmatpush1.msra.mxu0 0.0
    %7914 = vmatprep.subr.mxu0 0.0
    %7915 = vmatpush1.msra.mxu0 0.0
    %7916 = vmatprep.subr.mxu0 0.0
    %7917 = vmatpush1.msra.mxu0 0.0
    %7918 = vmatprep.subr.mxu0 0.0
    %7919 = vmatpush1.msra.mxu0 0.0
    %7920 = vmatprep.subr.mxu0 0.0
    %7921 = vmatpush1.msra.mxu0 0.0
    %7922 = vmatprep.subr.mxu0 0.0
    %7923 = vmatpush1.msra.mxu0 0.0
    %7924 = vmatprep.subr.mxu0 0.0
    %7925 = vmatpush1.msra.mxu0 0.0
    %7926 = vmatprep.subr.mxu0 0.0
    %7927 = vmatpush1.msra.mxu0 0.0
    %7928 = vmatprep.subr.mxu0 0.0
    %7929 = vmatpush1.msra.mxu0 0.0
    %7930 = vmatprep.subr.mxu0 0.0
    %7931 = vmatpush1.msra.mxu0 0.0
    %7932 = vmatprep.subr.mxu0 0.0
    %7933 = vmatpush1.msra.mxu0 0.0
    %7934 = vmatprep.subr.mxu0 0.0
    %7935 = vmatpush1.msra.mxu0 0.0
    %7936 = vmatprep.subr.mxu0 0.0
    %7937 = vmatpush1.msra.mxu0 0.0
    %7938 = vmatprep.subr.mxu0 0.0
    %7939 = vmatpush1.msra.mxu0 0.0
    %7940 = vmatprep.subr.mxu0 0.0
    %7941 = vmatpush1.msra.mxu0 0.0
    %7942 = vmatprep.subr.mxu0 0.0
    %7943 = vmatpush1.msra.mxu0 0.0
    %7944 = vmatprep.subr.mxu0 0.0
    %7945 = vmatpush1.msra.mxu0 0.0
    %7946 = vmatprep.subr.mxu0 0.0
    %7947 = vmatpush1.msra.mxu0 0.0
    %7948 = vmatprep.subr.mxu0 0.0
    %7949 = vmatpush1.msra.mxu0 0.0
    %7950 = vmatprep.subr.mxu0 0.0
    %7951 = vmatpush1.msra.mxu0 0.0
    %7952 = vmatprep.mubr.f32.mxu0 0.0
    %7953 = vmatmul.mubr.f32.gmra.mrb[0].mxu0 %v7886
    %v7954 = vpop.f32.mrb[0].mxu0
    %v7955 = vadd.f32 %v7882, %v7954
    %v7956 = vpop.f32.mrb[0].mxu0
    %7957 = vdwg.mxu0
    %7958 = vmatprep.subr.mxu0 0.0
    %7959 = vmatpush1.msra.mxu0 %v7595
    %7960 = vmatprep.subr.mxu0 0.0
    %7961 = vmatpush1.msra.mxu0 0.0
    %7962 = vmatprep.subr.mxu0 0.0
    %7963 = vmatpush1.msra.mxu0 0.0
    %7964 = vmatprep.subr.mxu0 0.0
    %7965 = vmatpush1.msra.mxu0 0.0
    %7966 = vmatprep.subr.mxu0 0.0
    %7967 = vmatpush1.msra.mxu0 0.0
    %7968 = vmatprep.subr.mxu0 0.0
    %7969 = vmatpush1.msra.mxu0 0.0
    %7970 = vmatprep.subr.mxu0 0.0
    %7971 = vmatpush1.msra.mxu0 0.0
    %7972 = vmatprep.subr.mxu0 0.0
    %7973 = vmatpush1.msra.mxu0 0.0
    %7974 = vmatprep.subr.mxu0 0.0
    %7975 = vmatpush1.msra.mxu0 0.0
    %7976 = vmatprep.subr.mxu0 0.0
    %7977 = vmatpush1.msra.mxu0 0.0
    %7978 = vmatprep.subr.mxu0 0.0
    %7979 = vmatpush1.msra.mxu0 0.0
    %7980 = vmatprep.subr.mxu0 0.0
    %7981 = vmatpush1.msra.mxu0 0.0
    %7982 = vmatprep.subr.mxu0 0.0
    %7983 = vmatpush1.msra.mxu0 0.0
    %7984 = vmatprep.subr.mxu0 0.0
    %7985 = vmatpush1.msra.mxu0 0.0
    %7986 = vmatprep.subr.mxu0 0.0
    %7987 = vmatpush1.msra.mxu0 0.0
    %7988 = vmatprep.subr.mxu0 0.0
    %7989 = vmatpush1.msra.mxu0 0.0
    %7990 = vmatprep.subr.mxu0 0.0
    %7991 = vmatpush1.msra.mxu0 0.0
    %7992 = vmatprep.subr.mxu0 0.0
    %7993 = vmatpush1.msra.mxu0 0.0
    %7994 = vmatprep.subr.mxu0 0.0
    %7995 = vmatpush1.msra.mxu0 0.0
    %7996 = vmatprep.subr.mxu0 0.0
    %7997 = vmatpush1.msra.mxu0 0.0
    %7998 = vmatprep.subr.mxu0 0.0
    %7999 = vmatpush1.msra.mxu0 0.0
    %8000 = vmatprep.subr.mxu0 0.0
    %8001 = vmatpush1.msra.mxu0 0.0
    %8002 = vmatprep.subr.mxu0 0.0
    %8003 = vmatpush1.msra.mxu0 0.0
    %8004 = vmatprep.subr.mxu0 0.0
    %8005 = vmatpush1.msra.mxu0 0.0
    %8006 = vmatprep.subr.mxu0 0.0
    %8007 = vmatpush1.msra.mxu0 0.0
    %8008 = vmatprep.subr.mxu0 0.0
    %8009 = vmatpush1.msra.mxu0 0.0
    %8010 = vmatprep.subr.mxu0 0.0
    %8011 = vmatpush1.msra.mxu0 0.0
    %8012 = vmatprep.subr.mxu0 0.0
    %8013 = vmatpush1.msra.mxu0 0.0
    %8014 = vmatprep.subr.mxu0 0.0
    %8015 = vmatpush1.msra.mxu0 0.0
    %8016 = vmatprep.subr.mxu0 0.0
    %8017 = vmatpush1.msra.mxu0 0.0
    %8018 = vmatprep.subr.mxu0 0.0
    %8019 = vmatpush1.msra.mxu0 0.0
    %8020 = vmatprep.subr.mxu0 0.0
    %8021 = vmatpush1.msra.mxu0 0.0
    %8022 = vmatprep.mubr.f32.mxu0 0.0
    %8023 = vmatmul.mubr.f32.gmra.mrb[0].mxu0 %v3104
    %v8024 = vpop.f32.mrb[0].mxu0
    %v8025 = vadd.f32 0.0, %v8024
    %v8026 = vpop.f32.mrb[0].mxu0
    %8027 = vdwg.mxu0
    %v8028 = vld [vmem:[%s3176] sm:$0xff]
    %v8030 = vsel %vm2349, %v8025, 0
    %8032 = vmatprep.subr.mxu0 0.0
    %8033 = vmatpush1.msra.mxu0 %v8028
    %8034 = vmatprep.subr.mxu0 0.0
    %8035 = vmatpush1.msra.mxu0 0.0
    %8036 = vmatprep.subr.mxu0 0.0
    %8037 = vmatpush1.msra.mxu0 0.0
    %8038 = vmatprep.subr.mxu0 0.0
    %8039 = vmatpush1.msra.mxu0 0.0
    %8040 = vmatprep.subr.mxu0 0.0
    %8041 = vmatpush1.msra.mxu0 0.0
    %8042 = vmatprep.subr.mxu0 0.0
    %8043 = vmatpush1.msra.mxu0 0.0
    %8044 = vmatprep.subr.mxu0 0.0
    %8045 = vmatpush1.msra.mxu0 0.0
    %8046 = vmatprep.subr.mxu0 0.0
    %8047 = vmatpush1.msra.mxu0 0.0
    %8048 = vmatprep.subr.mxu0 0.0
    %8049 = vmatpush1.msra.mxu0 0.0
    %8050 = vmatprep.subr.mxu0 0.0
    %8051 = vmatpush1.msra.mxu0 0.0
    %8052 = vmatprep.subr.mxu0 0.0
    %8053 = vmatpush1.msra.mxu0 0.0
    %8054 = vmatprep.subr.mxu0 0.0
    %8055 = vmatpush1.msra.mxu0 0.0
    %8056 = vmatprep.subr.mxu0 0.0
    %8057 = vmatpush1.msra.mxu0 0.0
    %8058 = vmatprep.subr.mxu0 0.0
    %8059 = vmatpush1.msra.mxu0 0.0
    %8060 = vmatprep.subr.mxu0 0.0
    %8061 = vmatpush1.msra.mxu0 0.0
    %8062 = vmatprep.subr.mxu0 0.0
    %8063 = vmatpush1.msra.mxu0 0.0
    %8064 = vmatprep.subr.mxu0 0.0
    %8065 = vmatpush1.msra.mxu0 0.0
    %8066 = vmatprep.subr.mxu0 0.0
    %8067 = vmatpush1.msra.mxu0 0.0
    %8068 = vmatprep.subr.mxu0 0.0
    %8069 = vmatpush1.msra.mxu0 0.0
    %8070 = vmatprep.subr.mxu0 0.0
    %8071 = vmatpush1.msra.mxu0 0.0
    %8072 = vmatprep.subr.mxu0 0.0
    %8073 = vmatpush1.msra.mxu0 0.0
    %8074 = vmatprep.subr.mxu0 0.0
    %8075 = vmatpush1.msra.mxu0 0.0
    %8076 = vmatprep.subr.mxu0 0.0
    %8077 = vmatpush1.msra.mxu0 0.0
    %8078 = vmatprep.subr.mxu0 0.0
    %8079 = vmatpush1.msra.mxu0 0.0
    %8080 = vmatprep.subr.mxu0 0.0
    %8081 = vmatpush1.msra.mxu0 0.0
    %8082 = vmatprep.subr.mxu0 0.0
    %8083 = vmatpush1.msra.mxu0 0.0
    %8084 = vmatprep.subr.mxu0 0.0
    %8085 = vmatpush1.msra.mxu0 0.0
    %8086 = vmatprep.subr.mxu0 0.0
    %8087 = vmatpush1.msra.mxu0 0.0
    %8088 = vmatprep.subr.mxu0 0.0
    %8089 = vmatpush1.msra.mxu0 0.0
    %8090 = vmatprep.subr.mxu0 0.0
    %8091 = vmatpush1.msra.mxu0 0.0
    %8092 = vmatprep.subr.mxu0 0.0
    %8093 = vmatpush1.msra.mxu0 0.0
    %8094 = vmatprep.subr.mxu0 0.0
    %8095 = vmatpush1.msra.mxu0 0.0
    %8096 = vmatprep.mubr.f32.mxu0 0.0
    %8097 = vmatmul.mubr.f32.gmra.mrb[0].mxu0 %v8030
    %v8098 = vpop.f32.mrb[0].mxu0
    %v8099 = vadd.f32 0.0, %v8098
    %v8100 = vpop.f32.mrb[0].mxu0
    %8101 = vdwg.mxu0
    %v8102 = vadd.f32 %v7955, %v8099
    %v8103 = vld [vmem:[%s12] sm:$0x1]
    %v8105 = vlaneseq
    %v8106 = vshrl.u32 %v8105, 7
    %v8107 = vsub.s32 0, %v8106
    %v8108 = vrot.slane %v8103, %v8107
    %v8110 = vadd.f32 %v8102, %v8108
    %v8111 = vadd.f32 %v8110, %v7667
    %v8112 = vmax.f32 %v8111, 0.0
    %v8114 = vsel %vm327, %v8112, 0
    %8116 = vmatprep.subr.mxu0 0.0
    %8117 = vmatpush1.msra.mxu0 %v8114
    %8118 = vmatprep.subr.mxu0 0.0
    %8119 = vmatpush1.msra.mxu0 0.0
    %8120 = vmatprep.subr.mxu0 0.0
    %8121 = vmatpush1.msra.mxu0 0.0
    %8122 = vmatprep.subr.mxu0 0.0
    %8123 = vmatpush1.msra.mxu0 0.0
    %8124 = vmatprep.subr.mxu0 0.0
    %8125 = vmatpush1.msra.mxu0 0.0
    %8126 = vmatprep.subr.mxu0 0.0
    %8127 = vmatpush1.msra.mxu0 0.0
    %8128 = vmatprep.subr.mxu0 0.0
    %8129 = vmatpush1.msra.mxu0 0.0
    %8130 = vmatprep.subr.mxu0 0.0
    %8131 = vmatpush1.msra.mxu0 0.0
    %8132 = vmatprep.subr.mxu0 0.0
    %8133 = vmatpush1.msra.mxu0 0.0
    %8134 = vmatprep.subr.mxu0 0.0
    %8135 = vmatpush1.msra.mxu0 0.0
    %8136 = vmatprep.subr.mxu0 0.0
    %8137 = vmatpush1.msra.mxu0 0.0
    %8138 = vmatprep.subr.mxu0 0.0
    %8139 = vmatpush1.msra.mxu0 0.0
    %8140 = vmatprep.subr.mxu0 0.0
    %8141 = vmatpush1.msra.mxu0 0.0
    %8142 = vmatprep.subr.mxu0 0.0
    %8143 = vmatpush1.msra.mxu0 0.0
    %8144 = vmatprep.subr.mxu0 0.0
    %8145 = vmatpush1.msra.mxu0 0.0
    %8146 = vmatprep.subr.mxu0 0.0
    %8147 = vmatpush1.msra.mxu0 0.0
    %8148 = vmatprep.subr.mxu0 0.0
    %8149 = vmatpush1.msra.mxu0 0.0
    %8150 = vmatprep.subr.mxu0 0.0
    %8151 = vmatpush1.msra.mxu0 0.0
    %8152 = vmatprep.subr.mxu0 0.0
    %8153 = vmatpush1.msra.mxu0 0.0
    %8154 = vmatprep.subr.mxu0 0.0
    %8155 = vmatpush1.msra.mxu0 0.0
    %8156 = vmatprep.subr.mxu0 0.0
    %8157 = vmatpush1.msra.mxu0 0.0
    %8158 = vmatprep.subr.mxu0 0.0
    %8159 = vmatpush1.msra.mxu0 0.0
    %8160 = vmatprep.subr.mxu0 0.0
    %8161 = vmatpush1.msra.mxu0 0.0
    %8162 = vmatprep.subr.mxu0 0.0
    %8163 = vmatpush1.msra.mxu0 0.0
    %8164 = vmatprep.subr.mxu0 0.0
    %8165 = vmatpush1.msra.mxu0 0.0
    %8166 = vmatprep.subr.mxu0 0.0
    %8167 = vmatpush1.msra.mxu0 0.0
    %8168 = vmatprep.subr.mxu0 0.0
    %8169 = vmatpush1.msra.mxu0 0.0
    %8170 = vmatprep.subr.mxu0 0.0
    %8171 = vmatpush1.msra.mxu0 0.0
    %8172 = vmatprep.subr.mxu0 0.0
    %8173 = vmatpush1.msra.mxu0 0.0
    %8174 = vmatprep.subr.mxu0 0.0
    %8175 = vmatpush1.msra.mxu0 0.0
    %8176 = vmatprep.subr.mxu0 0.0
    %8177 = vmatpush1.msra.mxu0 0.0
    %8178 = vmatprep.subr.mxu0 0.0
    %8179 = vmatpush1.msra.mxu0 0.0
    %8180 = vmatprep.mubr.f32.mxu0 0.0
    %8181 = vmatmul.mubr.f32.gmra.mrb[0].mxu0 %v3262
    %v8182 = vpop.f32.mrb[0].mxu0
    %v8183 = vadd.f32 0.0, %v8182
    %v8184 = vpop.f32.mrb[0].mxu0
    %8185 = vdwg.mxu0
    %v8186 = vld [vmem:[#allocation11] sm:$0xff]
    %v8187 = vld [vmem:[%s3338] sm:$0xff]
    %v8188 = vsel %vm2349, %v8112, 0
    %8190 = vmatprep.subr.mxu0 0.0
    %8191 = vmatpush1.msra.mxu0 %v8187
    %8192 = vmatprep.subr.mxu0 0.0
    %8193 = vmatpush1.msra.mxu0 0.0
    %8194 = vmatprep.subr.mxu0 0.0
    %8195 = vmatpush1.msra.mxu0 0.0
    %8196 = vmatprep.subr.mxu0 0.0
    %8197 = vmatpush1.msra.mxu0 0.0
    %8198 = vmatprep.subr.mxu0 0.0
    %8199 = vmatpush1.msra.mxu0 0.0
    %8200 = vmatprep.subr.mxu0 0.0
    %8201 = vmatpush1.msra.mxu0 0.0
    %8202 = vmatprep.subr.mxu0 0.0
    %8203 = vmatpush1.msra.mxu0 0.0
    %8204 = vmatprep.subr.mxu0 0.0
    %8205 = vmatpush1.msra.mxu0 0.0
    %8206 = vmatprep.subr.mxu0 0.0
    %8207 = vmatpush1.msra.mxu0 0.0
    %8208 = vmatprep.subr.mxu0 0.0
    %8209 = vmatpush1.msra.mxu0 0.0
    %8210 = vmatprep.subr.mxu0 0.0
    %8211 = vmatpush1.msra.mxu0 0.0
    %8212 = vmatprep.subr.mxu0 0.0
    %8213 = vmatpush1.msra.mxu0 0.0
    %8214 = vmatprep.subr.mxu0 0.0
    %8215 = vmatpush1.msra.mxu0 0.0
    %8216 = vmatprep.subr.mxu0 0.0
    %8217 = vmatpush1.msra.mxu0 0.0
    %8218 = vmatprep.subr.mxu0 0.0
    %8219 = vmatpush1.msra.mxu0 0.0
    %8220 = vmatprep.subr.mxu0 0.0
    %8221 = vmatpush1.msra.mxu0 0.0
    %8222 = vmatprep.subr.mxu0 0.0
    %8223 = vmatpush1.msra.mxu0 0.0
    %8224 = vmatprep.subr.mxu0 0.0
    %8225 = vmatpush1.msra.mxu0 0.0
    %8226 = vmatprep.subr.mxu0 0.0
    %8227 = vmatpush1.msra.mxu0 0.0
    %8228 = vmatprep.subr.mxu0 0.0
    %8229 = vmatpush1.msra.mxu0 0.0
    %8230 = vmatprep.subr.mxu0 0.0
    %8231 = vmatpush1.msra.mxu0 0.0
    %8232 = vmatprep.subr.mxu0 0.0
    %8233 = vmatpush1.msra.mxu0 0.0
    %8234 = vmatprep.subr.mxu0 0.0
    %8235 = vmatpush1.msra.mxu0 0.0
    %8236 = vmatprep.subr.mxu0 0.0
    %8237 = vmatpush1.msra.mxu0 0.0
    %8238 = vmatprep.subr.mxu0 0.0
    %8239 = vmatpush1.msra.mxu0 0.0
    %8240 = vmatprep.subr.mxu0 0.0
    %8241 = vmatpush1.msra.mxu0 0.0
    %8242 = vmatprep.subr.mxu0 0.0
    %8243 = vmatpush1.msra.mxu0 0.0
    %8244 = vmatprep.subr.mxu0 0.0
    %8245 = vmatpush1.msra.mxu0 0.0
    %8246 = vmatprep.subr.mxu0 0.0
    %8247 = vmatpush1.msra.mxu0 0.0
    %8248 = vmatprep.subr.mxu0 0.0
    %8249 = vmatpush1.msra.mxu0 0.0
    %8250 = vmatprep.subr.mxu0 0.0
    %8251 = vmatpush1.msra.mxu0 0.0
    %8252 = vmatprep.subr.mxu0 0.0
    %8253 = vmatpush1.msra.mxu0 0.0
    %8254 = vmatprep.mubr.f32.mxu0 0.0
    %8255 = vmatmul.mubr.f32.gmra.mrb[0].mxu0 %v8188
    %v8256 = vpop.f32.mrb[0].mxu0
    %v8257 = vadd.f32 0.0, %v8256
    %v8258 = vpop.f32.mrb[0].mxu0
    %8259 = vdwg.mxu0
    %v8261 = vsel %vm2349, %v8183, 0
    %8263 = vmatprep.subr.mxu0 0.0
    %8264 = vmatpush1.msra.mxu0 %v8186
    %8265 = vmatprep.subr.mxu0 0.0
    %8266 = vmatpush1.msra.mxu0 0.0
    %8267 = vmatprep.subr.mxu0 0.0
    %8268 = vmatpush1.msra.mxu0 0.0
    %8269 = vmatprep.subr.mxu0 0.0
    %8270 = vmatpush1.msra.mxu0 0.0
    %8271 = vmatprep.subr.mxu0 0.0
    %8272 = vmatpush1.msra.mxu0 0.0
    %8273 = vmatprep.subr.mxu0 0.0
    %8274 = vmatpush1.msra.mxu0 0.0
    %8275 = vmatprep.subr.mxu0 0.0
    %8276 = vmatpush1.msra.mxu0 0.0
    %8277 = vmatprep.subr.mxu0 0.0
    %8278 = vmatpush1.msra.mxu0 0.0
    %8279 = vmatprep.subr.mxu0 0.0
    %8280 = vmatpush1.msra.mxu0 0.0
    %8281 = vmatprep.subr.mxu0 0.0
    %8282 = vmatpush1.msra.mxu0 0.0
    %8283 = vmatprep.subr.mxu0 0.0
    %8284 = vmatpush1.msra.mxu0 0.0
    %8285 = vmatprep.subr.mxu0 0.0
    %8286 = vmatpush1.msra.mxu0 0.0
    %8287 = vmatprep.subr.mxu0 0.0
    %8288 = vmatpush1.msra.mxu0 0.0
    %8289 = vmatprep.subr.mxu0 0.0
    %8290 = vmatpush1.msra.mxu0 0.0
    %8291 = vmatprep.subr.mxu0 0.0
    %8292 = vmatpush1.msra.mxu0 0.0
    %8293 = vmatprep.subr.mxu0 0.0
    %8294 = vmatpush1.msra.mxu0 0.0
    %8295 = vmatprep.subr.mxu0 0.0
    %8296 = vmatpush1.msra.mxu0 0.0
    %8297 = vmatprep.subr.mxu0 0.0
    %8298 = vmatpush1.msra.mxu0 0.0
    %8299 = vmatprep.subr.mxu0 0.0
    %8300 = vmatpush1.msra.mxu0 0.0
    %8301 = vmatprep.subr.mxu0 0.0
    %8302 = vmatpush1.msra.mxu0 0.0
    %8303 = vmatprep.subr.mxu0 0.0
    %8304 = vmatpush1.msra.mxu0 0.0
    %8305 = vmatprep.subr.mxu0 0.0
    %8306 = vmatpush1.msra.mxu0 0.0
    %8307 = vmatprep.subr.mxu0 0.0
    %8308 = vmatpush1.msra.mxu0 0.0
    %8309 = vmatprep.subr.mxu0 0.0
    %8310 = vmatpush1.msra.mxu0 0.0
    %8311 = vmatprep.subr.mxu0 0.0
    %8312 = vmatpush1.msra.mxu0 0.0
    %8313 = vmatprep.subr.mxu0 0.0
    %8314 = vmatpush1.msra.mxu0 0.0
    %8315 = vmatprep.subr.mxu0 0.0
    %8316 = vmatpush1.msra.mxu0 0.0
    %8317 = vmatprep.subr.mxu0 0.0
    %8318 = vmatpush1.msra.mxu0 0.0
    %8319 = vmatprep.subr.mxu0 0.0
    %8320 = vmatpush1.msra.mxu0 0.0
    %8321 = vmatprep.subr.mxu0 0.0
    %8322 = vmatpush1.msra.mxu0 0.0
    %8323 = vmatprep.subr.mxu0 0.0
    %8324 = vmatpush1.msra.mxu0 0.0
    %8325 = vmatprep.subr.mxu0 0.0
    %8326 = vmatpush1.msra.mxu0 0.0
    %8327 = vmatprep.mubr.f32.mxu0 0.0
    %8328 = vmatmul.mubr.f32.gmra.mrb[0].mxu0 %v8261
    %v8329 = vpop.f32.mrb[0].mxu0
    %v8330 = vadd.f32 %v8257, %v8329
    %v8331 = vpop.f32.mrb[0].mxu0
    %8332 = vdwg.mxu0
    %8333 = vmatprep.subr.mxu0 0.0
    %8334 = vmatpush1.msra.mxu0 %v8114
    %8335 = vmatprep.subr.mxu0 0.0
    %8336 = vmatpush1.msra.mxu0 0.0
    %8337 = vmatprep.subr.mxu0 0.0
    %8338 = vmatpush1.msra.mxu0 0.0
    %8339 = vmatprep.subr.mxu0 0.0
    %8340 = vmatpush1.msra.mxu0 0.0
    %8341 = vmatprep.subr.mxu0 0.0
    %8342 = vmatpush1.msra.mxu0 0.0
    %8343 = vmatprep.subr.mxu0 0.0
    %8344 = vmatpush1.msra.mxu0 0.0
    %8345 = vmatprep.subr.mxu0 0.0
    %8346 = vmatpush1.msra.mxu0 0.0
    %8347 = vmatprep.subr.mxu0 0.0
    %8348 = vmatpush1.msra.mxu0 0.0
    %8349 = vmatprep.subr.mxu0 0.0
    %8350 = vmatpush1.msra.mxu0 0.0
    %8351 = vmatprep.subr.mxu0 0.0
    %8352 = vmatpush1.msra.mxu0 0.0
    %8353 = vmatprep.subr.mxu0 0.0
    %8354 = vmatpush1.msra.mxu0 0.0
    %8355 = vmatprep.subr.mxu0 0.0
    %8356 = vmatpush1.msra.mxu0 0.0
    %8357 = vmatprep.subr.mxu0 0.0
    %8358 = vmatpush1.msra.mxu0 0.0
    %8359 = vmatprep.subr.mxu0 0.0
    %8360 = vmatpush1.msra.mxu0 0.0
    %8361 = vmatprep.subr.mxu0 0.0
    %8362 = vmatpush1.msra.mxu0 0.0
    %8363 = vmatprep.subr.mxu0 0.0
    %8364 = vmatpush1.msra.mxu0 0.0
    %8365 = vmatprep.subr.mxu0 0.0
    %8366 = vmatpush1.msra.mxu0 0.0
    %8367 = vmatprep.subr.mxu0 0.0
    %8368 = vmatpush1.msra.mxu0 0.0
    %8369 = vmatprep.subr.mxu0 0.0
    %8370 = vmatpush1.msra.mxu0 0.0
    %8371 = vmatprep.subr.mxu0 0.0
    %8372 = vmatpush1.msra.mxu0 0.0
    %8373 = vmatprep.subr.mxu0 0.0
    %8374 = vmatpush1.msra.mxu0 0.0
    %8375 = vmatprep.subr.mxu0 0.0
    %8376 = vmatpush1.msra.mxu0 0.0
    %8377 = vmatprep.subr.mxu0 0.0
    %8378 = vmatpush1.msra.mxu0 0.0
    %8379 = vmatprep.subr.mxu0 0.0
    %8380 = vmatpush1.msra.mxu0 0.0
    %8381 = vmatprep.subr.mxu0 0.0
    %8382 = vmatpush1.msra.mxu0 0.0
    %8383 = vmatprep.subr.mxu0 0.0
    %8384 = vmatpush1.msra.mxu0 0.0
    %8385 = vmatprep.subr.mxu0 0.0
    %8386 = vmatpush1.msra.mxu0 0.0
    %8387 = vmatprep.subr.mxu0 0.0
    %8388 = vmatpush1.msra.mxu0 0.0
    %8389 = vmatprep.subr.mxu0 0.0
    %8390 = vmatpush1.msra.mxu0 0.0
    %8391 = vmatprep.subr.mxu0 0.0
    %8392 = vmatpush1.msra.mxu0 0.0
    %8393 = vmatprep.subr.mxu0 0.0
    %8394 = vmatpush1.msra.mxu0 0.0
    %8395 = vmatprep.subr.mxu0 0.0
    %8396 = vmatpush1.msra.mxu0 0.0
    %8397 = vmatprep.mubr.f32.mxu0 0.0
    %8398 = vmatmul.mubr.f32.gmra.mrb[0].mxu0 %v3485
    %v8399 = vpop.f32.mrb[0].mxu0
    %v8400 = vadd.f32 0.0, %v8399
    %v8401 = vpop.f32.mrb[0].mxu0
    %8402 = vdwg.mxu0
    %v8403 = vld [vmem:[%s3557] sm:$0xff]
    %v8405 = vsel %vm2349, %v8400, 0
    %8407 = vmatprep.subr.mxu0 0.0
    %8408 = vmatpush1.msra.mxu0 %v8403
    %8409 = vmatprep.subr.mxu0 0.0
    %8410 = vmatpush1.msra.mxu0 0.0
    %8411 = vmatprep.subr.mxu0 0.0
    %8412 = vmatpush1.msra.mxu0 0.0
    %8413 = vmatprep.subr.mxu0 0.0
    %8414 = vmatpush1.msra.mxu0 0.0
    %8415 = vmatprep.subr.mxu0 0.0
    %8416 = vmatpush1.msra.mxu0 0.0
    %8417 = vmatprep.subr.mxu0 0.0
    %8418 = vmatpush1.msra.mxu0 0.0
    %8419 = vmatprep.subr.mxu0 0.0
    %8420 = vmatpush1.msra.mxu0 0.0
    %8421 = vmatprep.subr.mxu0 0.0
    %8422 = vmatpush1.msra.mxu0 0.0
    %8423 = vmatprep.subr.mxu0 0.0
    %8424 = vmatpush1.msra.mxu0 0.0
    %8425 = vmatprep.subr.mxu0 0.0
    %8426 = vmatpush1.msra.mxu0 0.0
    %8427 = vmatprep.subr.mxu0 0.0
    %8428 = vmatpush1.msra.mxu0 0.0
    %8429 = vmatprep.subr.mxu0 0.0
    %8430 = vmatpush1.msra.mxu0 0.0
    %8431 = vmatprep.subr.mxu0 0.0
    %8432 = vmatpush1.msra.mxu0 0.0
    %8433 = vmatprep.subr.mxu0 0.0
    %8434 = vmatpush1.msra.mxu0 0.0
    %8435 = vmatprep.subr.mxu0 0.0
    %8436 = vmatpush1.msra.mxu0 0.0
    %8437 = vmatprep.subr.mxu0 0.0
    %8438 = vmatpush1.msra.mxu0 0.0
    %8439 = vmatprep.subr.mxu0 0.0
    %8440 = vmatpush1.msra.mxu0 0.0
    %8441 = vmatprep.subr.mxu0 0.0
    %8442 = vmatpush1.msra.mxu0 0.0
    %8443 = vmatprep.subr.mxu0 0.0
    %8444 = vmatpush1.msra.mxu0 0.0
    %8445 = vmatprep.subr.mxu0 0.0
    %8446 = vmatpush1.msra.mxu0 0.0
    %8447 = vmatprep.subr.mxu0 0.0
    %8448 = vmatpush1.msra.mxu0 0.0
    %8449 = vmatprep.subr.mxu0 0.0
    %8450 = vmatpush1.msra.mxu0 0.0
    %8451 = vmatprep.subr.mxu0 0.0
    %8452 = vmatpush1.msra.mxu0 0.0
    %8453 = vmatprep.subr.mxu0 0.0
    %8454 = vmatpush1.msra.mxu0 0.0
    %8455 = vmatprep.subr.mxu0 0.0
    %8456 = vmatpush1.msra.mxu0 0.0
    %8457 = vmatprep.subr.mxu0 0.0
    %8458 = vmatpush1.msra.mxu0 0.0
    %8459 = vmatprep.subr.mxu0 0.0
    %8460 = vmatpush1.msra.mxu0 0.0
    %8461 = vmatprep.subr.mxu0 0.0
    %8462 = vmatpush1.msra.mxu0 0.0
    %8463 = vmatprep.subr.mxu0 0.0
    %8464 = vmatpush1.msra.mxu0 0.0
    %8465 = vmatprep.subr.mxu0 0.0
    %8466 = vmatpush1.msra.mxu0 0.0
    %8467 = vmatprep.subr.mxu0 0.0
    %8468 = vmatpush1.msra.mxu0 0.0
    %8469 = vmatprep.subr.mxu0 0.0
    %8470 = vmatpush1.msra.mxu0 0.0
    %8471 = vmatprep.mubr.f32.mxu0 0.0
    %8472 = vmatmul.mubr.f32.gmra.mrb[0].mxu0 %v8405
    %v8473 = vpop.f32.mrb[0].mxu0
    %v8474 = vadd.f32 0.0, %v8473
    %v8475 = vpop.f32.mrb[0].mxu0
    %8476 = vdwg.mxu0
    %v8477 = vadd.f32 %v8330, %v8474
    %v8478 = vld [vmem:[%s14] sm:$0x1]
    %v8480 = vlaneseq
    %v8481 = vshrl.u32 %v8480, 7
    %v8482 = vsub.s32 0, %v8481
    %v8483 = vrot.slane %v8478, %v8482
    %v8485 = vadd.f32 %v8477, %v8483
    %v8486 = vmax.f32 %v8485, 0.0
    %8488 = vrot.lane.b32.xlu0 %v8485, 112
    %v8489 = vpop.permute.xlu0 %8488
    %v8490 = vsel %vm327, %v8489, 0
    %8492 = vmatprep.subr.mxu0 0.0
    %8493 = vmatpush1.msra.mxu0 %v8490
    %8494 = vmatprep.subr.mxu0 0.0
    %8495 = vmatpush1.msra.mxu0 0.0
    %8496 = vmatprep.subr.mxu0 0.0
    %8497 = vmatpush1.msra.mxu0 0.0
    %8498 = vmatprep.subr.mxu0 0.0
    %8499 = vmatpush1.msra.mxu0 0.0
    %8500 = vmatprep.subr.mxu0 0.0
    %8501 = vmatpush1.msra.mxu0 0.0
    %8502 = vmatprep.subr.mxu0 0.0
    %8503 = vmatpush1.msra.mxu0 0.0
    %8504 = vmatprep.subr.mxu0 0.0
    %8505 = vmatpush1.msra.mxu0 0.0
    %8506 = vmatprep.subr.mxu0 0.0
    %8507 = vmatpush1.msra.mxu0 0.0
    %8508 = vmatprep.subr.mxu0 0.0
    %8509 = vmatpush1.msra.mxu0 0.0
    %8510 = vmatprep.subr.mxu0 0.0
    %8511 = vmatpush1.msra.mxu0 0.0
    %8512 = vmatprep.subr.mxu0 0.0
    %8513 = vmatpush1.msra.mxu0 0.0
    %8514 = vmatprep.subr.mxu0 0.0
    %8515 = vmatpush1.msra.mxu0 0.0
    %8516 = vmatprep.subr.mxu0 0.0
    %8517 = vmatpush1.msra.mxu0 0.0
    %8518 = vmatprep.subr.mxu0 0.0
    %8519 = vmatpush1.msra.mxu0 0.0
    %8520 = vmatprep.subr.mxu0 0.0
    %8521 = vmatpush1.msra.mxu0 0.0
    %8522 = vmatprep.subr.mxu0 0.0
    %8523 = vmatpush1.msra.mxu0 0.0
    %8524 = vmatprep.subr.mxu0 0.0
    %8525 = vmatpush1.msra.mxu0 0.0
    %8526 = vmatprep.subr.mxu0 0.0
    %8527 = vmatpush1.msra.mxu0 0.0
    %8528 = vmatprep.subr.mxu0 0.0
    %8529 = vmatpush1.msra.mxu0 0.0
    %8530 = vmatprep.subr.mxu0 0.0
    %8531 = vmatpush1.msra.mxu0 0.0
    %8532 = vmatprep.subr.mxu0 0.0
    %8533 = vmatpush1.msra.mxu0 0.0
    %8534 = vmatprep.subr.mxu0 0.0
    %8535 = vmatpush1.msra.mxu0 0.0
    %8536 = vmatprep.subr.mxu0 0.0
    %8537 = vmatpush1.msra.mxu0 0.0
    %8538 = vmatprep.subr.mxu0 0.0
    %8539 = vmatpush1.msra.mxu0 0.0
    %8540 = vmatprep.subr.mxu0 0.0
    %8541 = vmatpush1.msra.mxu0 0.0
    %8542 = vmatprep.subr.mxu0 0.0
    %8543 = vmatpush1.msra.mxu0 0.0
    %8544 = vmatprep.subr.mxu0 0.0
    %8545 = vmatpush1.msra.mxu0 0.0
    %8546 = vmatprep.subr.mxu0 0.0
    %8547 = vmatpush1.msra.mxu0 0.0
    %8548 = vmatprep.subr.mxu0 0.0
    %8549 = vmatpush1.msra.mxu0 0.0
    %8550 = vmatprep.subr.mxu0 0.0
    %8551 = vmatpush1.msra.mxu0 0.0
    %8552 = vmatprep.subr.mxu0 0.0
    %8553 = vmatpush1.msra.mxu0 0.0
    %8554 = vmatprep.subr.mxu0 0.0
    %8555 = vmatpush1.msra.mxu0 0.0
    %8556 = vmatprep.mubr.f32.mxu0 0.0
    %8557 = vmatmul.mubr.f32.gmra.mrb[0].mxu0 %v3645
    %v8558 = vpop.f32.mrb[0].mxu0
    %v8559 = vadd.f32 0.0, %v8558
    %v8560 = vpop.f32.mrb[0].mxu0
    %8561 = vdwg.mxu0
    %v8563 = vsel %vm327, %v8486, 0
    %8565 = vmatprep.subr.mxu0 0.0
    %8566 = vmatpush1.msra.mxu0 %v8563
    %8567 = vmatprep.subr.mxu0 0.0
    %8568 = vmatpush1.msra.mxu0 0.0
    %8569 = vmatprep.subr.mxu0 0.0
    %8570 = vmatpush1.msra.mxu0 0.0
    %8571 = vmatprep.subr.mxu0 0.0
    %8572 = vmatpush1.msra.mxu0 0.0
    %8573 = vmatprep.subr.mxu0 0.0
    %8574 = vmatpush1.msra.mxu0 0.0
    %8575 = vmatprep.subr.mxu0 0.0
    %8576 = vmatpush1.msra.mxu0 0.0
    %8577 = vmatprep.subr.mxu0 0.0
    %8578 = vmatpush1.msra.mxu0 0.0
    %8579 = vmatprep.subr.mxu0 0.0
    %8580 = vmatpush1.msra.mxu0 0.0
    %8581 = vmatprep.subr.mxu0 0.0
    %8582 = vmatpush1.msra.mxu0 0.0
    %8583 = vmatprep.subr.mxu0 0.0
    %8584 = vmatpush1.msra.mxu0 0.0
    %8585 = vmatprep.subr.mxu0 0.0
    %8586 = vmatpush1.msra.mxu0 0.0
    %8587 = vmatprep.subr.mxu0 0.0
    %8588 = vmatpush1.msra.mxu0 0.0
    %8589 = vmatprep.subr.mxu0 0.0
    %8590 = vmatpush1.msra.mxu0 0.0
    %8591 = vmatprep.subr.mxu0 0.0
    %8592 = vmatpush1.msra.mxu0 0.0
    %8593 = vmatprep.subr.mxu0 0.0
    %8594 = vmatpush1.msra.mxu0 0.0
    %8595 = vmatprep.subr.mxu0 0.0
    %8596 = vmatpush1.msra.mxu0 0.0
    %8597 = vmatprep.subr.mxu0 0.0
    %8598 = vmatpush1.msra.mxu0 0.0
    %8599 = vmatprep.subr.mxu0 0.0
    %8600 = vmatpush1.msra.mxu0 0.0
    %8601 = vmatprep.subr.mxu0 0.0
    %8602 = vmatpush1.msra.mxu0 0.0
    %8603 = vmatprep.subr.mxu0 0.0
    %8604 = vmatpush1.msra.mxu0 0.0
    %8605 = vmatprep.subr.mxu0 0.0
    %8606 = vmatpush1.msra.mxu0 0.0
    %8607 = vmatprep.subr.mxu0 0.0
    %8608 = vmatpush1.msra.mxu0 0.0
    %8609 = vmatprep.subr.mxu0 0.0
    %8610 = vmatpush1.msra.mxu0 0.0
    %8611 = vmatprep.subr.mxu0 0.0
    %8612 = vmatpush1.msra.mxu0 0.0
    %8613 = vmatprep.subr.mxu0 0.0
    %8614 = vmatpush1.msra.mxu0 0.0
    %8615 = vmatprep.subr.mxu0 0.0
    %8616 = vmatpush1.msra.mxu0 0.0
    %8617 = vmatprep.subr.mxu0 0.0
    %8618 = vmatpush1.msra.mxu0 0.0
    %8619 = vmatprep.subr.mxu0 0.0
    %8620 = vmatpush1.msra.mxu0 0.0
    %8621 = vmatprep.subr.mxu0 0.0
    %8622 = vmatpush1.msra.mxu0 0.0
    %8623 = vmatprep.subr.mxu0 0.0
    %8624 = vmatpush1.msra.mxu0 0.0
    %8625 = vmatprep.subr.mxu0 0.0
    %8626 = vmatpush1.msra.mxu0 0.0
    %8627 = vmatprep.subr.mxu0 0.0
    %8628 = vmatpush1.msra.mxu0 0.0
    %8629 = vmatprep.mubr.f32.mxu0 0.0
    %8630 = vmatmul.mubr.f32.gmra.mrb[0].mxu0 %v3719
    %v8631 = vpop.f32.mrb[0].mxu0
    %v8632 = vadd.f32 0.0, %v8631
    %v8633 = vpop.f32.mrb[0].mxu0
    %8634 = vdwg.mxu0
    %v8635 = vld [vmem:[#allocation13] sm:$0xff]
    %v8636 = vld [vmem:[#allocation13 + $0x8] sm:$0xff]
    %8637 = vmatprep.subr.mxu0 0.0
    %8638 = vmatpush1.msra.mxu0 %v8563
    %8639 = vmatprep.subr.mxu0 0.0
    %8640 = vmatpush1.msra.mxu0 0.0
    %8641 = vmatprep.subr.mxu0 0.0
    %8642 = vmatpush1.msra.mxu0 0.0
    %8643 = vmatprep.subr.mxu0 0.0
    %8644 = vmatpush1.msra.mxu0 0.0
    %8645 = vmatprep.subr.mxu0 0.0
    %8646 = vmatpush1.msra.mxu0 0.0
    %8647 = vmatprep.subr.mxu0 0.0
    %8648 = vmatpush1.msra.mxu0 0.0
    %8649 = vmatprep.subr.mxu0 0.0
    %8650 = vmatpush1.msra.mxu0 0.0
    %8651 = vmatprep.subr.mxu0 0.0
    %8652 = vmatpush1.msra.mxu0 0.0
    %8653 = vmatprep.subr.mxu0 0.0
    %8654 = vmatpush1.msra.mxu0 0.0
    %8655 = vmatprep.subr.mxu0 0.0
    %8656 = vmatpush1.msra.mxu0 0.0
    %8657 = vmatprep.subr.mxu0 0.0
    %8658 = vmatpush1.msra.mxu0 0.0
    %8659 = vmatprep.subr.mxu0 0.0
    %8660 = vmatpush1.msra.mxu0 0.0
    %8661 = vmatprep.subr.mxu0 0.0
    %8662 = vmatpush1.msra.mxu0 0.0
    %8663 = vmatprep.subr.mxu0 0.0
    %8664 = vmatpush1.msra.mxu0 0.0
    %8665 = vmatprep.subr.mxu0 0.0
    %8666 = vmatpush1.msra.mxu0 0.0
    %8667 = vmatprep.subr.mxu0 0.0
    %8668 = vmatpush1.msra.mxu0 0.0
    %8669 = vmatprep.subr.mxu0 0.0
    %8670 = vmatpush1.msra.mxu0 0.0
    %8671 = vmatprep.subr.mxu0 0.0
    %8672 = vmatpush1.msra.mxu0 0.0
    %8673 = vmatprep.subr.mxu0 0.0
    %8674 = vmatpush1.msra.mxu0 0.0
    %8675 = vmatprep.subr.mxu0 0.0
    %8676 = vmatpush1.msra.mxu0 0.0
    %8677 = vmatprep.subr.mxu0 0.0
    %8678 = vmatpush1.msra.mxu0 0.0
    %8679 = vmatprep.subr.mxu0 0.0
    %8680 = vmatpush1.msra.mxu0 0.0
    %8681 = vmatprep.subr.mxu0 0.0
    %8682 = vmatpush1.msra.mxu0 0.0
    %8683 = vmatprep.subr.mxu0 0.0
    %8684 = vmatpush1.msra.mxu0 0.0
    %8685 = vmatprep.subr.mxu0 0.0
    %8686 = vmatpush1.msra.mxu0 0.0
    %8687 = vmatprep.subr.mxu0 0.0
    %8688 = vmatpush1.msra.mxu0 0.0
    %8689 = vmatprep.subr.mxu0 0.0
    %8690 = vmatpush1.msra.mxu0 0.0
    %8691 = vmatprep.subr.mxu0 0.0
    %8692 = vmatpush1.msra.mxu0 0.0
    %8693 = vmatprep.subr.mxu0 0.0
    %8694 = vmatpush1.msra.mxu0 0.0
    %8695 = vmatprep.subr.mxu0 0.0
    %8696 = vmatpush1.msra.mxu0 0.0
    %8697 = vmatprep.subr.mxu0 0.0
    %8698 = vmatpush1.msra.mxu0 0.0
    %8699 = vmatprep.subr.mxu0 0.0
    %8700 = vmatpush1.msra.mxu0 0.0
    %8701 = vmatprep.mubr.f32.mxu0 0.0
    %8702 = vmatmul.mubr.f32.gmra.mrb[0].mxu0 %v3645
    %v8703 = vpop.f32.mrb[0].mxu0
    %v8704 = vadd.f32 0.0, %v8703
    %v8705 = vpop.f32.mrb[0].mxu0
    %8706 = vdwg.mxu0
    %v8707 = vld [vmem:[%s3866] sm:$0xff]
    %v8708 = vld [vmem:[%s3866 + $0x8] sm:$0xff]
    %v8710 = vsel %vm1382, %v8704, 0
    %8712 = vmatprep.subr.mxu0 0.0
    %8713 = vmatpush1.msra.mxu0 %v8707
    %8714 = vmatprep.subr.mxu0 0.0
    %8715 = vmatpush1.msra.mxu0 %v8708
    %8716 = vmatprep.subr.mxu0 0.0
    %8717 = vmatpush1.msra.mxu0 0.0
    %8718 = vmatprep.subr.mxu0 0.0
    %8719 = vmatpush1.msra.mxu0 0.0
    %8720 = vmatprep.subr.mxu0 0.0
    %8721 = vmatpush1.msra.mxu0 0.0
    %8722 = vmatprep.subr.mxu0 0.0
    %8723 = vmatpush1.msra.mxu0 0.0
    %8724 = vmatprep.subr.mxu0 0.0
    %8725 = vmatpush1.msra.mxu0 0.0
    %8726 = vmatprep.subr.mxu0 0.0
    %8727 = vmatpush1.msra.mxu0 0.0
    %8728 = vmatprep.subr.mxu0 0.0
    %8729 = vmatpush1.msra.mxu0 0.0
    %8730 = vmatprep.subr.mxu0 0.0
    %8731 = vmatpush1.msra.mxu0 0.0
    %8732 = vmatprep.subr.mxu0 0.0
    %8733 = vmatpush1.msra.mxu0 0.0
    %8734 = vmatprep.subr.mxu0 0.0
    %8735 = vmatpush1.msra.mxu0 0.0
    %8736 = vmatprep.subr.mxu0 0.0
    %8737 = vmatpush1.msra.mxu0 0.0
    %8738 = vmatprep.subr.mxu0 0.0
    %8739 = vmatpush1.msra.mxu0 0.0
    %8740 = vmatprep.subr.mxu0 0.0
    %8741 = vmatpush1.msra.mxu0 0.0
    %8742 = vmatprep.subr.mxu0 0.0
    %8743 = vmatpush1.msra.mxu0 0.0
    %8744 = vmatprep.subr.mxu0 0.0
    %8745 = vmatpush1.msra.mxu0 0.0
    %8746 = vmatprep.subr.mxu0 0.0
    %8747 = vmatpush1.msra.mxu0 0.0
    %8748 = vmatprep.subr.mxu0 0.0
    %8749 = vmatpush1.msra.mxu0 0.0
    %8750 = vmatprep.subr.mxu0 0.0
    %8751 = vmatpush1.msra.mxu0 0.0
    %8752 = vmatprep.subr.mxu0 0.0
    %8753 = vmatpush1.msra.mxu0 0.0
    %8754 = vmatprep.subr.mxu0 0.0
    %8755 = vmatpush1.msra.mxu0 0.0
    %8756 = vmatprep.subr.mxu0 0.0
    %8757 = vmatpush1.msra.mxu0 0.0
    %8758 = vmatprep.subr.mxu0 0.0
    %8759 = vmatpush1.msra.mxu0 0.0
    %8760 = vmatprep.subr.mxu0 0.0
    %8761 = vmatpush1.msra.mxu0 0.0
    %8762 = vmatprep.subr.mxu0 0.0
    %8763 = vmatpush1.msra.mxu0 0.0
    %8764 = vmatprep.subr.mxu0 0.0
    %8765 = vmatpush1.msra.mxu0 0.0
    %8766 = vmatprep.subr.mxu0 0.0
    %8767 = vmatpush1.msra.mxu0 0.0
    %8768 = vmatprep.subr.mxu0 0.0
    %8769 = vmatpush1.msra.mxu0 0.0
    %8770 = vmatprep.subr.mxu0 0.0
    %8771 = vmatpush1.msra.mxu0 0.0
    %8772 = vmatprep.subr.mxu0 0.0
    %8773 = vmatpush1.msra.mxu0 0.0
    %8774 = vmatprep.subr.mxu0 0.0
    %8775 = vmatpush1.msra.mxu0 0.0
    %8776 = vmatprep.mubr.f32.mxu0 0.0
    %8777 = vmatmul.mubr.f32.gmra.mrb[0].mxu0 %v8710
    %v8778 = vpop.f32.mrb[0].mxu0
    %v8779 = vadd.f32 0.0, %v8778
    %v8780 = vpop.f32.mrb[0].mxu0
    %8781 = vdwg.mxu0
    %v8783 = vsel %vm1382, %v8632, 0
    %8785 = vmatprep.subr.mxu0 0.0
    %8786 = vmatpush1.msra.mxu0 %v8635
    %8787 = vmatprep.subr.mxu0 0.0
    %8788 = vmatpush1.msra.mxu0 %v8636
    %8789 = vmatprep.subr.mxu0 0.0
    %8790 = vmatpush1.msra.mxu0 0.0
    %8791 = vmatprep.subr.mxu0 0.0
    %8792 = vmatpush1.msra.mxu0 0.0
    %8793 = vmatprep.subr.mxu0 0.0
    %8794 = vmatpush1.msra.mxu0 0.0
    %8795 = vmatprep.subr.mxu0 0.0
    %8796 = vmatpush1.msra.mxu0 0.0
    %8797 = vmatprep.subr.mxu0 0.0
    %8798 = vmatpush1.msra.mxu0 0.0
    %8799 = vmatprep.subr.mxu0 0.0
    %8800 = vmatpush1.msra.mxu0 0.0
    %8801 = vmatprep.subr.mxu0 0.0
    %8802 = vmatpush1.msra.mxu0 0.0
    %8803 = vmatprep.subr.mxu0 0.0
    %8804 = vmatpush1.msra.mxu0 0.0
    %8805 = vmatprep.subr.mxu0 0.0
    %8806 = vmatpush1.msra.mxu0 0.0
    %8807 = vmatprep.subr.mxu0 0.0
    %8808 = vmatpush1.msra.mxu0 0.0
    %8809 = vmatprep.subr.mxu0 0.0
    %8810 = vmatpush1.msra.mxu0 0.0
    %8811 = vmatprep.subr.mxu0 0.0
    %8812 = vmatpush1.msra.mxu0 0.0
    %8813 = vmatprep.subr.mxu0 0.0
    %8814 = vmatpush1.msra.mxu0 0.0
    %8815 = vmatprep.subr.mxu0 0.0
    %8816 = vmatpush1.msra.mxu0 0.0
    %8817 = vmatprep.subr.mxu0 0.0
    %8818 = vmatpush1.msra.mxu0 0.0
    %8819 = vmatprep.subr.mxu0 0.0
    %8820 = vmatpush1.msra.mxu0 0.0
    %8821 = vmatprep.subr.mxu0 0.0
    %8822 = vmatpush1.msra.mxu0 0.0
    %8823 = vmatprep.subr.mxu0 0.0
    %8824 = vmatpush1.msra.mxu0 0.0
    %8825 = vmatprep.subr.mxu0 0.0
    %8826 = vmatpush1.msra.mxu0 0.0
    %8827 = vmatprep.subr.mxu0 0.0
    %8828 = vmatpush1.msra.mxu0 0.0
    %8829 = vmatprep.subr.mxu0 0.0
    %8830 = vmatpush1.msra.mxu0 0.0
    %8831 = vmatprep.subr.mxu0 0.0
    %8832 = vmatpush1.msra.mxu0 0.0
    %8833 = vmatprep.subr.mxu0 0.0
    %8834 = vmatpush1.msra.mxu0 0.0
    %8835 = vmatprep.subr.mxu0 0.0
    %8836 = vmatpush1.msra.mxu0 0.0
    %8837 = vmatprep.subr.mxu0 0.0
    %8838 = vmatpush1.msra.mxu0 0.0
    %8839 = vmatprep.subr.mxu0 0.0
    %8840 = vmatpush1.msra.mxu0 0.0
    %8841 = vmatprep.subr.mxu0 0.0
    %8842 = vmatpush1.msra.mxu0 0.0
    %8843 = vmatprep.subr.mxu0 0.0
    %8844 = vmatpush1.msra.mxu0 0.0
    %8845 = vmatprep.subr.mxu0 0.0
    %8846 = vmatpush1.msra.mxu0 0.0
    %8847 = vmatprep.subr.mxu0 0.0
    %8848 = vmatpush1.msra.mxu0 0.0
    %8849 = vmatprep.mubr.f32.mxu0 0.0
    %8850 = vmatmul.mubr.f32.gmra.mrb[0].mxu0 %v8783
    %v8851 = vpop.f32.mrb[0].mxu0
    %v8852 = vadd.f32 %v8779, %v8851
    %v8853 = vpop.f32.mrb[0].mxu0
    %8854 = vdwg.mxu0
    %8855 = vmatprep.subr.mxu0 0.0
    %8856 = vmatpush1.msra.mxu0 %v8563
    %8857 = vmatprep.subr.mxu0 0.0
    %8858 = vmatpush1.msra.mxu0 0.0
    %8859 = vmatprep.subr.mxu0 0.0
    %8860 = vmatpush1.msra.mxu0 0.0
    %8861 = vmatprep.subr.mxu0 0.0
    %8862 = vmatpush1.msra.mxu0 0.0
    %8863 = vmatprep.subr.mxu0 0.0
    %8864 = vmatpush1.msra.mxu0 0.0
    %8865 = vmatprep.subr.mxu0 0.0
    %8866 = vmatpush1.msra.mxu0 0.0
    %8867 = vmatprep.subr.mxu0 0.0
    %8868 = vmatpush1.msra.mxu0 0.0
    %8869 = vmatprep.subr.mxu0 0.0
    %8870 = vmatpush1.msra.mxu0 0.0
    %8871 = vmatprep.subr.mxu0 0.0
    %8872 = vmatpush1.msra.mxu0 0.0
    %8873 = vmatprep.subr.mxu0 0.0
    %8874 = vmatpush1.msra.mxu0 0.0
    %8875 = vmatprep.subr.mxu0 0.0
    %8876 = vmatpush1.msra.mxu0 0.0
    %8877 = vmatprep.subr.mxu0 0.0
    %8878 = vmatpush1.msra.mxu0 0.0
    %8879 = vmatprep.subr.mxu0 0.0
    %8880 = vmatpush1.msra.mxu0 0.0
    %8881 = vmatprep.subr.mxu0 0.0
    %8882 = vmatpush1.msra.mxu0 0.0
    %8883 = vmatprep.subr.mxu0 0.0
    %8884 = vmatpush1.msra.mxu0 0.0
    %8885 = vmatprep.subr.mxu0 0.0
    %8886 = vmatpush1.msra.mxu0 0.0
    %8887 = vmatprep.subr.mxu0 0.0
    %8888 = vmatpush1.msra.mxu0 0.0
    %8889 = vmatprep.subr.mxu0 0.0
    %8890 = vmatpush1.msra.mxu0 0.0
    %8891 = vmatprep.subr.mxu0 0.0
    %8892 = vmatpush1.msra.mxu0 0.0
    %8893 = vmatprep.subr.mxu0 0.0
    %8894 = vmatpush1.msra.mxu0 0.0
    %8895 = vmatprep.subr.mxu0 0.0
    %8896 = vmatpush1.msra.mxu0 0.0
    %8897 = vmatprep.subr.mxu0 0.0
    %8898 = vmatpush1.msra.mxu0 0.0
    %8899 = vmatprep.subr.mxu0 0.0
    %8900 = vmatpush1.msra.mxu0 0.0
    %8901 = vmatprep.subr.mxu0 0.0
    %8902 = vmatpush1.msra.mxu0 0.0
    %8903 = vmatprep.subr.mxu0 0.0
    %8904 = vmatpush1.msra.mxu0 0.0
    %8905 = vmatprep.subr.mxu0 0.0
    %8906 = vmatpush1.msra.mxu0 0.0
    %8907 = vmatprep.subr.mxu0 0.0
    %8908 = vmatpush1.msra.mxu0 0.0
    %8909 = vmatprep.subr.mxu0 0.0
    %8910 = vmatpush1.msra.mxu0 0.0
    %8911 = vmatprep.subr.mxu0 0.0
    %8912 = vmatpush1.msra.mxu0 0.0
    %8913 = vmatprep.subr.mxu0 0.0
    %8914 = vmatpush1.msra.mxu0 0.0
    %8915 = vmatprep.subr.mxu0 0.0
    %8916 = vmatpush1.msra.mxu0 0.0
    %8917 = vmatprep.subr.mxu0 0.0
    %8918 = vmatpush1.msra.mxu0 0.0
    %8919 = vmatprep.mubr.f32.mxu0 0.0
    %8920 = vmatmul.mubr.f32.gmra.mrb[0].mxu0 %v4015
    %v8921 = vpop.f32.mrb[0].mxu0
    %v8922 = vadd.f32 0.0, %v8921
    %v8923 = vpop.f32.mrb[0].mxu0
    %8924 = vdwg.mxu0
    %v8925 = vld [vmem:[%s4087] sm:$0xff]
    %v8926 = vld [vmem:[%s4087 + $0x8] sm:$0xff]
    %v8928 = vsel %vm1382, %v8922, 0
    %8930 = vmatprep.subr.mxu0 0.0
    %8931 = vmatpush1.msra.mxu0 %v8925
    %8932 = vmatprep.subr.mxu0 0.0
    %8933 = vmatpush1.msra.mxu0 %v8926
    %8934 = vmatprep.subr.mxu0 0.0
    %8935 = vmatpush1.msra.mxu0 0.0
    %8936 = vmatprep.subr.mxu0 0.0
    %8937 = vmatpush1.msra.mxu0 0.0
    %8938 = vmatprep.subr.mxu0 0.0
    %8939 = vmatpush1.msra.mxu0 0.0
    %8940 = vmatprep.subr.mxu0 0.0
    %8941 = vmatpush1.msra.mxu0 0.0
    %8942 = vmatprep.subr.mxu0 0.0
    %8943 = vmatpush1.msra.mxu0 0.0
    %8944 = vmatprep.subr.mxu0 0.0
    %8945 = vmatpush1.msra.mxu0 0.0
    %8946 = vmatprep.subr.mxu0 0.0
    %8947 = vmatpush1.msra.mxu0 0.0
    %8948 = vmatprep.subr.mxu0 0.0
    %8949 = vmatpush1.msra.mxu0 0.0
    %8950 = vmatprep.subr.mxu0 0.0
    %8951 = vmatpush1.msra.mxu0 0.0
    %8952 = vmatprep.subr.mxu0 0.0
    %8953 = vmatpush1.msra.mxu0 0.0
    %8954 = vmatprep.subr.mxu0 0.0
    %8955 = vmatpush1.msra.mxu0 0.0
    %8956 = vmatprep.subr.mxu0 0.0
    %8957 = vmatpush1.msra.mxu0 0.0
    %8958 = vmatprep.subr.mxu0 0.0
    %8959 = vmatpush1.msra.mxu0 0.0
    %8960 = vmatprep.subr.mxu0 0.0
    %8961 = vmatpush1.msra.mxu0 0.0
    %8962 = vmatprep.subr.mxu0 0.0
    %8963 = vmatpush1.msra.mxu0 0.0
    %8964 = vmatprep.subr.mxu0 0.0
    %8965 = vmatpush1.msra.mxu0 0.0
    %8966 = vmatprep.subr.mxu0 0.0
    %8967 = vmatpush1.msra.mxu0 0.0
    %8968 = vmatprep.subr.mxu0 0.0
    %8969 = vmatpush1.msra.mxu0 0.0
    %8970 = vmatprep.subr.mxu0 0.0
    %8971 = vmatpush1.msra.mxu0 0.0
    %8972 = vmatprep.subr.mxu0 0.0
    %8973 = vmatpush1.msra.mxu0 0.0
    %8974 = vmatprep.subr.mxu0 0.0
    %8975 = vmatpush1.msra.mxu0 0.0
    %8976 = vmatprep.subr.mxu0 0.0
    %8977 = vmatpush1.msra.mxu0 0.0
    %8978 = vmatprep.subr.mxu0 0.0
    %8979 = vmatpush1.msra.mxu0 0.0
    %8980 = vmatprep.subr.mxu0 0.0
    %8981 = vmatpush1.msra.mxu0 0.0
    %8982 = vmatprep.subr.mxu0 0.0
    %8983 = vmatpush1.msra.mxu0 0.0
    %8984 = vmatprep.subr.mxu0 0.0
    %8985 = vmatpush1.msra.mxu0 0.0
    %8986 = vmatprep.subr.mxu0 0.0
    %8987 = vmatpush1.msra.mxu0 0.0
    %8988 = vmatprep.subr.mxu0 0.0
    %8989 = vmatpush1.msra.mxu0 0.0
    %8990 = vmatprep.subr.mxu0 0.0
    %8991 = vmatpush1.msra.mxu0 0.0
    %8992 = vmatprep.subr.mxu0 0.0
    %8993 = vmatpush1.msra.mxu0 0.0
    %8994 = vmatprep.mubr.f32.mxu0 0.0
    %8995 = vmatmul.mubr.f32.gmra.mrb[0].mxu0 %v8928
    %v8996 = vpop.f32.mrb[0].mxu0
    %v8997 = vadd.f32 0.0, %v8996
    %v8998 = vpop.f32.mrb[0].mxu0
    %8999 = vdwg.mxu0
    %v9000 = vadd.f32 %v8852, %v8997
    %v9001 = vld [vmem:[%s16] sm:$0x1]
    %v9003 = vlaneseq
    %v9004 = vshrl.u32 %v9003, 7
    %v9005 = vsub.s32 0, %v9004
    %v9006 = vrot.slane %v9001, %v9005
    %v9008 = vadd.f32 %v9000, %v9006
    %v9009 = vadd.f32 %v9008, %v8559
    %v9010 = vmax.f32 %v9009, 0.0
    %v9012 = vsel %vm1029, %v9010, 0
    %9014 = vmatprep.subr.mxu0 0.0
    %9015 = vmatpush1.msra.mxu0 %v9012
    %9016 = vmatprep.subr.mxu0 0.0
    %9017 = vmatpush1.msra.mxu0 0.0
    %9018 = vmatprep.subr.mxu0 0.0
    %9019 = vmatpush1.msra.mxu0 0.0
    %9020 = vmatprep.subr.mxu0 0.0
    %9021 = vmatpush1.msra.mxu0 0.0
    %9022 = vmatprep.subr.mxu0 0.0
    %9023 = vmatpush1.msra.mxu0 0.0
    %9024 = vmatprep.subr.mxu0 0.0
    %9025 = vmatpush1.msra.mxu0 0.0
    %9026 = vmatprep.subr.mxu0 0.0
    %9027 = vmatpush1.msra.mxu0 0.0
    %9028 = vmatprep.subr.mxu0 0.0
    %9029 = vmatpush1.msra.mxu0 0.0
    %9030 = vmatprep.subr.mxu0 0.0
    %9031 = vmatpush1.msra.mxu0 0.0
    %9032 = vmatprep.subr.mxu0 0.0
    %9033 = vmatpush1.msra.mxu0 0.0
    %9034 = vmatprep.subr.mxu0 0.0
    %9035 = vmatpush1.msra.mxu0 0.0
    %9036 = vmatprep.subr.mxu0 0.0
    %9037 = vmatpush1.msra.mxu0 0.0
    %9038 = vmatprep.subr.mxu0 0.0
    %9039 = vmatpush1.msra.mxu0 0.0
    %9040 = vmatprep.subr.mxu0 0.0
    %9041 = vmatpush1.msra.mxu0 0.0
    %9042 = vmatprep.subr.mxu0 0.0
    %9043 = vmatpush1.msra.mxu0 0.0
    %9044 = vmatprep.subr.mxu0 0.0
    %9045 = vmatpush1.msra.mxu0 0.0
    %9046 = vmatprep.subr.mxu0 0.0
    %9047 = vmatpush1.msra.mxu0 0.0
    %9048 = vmatprep.subr.mxu0 0.0
    %9049 = vmatpush1.msra.mxu0 0.0
    %9050 = vmatprep.subr.mxu0 0.0
    %9051 = vmatpush1.msra.mxu0 0.0
    %9052 = vmatprep.subr.mxu0 0.0
    %9053 = vmatpush1.msra.mxu0 0.0
    %9054 = vmatprep.subr.mxu0 0.0
    %9055 = vmatpush1.msra.mxu0 0.0
    %9056 = vmatprep.subr.mxu0 0.0
    %9057 = vmatpush1.msra.mxu0 0.0
    %9058 = vmatprep.subr.mxu0 0.0
    %9059 = vmatpush1.msra.mxu0 0.0
    %9060 = vmatprep.subr.mxu0 0.0
    %9061 = vmatpush1.msra.mxu0 0.0
    %9062 = vmatprep.subr.mxu0 0.0
    %9063 = vmatpush1.msra.mxu0 0.0
    %9064 = vmatprep.subr.mxu0 0.0
    %9065 = vmatpush1.msra.mxu0 0.0
    %9066 = vmatprep.subr.mxu0 0.0
    %9067 = vmatpush1.msra.mxu0 0.0
    %9068 = vmatprep.subr.mxu0 0.0
    %9069 = vmatpush1.msra.mxu0 0.0
    %9070 = vmatprep.subr.mxu0 0.0
    %9071 = vmatpush1.msra.mxu0 0.0
    %9072 = vmatprep.subr.mxu0 0.0
    %9073 = vmatpush1.msra.mxu0 0.0
    %9074 = vmatprep.subr.mxu0 0.0
    %9075 = vmatpush1.msra.mxu0 0.0
    %9076 = vmatprep.subr.mxu0 0.0
    %9077 = vmatpush1.msra.mxu0 0.0
    %9078 = vmatprep.mubr.f32.mxu0 0.0
    %9079 = vmatmul.mubr.f32.gmra.mrb[0].mxu0 %v4174
    %v9080 = vpop.f32.mrb[0].mxu0
    %v9081 = vadd.f32 0.0, %v9080
    %v9082 = vpop.f32.mrb[0].mxu0
    %9083 = vdwg.mxu0
    %v9084 = vld [vmem:[#allocation14] sm:$0xff]
    %v9085 = vld [vmem:[#allocation14 + $0x8] sm:$0xff]
    %v9086 = vld [vmem:[%s4251] sm:$0xff]
    %v9087 = vld [vmem:[%s4251 + $0x8] sm:$0xff]
    %v9088 = vsel %vm1382, %v9010, 0
    %9090 = vmatprep.subr.mxu0 0.0
    %9091 = vmatpush1.msra.mxu0 %v9086
    %9092 = vmatprep.subr.mxu0 0.0
    %9093 = vmatpush1.msra.mxu0 %v9087
    %9094 = vmatprep.subr.mxu0 0.0
    %9095 = vmatpush1.msra.mxu0 0.0
    %9096 = vmatprep.subr.mxu0 0.0
    %9097 = vmatpush1.msra.mxu0 0.0
    %9098 = vmatprep.subr.mxu0 0.0
    %9099 = vmatpush1.msra.mxu0 0.0
    %9100 = vmatprep.subr.mxu0 0.0
    %9101 = vmatpush1.msra.mxu0 0.0
    %9102 = vmatprep.subr.mxu0 0.0
    %9103 = vmatpush1.msra.mxu0 0.0
    %9104 = vmatprep.subr.mxu0 0.0
    %9105 = vmatpush1.msra.mxu0 0.0
    %9106 = vmatprep.subr.mxu0 0.0
    %9107 = vmatpush1.msra.mxu0 0.0
    %9108 = vmatprep.subr.mxu0 0.0
    %9109 = vmatpush1.msra.mxu0 0.0
    %9110 = vmatprep.subr.mxu0 0.0
    %9111 = vmatpush1.msra.mxu0 0.0
    %9112 = vmatprep.subr.mxu0 0.0
    %9113 = vmatpush1.msra.mxu0 0.0
    %9114 = vmatprep.subr.mxu0 0.0
    %9115 = vmatpush1.msra.mxu0 0.0
    %9116 = vmatprep.subr.mxu0 0.0
    %9117 = vmatpush1.msra.mxu0 0.0
    %9118 = vmatprep.subr.mxu0 0.0
    %9119 = vmatpush1.msra.mxu0 0.0
    %9120 = vmatprep.subr.mxu0 0.0
    %9121 = vmatpush1.msra.mxu0 0.0
    %9122 = vmatprep.subr.mxu0 0.0
    %9123 = vmatpush1.msra.mxu0 0.0
    %9124 = vmatprep.subr.mxu0 0.0
    %9125 = vmatpush1.msra.mxu0 0.0
    %9126 = vmatprep.subr.mxu0 0.0
    %9127 = vmatpush1.msra.mxu0 0.0
    %9128 = vmatprep.subr.mxu0 0.0
    %9129 = vmatpush1.msra.mxu0 0.0
    %9130 = vmatprep.subr.mxu0 0.0
    %9131 = vmatpush1.msra.mxu0 0.0
    %9132 = vmatprep.subr.mxu0 0.0
    %9133 = vmatpush1.msra.mxu0 0.0
    %9134 = vmatprep.subr.mxu0 0.0
    %9135 = vmatpush1.msra.mxu0 0.0
    %9136 = vmatprep.subr.mxu0 0.0
    %9137 = vmatpush1.msra.mxu0 0.0
    %9138 = vmatprep.subr.mxu0 0.0
    %9139 = vmatpush1.msra.mxu0 0.0
    %9140 = vmatprep.subr.mxu0 0.0
    %9141 = vmatpush1.msra.mxu0 0.0
    %9142 = vmatprep.subr.mxu0 0.0
    %9143 = vmatpush1.msra.mxu0 0.0
    %9144 = vmatprep.subr.mxu0 0.0
    %9145 = vmatpush1.msra.mxu0 0.0
    %9146 = vmatprep.subr.mxu0 0.0
    %9147 = vmatpush1.msra.mxu0 0.0
    %9148 = vmatprep.subr.mxu0 0.0
    %9149 = vmatpush1.msra.mxu0 0.0
    %9150 = vmatprep.subr.mxu0 0.0
    %9151 = vmatpush1.msra.mxu0 0.0
    %9152 = vmatprep.subr.mxu0 0.0
    %9153 = vmatpush1.msra.mxu0 0.0
    %9154 = vmatprep.mubr.f32.mxu0 0.0
    %9155 = vmatmul.mubr.f32.gmra.mrb[0].mxu0 %v9088
    %v9156 = vpop.f32.mrb[0].mxu0
    %v9157 = vadd.f32 0.0, %v9156
    %v9158 = vpop.f32.mrb[0].mxu0
    %9159 = vdwg.mxu0
    %v9161 = vsel %vm1382, %v9081, 0
    %9163 = vmatprep.subr.mxu0 0.0
    %9164 = vmatpush1.msra.mxu0 %v9084
    %9165 = vmatprep.subr.mxu0 0.0
    %9166 = vmatpush1.msra.mxu0 %v9085
    %9167 = vmatprep.subr.mxu0 0.0
    %9168 = vmatpush1.msra.mxu0 0.0
    %9169 = vmatprep.subr.mxu0 0.0
    %9170 = vmatpush1.msra.mxu0 0.0
    %9171 = vmatprep.subr.mxu0 0.0
    %9172 = vmatpush1.msra.mxu0 0.0
    %9173 = vmatprep.subr.mxu0 0.0
    %9174 = vmatpush1.msra.mxu0 0.0
    %9175 = vmatprep.subr.mxu0 0.0
    %9176 = vmatpush1.msra.mxu0 0.0
    %9177 = vmatprep.subr.mxu0 0.0
    %9178 = vmatpush1.msra.mxu0 0.0
    %9179 = vmatprep.subr.mxu0 0.0
    %9180 = vmatpush1.msra.mxu0 0.0
    %9181 = vmatprep.subr.mxu0 0.0
    %9182 = vmatpush1.msra.mxu0 0.0
    %9183 = vmatprep.subr.mxu0 0.0
    %9184 = vmatpush1.msra.mxu0 0.0
    %9185 = vmatprep.subr.mxu0 0.0
    %9186 = vmatpush1.msra.mxu0 0.0
    %9187 = vmatprep.subr.mxu0 0.0
    %9188 = vmatpush1.msra.mxu0 0.0
    %9189 = vmatprep.subr.mxu0 0.0
    %9190 = vmatpush1.msra.mxu0 0.0
    %9191 = vmatprep.subr.mxu0 0.0
    %9192 = vmatpush1.msra.mxu0 0.0
    %9193 = vmatprep.subr.mxu0 0.0
    %9194 = vmatpush1.msra.mxu0 0.0
    %9195 = vmatprep.subr.mxu0 0.0
    %9196 = vmatpush1.msra.mxu0 0.0
    %9197 = vmatprep.subr.mxu0 0.0
    %9198 = vmatpush1.msra.mxu0 0.0
    %9199 = vmatprep.subr.mxu0 0.0
    %9200 = vmatpush1.msra.mxu0 0.0
    %9201 = vmatprep.subr.mxu0 0.0
    %9202 = vmatpush1.msra.mxu0 0.0
    %9203 = vmatprep.subr.mxu0 0.0
    %9204 = vmatpush1.msra.mxu0 0.0
    %9205 = vmatprep.subr.mxu0 0.0
    %9206 = vmatpush1.msra.mxu0 0.0
    %9207 = vmatprep.subr.mxu0 0.0
    %9208 = vmatpush1.msra.mxu0 0.0
    %9209 = vmatprep.subr.mxu0 0.0
    %9210 = vmatpush1.msra.mxu0 0.0
    %9211 = vmatprep.subr.mxu0 0.0
    %9212 = vmatpush1.msra.mxu0 0.0
    %9213 = vmatprep.subr.mxu0 0.0
    %9214 = vmatpush1.msra.mxu0 0.0
    %9215 = vmatprep.subr.mxu0 0.0
    %9216 = vmatpush1.msra.mxu0 0.0
    %9217 = vmatprep.subr.mxu0 0.0
    %9218 = vmatpush1.msra.mxu0 0.0
    %9219 = vmatprep.subr.mxu0 0.0
    %9220 = vmatpush1.msra.mxu0 0.0
    %9221 = vmatprep.subr.mxu0 0.0
    %9222 = vmatpush1.msra.mxu0 0.0
    %9223 = vmatprep.subr.mxu0 0.0
    %9224 = vmatpush1.msra.mxu0 0.0
    %9225 = vmatprep.subr.mxu0 0.0
    %9226 = vmatpush1.msra.mxu0 0.0
    %9227 = vmatprep.mubr.f32.mxu0 0.0
    %9228 = vmatmul.mubr.f32.gmra.mrb[0].mxu0 %v9161
    %v9229 = vpop.f32.mrb[0].mxu0
    %v9230 = vadd.f32 %v9157, %v9229
    %v9231 = vpop.f32.mrb[0].mxu0
    %9232 = vdwg.mxu0
    %9233 = vmatprep.subr.mxu0 0.0
    %9234 = vmatpush1.msra.mxu0 %v9012
    %9235 = vmatprep.subr.mxu0 0.0
    %9236 = vmatpush1.msra.mxu0 0.0
    %9237 = vmatprep.subr.mxu0 0.0
    %9238 = vmatpush1.msra.mxu0 0.0
    %9239 = vmatprep.subr.mxu0 0.0
    %9240 = vmatpush1.msra.mxu0 0.0
    %9241 = vmatprep.subr.mxu0 0.0
    %9242 = vmatpush1.msra.mxu0 0.0
    %9243 = vmatprep.subr.mxu0 0.0
    %9244 = vmatpush1.msra.mxu0 0.0
    %9245 = vmatprep.subr.mxu0 0.0
    %9246 = vmatpush1.msra.mxu0 0.0
    %9247 = vmatprep.subr.mxu0 0.0
    %9248 = vmatpush1.msra.mxu0 0.0
    %9249 = vmatprep.subr.mxu0 0.0
    %9250 = vmatpush1.msra.mxu0 0.0
    %9251 = vmatprep.subr.mxu0 0.0
    %9252 = vmatpush1.msra.mxu0 0.0
    %9253 = vmatprep.subr.mxu0 0.0
    %9254 = vmatpush1.msra.mxu0 0.0
    %9255 = vmatprep.subr.mxu0 0.0
    %9256 = vmatpush1.msra.mxu0 0.0
    %9257 = vmatprep.subr.mxu0 0.0
    %9258 = vmatpush1.msra.mxu0 0.0
    %9259 = vmatprep.subr.mxu0 0.0
    %9260 = vmatpush1.msra.mxu0 0.0
    %9261 = vmatprep.subr.mxu0 0.0
    %9262 = vmatpush1.msra.mxu0 0.0
    %9263 = vmatprep.subr.mxu0 0.0
    %9264 = vmatpush1.msra.mxu0 0.0
    %9265 = vmatprep.subr.mxu0 0.0
    %9266 = vmatpush1.msra.mxu0 0.0
    %9267 = vmatprep.subr.mxu0 0.0
    %9268 = vmatpush1.msra.mxu0 0.0
    %9269 = vmatprep.subr.mxu0 0.0
    %9270 = vmatpush1.msra.mxu0 0.0
    %9271 = vmatprep.subr.mxu0 0.0
    %9272 = vmatpush1.msra.mxu0 0.0
    %9273 = vmatprep.subr.mxu0 0.0
    %9274 = vmatpush1.msra.mxu0 0.0
    %9275 = vmatprep.subr.mxu0 0.0
    %9276 = vmatpush1.msra.mxu0 0.0
    %9277 = vmatprep.subr.mxu0 0.0
    %9278 = vmatpush1.msra.mxu0 0.0
    %9279 = vmatprep.subr.mxu0 0.0
    %9280 = vmatpush1.msra.mxu0 0.0
    %9281 = vmatprep.subr.mxu0 0.0
    %9282 = vmatpush1.msra.mxu0 0.0
    %9283 = vmatprep.subr.mxu0 0.0
    %9284 = vmatpush1.msra.mxu0 0.0
    %9285 = vmatprep.subr.mxu0 0.0
    %9286 = vmatpush1.msra.mxu0 0.0
    %9287 = vmatprep.subr.mxu0 0.0
    %9288 = vmatpush1.msra.mxu0 0.0
    %9289 = vmatprep.subr.mxu0 0.0
    %9290 = vmatpush1.msra.mxu0 0.0
    %9291 = vmatprep.subr.mxu0 0.0
    %9292 = vmatpush1.msra.mxu0 0.0
    %9293 = vmatprep.subr.mxu0 0.0
    %9294 = vmatpush1.msra.mxu0 0.0
    %9295 = vmatprep.subr.mxu0 0.0
    %9296 = vmatpush1.msra.mxu0 0.0
    %9297 = vmatprep.mubr.f32.mxu0 0.0
    %9298 = vmatmul.mubr.f32.gmra.mrb[0].mxu0 %v4399
    %v9299 = vpop.f32.mrb[0].mxu0
    %v9300 = vadd.f32 0.0, %v9299
    %v9301 = vpop.f32.mrb[0].mxu0
    %9302 = vdwg.mxu0
    %v9303 = vld [vmem:[%s4471] sm:$0xff]
    %v9304 = vld [vmem:[%s4471 + $0x8] sm:$0xff]
    %v9306 = vsel %vm1382, %v9300, 0
    %9308 = vmatprep.subr.mxu0 0.0
    %9309 = vmatpush1.msra.mxu0 %v9303
    %9310 = vmatprep.subr.mxu0 0.0
    %9311 = vmatpush1.msra.mxu0 %v9304
    %9312 = vmatprep.subr.mxu0 0.0
    %9313 = vmatpush1.msra.mxu0 0.0
    %9314 = vmatprep.subr.mxu0 0.0
    %9315 = vmatpush1.msra.mxu0 0.0
    %9316 = vmatprep.subr.mxu0 0.0
    %9317 = vmatpush1.msra.mxu0 0.0
    %9318 = vmatprep.subr.mxu0 0.0
    %9319 = vmatpush1.msra.mxu0 0.0
    %9320 = vmatprep.subr.mxu0 0.0
    %9321 = vmatpush1.msra.mxu0 0.0
    %9322 = vmatprep.subr.mxu0 0.0
    %9323 = vmatpush1.msra.mxu0 0.0
    %9324 = vmatprep.subr.mxu0 0.0
    %9325 = vmatpush1.msra.mxu0 0.0
    %9326 = vmatprep.subr.mxu0 0.0
    %9327 = vmatpush1.msra.mxu0 0.0
    %9328 = vmatprep.subr.mxu0 0.0
    %9329 = vmatpush1.msra.mxu0 0.0
    %9330 = vmatprep.subr.mxu0 0.0
    %9331 = vmatpush1.msra.mxu0 0.0
    %9332 = vmatprep.subr.mxu0 0.0
    %9333 = vmatpush1.msra.mxu0 0.0
    %9334 = vmatprep.subr.mxu0 0.0
    %9335 = vmatpush1.msra.mxu0 0.0
    %9336 = vmatprep.subr.mxu0 0.0
    %9337 = vmatpush1.msra.mxu0 0.0
    %9338 = vmatprep.subr.mxu0 0.0
    %9339 = vmatpush1.msra.mxu0 0.0
    %9340 = vmatprep.subr.mxu0 0.0
    %9341 = vmatpush1.msra.mxu0 0.0
    %9342 = vmatprep.subr.mxu0 0.0
    %9343 = vmatpush1.msra.mxu0 0.0
    %9344 = vmatprep.subr.mxu0 0.0
    %9345 = vmatpush1.msra.mxu0 0.0
    %9346 = vmatprep.subr.mxu0 0.0
    %9347 = vmatpush1.msra.mxu0 0.0
    %9348 = vmatprep.subr.mxu0 0.0
    %9349 = vmatpush1.msra.mxu0 0.0
    %9350 = vmatprep.subr.mxu0 0.0
    %9351 = vmatpush1.msra.mxu0 0.0
    %9352 = vmatprep.subr.mxu0 0.0
    %9353 = vmatpush1.msra.mxu0 0.0
    %9354 = vmatprep.subr.mxu0 0.0
    %9355 = vmatpush1.msra.mxu0 0.0
    %9356 = vmatprep.subr.mxu0 0.0
    %9357 = vmatpush1.msra.mxu0 0.0
    %9358 = vmatprep.subr.mxu0 0.0
    %9359 = vmatpush1.msra.mxu0 0.0
    %9360 = vmatprep.subr.mxu0 0.0
    %9361 = vmatpush1.msra.mxu0 0.0
    %9362 = vmatprep.subr.mxu0 0.0
    %9363 = vmatpush1.msra.mxu0 0.0
    %9364 = vmatprep.subr.mxu0 0.0
    %9365 = vmatpush1.msra.mxu0 0.0
    %9366 = vmatprep.subr.mxu0 0.0
    %9367 = vmatpush1.msra.mxu0 0.0
    %9368 = vmatprep.subr.mxu0 0.0
    %9369 = vmatpush1.msra.mxu0 0.0
    %9370 = vmatprep.subr.mxu0 0.0
    %9371 = vmatpush1.msra.mxu0 0.0
    %9372 = vmatprep.mubr.f32.mxu0 0.0
    %9373 = vmatmul.mubr.f32.gmra.mrb[0].mxu0 %v9306
    %v9374 = vpop.f32.mrb[0].mxu0
    %v9375 = vadd.f32 0.0, %v9374
    %v9376 = vpop.f32.mrb[0].mxu0
    %9377 = vdwg.mxu0
    %v9378 = vadd.f32 %v9230, %v9375
    %v9379 = vld [vmem:[%s18] sm:$0x1]
    %v9381 = vlaneseq
    %v9382 = vshrl.u32 %v9381, 7
    %v9383 = vsub.s32 0, %v9382
    %v9384 = vrot.slane %v9379, %v9383
    %v9386 = vadd.f32 %v9378, %v9384
    %v9387 = vmax.f32 %v9386, 0.0
    %9389 = vrot.lane.b32.xlu0 %v9386, 96
    %v9390 = vpop.permute.xlu0 %9389
    %v9391 = vsel %vm1029, %v9390, 0
    %9393 = vmatprep.subr.mxu0 0.0
    %9394 = vmatpush1.msra.mxu0 %v9391
    %9395 = vmatprep.subr.mxu0 0.0
    %9396 = vmatpush1.msra.mxu0 0.0
    %9397 = vmatprep.subr.mxu0 0.0
    %9398 = vmatpush1.msra.mxu0 0.0
    %9399 = vmatprep.subr.mxu0 0.0
    %9400 = vmatpush1.msra.mxu0 0.0
    %9401 = vmatprep.subr.mxu0 0.0
    %9402 = vmatpush1.msra.mxu0 0.0
    %9403 = vmatprep.subr.mxu0 0.0
    %9404 = vmatpush1.msra.mxu0 0.0
    %9405 = vmatprep.subr.mxu0 0.0
    %9406 = vmatpush1.msra.mxu0 0.0
    %9407 = vmatprep.subr.mxu0 0.0
    %9408 = vmatpush1.msra.mxu0 0.0
    %9409 = vmatprep.subr.mxu0 0.0
    %9410 = vmatpush1.msra.mxu0 0.0
    %9411 = vmatprep.subr.mxu0 0.0
    %9412 = vmatpush1.msra.mxu0 0.0
    %9413 = vmatprep.subr.mxu0 0.0
    %9414 = vmatpush1.msra.mxu0 0.0
    %9415 = vmatprep.subr.mxu0 0.0
    %9416 = vmatpush1.msra.mxu0 0.0
    %9417 = vmatprep.subr.mxu0 0.0
    %9418 = vmatpush1.msra.mxu0 0.0
    %9419 = vmatprep.subr.mxu0 0.0
    %9420 = vmatpush1.msra.mxu0 0.0
    %9421 = vmatprep.subr.mxu0 0.0
    %9422 = vmatpush1.msra.mxu0 0.0
    %9423 = vmatprep.subr.mxu0 0.0
    %9424 = vmatpush1.msra.mxu0 0.0
    %9425 = vmatprep.subr.mxu0 0.0
    %9426 = vmatpush1.msra.mxu0 0.0
    %9427 = vmatprep.subr.mxu0 0.0
    %9428 = vmatpush1.msra.mxu0 0.0
    %9429 = vmatprep.subr.mxu0 0.0
    %9430 = vmatpush1.msra.mxu0 0.0
    %9431 = vmatprep.subr.mxu0 0.0
    %9432 = vmatpush1.msra.mxu0 0.0
    %9433 = vmatprep.subr.mxu0 0.0
    %9434 = vmatpush1.msra.mxu0 0.0
    %9435 = vmatprep.subr.mxu0 0.0
    %9436 = vmatpush1.msra.mxu0 0.0
    %9437 = vmatprep.subr.mxu0 0.0
    %9438 = vmatpush1.msra.mxu0 0.0
    %9439 = vmatprep.subr.mxu0 0.0
    %9440 = vmatpush1.msra.mxu0 0.0
    %9441 = vmatprep.subr.mxu0 0.0
    %9442 = vmatpush1.msra.mxu0 0.0
    %9443 = vmatprep.subr.mxu0 0.0
    %9444 = vmatpush1.msra.mxu0 0.0
    %9445 = vmatprep.subr.mxu0 0.0
    %9446 = vmatpush1.msra.mxu0 0.0
    %9447 = vmatprep.subr.mxu0 0.0
    %9448 = vmatpush1.msra.mxu0 0.0
    %9449 = vmatprep.subr.mxu0 0.0
    %9450 = vmatpush1.msra.mxu0 0.0
    %9451 = vmatprep.subr.mxu0 0.0
    %9452 = vmatpush1.msra.mxu0 0.0
    %9453 = vmatprep.subr.mxu0 0.0
    %9454 = vmatpush1.msra.mxu0 0.0
    %9455 = vmatprep.subr.mxu0 0.0
    %9456 = vmatpush1.msra.mxu0 0.0
    %9457 = vmatprep.mubr.f32.mxu0 0.0
    %9458 = vmatmul.mubr.f32.gmra.mrb[0].mxu0 %v4560
    %v9459 = vpop.f32.mrb[0].mxu0
    %v9460 = vadd.f32 0.0, %v9459
    %v9461 = vpop.f32.mrb[0].mxu0
    %9462 = vdwg.mxu0
    %v9464 = vsel %vm1029, %v9387, 0
    %9466 = vmatprep.subr.mxu0 0.0
    %9467 = vmatpush1.msra.mxu0 %v9464
    %9468 = vmatprep.subr.mxu0 0.0
    %9469 = vmatpush1.msra.mxu0 0.0
    %9470 = vmatprep.subr.mxu0 0.0
    %9471 = vmatpush1.msra.mxu0 0.0
    %9472 = vmatprep.subr.mxu0 0.0
    %9473 = vmatpush1.msra.mxu0 0.0
    %9474 = vmatprep.subr.mxu0 0.0
    %9475 = vmatpush1.msra.mxu0 0.0
    %9476 = vmatprep.subr.mxu0 0.0
    %9477 = vmatpush1.msra.mxu0 0.0
    %9478 = vmatprep.subr.mxu0 0.0
    %9479 = vmatpush1.msra.mxu0 0.0
    %9480 = vmatprep.subr.mxu0 0.0
    %9481 = vmatpush1.msra.mxu0 0.0
    %9482 = vmatprep.subr.mxu0 0.0
    %9483 = vmatpush1.msra.mxu0 0.0
    %9484 = vmatprep.subr.mxu0 0.0
    %9485 = vmatpush1.msra.mxu0 0.0
    %9486 = vmatprep.subr.mxu0 0.0
    %9487 = vmatpush1.msra.mxu0 0.0
    %9488 = vmatprep.subr.mxu0 0.0
    %9489 = vmatpush1.msra.mxu0 0.0
    %9490 = vmatprep.subr.mxu0 0.0
    %9491 = vmatpush1.msra.mxu0 0.0
    %9492 = vmatprep.subr.mxu0 0.0
    %9493 = vmatpush1.msra.mxu0 0.0
    %9494 = vmatprep.subr.mxu0 0.0
    %9495 = vmatpush1.msra.mxu0 0.0
    %9496 = vmatprep.subr.mxu0 0.0
    %9497 = vmatpush1.msra.mxu0 0.0
    %9498 = vmatprep.subr.mxu0 0.0
    %9499 = vmatpush1.msra.mxu0 0.0
    %9500 = vmatprep.subr.mxu0 0.0
    %9501 = vmatpush1.msra.mxu0 0.0
    %9502 = vmatprep.subr.mxu0 0.0
    %9503 = vmatpush1.msra.mxu0 0.0
    %9504 = vmatprep.subr.mxu0 0.0
    %9505 = vmatpush1.msra.mxu0 0.0
    %9506 = vmatprep.subr.mxu0 0.0
    %9507 = vmatpush1.msra.mxu0 0.0
    %9508 = vmatprep.subr.mxu0 0.0
    %9509 = vmatpush1.msra.mxu0 0.0
    %9510 = vmatprep.subr.mxu0 0.0
    %9511 = vmatpush1.msra.mxu0 0.0
    %9512 = vmatprep.subr.mxu0 0.0
    %9513 = vmatpush1.msra.mxu0 0.0
    %9514 = vmatprep.subr.mxu0 0.0
    %9515 = vmatpush1.msra.mxu0 0.0
    %9516 = vmatprep.subr.mxu0 0.0
    %9517 = vmatpush1.msra.mxu0 0.0
    %9518 = vmatprep.subr.mxu0 0.0
    %9519 = vmatpush1.msra.mxu0 0.0
    %9520 = vmatprep.subr.mxu0 0.0
    %9521 = vmatpush1.msra.mxu0 0.0
    %9522 = vmatprep.subr.mxu0 0.0
    %9523 = vmatpush1.msra.mxu0 0.0
    %9524 = vmatprep.subr.mxu0 0.0
    %9525 = vmatpush1.msra.mxu0 0.0
    %9526 = vmatprep.subr.mxu0 0.0
    %9527 = vmatpush1.msra.mxu0 0.0
    %9528 = vmatprep.subr.mxu0 0.0
    %9529 = vmatpush1.msra.mxu0 0.0
    %9530 = vmatprep.mubr.f32.mxu0 0.0
    %9531 = vmatmul.mubr.f32.gmra.mrb[0].mxu0 %v4634
    %v9532 = vpop.f32.mrb[0].mxu0
    %v9533 = vadd.f32 0.0, %v9532
    %v9534 = vpop.f32.mrb[0].mxu0
    %9535 = vdwg.mxu0
    %v9536 = vld [vmem:[%s19] sm:$0xff]
    %v9537 = vld [vmem:[%s19 + $0x8] sm:$0xff]
    %v9538 = vld [vmem:[%s19 + $0x10] sm:$0xff]
    %v9539 = vld [vmem:[%s19 + $0x18] sm:$0xff]
    %9540 = vmatprep.subr.mxu0 0.0
    %9541 = vmatpush1.msra.mxu0 %v9464
    %9542 = vmatprep.subr.mxu0 0.0
    %9543 = vmatpush1.msra.mxu0 0.0
    %9544 = vmatprep.subr.mxu0 0.0
    %9545 = vmatpush1.msra.mxu0 0.0
    %9546 = vmatprep.subr.mxu0 0.0
    %9547 = vmatpush1.msra.mxu0 0.0
    %9548 = vmatprep.subr.mxu0 0.0
    %9549 = vmatpush1.msra.mxu0 0.0
    %9550 = vmatprep.subr.mxu0 0.0
    %9551 = vmatpush1.msra.mxu0 0.0
    %9552 = vmatprep.subr.mxu0 0.0
    %9553 = vmatpush1.msra.mxu0 0.0
    %9554 = vmatprep.subr.mxu0 0.0
    %9555 = vmatpush1.msra.mxu0 0.0
    %9556 = vmatprep.subr.mxu0 0.0
    %9557 = vmatpush1.msra.mxu0 0.0
    %9558 = vmatprep.subr.mxu0 0.0
    %9559 = vmatpush1.msra.mxu0 0.0
    %9560 = vmatprep.subr.mxu0 0.0
    %9561 = vmatpush1.msra.mxu0 0.0
    %9562 = vmatprep.subr.mxu0 0.0
    %9563 = vmatpush1.msra.mxu0 0.0
    %9564 = vmatprep.subr.mxu0 0.0
    %9565 = vmatpush1.msra.mxu0 0.0
    %9566 = vmatprep.subr.mxu0 0.0
    %9567 = vmatpush1.msra.mxu0 0.0
    %9568 = vmatprep.subr.mxu0 0.0
    %9569 = vmatpush1.msra.mxu0 0.0
    %9570 = vmatprep.subr.mxu0 0.0
    %9571 = vmatpush1.msra.mxu0 0.0
    %9572 = vmatprep.subr.mxu0 0.0
    %9573 = vmatpush1.msra.mxu0 0.0
    %9574 = vmatprep.subr.mxu0 0.0
    %9575 = vmatpush1.msra.mxu0 0.0
    %9576 = vmatprep.subr.mxu0 0.0
    %9577 = vmatpush1.msra.mxu0 0.0
    %9578 = vmatprep.subr.mxu0 0.0
    %9579 = vmatpush1.msra.mxu0 0.0
    %9580 = vmatprep.subr.mxu0 0.0
    %9581 = vmatpush1.msra.mxu0 0.0
    %9582 = vmatprep.subr.mxu0 0.0
    %9583 = vmatpush1.msra.mxu0 0.0
    %9584 = vmatprep.subr.mxu0 0.0
    %9585 = vmatpush1.msra.mxu0 0.0
    %9586 = vmatprep.subr.mxu0 0.0
    %9587 = vmatpush1.msra.mxu0 0.0
    %9588 = vmatprep.subr.mxu0 0.0
    %9589 = vmatpush1.msra.mxu0 0.0
    %9590 = vmatprep.subr.mxu0 0.0
    %9591 = vmatpush1.msra.mxu0 0.0
    %9592 = vmatprep.subr.mxu0 0.0
    %9593 = vmatpush1.msra.mxu0 0.0
    %9594 = vmatprep.subr.mxu0 0.0
    %9595 = vmatpush1.msra.mxu0 0.0
    %9596 = vmatprep.subr.mxu0 0.0
    %9597 = vmatpush1.msra.mxu0 0.0
    %9598 = vmatprep.subr.mxu0 0.0
    %9599 = vmatpush1.msra.mxu0 0.0
    %9600 = vmatprep.subr.mxu0 0.0
    %9601 = vmatpush1.msra.mxu0 0.0
    %9602 = vmatprep.subr.mxu0 0.0
    %9603 = vmatpush1.msra.mxu0 0.0
    %9604 = vmatprep.mubr.f32.mxu0 0.0
    %9605 = vmatmul.mubr.f32.gmra.mrb[0].mxu0 %v4560
    %v9606 = vpop.f32.mrb[0].mxu0
    %v9607 = vadd.f32 0.0, %v9606
    %v9608 = vpop.f32.mrb[0].mxu0
    %9609 = vdwg.mxu0
    %v9610 = vld [vmem:[%s4783] sm:$0xff]
    %v9611 = vld [vmem:[%s4783 + $0x8] sm:$0xff]
    %v9612 = vld [vmem:[%s4783 + $0x10] sm:$0xff]
    %v9613 = vld [vmem:[%s4783 + $0x18] sm:$0xff]
    %v9615 = vsel %vm213, %v9607, 0
    %9617 = vmatprep.subr.mxu0 0.0
    %9618 = vmatpush1.msra.mxu0 %v9610
    %9619 = vmatprep.subr.mxu0 0.0
    %9620 = vmatpush1.msra.mxu0 %v9611
    %9621 = vmatprep.subr.mxu0 0.0
    %9622 = vmatpush1.msra.mxu0 %v9612
    %9623 = vmatprep.subr.mxu0 0.0
    %9624 = vmatpush1.msra.mxu0 %v9613
    %9625 = vmatprep.subr.mxu0 0.0
    %9626 = vmatpush1.msra.mxu0 0.0
    %9627 = vmatprep.subr.mxu0 0.0
    %9628 = vmatpush1.msra.mxu0 0.0
    %9629 = vmatprep.subr.mxu0 0.0
    %9630 = vmatpush1.msra.mxu0 0.0
    %9631 = vmatprep.subr.mxu0 0.0
    %9632 = vmatpush1.msra.mxu0 0.0
    %9633 = vmatprep.subr.mxu0 0.0
    %9634 = vmatpush1.msra.mxu0 0.0
    %9635 = vmatprep.subr.mxu0 0.0
    %9636 = vmatpush1.msra.mxu0 0.0
    %9637 = vmatprep.subr.mxu0 0.0
    %9638 = vmatpush1.msra.mxu0 0.0
    %9639 = vmatprep.subr.mxu0 0.0
    %9640 = vmatpush1.msra.mxu0 0.0
    %9641 = vmatprep.subr.mxu0 0.0
    %9642 = vmatpush1.msra.mxu0 0.0
    %9643 = vmatprep.subr.mxu0 0.0
    %9644 = vmatpush1.msra.mxu0 0.0
    %9645 = vmatprep.subr.mxu0 0.0
    %9646 = vmatpush1.msra.mxu0 0.0
    %9647 = vmatprep.subr.mxu0 0.0
    %9648 = vmatpush1.msra.mxu0 0.0
    %9649 = vmatprep.subr.mxu0 0.0
    %9650 = vmatpush1.msra.mxu0 0.0
    %9651 = vmatprep.subr.mxu0 0.0
    %9652 = vmatpush1.msra.mxu0 0.0
    %9653 = vmatprep.subr.mxu0 0.0
    %9654 = vmatpush1.msra.mxu0 0.0
    %9655 = vmatprep.subr.mxu0 0.0
    %9656 = vmatpush1.msra.mxu0 0.0
    %9657 = vmatprep.subr.mxu0 0.0
    %9658 = vmatpush1.msra.mxu0 0.0
    %9659 = vmatprep.subr.mxu0 0.0
    %9660 = vmatpush1.msra.mxu0 0.0
    %9661 = vmatprep.subr.mxu0 0.0
    %9662 = vmatpush1.msra.mxu0 0.0
    %9663 = vmatprep.subr.mxu0 0.0
    %9664 = vmatpush1.msra.mxu0 0.0
    %9665 = vmatprep.subr.mxu0 0.0
    %9666 = vmatpush1.msra.mxu0 0.0
    %9667 = vmatprep.subr.mxu0 0.0
    %9668 = vmatpush1.msra.mxu0 0.0
    %9669 = vmatprep.subr.mxu0 0.0
    %9670 = vmatpush1.msra.mxu0 0.0
    %9671 = vmatprep.subr.mxu0 0.0
    %9672 = vmatpush1.msra.mxu0 0.0
    %9673 = vmatprep.subr.mxu0 0.0
    %9674 = vmatpush1.msra.mxu0 0.0
    %9675 = vmatprep.subr.mxu0 0.0
    %9676 = vmatpush1.msra.mxu0 0.0
    %9677 = vmatprep.subr.mxu0 0.0
    %9678 = vmatpush1.msra.mxu0 0.0
    %9679 = vmatprep.subr.mxu0 0.0
    %9680 = vmatpush1.msra.mxu0 0.0
    %9681 = vmatprep.mubr.f32.mxu0 0.0
    %9682 = vmatmul.mubr.f32.gmra.mrb[0].mxu0 %v9615
    %v9683 = vpop.f32.mrb[0].mxu0
    %v9684 = vadd.f32 0.0, %v9683
    %v9685 = vpop.f32.mrb[0].mxu0
    %9686 = vdwg.mxu0
    %v9688 = vsel %vm213, %v9533, 0
    %9690 = vmatprep.subr.mxu0 0.0
    %9691 = vmatpush1.msra.mxu0 %v9536
    %9692 = vmatprep.subr.mxu0 0.0
    %9693 = vmatpush1.msra.mxu0 %v9537
    %9694 = vmatprep.subr.mxu0 0.0
    %9695 = vmatpush1.msra.mxu0 %v9538
    %9696 = vmatprep.subr.mxu0 0.0
    %9697 = vmatpush1.msra.mxu0 %v9539
    %9698 = vmatprep.subr.mxu0 0.0
    %9699 = vmatpush1.msra.mxu0 0.0
    %9700 = vmatprep.subr.mxu0 0.0
    %9701 = vmatpush1.msra.mxu0 0.0
    %9702 = vmatprep.subr.mxu0 0.0
    %9703 = vmatpush1.msra.mxu0 0.0
    %9704 = vmatprep.subr.mxu0 0.0
    %9705 = vmatpush1.msra.mxu0 0.0
    %9706 = vmatprep.subr.mxu0 0.0
    %9707 = vmatpush1.msra.mxu0 0.0
    %9708 = vmatprep.subr.mxu0 0.0
    %9709 = vmatpush1.msra.mxu0 0.0
    %9710 = vmatprep.subr.mxu0 0.0
    %9711 = vmatpush1.msra.mxu0 0.0
    %9712 = vmatprep.subr.mxu0 0.0
    %9713 = vmatpush1.msra.mxu0 0.0
    %9714 = vmatprep.subr.mxu0 0.0
    %9715 = vmatpush1.msra.mxu0 0.0
    %9716 = vmatprep.subr.mxu0 0.0
    %9717 = vmatpush1.msra.mxu0 0.0
    %9718 = vmatprep.subr.mxu0 0.0
    %9719 = vmatpush1.msra.mxu0 0.0
    %9720 = vmatprep.subr.mxu0 0.0
    %9721 = vmatpush1.msra.mxu0 0.0
    %9722 = vmatprep.subr.mxu0 0.0
    %9723 = vmatpush1.msra.mxu0 0.0
    %9724 = vmatprep.subr.mxu0 0.0
    %9725 = vmatpush1.msra.mxu0 0.0
    %9726 = vmatprep.subr.mxu0 0.0
    %9727 = vmatpush1.msra.mxu0 0.0
    %9728 = vmatprep.subr.mxu0 0.0
    %9729 = vmatpush1.msra.mxu0 0.0
    %9730 = vmatprep.subr.mxu0 0.0
    %9731 = vmatpush1.msra.mxu0 0.0
    %9732 = vmatprep.subr.mxu0 0.0
    %9733 = vmatpush1.msra.mxu0 0.0
    %9734 = vmatprep.subr.mxu0 0.0
    %9735 = vmatpush1.msra.mxu0 0.0
    %9736 = vmatprep.subr.mxu0 0.0
    %9737 = vmatpush1.msra.mxu0 0.0
    %9738 = vmatprep.subr.mxu0 0.0
    %9739 = vmatpush1.msra.mxu0 0.0
    %9740 = vmatprep.subr.mxu0 0.0
    %9741 = vmatpush1.msra.mxu0 0.0
    %9742 = vmatprep.subr.mxu0 0.0
    %9743 = vmatpush1.msra.mxu0 0.0
    %9744 = vmatprep.subr.mxu0 0.0
    %9745 = vmatpush1.msra.mxu0 0.0
    %9746 = vmatprep.subr.mxu0 0.0
    %9747 = vmatpush1.msra.mxu0 0.0
    %9748 = vmatprep.subr.mxu0 0.0
    %9749 = vmatpush1.msra.mxu0 0.0
    %9750 = vmatprep.subr.mxu0 0.0
    %9751 = vmatpush1.msra.mxu0 0.0
    %9752 = vmatprep.subr.mxu0 0.0
    %9753 = vmatpush1.msra.mxu0 0.0
    %9754 = vmatprep.mubr.f32.mxu0 0.0
    %9755 = vmatmul.mubr.f32.gmra.mrb[0].mxu0 %v9688
    %v9756 = vpop.f32.mrb[0].mxu0
    %v9757 = vadd.f32 %v9684, %v9756
    %v9758 = vpop.f32.mrb[0].mxu0
    %9759 = vdwg.mxu0
    %9760 = vmatprep.subr.mxu0 0.0
    %9761 = vmatpush1.msra.mxu0 %v9464
    %9762 = vmatprep.subr.mxu0 0.0
    %9763 = vmatpush1.msra.mxu0 0.0
    %9764 = vmatprep.subr.mxu0 0.0
    %9765 = vmatpush1.msra.mxu0 0.0
    %9766 = vmatprep.subr.mxu0 0.0
    %9767 = vmatpush1.msra.mxu0 0.0
    %9768 = vmatprep.subr.mxu0 0.0
    %9769 = vmatpush1.msra.mxu0 0.0
    %9770 = vmatprep.subr.mxu0 0.0
    %9771 = vmatpush1.msra.mxu0 0.0
    %9772 = vmatprep.subr.mxu0 0.0
    %9773 = vmatpush1.msra.mxu0 0.0
    %9774 = vmatprep.subr.mxu0 0.0
    %9775 = vmatpush1.msra.mxu0 0.0
    %9776 = vmatprep.subr.mxu0 0.0
    %9777 = vmatpush1.msra.mxu0 0.0
    %9778 = vmatprep.subr.mxu0 0.0
    %9779 = vmatpush1.msra.mxu0 0.0
    %9780 = vmatprep.subr.mxu0 0.0
    %9781 = vmatpush1.msra.mxu0 0.0
    %9782 = vmatprep.subr.mxu0 0.0
    %9783 = vmatpush1.msra.mxu0 0.0
    %9784 = vmatprep.subr.mxu0 0.0
    %9785 = vmatpush1.msra.mxu0 0.0
    %9786 = vmatprep.subr.mxu0 0.0
    %9787 = vmatpush1.msra.mxu0 0.0
    %9788 = vmatprep.subr.mxu0 0.0
    %9789 = vmatpush1.msra.mxu0 0.0
    %9790 = vmatprep.subr.mxu0 0.0
    %9791 = vmatpush1.msra.mxu0 0.0
    %9792 = vmatprep.subr.mxu0 0.0
    %9793 = vmatpush1.msra.mxu0 0.0
    %9794 = vmatprep.subr.mxu0 0.0
    %9795 = vmatpush1.msra.mxu0 0.0
    %9796 = vmatprep.subr.mxu0 0.0
    %9797 = vmatpush1.msra.mxu0 0.0
    %9798 = vmatprep.subr.mxu0 0.0
    %9799 = vmatpush1.msra.mxu0 0.0
    %9800 = vmatprep.subr.mxu0 0.0
    %9801 = vmatpush1.msra.mxu0 0.0
    %9802 = vmatprep.subr.mxu0 0.0
    %9803 = vmatpush1.msra.mxu0 0.0
    %9804 = vmatprep.subr.mxu0 0.0
    %9805 = vmatpush1.msra.mxu0 0.0
    %9806 = vmatprep.subr.mxu0 0.0
    %9807 = vmatpush1.msra.mxu0 0.0
    %9808 = vmatprep.subr.mxu0 0.0
    %9809 = vmatpush1.msra.mxu0 0.0
    %9810 = vmatprep.subr.mxu0 0.0
    %9811 = vmatpush1.msra.mxu0 0.0
    %9812 = vmatprep.subr.mxu0 0.0
    %9813 = vmatpush1.msra.mxu0 0.0
    %9814 = vmatprep.subr.mxu0 0.0
    %9815 = vmatpush1.msra.mxu0 0.0
    %9816 = vmatprep.subr.mxu0 0.0
    %9817 = vmatpush1.msra.mxu0 0.0
    %9818 = vmatprep.subr.mxu0 0.0
    %9819 = vmatpush1.msra.mxu0 0.0
    %9820 = vmatprep.subr.mxu0 0.0
    %9821 = vmatpush1.msra.mxu0 0.0
    %9822 = vmatprep.subr.mxu0 0.0
    %9823 = vmatpush1.msra.mxu0 0.0
    %9824 = vmatprep.mubr.f32.mxu0 0.0
    %9825 = vmatmul.mubr.f32.gmra.mrb[0].mxu0 %v4934
    %v9826 = vpop.f32.mrb[0].mxu0
    %v9827 = vadd.f32 0.0, %v9826
    %v9828 = vpop.f32.mrb[0].mxu0
    %9829 = vdwg.mxu0
    %v9830 = vld [vmem:[%s5006] sm:$0xff]
    %v9831 = vld [vmem:[%s5006 + $0x8] sm:$0xff]
    %v9832 = vld [vmem:[%s5006 + $0x10] sm:$0xff]
    %v9833 = vld [vmem:[%s5006 + $0x18] sm:$0xff]
    %v9835 = vsel %vm213, %v9827, 0
    %9837 = vmatprep.subr.mxu0 0.0
    %9838 = vmatpush1.msra.mxu0 %v9830
    %9839 = vmatprep.subr.mxu0 0.0
    %9840 = vmatpush1.msra.mxu0 %v9831
    %9841 = vmatprep.subr.mxu0 0.0
    %9842 = vmatpush1.msra.mxu0 %v9832
    %9843 = vmatprep.subr.mxu0 0.0
    %9844 = vmatpush1.msra.mxu0 %v9833
    %9845 = vmatprep.subr.mxu0 0.0
    %9846 = vmatpush1.msra.mxu0 0.0
    %9847 = vmatprep.subr.mxu0 0.0
    %9848 = vmatpush1.msra.mxu0 0.0
    %9849 = vmatprep.subr.mxu0 0.0
    %9850 = vmatpush1.msra.mxu0 0.0
    %9851 = vmatprep.subr.mxu0 0.0
    %9852 = vmatpush1.msra.mxu0 0.0
    %9853 = vmatprep.subr.mxu0 0.0
    %9854 = vmatpush1.msra.mxu0 0.0
    %9855 = vmatprep.subr.mxu0 0.0
    %9856 = vmatpush1.msra.mxu0 0.0
    %9857 = vmatprep.subr.mxu0 0.0
    %9858 = vmatpush1.msra.mxu0 0.0
    %9859 = vmatprep.subr.mxu0 0.0
    %9860 = vmatpush1.msra.mxu0 0.0
    %9861 = vmatprep.subr.mxu0 0.0
    %9862 = vmatpush1.msra.mxu0 0.0
    %9863 = vmatprep.subr.mxu0 0.0
    %9864 = vmatpush1.msra.mxu0 0.0
    %9865 = vmatprep.subr.mxu0 0.0
    %9866 = vmatpush1.msra.mxu0 0.0
    %9867 = vmatprep.subr.mxu0 0.0
    %9868 = vmatpush1.msra.mxu0 0.0
    %9869 = vmatprep.subr.mxu0 0.0
    %9870 = vmatpush1.msra.mxu0 0.0
    %9871 = vmatprep.subr.mxu0 0.0
    %9872 = vmatpush1.msra.mxu0 0.0
    %9873 = vmatprep.subr.mxu0 0.0
    %9874 = vmatpush1.msra.mxu0 0.0
    %9875 = vmatprep.subr.mxu0 0.0
    %9876 = vmatpush1.msra.mxu0 0.0
    %9877 = vmatprep.subr.mxu0 0.0
    %9878 = vmatpush1.msra.mxu0 0.0
    %9879 = vmatprep.subr.mxu0 0.0
    %9880 = vmatpush1.msra.mxu0 0.0
    %9881 = vmatprep.subr.mxu0 0.0
    %9882 = vmatpush1.msra.mxu0 0.0
    %9883 = vmatprep.subr.mxu0 0.0
    %9884 = vmatpush1.msra.mxu0 0.0
    %9885 = vmatprep.subr.mxu0 0.0
    %9886 = vmatpush1.msra.mxu0 0.0
    %9887 = vmatprep.subr.mxu0 0.0
    %9888 = vmatpush1.msra.mxu0 0.0
    %9889 = vmatprep.subr.mxu0 0.0
    %9890 = vmatpush1.msra.mxu0 0.0
    %9891 = vmatprep.subr.mxu0 0.0
    %9892 = vmatpush1.msra.mxu0 0.0
    %9893 = vmatprep.subr.mxu0 0.0
    %9894 = vmatpush1.msra.mxu0 0.0
    %9895 = vmatprep.subr.mxu0 0.0
    %9896 = vmatpush1.msra.mxu0 0.0
    %9897 = vmatprep.subr.mxu0 0.0
    %9898 = vmatpush1.msra.mxu0 0.0
    %9899 = vmatprep.subr.mxu0 0.0
    %9900 = vmatpush1.msra.mxu0 0.0
    %9901 = vmatprep.mubr.f32.mxu0 0.0
    %9902 = vmatmul.mubr.f32.gmra.mrb[0].mxu0 %v9835
    %v9903 = vpop.f32.mrb[0].mxu0
    %v9904 = vadd.f32 0.0, %v9903
    %v9905 = vpop.f32.mrb[0].mxu0
    %9906 = vdwg.mxu0
    %v9907 = vadd.f32 %v9757, %v9904
    %v9908 = vld [vmem:[%s20] sm:$0x1]
    %v9909 = vadd.f32 %v9907, %v9908
    %v9910 = vadd.f32 %v9909, %v9460
    %v9911 = vmax.f32 %v9910, 0.0
    %v9912 = vld [vmem:[%s21] sm:$0xff]
    %v9913 = vld [vmem:[%s21 + $0x8] sm:$0xff]
    %v9914 = vld [vmem:[%s21 + $0x10] sm:$0xff]
    %v9915 = vld [vmem:[%s21 + $0x18] sm:$0xff]
    %v9916 = vld [vmem:[%s22] sm:$0x1]
    %v9918 = vsel %vm213, %v9911, 0
    %9920 = vmatprep.subr.mxu0 0.0
    %9921 = vmatpush1.msra.mxu0 %v9912
    %9922 = vmatprep.subr.mxu0 0.0
    %9923 = vmatpush1.msra.mxu0 %v9913
    %9924 = vmatprep.subr.mxu0 0.0
    %9925 = vmatpush1.msra.mxu0 %v9914
    %9926 = vmatprep.subr.mxu0 0.0
    %9927 = vmatpush1.msra.mxu0 %v9915
    %9928 = vmatprep.subr.mxu0 0.0
    %9929 = vmatpush1.msra.mxu0 0.0
    %9930 = vmatprep.subr.mxu0 0.0
    %9931 = vmatpush1.msra.mxu0 0.0
    %9932 = vmatprep.subr.mxu0 0.0
    %9933 = vmatpush1.msra.mxu0 0.0
    %9934 = vmatprep.subr.mxu0 0.0
    %9935 = vmatpush1.msra.mxu0 0.0
    %9936 = vmatprep.subr.mxu0 0.0
    %9937 = vmatpush1.msra.mxu0 0.0
    %9938 = vmatprep.subr.mxu0 0.0
    %9939 = vmatpush1.msra.mxu0 0.0
    %9940 = vmatprep.subr.mxu0 0.0
    %9941 = vmatpush1.msra.mxu0 0.0
    %9942 = vmatprep.subr.mxu0 0.0
    %9943 = vmatpush1.msra.mxu0 0.0
    %9944 = vmatprep.subr.mxu0 0.0
    %9945 = vmatpush1.msra.mxu0 0.0
    %9946 = vmatprep.subr.mxu0 0.0
    %9947 = vmatpush1.msra.mxu0 0.0
    %9948 = vmatprep.subr.mxu0 0.0
    %9949 = vmatpush1.msra.mxu0 0.0
    %9950 = vmatprep.subr.mxu0 0.0
    %9951 = vmatpush1.msra.mxu0 0.0
    %9952 = vmatprep.subr.mxu0 0.0
    %9953 = vmatpush1.msra.mxu0 0.0
    %9954 = vmatprep.subr.mxu0 0.0
    %9955 = vmatpush1.msra.mxu0 0.0
    %9956 = vmatprep.subr.mxu0 0.0
    %9957 = vmatpush1.msra.mxu0 0.0
    %9958 = vmatprep.subr.mxu0 0.0
    %9959 = vmatpush1.msra.mxu0 0.0
    %9960 = vmatprep.subr.mxu0 0.0
    %9961 = vmatpush1.msra.mxu0 0.0
    %9962 = vmatprep.subr.mxu0 0.0
    %9963 = vmatpush1.msra.mxu0 0.0
    %9964 = vmatprep.subr.mxu0 0.0
    %9965 = vmatpush1.msra.mxu0 0.0
    %9966 = vmatprep.subr.mxu0 0.0
    %9967 = vmatpush1.msra.mxu0 0.0
    %9968 = vmatprep.subr.mxu0 0.0
    %9969 = vmatpush1.msra.mxu0 0.0
    %9970 = vmatprep.subr.mxu0 0.0
    %9971 = vmatpush1.msra.mxu0 0.0
    %9972 = vmatprep.subr.mxu0 0.0
    %9973 = vmatpush1.msra.mxu0 0.0
    %9974 = vmatprep.subr.mxu0 0.0
    %9975 = vmatpush1.msra.mxu0 0.0
    %9976 = vmatprep.subr.mxu0 0.0
    %9977 = vmatpush1.msra.mxu0 0.0
    %9978 = vmatprep.subr.mxu0 0.0
    %9979 = vmatpush1.msra.mxu0 0.0
    %9980 = vmatprep.subr.mxu0 0.0
    %9981 = vmatpush1.msra.mxu0 0.0
    %9982 = vmatprep.subr.mxu0 0.0
    %9983 = vmatpush1.msra.mxu0 0.0
    %9984 = vmatprep.mubr.f32.mxu0 0.0
    %9985 = vmatmul.mubr.f32.gmra.mrb[0].mxu0 %v9918
    %v9986 = vpop.f32.mrb[0].mxu0
    %v9987 = vadd.f32 %v9916, %v9986
    %v9988 = vpop.f32.mrb[0].mxu0
    %9989 = vdwg.mxu0
    %vm9990 = vcmp.gt.f32.partialorder %v9987, 20.0
    %v9991 = vmin.f32 %v9987, 20.0
    %v9992 = vmul.f32 %v9991, 1.442695
    %v9993 = vpow.pop %v9992
    %v9994 = vadd.f32 %v9993, 1.0
    %v9995 = vlog2.pop %v9994
    %v9996 = vmul.f32 %v9995, 0.6931472
    %v9997 = vsel %vm9990, %v9987, %v9996
    %v9998 = vmax.f32 %v9997, 1e-05
    %v9999 = vmin.f32 %v9998, 5.0
    %10000 = vst.msk [vmem:[%s23 + $0x1] sm:$0x1] %vm5177, %v9987
    %10002 = vrot.lane.b32.xlu0 %v9999, 120
    %v10003 = vpop.permute.xlu0 %10002
    %10005 = vst.msk [vmem:[#allocation16 + $0x1] sm:$0x1] %vm5177, %v10003
    // Predicated region
    $region126: #{context_conv_forward.1} parent=1 // pred_check
      _
    $region127: #{context_conv_forward.1} parent=1 // pred_check_branch
      %10007 = sbr.rel (0) target = $region129
    $region128: #{context_conv_forward.1} parent=1 // pred_region
      _
    $region129: #{context_conv_forward.1} parent=1 // pred_fallthru
      _
    // Predicated region
    $region130: #{context_conv_forward.1} parent=1 // pred_check
      _
    $region131: #{context_conv_forward.1} parent=1 // pred_check_branch
      %10009 = sbr.rel (0) target = $region133
    $region132: #{context_conv_forward.1} parent=1 // pred_region
      %s10011 = ssub.s32 32, 32
      %10012 = vsyncadd [#allocation4], %s10011
      %s10014 = sshll.u32 [#allocation16], 4
      %s10015 = int_to_ptr.vmem [resolvable:$true] %s10014
      %10017 = dma.vmem_to_hbm [thread:$0]  %s10015, 32, %s24, [#allocation4]
    $region133: #{context_conv_forward.1} parent=1 // pred_fallthru
      _
    // Predicated region
    $region134: #{context_conv_forward.1} parent=1 // pred_check
      _
    $region135: #{context_conv_forward.1} parent=1 // pred_check_branch
      %10019 = sbr.rel (0) target = $region137
    $region136: #{context_conv_forward.1} parent=1 // pred_region
      _
    $region137: #{context_conv_forward.1} parent=1 // pred_fallthru
      _
    // Predicated region
    $region138: #{context_conv_forward.1} parent=1 // pred_check
      _
    $region139: #{context_conv_forward.1} parent=1 // pred_check_branch
      %10021 = sbr.rel (0) target = $region141
    $region140: #{context_conv_forward.1} parent=1 // pred_region
      %10022 = dma.done [#allocation4], 32
    $region141: #{context_conv_forward.1} parent=1 // pred_fallthru
      _
    %10023 = vsyncpa [#allocation3], 1
    %10024 = vsyncpa [#allocation6], 1
    %10025 = vsyncpa [#allocation9], 1
    %10026 = vsyncpa [#allocation12], 1
    %10027 = vsyncpa [#allocation15], 1
    %10028 = vsyncpa [#allocation4], 1

</llo_original>
